<compile_context>
chip_gen: v7x
topology: tpu7x:2x2x1
jax: 0.10.0
libtpu: 0.0.40
codegen_flags: <defaults>
</compile_context>

<pallas_src>
import functools

import jax
import jax.numpy as jnp
from jax import lax
from jax.experimental import pallas as pl
from jax.experimental.pallas import tpu as pltpu

_KH, _KW, _STRIDE, _PAD = 7, 7, 2, 3


def _round_up(x, m):
    return (x + m - 1) // m * m


# ----------------------------- Pallas kernel --------------------------------

def _fused_stem_heads_kernel(x_ref, wc_ref, wh_ref, b_ref, o_ref,
                             patches_ref, feat_ref, flat_ref, *,
                             kh, kw, cin, cout, wh_half, ncols):
    """conv1 (7x7 / s2) + NCHW flatten + fused fc/fc_a heads for one image.

    x_ref       : (1, 4, Cin, Lpad) bf16  flattened stride-2 parity phases,
                                          phase p = (row%2)*2 + (col%2)
    wc_ref      : (Cout, kh*kw*Cin) bf16  conv weight, columns = (ki, kj, c)
    wh_ref      : (Cout*ncols, 128) bf16  fused fc|fc_a weight (zero rows at
                                          garbage columns ow >= Wo)
    b_ref       : (1, 128)          f32   fused, N-padded bias
    o_ref       : (1, 1, 128)       f32   head outputs for this image
    patches_ref : (kh*kw*Cin, ncols) bf16 scratch: transposed im2col
    feat_ref    : (Cout, ncols)      bf16 scratch: conv output, channel-major
    flat_ref    : (1, Cout*ncols)    bf16 scratch: NCHW-flattened feature
    """
    # 1) Transposed im2col: every tap is one contiguous lane-dense slice of a
    #    flattened parity phase, sublane-stacked into the patches buffer.
    for ki in range(kh):
        for kj in range(kw):
            p = (ki % 2) * 2 + (kj % 2)
            start = (ki // 2) * wh_half + (kj // 2)
            row = (ki * kw + kj) * cin
            patches_ref[row:row + cin, :] = x_ref[0, p, :, start:start + ncols]

    # 2) conv1 as one MXU dot; output is channel-major (== NCHW flatten order).
    feat_ref[...] = jnp.dot(wc_ref[...], patches_ref[...],
                            preferred_element_type=jnp.float32
                            ).astype(feat_ref.dtype)

    # 3) torch.flatten(feat, 1): relayout through a VMEM scratch row
    #    (guaranteed-lowering ref reads/stores instead of a value reshape).
    for c in range(cout):
        flat_ref[0, c * ncols:(c + 1) * ncols] = feat_ref[c, :]

    # 4) fused fc / fc_a heads: (1, Kf) @ (Kf, 128) + bias, f32 accumulate.
    o_ref[0] = (jnp.dot(flat_ref[...], wh_ref[...],
                        preferred_element_type=jnp.float32) + b_ref[...])


# ------------------------------- Wrappers -----------------------------------

def _phase_flatten(images_nchw):
    """NCHW image -> lane-dense flattened stride-2 parity phases (bf16)."""
    B, Cin, H, W = images_nchw.shape
    Hp, Wp = H + 2 * _PAD, W + 2 * _PAD
    assert Hp % 2 == 0 and Wp % 2 == 0, "stride-2 parity split needs even padded extents"
    Hh, Wh = Hp // 2, Wp // 2
    xp = jnp.pad(images_nchw, ((0, 0), (0, 0), (_PAD, _PAD), (_PAD, _PAD)))
    xph = (xp.reshape(B, Cin, Hh, 2, Wh, 2)
             .transpose(0, 3, 5, 1, 2, 4)            # (B, rp, cp, C, Hh, Wh)
             .reshape(B, 4, Cin, Hh * Wh))
    # Tail pad so the largest tap offset's full-width slice stays in bounds,
    # rounded up to a lane-dense multiple of 128.
    lpad = _round_up(Hh * Wh + (_KW - 1) // 2, 128)
    xph = jnp.pad(xph, ((0, 0), (0, 0), (0, 0), (0, lpad - Hh * Wh)))
    return xph.astype(jnp.bfloat16), Wh, lpad


def resnet_forward(images_nchw, prep, n_fc, n_fc_a):
    """ResNet.forward: feat = conv1(images); flatten; (fc(feat), fc_a(feat))."""
    B, Cin, H, W = images_nchw.shape
    cout, kk = prep["w_conv"].shape
    assert kk == _KH * _KW * Cin
    ho = (H + 2 * _PAD - _KH) // _STRIDE + 1

    x_ph, wh_half, lpad = _phase_flatten(images_nchw)
    ncols = ho * wh_half                               # full-width window cols
    kf, npad = prep["w_heads"].shape
    assert kf == cout * ncols

    kernel = functools.partial(_fused_stem_heads_kernel,
                               kh=_KH, kw=_KW, cin=Cin, cout=cout,
                               wh_half=wh_half, ncols=ncols)

    heads = pl.pallas_call(
        kernel,
        out_shape=jax.ShapeDtypeStruct((B, 1, npad), jnp.float32),
        grid=(B,),
        in_specs=[
            pl.BlockSpec((1, 4, Cin, lpad), lambda b: (b, 0, 0, 0)),
            pl.BlockSpec((cout, kk), lambda b: (0, 0)),
            pl.BlockSpec((kf, npad), lambda b: (0, 0)),
            pl.BlockSpec((1, npad), lambda b: (0, 0)),
        ],
        out_specs=pl.BlockSpec((1, 1, npad), lambda b: (b, 0, 0)),
        scratch_shapes=[
            pltpu.VMEM((kk, ncols), jnp.bfloat16),
            pltpu.VMEM((cout, ncols), jnp.bfloat16),
            pltpu.VMEM((1, cout * ncols), jnp.bfloat16),
        ],
        compiler_params=pltpu.CompilerParams(
            dimension_semantics=("parallel",),        # batch across TCs on v7x
            vmem_limit_bytes=32 * 1024 * 1024),
    )(x_ph, prep["w_conv"], prep["w_heads"], prep["b_heads"])

    heads = heads[:, 0, :]
    return heads[:, :n_fc], heads[:, n_fc:n_fc + n_fc_a]


def init_params(key, image_size=16, n_out=10, n_out_a=5):
    ho = wo = (image_size + 2 * _PAD - _KH) // _STRIDE + 1
    feat_dim = 64 * ho * wo
    k1, k2, k3, k4, k5 = jax.random.split(key, 5)
    return {
        "conv1_w": 0.05 * jax.random.normal(k1, (64, 3, _KH, _KW), jnp.float32),
        "fc_w":    0.02 * jax.random.normal(k2, (n_out, feat_dim), jnp.float32),
        "fc_b":    0.01 * jax.random.normal(k3, (n_out,), jnp.float32),
        "fc_a_w":  0.02 * jax.random.normal(k4, (n_out_a, feat_dim), jnp.float32),
        "fc_a_b":  0.01 * jax.random.normal(k5, (n_out_a,), jnp.float32),
    }


def prepare_params(params, image_size, head_pad=128):
    """One-time layout work; no per-call transposes, no feature permutation."""
    cout, cin, kh, kw = params["conv1_w"].shape
    Hp = image_size + 2 * _PAD
    wh_half = Hp // 2
    ho = wo = (Hp - kh) // _STRIDE + 1
    ncols = ho * wh_half

    # conv1 weight (Cout, Cin, kh, kw) -> (Cout, kh*kw*Cin), columns ordered
    # (ki, kj, c) to match the in-kernel patch row order.
    w_conv = (jnp.transpose(params["conv1_w"], (0, 2, 3, 1))
                .reshape(cout, kh * kw * cin)
                .astype(jnp.bfloat16))

    # Head weights: torch NCHW-flatten rows (c, oh, ow) map directly onto the
    # kernel's channel-major feature; zero rows are inserted where the
    # full-width window produces garbage columns (ow >= Wo).
    def expand(w):
        n = w.shape[0]
        w4 = w.reshape(n, cout, ho, wo)
        w4 = jnp.pad(w4, ((0, 0), (0, 0), (0, 0), (0, wh_half - wo)))
        return w4.reshape(n, cout * ncols)

    w_heads = jnp.concatenate([expand(params["fc_w"]), expand(params["fc_a_w"])],
                              axis=0)
    n_total = w_heads.shape[0]
    assert n_total <= head_pad
    w_heads_t = jnp.pad(w_heads.T,
                        ((0, 0), (0, head_pad - n_total))).astype(jnp.bfloat16)
    # Fused heads must be VMEM-resident at this problem size (see file TODO).
    assert w_heads_t.size * 2 <= 24 * 1024 * 1024, "fused head weight too big for VMEM"

    b_heads = jnp.pad(jnp.concatenate([params["fc_b"], params["fc_a_b"]]),
                      (0, head_pad - n_total)).reshape(1, head_pad).astype(jnp.float32)
    return {"w_conv": w_conv, "w_heads": w_heads_t, "b_heads": b_heads}


if __name__ == "__main__":
    key = jax.random.PRNGKey(0)
    k_img, k_par = jax.random.split(key)

    B, C, H, W = 2, 3, 16, 16                 # images: (batch, 3, img, img)
    N_FC, N_FC_A = 10, 5
    images = jax.random.normal(k_img, (B, C, H, W), jnp.float32)
    params = init_params(k_par, image_size=H, n_out=N_FC, n_out_a=N_FC_A)
    prep = prepare_params(params, image_size=H)

    fwd = jax.jit(resnet_forward, static_argnums=(2, 3))
    out, out_a = fwd(images, prep, N_FC, N_FC_A)
    jax.block_until_ready((out, out_a))

    # Pure-JAX f32 reference of the same math (torch semantics: NCHW flatten).
    ref_feat = lax.conv_general_dilated(
        images, params["conv1_w"], window_strides=(_STRIDE, _STRIDE),
        padding=((_PAD, _PAD), (_PAD, _PAD)),
        dimension_numbers=("NCHW", "OIHW", "NCHW"),
        precision=lax.Precision.HIGHEST)
    ref_flat = ref_feat.reshape(B, -1)
    ref_out = jnp.dot(ref_flat, params["fc_w"].T,
                      precision=lax.Precision.HIGHEST) + params["fc_b"]
    ref_out_a = jnp.dot(ref_flat, params["fc_a_w"].T,
                        precision=lax.Precision.HIGHEST) + params["fc_a_b"]

    # bf16 MXU inputs with f32 accumulation -> loose-ish tolerance.
    assert out.shape == (B, N_FC) and out_a.shape == (B, N_FC_A)
    assert jnp.allclose(out, ref_out, atol=5e-2, rtol=5e-2)
    assert jnp.allclose(out_a, ref_out_a, atol=5e-2, rtol=5e-2)

    print("KERNEL_OK")
</pallas_src>

<mosaic_0001>
module attributes {stable_mosaic.version = 11 : i64} {
  func.func @_fused_stem_heads_kernel(%arg0: i32, %arg1: memref<1x4x3x128xbf16, #tpu.memory_space<vmem>>, %arg2: memref<64x147xbf16, #tpu.memory_space<vmem>>, %arg3: memref<5632x128xbf16, #tpu.memory_space<vmem>>, %arg4: memref<1x128xf32, #tpu.memory_space<vmem>>, %arg5: memref<1x1x128xf32, #tpu.memory_space<vmem>>, %arg6: memref<147x88xbf16, #tpu.memory_space<vmem>>, %arg7: memref<64x88xbf16, #tpu.memory_space<vmem>>, %arg8: memref<1x5632xbf16, #tpu.memory_space<vmem>>) attributes {dimension_semantics = [#tpu.dimension_semantics<parallel>], iteration_bounds = array<i64: 2>, scalar_prefetch = 0 : i64, scratch_operands = 3 : i64, tpu.core_type = #tpu.core_type<tc>, window_params = [{transform_indices = @transform_0, window_bounds = array<i64: 1, 4, 3, 128>}, {pipeline_mode = #tpu.pipeline_mode<synchronous>, transform_indices = @transform_1, window_bounds = array<i64: 64, 147>}, {pipeline_mode = #tpu.pipeline_mode<synchronous>, transform_indices = @transform_2, window_bounds = array<i64: 5632, 128>}, {pipeline_mode = #tpu.pipeline_mode<synchronous>, transform_indices = @transform_3, window_bounds = array<i64: 1, 128>}, {transform_indices = @transform_4, window_bounds = array<i64: 1, 1, 128>}]} {
    %c0 = arith.constant 0 : index
    %c0_0 = arith.constant 0 : index
    %c0_1 = arith.constant 0 : index
    %c0_2 = arith.constant 0 : index
    %0 = vector.load %arg1[%c0, %c0_0, %c0_1, %c0_2] : memref<1x4x3x128xbf16, #tpu.memory_space<vmem>>, vector<1x1x3x88xbf16>
    %1 = vector.shape_cast %0 : vector<1x1x3x88xbf16> to vector<3x88xbf16>
    %c0_3 = arith.constant 0 : index
    %c0_4 = arith.constant 0 : index
    %2 = vector.load %arg6[%c0_3, %c0_4] : memref<147x88xbf16, #tpu.memory_space<vmem>>, vector<3x88xbf16>
    tpu.vector_store %arg6[%c0_3, %c0_4], %1 {strides = array<i32>} : memref<147x88xbf16, #tpu.memory_space<vmem>>, vector<3x88xbf16>,
    %c0_5 = arith.constant 0 : index
    %c1 = arith.constant 1 : index
    %c0_6 = arith.constant 0 : index
    %c0_7 = arith.constant 0 : index
    %3 = vector.load %arg1[%c0_5, %c1, %c0_6, %c0_7] : memref<1x4x3x128xbf16, #tpu.memory_space<vmem>>, vector<1x1x3x88xbf16>
    %4 = vector.shape_cast %3 : vector<1x1x3x88xbf16> to vector<3x88xbf16>
    %c3 = arith.constant 3 : index
    %c0_8 = arith.constant 0 : index
    %5 = vector.load %arg6[%c3, %c0_8] : memref<147x88xbf16, #tpu.memory_space<vmem>>, vector<3x88xbf16>
    tpu.vector_store %arg6[%c3, %c0_8], %4 {strides = array<i32>} : memref<147x88xbf16, #tpu.memory_space<vmem>>, vector<3x88xbf16>,
    %c0_9 = arith.constant 0 : index
    %c0_10 = arith.constant 0 : index
    %c0_11 = arith.constant 0 : index
    %c1_12 = arith.constant 1 : index
    %6 = vector.load %arg1[%c0_9, %c0_10, %c0_11, %c1_12] : memref<1x4x3x128xbf16, #tpu.memory_space<vmem>>, vector<1x1x3x88xbf16>
    %7 = vector.shape_cast %6 : vector<1x1x3x88xbf16> to vector<3x88xbf16>
    %c6 = arith.constant 6 : index
    %c0_13 = arith.constant 0 : index
    %8 = vector.load %arg6[%c6, %c0_13] : memref<147x88xbf16, #tpu.memory_space<vmem>>, vector<3x88xbf16>
    tpu.vector_store %arg6[%c6, %c0_13], %7 {strides = array<i32>} : memref<147x88xbf16, #tpu.memory_space<vmem>>, vector<3x88xbf16>,
    %c0_14 = arith.constant 0 : index
    %c1_15 = arith.constant 1 : index
    %c0_16 = arith.constant 0 : index
    %c1_17 = arith.constant 1 : index
    %9 = vector.load %arg1[%c0_14, %c1_15, %c0_16, %c1_17] : memref<1x4x3x128xbf16, #tpu.memory_space<vmem>>, vector<1x1x3x88xbf16>
    %10 = vector.shape_cast %9 : vector<1x1x3x88xbf16> to vector<3x88xbf16>
    %c9 = arith.constant 9 : index
    %c0_18 = arith.constant 0 : index
    %11 = vector.load %arg6[%c9, %c0_18] : memref<147x88xbf16, #tpu.memory_space<vmem>>, vector<3x88xbf16>
    tpu.vector_store %arg6[%c9, %c0_18], %10 {strides = array<i32>} : memref<147x88xbf16, #tpu.memory_space<vmem>>, vector<3x88xbf16>,
    %c0_19 = arith.constant 0 : index
    %c0_20 = arith.constant 0 : index
    %c0_21 = arith.constant 0 : index
    %c2 = arith.constant 2 : index
    %12 = vector.load %arg1[%c0_19, %c0_20, %c0_21, %c2] : memref<1x4x3x128xbf16, #tpu.memory_space<vmem>>, vector<1x1x3x88xbf16>
    %13 = vector.shape_cast %12 : vector<1x1x3x88xbf16> to vector<3x88xbf16>
    %c12 = arith.constant 12 : index
    %c0_22 = arith.constant 0 : index
    %14 = vector.load %arg6[%c12, %c0_22] : memref<147x88xbf16, #tpu.memory_space<vmem>>, vector<3x88xbf16>
    tpu.vector_store %arg6[%c12, %c0_22], %13 {strides = array<i32>} : memref<147x88xbf16, #tpu.memory_space<vmem>>, vector<3x88xbf16>,
    %c0_23 = arith.constant 0 : index
    %c1_24 = arith.constant 1 : index
    %c0_25 = arith.constant 0 : index
    %c2_26 = arith.constant 2 : index
    %15 = vector.load %arg1[%c0_23, %c1_24, %c0_25, %c2_26] : memref<1x4x3x128xbf16, #tpu.memory_space<vmem>>, vector<1x1x3x88xbf16>
    %16 = vector.shape_cast %15 : vector<1x1x3x88xbf16> to vector<3x88xbf16>
    %c15 = arith.constant 15 : index
    %c0_27 = arith.constant 0 : index
    %17 = vector.load %arg6[%c15, %c0_27] : memref<147x88xbf16, #tpu.memory_space<vmem>>, vector<3x88xbf16>
    tpu.vector_store %arg6[%c15, %c0_27], %16 {strides = array<i32>} : memref<147x88xbf16, #tpu.memory_space<vmem>>, vector<3x88xbf16>,
    %c0_28 = arith.constant 0 : index
    %c0_29 = arith.constant 0 : index
    %c0_30 = arith.constant 0 : index
    %c3_31 = arith.constant 3 : index
    %18 = vector.load %arg1[%c0_28, %c0_29, %c0_30, %c3_31] : memref<1x4x3x128xbf16, #tpu.memory_space<vmem>>, vector<1x1x3x88xbf16>
    %19 = vector.shape_cast %18 : vector<1x1x3x88xbf16> to vector<3x88xbf16>
    %c18 = arith.constant 18 : index
    %c0_32 = arith.constant 0 : index
    %20 = vector.load %arg6[%c18, %c0_32] : memref<147x88xbf16, #tpu.memory_space<vmem>>, vector<3x88xbf16>
    tpu.vector_store %arg6[%c18, %c0_32], %19 {strides = array<i32>} : memref<147x88xbf16, #tpu.memory_space<vmem>>, vector<3x88xbf16>,
    %c0_33 = arith.constant 0 : index
    %c2_34 = arith.constant 2 : index
    %c0_35 = arith.constant 0 : index
    %c0_36 = arith.constant 0 : index
    %21 = vector.load %arg1[%c0_33, %c2_34, %c0_35, %c0_36] : memref<1x4x3x128xbf16, #tpu.memory_space<vmem>>, vector<1x1x3x88xbf16>
    %22 = vector.shape_cast %21 : vector<1x1x3x88xbf16> to vector<3x88xbf16>
    %c21 = arith.constant 21 : index
    %c0_37 = arith.constant 0 : index
    %23 = vector.load %arg6[%c21, %c0_37] : memref<147x88xbf16, #tpu.memory_space<vmem>>, vector<3x88xbf16>
    tpu.vector_store %arg6[%c21, %c0_37], %22 {strides = array<i32>} : memref<147x88xbf16, #tpu.memory_space<vmem>>, vector<3x88xbf16>,
    %c0_38 = arith.constant 0 : index
    %c3_39 = arith.constant 3 : index
    %c0_40 = arith.constant 0 : index
    %c0_41 = arith.constant 0 : index
    %24 = vector.load %arg1[%c0_38, %c3_39, %c0_40, %c0_41] : memref<1x4x3x128xbf16, #tpu.memory_space<vmem>>, vector<1x1x3x88xbf16>
    %25 = vector.shape_cast %24 : vector<1x1x3x88xbf16> to vector<3x88xbf16>
    %c24 = arith.constant 24 : index
    %c0_42 = arith.constant 0 : index
    %26 = vector.load %arg6[%c24, %c0_42] : memref<147x88xbf16, #tpu.memory_space<vmem>>, vector<3x88xbf16>
    tpu.vector_store %arg6[%c24, %c0_42], %25 {strides = array<i32>} : memref<147x88xbf16, #tpu.memory_space<vmem>>, vector<3x88xbf16>,
    %c0_43 = arith.constant 0 : index
    %c2_44 = arith.constant 2 : index
    %c0_45 = arith.constant 0 : index
    %c1_46 = arith.constant 1 : index
    %27 = vector.load %arg1[%c0_43, %c2_44, %c0_45, %c1_46] : memref<1x4x3x128xbf16, #tpu.memory_space<vmem>>, vector<1x1x3x88xbf16>
    %28 = vector.shape_cast %27 : vector<1x1x3x88xbf16> to vector<3x88xbf16>
    %c27 = arith.constant 27 : index
    %c0_47 = arith.constant 0 : index
    %29 = vector.load %arg6[%c27, %c0_47] : memref<147x88xbf16, #tpu.memory_space<vmem>>, vector<3x88xbf16>
    tpu.vector_store %arg6[%c27, %c0_47], %28 {strides = array<i32>} : memref<147x88xbf16, #tpu.memory_space<vmem>>, vector<3x88xbf16>,
    %c0_48 = arith.constant 0 : index
    %c3_49 = arith.constant 3 : index
    %c0_50 = arith.constant 0 : index
    %c1_51 = arith.constant 1 : index
    %30 = vector.load %arg1[%c0_48, %c3_49, %c0_50, %c1_51] : memref<1x4x3x128xbf16, #tpu.memory_space<vmem>>, vector<1x1x3x88xbf16>
    %31 = vector.shape_cast %30 : vector<1x1x3x88xbf16> to vector<3x88xbf16>
    %c30 = arith.constant 30 : index
    %c0_52 = arith.constant 0 : index
    %32 = vector.load %arg6[%c30, %c0_52] : memref<147x88xbf16, #tpu.memory_space<vmem>>, vector<3x88xbf16>
    tpu.vector_store %arg6[%c30, %c0_52], %31 {strides = array<i32>} : memref<147x88xbf16, #tpu.memory_space<vmem>>, vector<3x88xbf16>,
    %c0_53 = arith.constant 0 : index
    %c2_54 = arith.constant 2 : index
    %c0_55 = arith.constant 0 : index
    %c2_56 = arith.constant 2 : index
    %33 = vector.load %arg1[%c0_53, %c2_54, %c0_55, %c2_56] : memref<1x4x3x128xbf16, #tpu.memory_space<vmem>>, vector<1x1x3x88xbf16>
    %34 = vector.shape_cast %33 : vector<1x1x3x88xbf16> to vector<3x88xbf16>
    %c33 = arith.constant 33 : index
    %c0_57 = arith.constant 0 : index
    %35 = vector.load %arg6[%c33, %c0_57] : memref<147x88xbf16, #tpu.memory_space<vmem>>, vector<3x88xbf16>
    tpu.vector_store %arg6[%c33, %c0_57], %34 {strides = array<i32>} : memref<147x88xbf16, #tpu.memory_space<vmem>>, vector<3x88xbf16>,
    %c0_58 = arith.constant 0 : index
    %c3_59 = arith.constant 3 : index
    %c0_60 = arith.constant 0 : index
    %c2_61 = arith.constant 2 : index
    %36 = vector.load %arg1[%c0_58, %c3_59, %c0_60, %c2_61] : memref<1x4x3x128xbf16, #tpu.memory_space<vmem>>, vector<1x1x3x88xbf16>
    %37 = vector.shape_cast %36 : vector<1x1x3x88xbf16> to vector<3x88xbf16>
    %c36 = arith.constant 36 : index
    %c0_62 = arith.constant 0 : index
    %38 = vector.load %arg6[%c36, %c0_62] : memref<147x88xbf16, #tpu.memory_space<vmem>>, vector<3x88xbf16>
    tpu.vector_store %arg6[%c36, %c0_62], %37 {strides = array<i32>} : memref<147x88xbf16, #tpu.memory_space<vmem>>, vector<3x88xbf16>,
    %c0_63 = arith.constant 0 : index
    %c2_64 = arith.constant 2 : index
    %c0_65 = arith.constant 0 : index
    %c3_66 = arith.constant 3 : index
    %39 = vector.load %arg1[%c0_63, %c2_64, %c0_65, %c3_66] : memref<1x4x3x128xbf16, #tpu.memory_space<vmem>>, vector<1x1x3x88xbf16>
    %40 = vector.shape_cast %39 : vector<1x1x3x88xbf16> to vector<3x88xbf16>
    %c39 = arith.constant 39 : index
    %c0_67 = arith.constant 0 : index
    %41 = vector.load %arg6[%c39, %c0_67] : memref<147x88xbf16, #tpu.memory_space<vmem>>, vector<3x88xbf16>
    tpu.vector_store %arg6[%c39, %c0_67], %40 {strides = array<i32>} : memref<147x88xbf16, #tpu.memory_space<vmem>>, vector<3x88xbf16>,
    %c0_68 = arith.constant 0 : index
    %c0_69 = arith.constant 0 : index
    %c0_70 = arith.constant 0 : index
    %c11 = arith.constant 11 : index
    %42 = vector.load %arg1[%c0_68, %c0_69, %c0_70, %c11] : memref<1x4x3x128xbf16, #tpu.memory_space<vmem>>, vector<1x1x3x88xbf16>
    %43 = vector.shape_cast %42 : vector<1x1x3x88xbf16> to vector<3x88xbf16>
    %c42 = arith.constant 42 : index
    %c0_71 = arith.constant 0 : index
    %44 = vector.load %arg6[%c42, %c0_71] : memref<147x88xbf16, #tpu.memory_space<vmem>>, vector<3x88xbf16>
    tpu.vector_store %arg6[%c42, %c0_71], %43 {strides = array<i32>} : memref<147x88xbf16, #tpu.memory_space<vmem>>, vector<3x88xbf16>,
    %c0_72 = arith.constant 0 : index
    %c1_73 = arith.constant 1 : index
    %c0_74 = arith.constant 0 : index
    %c11_75 = arith.constant 11 : index
    %45 = vector.load %arg1[%c0_72, %c1_73, %c0_74, %c11_75] : memref<1x4x3x128xbf16, #tpu.memory_space<vmem>>, vector<1x1x3x88xbf16>
    %46 = vector.shape_cast %45 : vector<1x1x3x88xbf16> to vector<3x88xbf16>
    %c45 = arith.constant 45 : index
    %c0_76 = arith.constant 0 : index
    %47 = vector.load %arg6[%c45, %c0_76] : memref<147x88xbf16, #tpu.memory_space<vmem>>, vector<3x88xbf16>
    tpu.vector_store %arg6[%c45, %c0_76], %46 {strides = array<i32>} : memref<147x88xbf16, #tpu.memory_space<vmem>>, vector<3x88xbf16>,
    %c0_77 = arith.constant 0 : index
    %c0_78 = arith.constant 0 : index
    %c0_79 = arith.constant 0 : index
    %c12_80 = arith.constant 12 : index
    %48 = vector.load %arg1[%c0_77, %c0_78, %c0_79, %c12_80] : memref<1x4x3x128xbf16, #tpu.memory_space<vmem>>, vector<1x1x3x88xbf16>
    %49 = vector.shape_cast %48 : vector<1x1x3x88xbf16> to vector<3x88xbf16>
    %c48 = arith.constant 48 : index
    %c0_81 = arith.constant 0 : index
    %50 = vector.load %arg6[%c48, %c0_81] : memref<147x88xbf16, #tpu.memory_space<vmem>>, vector<3x88xbf16>
    tpu.vector_store %arg6[%c48, %c0_81], %49 {strides = array<i32>} : memref<147x88xbf16, #tpu.memory_space<vmem>>, vector<3x88xbf16>,
    %c0_82 = arith.constant 0 : index
    %c1_83 = arith.constant 1 : index
    %c0_84 = arith.constant 0 : index
    %c12_85 = arith.constant 12 : index
    %51 = vector.load %arg1[%c0_82, %c1_83, %c0_84, %c12_85] : memref<1x4x3x128xbf16, #tpu.memory_space<vmem>>, vector<1x1x3x88xbf16>
    %52 = vector.shape_cast %51 : vector<1x1x3x88xbf16> to vector<3x88xbf16>
    %c51 = arith.constant 51 : index
    %c0_86 = arith.constant 0 : index
    %53 = vector.load %arg6[%c51, %c0_86] : memref<147x88xbf16, #tpu.memory_space<vmem>>, vector<3x88xbf16>
    tpu.vector_store %arg6[%c51, %c0_86], %52 {strides = array<i32>} : memref<147x88xbf16, #tpu.memory_space<vmem>>, vector<3x88xbf16>,
    %c0_87 = arith.constant 0 : index
    %c0_88 = arith.constant 0 : index
    %c0_89 = arith.constant 0 : index
    %c13 = arith.constant 13 : index
    %54 = vector.load %arg1[%c0_87, %c0_88, %c0_89, %c13] : memref<1x4x3x128xbf16, #tpu.memory_space<vmem>>, vector<1x1x3x88xbf16>
    %55 = vector.shape_cast %54 : vector<1x1x3x88xbf16> to vector<3x88xbf16>
    %c54 = arith.constant 54 : index
    %c0_90 = arith.constant 0 : index
    %56 = vector.load %arg6[%c54, %c0_90] : memref<147x88xbf16, #tpu.memory_space<vmem>>, vector<3x88xbf16>
    tpu.vector_store %arg6[%c54, %c0_90], %55 {strides = array<i32>} : memref<147x88xbf16, #tpu.memory_space<vmem>>, vector<3x88xbf16>,
    %c0_91 = arith.constant 0 : index
    %c1_92 = arith.constant 1 : index
    %c0_93 = arith.constant 0 : index
    %c13_94 = arith.constant 13 : index
    %57 = vector.load %arg1[%c0_91, %c1_92, %c0_93, %c13_94] : memref<1x4x3x128xbf16, #tpu.memory_space<vmem>>, vector<1x1x3x88xbf16>
    %58 = vector.shape_cast %57 : vector<1x1x3x88xbf16> to vector<3x88xbf16>
    %c57 = arith.constant 57 : index
    %c0_95 = arith.constant 0 : index
    %59 = vector.load %arg6[%c57, %c0_95] : memref<147x88xbf16, #tpu.memory_space<vmem>>, vector<3x88xbf16>
    tpu.vector_store %arg6[%c57, %c0_95], %58 {strides = array<i32>} : memref<147x88xbf16, #tpu.memory_space<vmem>>, vector<3x88xbf16>,
    %c0_96 = arith.constant 0 : index
    %c0_97 = arith.constant 0 : index
    %c0_98 = arith.constant 0 : index
    %c14 = arith.constant 14 : index
    %60 = vector.load %arg1[%c0_96, %c0_97, %c0_98, %c14] : memref<1x4x3x128xbf16, #tpu.memory_space<vmem>>, vector<1x1x3x88xbf16>
    %61 = vector.shape_cast %60 : vector<1x1x3x88xbf16> to vector<3x88xbf16>
    %c60 = arith.constant 60 : index
    %c0_99 = arith.constant 0 : index
    %62 = vector.load %arg6[%c60, %c0_99] : memref<147x88xbf16, #tpu.memory_space<vmem>>, vector<3x88xbf16>
    tpu.vector_store %arg6[%c60, %c0_99], %61 {strides = array<i32>} : memref<147x88xbf16, #tpu.memory_space<vmem>>, vector<3x88xbf16>,
    %c0_100 = arith.constant 0 : index
    %c2_101 = arith.constant 2 : index
    %c0_102 = arith.constant 0 : index
    %c11_103 = arith.constant 11 : index
    %63 = vector.load %arg1[%c0_100, %c2_101, %c0_102, %c11_103] : memref<1x4x3x128xbf16, #tpu.memory_space<vmem>>, vector<1x1x3x88xbf16>
    %64 = vector.shape_cast %63 : vector<1x1x3x88xbf16> to vector<3x88xbf16>
    %c63 = arith.constant 63 : index
    %c0_104 = arith.constant 0 : index
    %65 = vector.load %arg6[%c63, %c0_104] : memref<147x88xbf16, #tpu.memory_space<vmem>>, vector<3x88xbf16>
    tpu.vector_store %arg6[%c63, %c0_104], %64 {strides = array<i32>} : memref<147x88xbf16, #tpu.memory_space<vmem>>, vector<3x88xbf16>,
    %c0_105 = arith.constant 0 : index
    %c3_106 = arith.constant 3 : index
    %c0_107 = arith.constant 0 : index
    %c11_108 = arith.constant 11 : index
    %66 = vector.load %arg1[%c0_105, %c3_106, %c0_107, %c11_108] : memref<1x4x3x128xbf16, #tpu.memory_space<vmem>>, vector<1x1x3x88xbf16>
    %67 = vector.shape_cast %66 : vector<1x1x3x88xbf16> to vector<3x88xbf16>
    %c66 = arith.constant 66 : index
    %c0_109 = arith.constant 0 : index
    %68 = vector.load %arg6[%c66, %c0_109] : memref<147x88xbf16, #tpu.memory_space<vmem>>, vector<3x88xbf16>
    tpu.vector_store %arg6[%c66, %c0_109], %67 {strides = array<i32>} : memref<147x88xbf16, #tpu.memory_space<vmem>>, vector<3x88xbf16>,
    %c0_110 = arith.constant 0 : index
    %c2_111 = arith.constant 2 : index
    %c0_112 = arith.constant 0 : index
    %c12_113 = arith.constant 12 : index
    %69 = vector.load %arg1[%c0_110, %c2_111, %c0_112, %c12_113] : memref<1x4x3x128xbf16, #tpu.memory_space<vmem>>, vector<1x1x3x88xbf16>
    %70 = vector.shape_cast %69 : vector<1x1x3x88xbf16> to vector<3x88xbf16>
    %c69 = arith.constant 69 : index
    %c0_114 = arith.constant 0 : index
    %71 = vector.load %arg6[%c69, %c0_114] : memref<147x88xbf16, #tpu.memory_space<vmem>>, vector<3x88xbf16>
    tpu.vector_store %arg6[%c69, %c0_114], %70 {strides = array<i32>} : memref<147x88xbf16, #tpu.memory_space<vmem>>, vector<3x88xbf16>,
    %c0_115 = arith.constant 0 : index
    %c3_116 = arith.constant 3 : index
    %c0_117 = arith.constant 0 : index
    %c12_118 = arith.constant 12 : index
    %72 = vector.load %arg1[%c0_115, %c3_116, %c0_117, %c12_118] : memref<1x4x3x128xbf16, #tpu.memory_space<vmem>>, vector<1x1x3x88xbf16>
    %73 = vector.shape_cast %72 : vector<1x1x3x88xbf16> to vector<3x88xbf16>
    %c72 = arith.constant 72 : index
    %c0_119 = arith.constant 0 : index
    %74 = vector.load %arg6[%c72, %c0_119] : memref<147x88xbf16, #tpu.memory_space<vmem>>, vector<3x88xbf16>
    tpu.vector_store %arg6[%c72, %c0_119], %73 {strides = array<i32>} : memref<147x88xbf16, #tpu.memory_space<vmem>>, vector<3x88xbf16>,
    %c0_120 = arith.constant 0 : index
    %c2_121 = arith.constant 2 : index
    %c0_122 = arith.constant 0 : index
    %c13_123 = arith.constant 13 : index
    %75 = vector.load %arg1[%c0_120, %c2_121, %c0_122, %c13_123] : memref<1x4x3x128xbf16, #tpu.memory_space<vmem>>, vector<1x1x3x88xbf16>
    %76 = vector.shape_cast %75 : vector<1x1x3x88xbf16> to vector<3x88xbf16>
    %c75 = arith.constant 75 : index
    %c0_124 = arith.constant 0 : index
    %77 = vector.load %arg6[%c75, %c0_124] : memref<147x88xbf16, #tpu.memory_space<vmem>>, vector<3x88xbf16>
    tpu.vector_store %arg6[%c75, %c0_124], %76 {strides = array<i32>} : memref<147x88xbf16, #tpu.memory_space<vmem>>, vector<3x88xbf16>,
    %c0_125 = arith.constant 0 : index
    %c3_126 = arith.constant 3 : index
    %c0_127 = arith.constant 0 : index
    %c13_128 = arith.constant 13 : index
    %78 = vector.load %arg1[%c0_125, %c3_126, %c0_127, %c13_128] : memref<1x4x3x128xbf16, #tpu.memory_space<vmem>>, vector<1x1x3x88xbf16>
    %79 = vector.shape_cast %78 : vector<1x1x3x88xbf16> to vector<3x88xbf16>
    %c78 = arith.constant 78 : index
    %c0_129 = arith.constant 0 : index
    %80 = vector.load %arg6[%c78, %c0_129] : memref<147x88xbf16, #tpu.memory_space<vmem>>, vector<3x88xbf16>
    tpu.vector_store %arg6[%c78, %c0_129], %79 {strides = array<i32>} : memref<147x88xbf16, #tpu.memory_space<vmem>>, vector<3x88xbf16>,
    %c0_130 = arith.constant 0 : index
    %c2_131 = arith.constant 2 : index
    %c0_132 = arith.constant 0 : index
    %c14_133 = arith.constant 14 : index
    %81 = vector.load %arg1[%c0_130, %c2_131, %c0_132, %c14_133] : memref<1x4x3x128xbf16, #tpu.memory_space<vmem>>, vector<1x1x3x88xbf16>
    %82 = vector.shape_cast %81 : vector<1x1x3x88xbf16> to vector<3x88xbf16>
    %c81 = arith.constant 81 : index
    %c0_134 = arith.constant 0 : index
    %83 = vector.load %arg6[%c81, %c0_134] : memref<147x88xbf16, #tpu.memory_space<vmem>>, vector<3x88xbf16>
    tpu.vector_store %arg6[%c81, %c0_134], %82 {strides = array<i32>} : memref<147x88xbf16, #tpu.memory_space<vmem>>, vector<3x88xbf16>,
    %c0_135 = arith.constant 0 : index
    %c0_136 = arith.constant 0 : index
    %c0_137 = arith.constant 0 : index
    %c22 = arith.constant 22 : index
    %84 = vector.load %arg1[%c0_135, %c0_136, %c0_137, %c22] : memref<1x4x3x128xbf16, #tpu.memory_space<vmem>>, vector<1x1x3x88xbf16>
    %85 = vector.shape_cast %84 : vector<1x1x3x88xbf16> to vector<3x88xbf16>
    %c84 = arith.constant 84 : index
    %c0_138 = arith.constant 0 : index
    %86 = vector.load %arg6[%c84, %c0_138] : memref<147x88xbf16, #tpu.memory_space<vmem>>, vector<3x88xbf16>
    tpu.vector_store %arg6[%c84, %c0_138], %85 {strides = array<i32>} : memref<147x88xbf16, #tpu.memory_space<vmem>>, vector<3x88xbf16>,
    %c0_139 = arith.constant 0 : index
    %c1_140 = arith.constant 1 : index
    %c0_141 = arith.constant 0 : index
    %c22_142 = arith.constant 22 : index
    %87 = vector.load %arg1[%c0_139, %c1_140, %c0_141, %c22_142] : memref<1x4x3x128xbf16, #tpu.memory_space<vmem>>, vector<1x1x3x88xbf16>
    %88 = vector.shape_cast %87 : vector<1x1x3x88xbf16> to vector<3x88xbf16>
    %c87 = arith.constant 87 : index
    %c0_143 = arith.constant 0 : index
    %89 = vector.load %arg6[%c87, %c0_143] : memref<147x88xbf16, #tpu.memory_space<vmem>>, vector<3x88xbf16>
    tpu.vector_store %arg6[%c87, %c0_143], %88 {strides = array<i32>} : memref<147x88xbf16, #tpu.memory_space<vmem>>, vector<3x88xbf16>,
    %c0_144 = arith.constant 0 : index
    %c0_145 = arith.constant 0 : index
    %c0_146 = arith.constant 0 : index
    %c23 = arith.constant 23 : index
    %90 = vector.load %arg1[%c0_144, %c0_145, %c0_146, %c23] : memref<1x4x3x128xbf16, #tpu.memory_space<vmem>>, vector<1x1x3x88xbf16>
    %91 = vector.shape_cast %90 : vector<1x1x3x88xbf16> to vector<3x88xbf16>
    %c90 = arith.constant 90 : index
    %c0_147 = arith.constant 0 : index
    %92 = vector.load %arg6[%c90, %c0_147] : memref<147x88xbf16, #tpu.memory_space<vmem>>, vector<3x88xbf16>
    tpu.vector_store %arg6[%c90, %c0_147], %91 {strides = array<i32>} : memref<147x88xbf16, #tpu.memory_space<vmem>>, vector<3x88xbf16>,
    %c0_148 = arith.constant 0 : index
    %c1_149 = arith.constant 1 : index
    %c0_150 = arith.constant 0 : index
    %c23_151 = arith.constant 23 : index
    %93 = vector.load %arg1[%c0_148, %c1_149, %c0_150, %c23_151] : memref<1x4x3x128xbf16, #tpu.memory_space<vmem>>, vector<1x1x3x88xbf16>
    %94 = vector.shape_cast %93 : vector<1x1x3x88xbf16> to vector<3x88xbf16>
    %c93 = arith.constant 93 : index
    %c0_152 = arith.constant 0 : index
    %95 = vector.load %arg6[%c93, %c0_152] : memref<147x88xbf16, #tpu.memory_space<vmem>>, vector<3x88xbf16>
    tpu.vector_store %arg6[%c93, %c0_152], %94 {strides = array<i32>} : memref<147x88xbf16, #tpu.memory_space<vmem>>, vector<3x88xbf16>,
    %c0_153 = arith.constant 0 : index
    %c0_154 = arith.constant 0 : index
    %c0_155 = arith.constant 0 : index
    %c24_156 = arith.constant 24 : index
    %96 = vector.load %arg1[%c0_153, %c0_154, %c0_155, %c24_156] : memref<1x4x3x128xbf16, #tpu.memory_space<vmem>>, vector<1x1x3x88xbf16>
    %97 = vector.shape_cast %96 : vector<1x1x3x88xbf16> to vector<3x88xbf16>
    %c96 = arith.constant 96 : index
    %c0_157 = arith.constant 0 : index
    %98 = vector.load %arg6[%c96, %c0_157] : memref<147x88xbf16, #tpu.memory_space<vmem>>, vector<3x88xbf16>
    tpu.vector_store %arg6[%c96, %c0_157], %97 {strides = array<i32>} : memref<147x88xbf16, #tpu.memory_space<vmem>>, vector<3x88xbf16>,
    %c0_158 = arith.constant 0 : index
    %c1_159 = arith.constant 1 : index
    %c0_160 = arith.constant 0 : index
    %c24_161 = arith.constant 24 : index
    %99 = vector.load %arg1[%c0_158, %c1_159, %c0_160, %c24_161] : memref<1x4x3x128xbf16, #tpu.memory_space<vmem>>, vector<1x1x3x88xbf16>
    %100 = vector.shape_cast %99 : vector<1x1x3x88xbf16> to vector<3x88xbf16>
    %c99 = arith.constant 99 : index
    %c0_162 = arith.constant 0 : index
    %101 = vector.load %arg6[%c99, %c0_162] : memref<147x88xbf16, #tpu.memory_space<vmem>>, vector<3x88xbf16>
    tpu.vector_store %arg6[%c99, %c0_162], %100 {strides = array<i32>} : memref<147x88xbf16, #tpu.memory_space<vmem>>, vector<3x88xbf16>,
    %c0_163 = arith.constant 0 : index
    %c0_164 = arith.constant 0 : index
    %c0_165 = arith.constant 0 : index
    %c25 = arith.constant 25 : index
    %102 = vector.load %arg1[%c0_163, %c0_164, %c0_165, %c25] : memref<1x4x3x128xbf16, #tpu.memory_space<vmem>>, vector<1x1x3x88xbf16>
    %103 = vector.shape_cast %102 : vector<1x1x3x88xbf16> to vector<3x88xbf16>
    %c102 = arith.constant 102 : index
    %c0_166 = arith.constant 0 : index
    %104 = vector.load %arg6[%c102, %c0_166] : memref<147x88xbf16, #tpu.memory_space<vmem>>, vector<3x88xbf16>
    tpu.vector_store %arg6[%c102, %c0_166], %103 {strides = array<i32>} : memref<147x88xbf16, #tpu.memory_space<vmem>>, vector<3x88xbf16>,
    %c0_167 = arith.constant 0 : index
    %c2_168 = arith.constant 2 : index
    %c0_169 = arith.constant 0 : index
    %c22_170 = arith.constant 22 : index
    %105 = vector.load %arg1[%c0_167, %c2_168, %c0_169, %c22_170] : memref<1x4x3x128xbf16, #tpu.memory_space<vmem>>, vector<1x1x3x88xbf16>
    %106 = vector.shape_cast %105 : vector<1x1x3x88xbf16> to vector<3x88xbf16>
    %c105 = arith.constant 105 : index
    %c0_171 = arith.constant 0 : index
    %107 = vector.load %arg6[%c105, %c0_171] : memref<147x88xbf16, #tpu.memory_space<vmem>>, vector<3x88xbf16>
    tpu.vector_store %arg6[%c105, %c0_171], %106 {strides = array<i32>} : memref<147x88xbf16, #tpu.memory_space<vmem>>, vector<3x88xbf16>,
    %c0_172 = arith.constant 0 : index
    %c3_173 = arith.constant 3 : index
    %c0_174 = arith.constant 0 : index
    %c22_175 = arith.constant 22 : index
    %108 = vector.load %arg1[%c0_172, %c3_173, %c0_174, %c22_175] : memref<1x4x3x128xbf16, #tpu.memory_space<vmem>>, vector<1x1x3x88xbf16>
    %109 = vector.shape_cast %108 : vector<1x1x3x88xbf16> to vector<3x88xbf16>
    %c108 = arith.constant 108 : index
    %c0_176 = arith.constant 0 : index
    %110 = vector.load %arg6[%c108, %c0_176] : memref<147x88xbf16, #tpu.memory_space<vmem>>, vector<3x88xbf16>
    tpu.vector_store %arg6[%c108, %c0_176], %109 {strides = array<i32>} : memref<147x88xbf16, #tpu.memory_space<vmem>>, vector<3x88xbf16>,
    %c0_177 = arith.constant 0 : index
    %c2_178 = arith.constant 2 : index
    %c0_179 = arith.constant 0 : index
    %c23_180 = arith.constant 23 : index
    %111 = vector.load %arg1[%c0_177, %c2_178, %c0_179, %c23_180] : memref<1x4x3x128xbf16, #tpu.memory_space<vmem>>, vector<1x1x3x88xbf16>
    %112 = vector.shape_cast %111 : vector<1x1x3x88xbf16> to vector<3x88xbf16>
    %c111 = arith.constant 111 : index
    %c0_181 = arith.constant 0 : index
    %113 = vector.load %arg6[%c111, %c0_181] : memref<147x88xbf16, #tpu.memory_space<vmem>>, vector<3x88xbf16>
    tpu.vector_store %arg6[%c111, %c0_181], %112 {strides = array<i32>} : memref<147x88xbf16, #tpu.memory_space<vmem>>, vector<3x88xbf16>,
    %c0_182 = arith.constant 0 : index
    %c3_183 = arith.constant 3 : index
    %c0_184 = arith.constant 0 : index
    %c23_185 = arith.constant 23 : index
    %114 = vector.load %arg1[%c0_182, %c3_183, %c0_184, %c23_185] : memref<1x4x3x128xbf16, #tpu.memory_space<vmem>>, vector<1x1x3x88xbf16>
    %115 = vector.shape_cast %114 : vector<1x1x3x88xbf16> to vector<3x88xbf16>
    %c114 = arith.constant 114 : index
    %c0_186 = arith.constant 0 : index
    %116 = vector.load %arg6[%c114, %c0_186] : memref<147x88xbf16, #tpu.memory_space<vmem>>, vector<3x88xbf16>
    tpu.vector_store %arg6[%c114, %c0_186], %115 {strides = array<i32>} : memref<147x88xbf16, #tpu.memory_space<vmem>>, vector<3x88xbf16>,
    %c0_187 = arith.constant 0 : index
    %c2_188 = arith.constant 2 : index
    %c0_189 = arith.constant 0 : index
    %c24_190 = arith.constant 24 : index
    %117 = vector.load %arg1[%c0_187, %c2_188, %c0_189, %c24_190] : memref<1x4x3x128xbf16, #tpu.memory_space<vmem>>, vector<1x1x3x88xbf16>
    %118 = vector.shape_cast %117 : vector<1x1x3x88xbf16> to vector<3x88xbf16>
    %c117 = arith.constant 117 : index
    %c0_191 = arith.constant 0 : index
    %119 = vector.load %arg6[%c117, %c0_191] : memref<147x88xbf16, #tpu.memory_space<vmem>>, vector<3x88xbf16>
    tpu.vector_store %arg6[%c117, %c0_191], %118 {strides = array<i32>} : memref<147x88xbf16, #tpu.memory_space<vmem>>, vector<3x88xbf16>,
    %c0_192 = arith.constant 0 : index
    %c3_193 = arith.constant 3 : index
    %c0_194 = arith.constant 0 : index
    %c24_195 = arith.constant 24 : index
    %120 = vector.load %arg1[%c0_192, %c3_193, %c0_194, %c24_195] : memref<1x4x3x128xbf16, #tpu.memory_space<vmem>>, vector<1x1x3x88xbf16>
    %121 = vector.shape_cast %120 : vector<1x1x3x88xbf16> to vector<3x88xbf16>
    %c120 = arith.constant 120 : index
    %c0_196 = arith.constant 0 : index
    %122 = vector.load %arg6[%c120, %c0_196] : memref<147x88xbf16, #tpu.memory_space<vmem>>, vector<3x88xbf16>
    tpu.vector_store %arg6[%c120, %c0_196], %121 {strides = array<i32>} : memref<147x88xbf16, #tpu.memory_space<vmem>>, vector<3x88xbf16>,
    %c0_197 = arith.constant 0 : index
    %c2_198 = arith.constant 2 : index
    %c0_199 = arith.constant 0 : index
    %c25_200 = arith.constant 25 : index
    %123 = vector.load %arg1[%c0_197, %c2_198, %c0_199, %c25_200] : memref<1x4x3x128xbf16, #tpu.memory_space<vmem>>, vector<1x1x3x88xbf16>
    %124 = vector.shape_cast %123 : vector<1x1x3x88xbf16> to vector<3x88xbf16>
    %c123 = arith.constant 123 : index
    %c0_201 = arith.constant 0 : index
    %125 = vector.load %arg6[%c123, %c0_201] : memref<147x88xbf16, #tpu.memory_space<vmem>>, vector<3x88xbf16>
    tpu.vector_store %arg6[%c123, %c0_201], %124 {strides = array<i32>} : memref<147x88xbf16, #tpu.memory_space<vmem>>, vector<3x88xbf16>,
    %c0_202 = arith.constant 0 : index
    %c0_203 = arith.constant 0 : index
    %c0_204 = arith.constant 0 : index
    %c33_205 = arith.constant 33 : index
    %126 = vector.load %arg1[%c0_202, %c0_203, %c0_204, %c33_205] : memref<1x4x3x128xbf16, #tpu.memory_space<vmem>>, vector<1x1x3x88xbf16>
    %127 = vector.shape_cast %126 : vector<1x1x3x88xbf16> to vector<3x88xbf16>
    %c126 = arith.constant 126 : index
    %c0_206 = arith.constant 0 : index
    %128 = vector.load %arg6[%c126, %c0_206] : memref<147x88xbf16, #tpu.memory_space<vmem>>, vector<3x88xbf16>
    tpu.vector_store %arg6[%c126, %c0_206], %127 {strides = array<i32>} : memref<147x88xbf16, #tpu.memory_space<vmem>>, vector<3x88xbf16>,
    %c0_207 = arith.constant 0 : index
    %c1_208 = arith.constant 1 : index
    %c0_209 = arith.constant 0 : index
    %c33_210 = arith.constant 33 : index
    %129 = vector.load %arg1[%c0_207, %c1_208, %c0_209, %c33_210] : memref<1x4x3x128xbf16, #tpu.memory_space<vmem>>, vector<1x1x3x88xbf16>
    %130 = vector.shape_cast %129 : vector<1x1x3x88xbf16> to vector<3x88xbf16>
    %c129 = arith.constant 129 : index
    %c0_211 = arith.constant 0 : index
    %131 = vector.load %arg6[%c129, %c0_211] : memref<147x88xbf16, #tpu.memory_space<vmem>>, vector<3x88xbf16>
    tpu.vector_store %arg6[%c129, %c0_211], %130 {strides = array<i32>} : memref<147x88xbf16, #tpu.memory_space<vmem>>, vector<3x88xbf16>,
    %c0_212 = arith.constant 0 : index
    %c0_213 = arith.constant 0 : index
    %c0_214 = arith.constant 0 : index
    %c34 = arith.constant 34 : index
    %132 = vector.load %arg1[%c0_212, %c0_213, %c0_214, %c34] : memref<1x4x3x128xbf16, #tpu.memory_space<vmem>>, vector<1x1x3x88xbf16>
    %133 = vector.shape_cast %132 : vector<1x1x3x88xbf16> to vector<3x88xbf16>
    %c132 = arith.constant 132 : index
    %c0_215 = arith.constant 0 : index
    %134 = vector.load %arg6[%c132, %c0_215] : memref<147x88xbf16, #tpu.memory_space<vmem>>, vector<3x88xbf16>
    tpu.vector_store %arg6[%c132, %c0_215], %133 {strides = array<i32>} : memref<147x88xbf16, #tpu.memory_space<vmem>>, vector<3x88xbf16>,
    %c0_216 = arith.constant 0 : index
    %c1_217 = arith.constant 1 : index
    %c0_218 = arith.constant 0 : index
    %c34_219 = arith.constant 34 : index
    %135 = vector.load %arg1[%c0_216, %c1_217, %c0_218, %c34_219] : memref<1x4x3x128xbf16, #tpu.memory_space<vmem>>, vector<1x1x3x88xbf16>
    %136 = vector.shape_cast %135 : vector<1x1x3x88xbf16> to vector<3x88xbf16>
    %c135 = arith.constant 135 : index
    %c0_220 = arith.constant 0 : index
    %137 = vector.load %arg6[%c135, %c0_220] : memref<147x88xbf16, #tpu.memory_space<vmem>>, vector<3x88xbf16>
    tpu.vector_store %arg6[%c135, %c0_220], %136 {strides = array<i32>} : memref<147x88xbf16, #tpu.memory_space<vmem>>, vector<3x88xbf16>,
    %c0_221 = arith.constant 0 : index
    %c0_222 = arith.constant 0 : index
    %c0_223 = arith.constant 0 : index
    %c35 = arith.constant 35 : index
    %138 = vector.load %arg1[%c0_221, %c0_222, %c0_223, %c35] : memref<1x4x3x128xbf16, #tpu.memory_space<vmem>>, vector<1x1x3x88xbf16>
    %139 = vector.shape_cast %138 : vector<1x1x3x88xbf16> to vector<3x88xbf16>
    %c138 = arith.constant 138 : index
    %c0_224 = arith.constant 0 : index
    %140 = vector.load %arg6[%c138, %c0_224] : memref<147x88xbf16, #tpu.memory_space<vmem>>, vector<3x88xbf16>
    tpu.vector_store %arg6[%c138, %c0_224], %139 {strides = array<i32>} : memref<147x88xbf16, #tpu.memory_space<vmem>>, vector<3x88xbf16>,
    %c0_225 = arith.constant 0 : index
    %c1_226 = arith.constant 1 : index
    %c0_227 = arith.constant 0 : index
    %c35_228 = arith.constant 35 : index
    %141 = vector.load %arg1[%c0_225, %c1_226, %c0_227, %c35_228] : memref<1x4x3x128xbf16, #tpu.memory_space<vmem>>, vector<1x1x3x88xbf16>
    %142 = vector.shape_cast %141 : vector<1x1x3x88xbf16> to vector<3x88xbf16>
    %c141 = arith.constant 141 : index
    %c0_229 = arith.constant 0 : index
    %143 = vector.load %arg6[%c141, %c0_229] : memref<147x88xbf16, #tpu.memory_space<vmem>>, vector<3x88xbf16>
    tpu.vector_store %arg6[%c141, %c0_229], %142 {strides = array<i32>} : memref<147x88xbf16, #tpu.memory_space<vmem>>, vector<3x88xbf16>,
    %c0_230 = arith.constant 0 : index
    %c0_231 = arith.constant 0 : index
    %c0_232 = arith.constant 0 : index
    %c36_233 = arith.constant 36 : index
    %144 = vector.load %arg1[%c0_230, %c0_231, %c0_232, %c36_233] : memref<1x4x3x128xbf16, #tpu.memory_space<vmem>>, vector<1x1x3x88xbf16>
    %145 = vector.shape_cast %144 : vector<1x1x3x88xbf16> to vector<3x88xbf16>
    %c144 = arith.constant 144 : index
    %c0_234 = arith.constant 0 : index
    %146 = vector.load %arg6[%c144, %c0_234] : memref<147x88xbf16, #tpu.memory_space<vmem>>, vector<3x88xbf16>
    tpu.vector_store %arg6[%c144, %c0_234], %145 {strides = array<i32>} : memref<147x88xbf16, #tpu.memory_space<vmem>>, vector<3x88xbf16>,
    %c0_235 = arith.constant 0 : index
    %c0_236 = arith.constant 0 : index
    %147 = vector.load %arg2[%c0_235, %c0_236] : memref<64x147xbf16, #tpu.memory_space<vmem>>, vector<64x147xbf16>
    %c0_237 = arith.constant 0 : index
    %c0_238 = arith.constant 0 : index
    %148 = vector.load %arg6[%c0_237, %c0_238] : memref<147x88xbf16, #tpu.memory_space<vmem>>, vector<147x88xbf16>
    %cst = arith.constant dense<0.000000e+00> : vector<64x88xf32>
    %149 = tpu.matmul %147, %148, %cst {dimension_numbers = #tpu.dot_dimension_numbers<[1], [0], [0], [1], [0, 0, 1, 1], [], []>} : vector<64x147xbf16>, vector<147x88xbf16>, vector<64x88xf32> -> vector<64x88xf32>
    %150 = arith.truncf %149 : vector<64x88xf32> to vector<64x88xbf16>
    %c0_239 = arith.constant 0 : index
    %c0_240 = arith.constant 0 : index
    %151 = vector.load %arg7[%c0_239, %c0_240] : memref<64x88xbf16, #tpu.memory_space<vmem>>, vector<64x88xbf16>
    tpu.vector_store %arg7[%c0_239, %c0_240], %150 {strides = array<i32>} : memref<64x88xbf16, #tpu.memory_space<vmem>>, vector<64x88xbf16>,
    %c0_241 = arith.constant 0 : index
    %c0_242 = arith.constant 0 : index
    %152 = vector.load %arg7[%c0_241, %c0_242] : memref<64x88xbf16, #tpu.memory_space<vmem>>, vector<1x88xbf16>
    %153 = vector.shape_cast %152 : vector<1x88xbf16> to vector<88xbf16>
    %c0_243 = arith.constant 0 : index
    %c0_244 = arith.constant 0 : index
    %154 = vector.load %arg8[%c0_243, %c0_244] : memref<1x5632xbf16, #tpu.memory_space<vmem>>, vector<1x88xbf16>
    %155 = vector.shape_cast %154 : vector<1x88xbf16> to vector<88xbf16>
    %156 = vector.shape_cast %153 : vector<88xbf16> to vector<1x88xbf16>
    tpu.vector_store %arg8[%c0_243, %c0_244], %156 {strides = array<i32>} : memref<1x5632xbf16, #tpu.memory_space<vmem>>, vector<1x88xbf16>,
    %c1_245 = arith.constant 1 : index
    %c0_246 = arith.constant 0 : index
    %157 = vector.load %arg7[%c1_245, %c0_246] : memref<64x88xbf16, #tpu.memory_space<vmem>>, vector<1x88xbf16>
    %158 = vector.shape_cast %157 : vector<1x88xbf16> to vector<88xbf16>
    %c0_247 = arith.constant 0 : index
    %c88 = arith.constant 88 : index
    %159 = vector.load %arg8[%c0_247, %c88] : memref<1x5632xbf16, #tpu.memory_space<vmem>>, vector<1x88xbf16>
    %160 = vector.shape_cast %159 : vector<1x88xbf16> to vector<88xbf16>
    %161 = vector.shape_cast %158 : vector<88xbf16> to vector<1x88xbf16>
    tpu.vector_store %arg8[%c0_247, %c88], %161 {strides = array<i32>} : memref<1x5632xbf16, #tpu.memory_space<vmem>>, vector<1x88xbf16>,
    %c2_248 = arith.constant 2 : index
    %c0_249 = arith.constant 0 : index
    %162 = vector.load %arg7[%c2_248, %c0_249] : memref<64x88xbf16, #tpu.memory_space<vmem>>, vector<1x88xbf16>
    %163 = vector.shape_cast %162 : vector<1x88xbf16> to vector<88xbf16>
    %c0_250 = arith.constant 0 : index
    %c176 = arith.constant 176 : index
    %164 = vector.load %arg8[%c0_250, %c176] : memref<1x5632xbf16, #tpu.memory_space<vmem>>, vector<1x88xbf16>
    %165 = vector.shape_cast %164 : vector<1x88xbf16> to vector<88xbf16>
    %166 = vector.shape_cast %163 : vector<88xbf16> to vector<1x88xbf16>
    tpu.vector_store %arg8[%c0_250, %c176], %166 {strides = array<i32>} : memref<1x5632xbf16, #tpu.memory_space<vmem>>, vector<1x88xbf16>,
    %c3_251 = arith.constant 3 : index
    %c0_252 = arith.constant 0 : index
    %167 = vector.load %arg7[%c3_251, %c0_252] : memref<64x88xbf16, #tpu.memory_space<vmem>>, vector<1x88xbf16>
    %168 = vector.shape_cast %167 : vector<1x88xbf16> to vector<88xbf16>
    %c0_253 = arith.constant 0 : index
    %c264 = arith.constant 264 : index
    %169 = vector.load %arg8[%c0_253, %c264] : memref<1x5632xbf16, #tpu.memory_space<vmem>>, vector<1x88xbf16>
    %170 = vector.shape_cast %169 : vector<1x88xbf16> to vector<88xbf16>
    %171 = vector.shape_cast %168 : vector<88xbf16> to vector<1x88xbf16>
    tpu.vector_store %arg8[%c0_253, %c264], %171 {strides = array<i32>} : memref<1x5632xbf16, #tpu.memory_space<vmem>>, vector<1x88xbf16>,
    %c4 = arith.constant 4 : index
    %c0_254 = arith.constant 0 : index
    %172 = vector.load %arg7[%c4, %c0_254] : memref<64x88xbf16, #tpu.memory_space<vmem>>, vector<1x88xbf16>
    %173 = vector.shape_cast %172 : vector<1x88xbf16> to vector<88xbf16>
    %c0_255 = arith.constant 0 : index
    %c352 = arith.constant 352 : index
    %174 = vector.load %arg8[%c0_255, %c352] : memref<1x5632xbf16, #tpu.memory_space<vmem>>, vector<1x88xbf16>
    %175 = vector.shape_cast %174 : vector<1x88xbf16> to vector<88xbf16>
    %176 = vector.shape_cast %173 : vector<88xbf16> to vector<1x88xbf16>
    tpu.vector_store %arg8[%c0_255, %c352], %176 {strides = array<i32>} : memref<1x5632xbf16, #tpu.memory_space<vmem>>, vector<1x88xbf16>,
    %c5 = arith.constant 5 : index
    %c0_256 = arith.constant 0 : index
    %177 = vector.load %arg7[%c5, %c0_256] : memref<64x88xbf16, #tpu.memory_space<vmem>>, vector<1x88xbf16>
    %178 = vector.shape_cast %177 : vector<1x88xbf16> to vector<88xbf16>
    %c0_257 = arith.constant 0 : index
    %c440 = arith.constant 440 : index
    %179 = vector.load %arg8[%c0_257, %c440] : memref<1x5632xbf16, #tpu.memory_space<vmem>>, vector<1x88xbf16>
    %180 = vector.shape_cast %179 : vector<1x88xbf16> to vector<88xbf16>
    %181 = vector.shape_cast %178 : vector<88xbf16> to vector<1x88xbf16>
    tpu.vector_store %arg8[%c0_257, %c440], %181 {strides = array<i32>} : memref<1x5632xbf16, #tpu.memory_space<vmem>>, vector<1x88xbf16>,
    %c6_258 = arith.constant 6 : index
    %c0_259 = arith.constant 0 : index
    %182 = vector.load %arg7[%c6_258, %c0_259] : memref<64x88xbf16, #tpu.memory_space<vmem>>, vector<1x88xbf16>
    %183 = vector.shape_cast %182 : vector<1x88xbf16> to vector<88xbf16>
    %c0_260 = arith.constant 0 : index
    %c528 = arith.constant 528 : index
    %184 = vector.load %arg8[%c0_260, %c528] : memref<1x5632xbf16, #tpu.memory_space<vmem>>, vector<1x88xbf16>
    %185 = vector.shape_cast %184 : vector<1x88xbf16> to vector<88xbf16>
    %186 = vector.shape_cast %183 : vector<88xbf16> to vector<1x88xbf16>
    tpu.vector_store %arg8[%c0_260, %c528], %186 {strides = array<i32>} : memref<1x5632xbf16, #tpu.memory_space<vmem>>, vector<1x88xbf16>,
    %c7 = arith.constant 7 : index
    %c0_261 = arith.constant 0 : index
    %187 = vector.load %arg7[%c7, %c0_261] : memref<64x88xbf16, #tpu.memory_space<vmem>>, vector<1x88xbf16>
    %188 = vector.shape_cast %187 : vector<1x88xbf16> to vector<88xbf16>
    %c0_262 = arith.constant 0 : index
    %c616 = arith.constant 616 : index
    %189 = vector.load %arg8[%c0_262, %c616] : memref<1x5632xbf16, #tpu.memory_space<vmem>>, vector<1x88xbf16>
    %190 = vector.shape_cast %189 : vector<1x88xbf16> to vector<88xbf16>
    %191 = vector.shape_cast %188 : vector<88xbf16> to vector<1x88xbf16>
    tpu.vector_store %arg8[%c0_262, %c616], %191 {strides = array<i32>} : memref<1x5632xbf16, #tpu.memory_space<vmem>>, vector<1x88xbf16>,
    %c8 = arith.constant 8 : index
    %c0_263 = arith.constant 0 : index
    %192 = vector.load %arg7[%c8, %c0_263] : memref<64x88xbf16, #tpu.memory_space<vmem>>, vector<1x88xbf16>
    %193 = vector.shape_cast %192 : vector<1x88xbf16> to vector<88xbf16>
    %c0_264 = arith.constant 0 : index
    %c704 = arith.constant 704 : index
    %194 = vector.load %arg8[%c0_264, %c704] : memref<1x5632xbf16, #tpu.memory_space<vmem>>, vector<1x88xbf16>
    %195 = vector.shape_cast %194 : vector<1x88xbf16> to vector<88xbf16>
    %196 = vector.shape_cast %193 : vector<88xbf16> to vector<1x88xbf16>
    tpu.vector_store %arg8[%c0_264, %c704], %196 {strides = array<i32>} : memref<1x5632xbf16, #tpu.memory_space<vmem>>, vector<1x88xbf16>,
    %c9_265 = arith.constant 9 : index
    %c0_266 = arith.constant 0 : index
    %197 = vector.load %arg7[%c9_265, %c0_266] : memref<64x88xbf16, #tpu.memory_space<vmem>>, vector<1x88xbf16>
    %198 = vector.shape_cast %197 : vector<1x88xbf16> to vector<88xbf16>
    %c0_267 = arith.constant 0 : index
    %c792 = arith.constant 792 : index
    %199 = vector.load %arg8[%c0_267, %c792] : memref<1x5632xbf16, #tpu.memory_space<vmem>>, vector<1x88xbf16>
    %200 = vector.shape_cast %199 : vector<1x88xbf16> to vector<88xbf16>
    %201 = vector.shape_cast %198 : vector<88xbf16> to vector<1x88xbf16>
    tpu.vector_store %arg8[%c0_267, %c792], %201 {strides = array<i32>} : memref<1x5632xbf16, #tpu.memory_space<vmem>>, vector<1x88xbf16>,
    %c10 = arith.constant 10 : index
    %c0_268 = arith.constant 0 : index
    %202 = vector.load %arg7[%c10, %c0_268] : memref<64x88xbf16, #tpu.memory_space<vmem>>, vector<1x88xbf16>
    %203 = vector.shape_cast %202 : vector<1x88xbf16> to vector<88xbf16>
    %c0_269 = arith.constant 0 : index
    %c880 = arith.constant 880 : index
    %204 = vector.load %arg8[%c0_269, %c880] : memref<1x5632xbf16, #tpu.memory_space<vmem>>, vector<1x88xbf16>
    %205 = vector.shape_cast %204 : vector<1x88xbf16> to vector<88xbf16>
    %206 = vector.shape_cast %203 : vector<88xbf16> to vector<1x88xbf16>
    tpu.vector_store %arg8[%c0_269, %c880], %206 {strides = array<i32>} : memref<1x5632xbf16, #tpu.memory_space<vmem>>, vector<1x88xbf16>,
    %c11_270 = arith.constant 11 : index
    %c0_271 = arith.constant 0 : index
    %207 = vector.load %arg7[%c11_270, %c0_271] : memref<64x88xbf16, #tpu.memory_space<vmem>>, vector<1x88xbf16>
    %208 = vector.shape_cast %207 : vector<1x88xbf16> to vector<88xbf16>
    %c0_272 = arith.constant 0 : index
    %c968 = arith.constant 968 : index
    %209 = vector.load %arg8[%c0_272, %c968] : memref<1x5632xbf16, #tpu.memory_space<vmem>>, vector<1x88xbf16>
    %210 = vector.shape_cast %209 : vector<1x88xbf16> to vector<88xbf16>
    %211 = vector.shape_cast %208 : vector<88xbf16> to vector<1x88xbf16>
    tpu.vector_store %arg8[%c0_272, %c968], %211 {strides = array<i32>} : memref<1x5632xbf16, #tpu.memory_space<vmem>>, vector<1x88xbf16>,
    %c12_273 = arith.constant 12 : index
    %c0_274 = arith.constant 0 : index
    %212 = vector.load %arg7[%c12_273, %c0_274] : memref<64x88xbf16, #tpu.memory_space<vmem>>, vector<1x88xbf16>
    %213 = vector.shape_cast %212 : vector<1x88xbf16> to vector<88xbf16>
    %c0_275 = arith.constant 0 : index
    %c1056 = arith.constant 1056 : index
    %214 = vector.load %arg8[%c0_275, %c1056] : memref<1x5632xbf16, #tpu.memory_space<vmem>>, vector<1x88xbf16>
    %215 = vector.shape_cast %214 : vector<1x88xbf16> to vector<88xbf16>
    %216 = vector.shape_cast %213 : vector<88xbf16> to vector<1x88xbf16>
    tpu.vector_store %arg8[%c0_275, %c1056], %216 {strides = array<i32>} : memref<1x5632xbf16, #tpu.memory_space<vmem>>, vector<1x88xbf16>,
    %c13_276 = arith.constant 13 : index
    %c0_277 = arith.constant 0 : index
    %217 = vector.load %arg7[%c13_276, %c0_277] : memref<64x88xbf16, #tpu.memory_space<vmem>>, vector<1x88xbf16>
    %218 = vector.shape_cast %217 : vector<1x88xbf16> to vector<88xbf16>
    %c0_278 = arith.constant 0 : index
    %c1144 = arith.constant 1144 : index
    %219 = vector.load %arg8[%c0_278, %c1144] : memref<1x5632xbf16, #tpu.memory_space<vmem>>, vector<1x88xbf16>
    %220 = vector.shape_cast %219 : vector<1x88xbf16> to vector<88xbf16>
    %221 = vector.shape_cast %218 : vector<88xbf16> to vector<1x88xbf16>
    tpu.vector_store %arg8[%c0_278, %c1144], %221 {strides = array<i32>} : memref<1x5632xbf16, #tpu.memory_space<vmem>>, vector<1x88xbf16>,
    %c14_279 = arith.constant 14 : index
    %c0_280 = arith.constant 0 : index
    %222 = vector.load %arg7[%c14_279, %c0_280] : memref<64x88xbf16, #tpu.memory_space<vmem>>, vector<1x88xbf16>
    %223 = vector.shape_cast %222 : vector<1x88xbf16> to vector<88xbf16>
    %c0_281 = arith.constant 0 : index
    %c1232 = arith.constant 1232 : index
    %224 = vector.load %arg8[%c0_281, %c1232] : memref<1x5632xbf16, #tpu.memory_space<vmem>>, vector<1x88xbf16>
    %225 = vector.shape_cast %224 : vector<1x88xbf16> to vector<88xbf16>
    %226 = vector.shape_cast %223 : vector<88xbf16> to vector<1x88xbf16>
    tpu.vector_store %arg8[%c0_281, %c1232], %226 {strides = array<i32>} : memref<1x5632xbf16, #tpu.memory_space<vmem>>, vector<1x88xbf16>,
    %c15_282 = arith.constant 15 : index
    %c0_283 = arith.constant 0 : index
    %227 = vector.load %arg7[%c15_282, %c0_283] : memref<64x88xbf16, #tpu.memory_space<vmem>>, vector<1x88xbf16>
    %228 = vector.shape_cast %227 : vector<1x88xbf16> to vector<88xbf16>
    %c0_284 = arith.constant 0 : index
    %c1320 = arith.constant 1320 : index
    %229 = vector.load %arg8[%c0_284, %c1320] : memref<1x5632xbf16, #tpu.memory_space<vmem>>, vector<1x88xbf16>
    %230 = vector.shape_cast %229 : vector<1x88xbf16> to vector<88xbf16>
    %231 = vector.shape_cast %228 : vector<88xbf16> to vector<1x88xbf16>
    tpu.vector_store %arg8[%c0_284, %c1320], %231 {strides = array<i32>} : memref<1x5632xbf16, #tpu.memory_space<vmem>>, vector<1x88xbf16>,
    %c16 = arith.constant 16 : index
    %c0_285 = arith.constant 0 : index
    %232 = vector.load %arg7[%c16, %c0_285] : memref<64x88xbf16, #tpu.memory_space<vmem>>, vector<1x88xbf16>
    %233 = vector.shape_cast %232 : vector<1x88xbf16> to vector<88xbf16>
    %c0_286 = arith.constant 0 : index
    %c1408 = arith.constant 1408 : index
    %234 = vector.load %arg8[%c0_286, %c1408] : memref<1x5632xbf16, #tpu.memory_space<vmem>>, vector<1x88xbf16>
    %235 = vector.shape_cast %234 : vector<1x88xbf16> to vector<88xbf16>
    %236 = vector.shape_cast %233 : vector<88xbf16> to vector<1x88xbf16>
    tpu.vector_store %arg8[%c0_286, %c1408], %236 {strides = array<i32>} : memref<1x5632xbf16, #tpu.memory_space<vmem>>, vector<1x88xbf16>,
    %c17 = arith.constant 17 : index
    %c0_287 = arith.constant 0 : index
    %237 = vector.load %arg7[%c17, %c0_287] : memref<64x88xbf16, #tpu.memory_space<vmem>>, vector<1x88xbf16>
    %238 = vector.shape_cast %237 : vector<1x88xbf16> to vector<88xbf16>
    %c0_288 = arith.constant 0 : index
    %c1496 = arith.constant 1496 : index
    %239 = vector.load %arg8[%c0_288, %c1496] : memref<1x5632xbf16, #tpu.memory_space<vmem>>, vector<1x88xbf16>
    %240 = vector.shape_cast %239 : vector<1x88xbf16> to vector<88xbf16>
    %241 = vector.shape_cast %238 : vector<88xbf16> to vector<1x88xbf16>
    tpu.vector_store %arg8[%c0_288, %c1496], %241 {strides = array<i32>} : memref<1x5632xbf16, #tpu.memory_space<vmem>>, vector<1x88xbf16>,
    %c18_289 = arith.constant 18 : index
    %c0_290 = arith.constant 0 : index
    %242 = vector.load %arg7[%c18_289, %c0_290] : memref<64x88xbf16, #tpu.memory_space<vmem>>, vector<1x88xbf16>
    %243 = vector.shape_cast %242 : vector<1x88xbf16> to vector<88xbf16>
    %c0_291 = arith.constant 0 : index
    %c1584 = arith.constant 1584 : index
    %244 = vector.load %arg8[%c0_291, %c1584] : memref<1x5632xbf16, #tpu.memory_space<vmem>>, vector<1x88xbf16>
    %245 = vector.shape_cast %244 : vector<1x88xbf16> to vector<88xbf16>
    %246 = vector.shape_cast %243 : vector<88xbf16> to vector<1x88xbf16>
    tpu.vector_store %arg8[%c0_291, %c1584], %246 {strides = array<i32>} : memref<1x5632xbf16, #tpu.memory_space<vmem>>, vector<1x88xbf16>,
    %c19 = arith.constant 19 : index
    %c0_292 = arith.constant 0 : index
    %247 = vector.load %arg7[%c19, %c0_292] : memref<64x88xbf16, #tpu.memory_space<vmem>>, vector<1x88xbf16>
    %248 = vector.shape_cast %247 : vector<1x88xbf16> to vector<88xbf16>
    %c0_293 = arith.constant 0 : index
    %c1672 = arith.constant 1672 : index
    %249 = vector.load %arg8[%c0_293, %c1672] : memref<1x5632xbf16, #tpu.memory_space<vmem>>, vector<1x88xbf16>
    %250 = vector.shape_cast %249 : vector<1x88xbf16> to vector<88xbf16>
    %251 = vector.shape_cast %248 : vector<88xbf16> to vector<1x88xbf16>
    tpu.vector_store %arg8[%c0_293, %c1672], %251 {strides = array<i32>} : memref<1x5632xbf16, #tpu.memory_space<vmem>>, vector<1x88xbf16>,
    %c20 = arith.constant 20 : index
    %c0_294 = arith.constant 0 : index
    %252 = vector.load %arg7[%c20, %c0_294] : memref<64x88xbf16, #tpu.memory_space<vmem>>, vector<1x88xbf16>
    %253 = vector.shape_cast %252 : vector<1x88xbf16> to vector<88xbf16>
    %c0_295 = arith.constant 0 : index
    %c1760 = arith.constant 1760 : index
    %254 = vector.load %arg8[%c0_295, %c1760] : memref<1x5632xbf16, #tpu.memory_space<vmem>>, vector<1x88xbf16>
    %255 = vector.shape_cast %254 : vector<1x88xbf16> to vector<88xbf16>
    %256 = vector.shape_cast %253 : vector<88xbf16> to vector<1x88xbf16>
    tpu.vector_store %arg8[%c0_295, %c1760], %256 {strides = array<i32>} : memref<1x5632xbf16, #tpu.memory_space<vmem>>, vector<1x88xbf16>,
    %c21_296 = arith.constant 21 : index
    %c0_297 = arith.constant 0 : index
    %257 = vector.load %arg7[%c21_296, %c0_297] : memref<64x88xbf16, #tpu.memory_space<vmem>>, vector<1x88xbf16>
    %258 = vector.shape_cast %257 : vector<1x88xbf16> to vector<88xbf16>
    %c0_298 = arith.constant 0 : index
    %c1848 = arith.constant 1848 : index
    %259 = vector.load %arg8[%c0_298, %c1848] : memref<1x5632xbf16, #tpu.memory_space<vmem>>, vector<1x88xbf16>
    %260 = vector.shape_cast %259 : vector<1x88xbf16> to vector<88xbf16>
    %261 = vector.shape_cast %258 : vector<88xbf16> to vector<1x88xbf16>
    tpu.vector_store %arg8[%c0_298, %c1848], %261 {strides = array<i32>} : memref<1x5632xbf16, #tpu.memory_space<vmem>>, vector<1x88xbf16>,
    %c22_299 = arith.constant 22 : index
    %c0_300 = arith.constant 0 : index
    %262 = vector.load %arg7[%c22_299, %c0_300] : memref<64x88xbf16, #tpu.memory_space<vmem>>, vector<1x88xbf16>
    %263 = vector.shape_cast %262 : vector<1x88xbf16> to vector<88xbf16>
    %c0_301 = arith.constant 0 : index
    %c1936 = arith.constant 1936 : index
    %264 = vector.load %arg8[%c0_301, %c1936] : memref<1x5632xbf16, #tpu.memory_space<vmem>>, vector<1x88xbf16>
    %265 = vector.shape_cast %264 : vector<1x88xbf16> to vector<88xbf16>
    %266 = vector.shape_cast %263 : vector<88xbf16> to vector<1x88xbf16>
    tpu.vector_store %arg8[%c0_301, %c1936], %266 {strides = array<i32>} : memref<1x5632xbf16, #tpu.memory_space<vmem>>, vector<1x88xbf16>,
    %c23_302 = arith.constant 23 : index
    %c0_303 = arith.constant 0 : index
    %267 = vector.load %arg7[%c23_302, %c0_303] : memref<64x88xbf16, #tpu.memory_space<vmem>>, vector<1x88xbf16>
    %268 = vector.shape_cast %267 : vector<1x88xbf16> to vector<88xbf16>
    %c0_304 = arith.constant 0 : index
    %c2024 = arith.constant 2024 : index
    %269 = vector.load %arg8[%c0_304, %c2024] : memref<1x5632xbf16, #tpu.memory_space<vmem>>, vector<1x88xbf16>
    %270 = vector.shape_cast %269 : vector<1x88xbf16> to vector<88xbf16>
    %271 = vector.shape_cast %268 : vector<88xbf16> to vector<1x88xbf16>
    tpu.vector_store %arg8[%c0_304, %c2024], %271 {strides = array<i32>} : memref<1x5632xbf16, #tpu.memory_space<vmem>>, vector<1x88xbf16>,
    %c24_305 = arith.constant 24 : index
    %c0_306 = arith.constant 0 : index
    %272 = vector.load %arg7[%c24_305, %c0_306] : memref<64x88xbf16, #tpu.memory_space<vmem>>, vector<1x88xbf16>
    %273 = vector.shape_cast %272 : vector<1x88xbf16> to vector<88xbf16>
    %c0_307 = arith.constant 0 : index
    %c2112 = arith.constant 2112 : index
    %274 = vector.load %arg8[%c0_307, %c2112] : memref<1x5632xbf16, #tpu.memory_space<vmem>>, vector<1x88xbf16>
    %275 = vector.shape_cast %274 : vector<1x88xbf16> to vector<88xbf16>
    %276 = vector.shape_cast %273 : vector<88xbf16> to vector<1x88xbf16>
    tpu.vector_store %arg8[%c0_307, %c2112], %276 {strides = array<i32>} : memref<1x5632xbf16, #tpu.memory_space<vmem>>, vector<1x88xbf16>,
    %c25_308 = arith.constant 25 : index
    %c0_309 = arith.constant 0 : index
    %277 = vector.load %arg7[%c25_308, %c0_309] : memref<64x88xbf16, #tpu.memory_space<vmem>>, vector<1x88xbf16>
    %278 = vector.shape_cast %277 : vector<1x88xbf16> to vector<88xbf16>
    %c0_310 = arith.constant 0 : index
    %c2200 = arith.constant 2200 : index
    %279 = vector.load %arg8[%c0_310, %c2200] : memref<1x5632xbf16, #tpu.memory_space<vmem>>, vector<1x88xbf16>
    %280 = vector.shape_cast %279 : vector<1x88xbf16> to vector<88xbf16>
    %281 = vector.shape_cast %278 : vector<88xbf16> to vector<1x88xbf16>
    tpu.vector_store %arg8[%c0_310, %c2200], %281 {strides = array<i32>} : memref<1x5632xbf16, #tpu.memory_space<vmem>>, vector<1x88xbf16>,
    %c26 = arith.constant 26 : index
    %c0_311 = arith.constant 0 : index
    %282 = vector.load %arg7[%c26, %c0_311] : memref<64x88xbf16, #tpu.memory_space<vmem>>, vector<1x88xbf16>
    %283 = vector.shape_cast %282 : vector<1x88xbf16> to vector<88xbf16>
    %c0_312 = arith.constant 0 : index
    %c2288 = arith.constant 2288 : index
    %284 = vector.load %arg8[%c0_312, %c2288] : memref<1x5632xbf16, #tpu.memory_space<vmem>>, vector<1x88xbf16>
    %285 = vector.shape_cast %284 : vector<1x88xbf16> to vector<88xbf16>
    %286 = vector.shape_cast %283 : vector<88xbf16> to vector<1x88xbf16>
    tpu.vector_store %arg8[%c0_312, %c2288], %286 {strides = array<i32>} : memref<1x5632xbf16, #tpu.memory_space<vmem>>, vector<1x88xbf16>,
    %c27_313 = arith.constant 27 : index
    %c0_314 = arith.constant 0 : index
    %287 = vector.load %arg7[%c27_313, %c0_314] : memref<64x88xbf16, #tpu.memory_space<vmem>>, vector<1x88xbf16>
    %288 = vector.shape_cast %287 : vector<1x88xbf16> to vector<88xbf16>
    %c0_315 = arith.constant 0 : index
    %c2376 = arith.constant 2376 : index
    %289 = vector.load %arg8[%c0_315, %c2376] : memref<1x5632xbf16, #tpu.memory_space<vmem>>, vector<1x88xbf16>
    %290 = vector.shape_cast %289 : vector<1x88xbf16> to vector<88xbf16>
    %291 = vector.shape_cast %288 : vector<88xbf16> to vector<1x88xbf16>
    tpu.vector_store %arg8[%c0_315, %c2376], %291 {strides = array<i32>} : memref<1x5632xbf16, #tpu.memory_space<vmem>>, vector<1x88xbf16>,
    %c28 = arith.constant 28 : index
    %c0_316 = arith.constant 0 : index
    %292 = vector.load %arg7[%c28, %c0_316] : memref<64x88xbf16, #tpu.memory_space<vmem>>, vector<1x88xbf16>
    %293 = vector.shape_cast %292 : vector<1x88xbf16> to vector<88xbf16>
    %c0_317 = arith.constant 0 : index
    %c2464 = arith.constant 2464 : index
    %294 = vector.load %arg8[%c0_317, %c2464] : memref<1x5632xbf16, #tpu.memory_space<vmem>>, vector<1x88xbf16>
    %295 = vector.shape_cast %294 : vector<1x88xbf16> to vector<88xbf16>
    %296 = vector.shape_cast %293 : vector<88xbf16> to vector<1x88xbf16>
    tpu.vector_store %arg8[%c0_317, %c2464], %296 {strides = array<i32>} : memref<1x5632xbf16, #tpu.memory_space<vmem>>, vector<1x88xbf16>,
    %c29 = arith.constant 29 : index
    %c0_318 = arith.constant 0 : index
    %297 = vector.load %arg7[%c29, %c0_318] : memref<64x88xbf16, #tpu.memory_space<vmem>>, vector<1x88xbf16>
    %298 = vector.shape_cast %297 : vector<1x88xbf16> to vector<88xbf16>
    %c0_319 = arith.constant 0 : index
    %c2552 = arith.constant 2552 : index
    %299 = vector.load %arg8[%c0_319, %c2552] : memref<1x5632xbf16, #tpu.memory_space<vmem>>, vector<1x88xbf16>
    %300 = vector.shape_cast %299 : vector<1x88xbf16> to vector<88xbf16>
    %301 = vector.shape_cast %298 : vector<88xbf16> to vector<1x88xbf16>
    tpu.vector_store %arg8[%c0_319, %c2552], %301 {strides = array<i32>} : memref<1x5632xbf16, #tpu.memory_space<vmem>>, vector<1x88xbf16>,
    %c30_320 = arith.constant 30 : index
    %c0_321 = arith.constant 0 : index
    %302 = vector.load %arg7[%c30_320, %c0_321] : memref<64x88xbf16, #tpu.memory_space<vmem>>, vector<1x88xbf16>
    %303 = vector.shape_cast %302 : vector<1x88xbf16> to vector<88xbf16>
    %c0_322 = arith.constant 0 : index
    %c2640 = arith.constant 2640 : index
    %304 = vector.load %arg8[%c0_322, %c2640] : memref<1x5632xbf16, #tpu.memory_space<vmem>>, vector<1x88xbf16>
    %305 = vector.shape_cast %304 : vector<1x88xbf16> to vector<88xbf16>
    %306 = vector.shape_cast %303 : vector<88xbf16> to vector<1x88xbf16>
    tpu.vector_store %arg8[%c0_322, %c2640], %306 {strides = array<i32>} : memref<1x5632xbf16, #tpu.memory_space<vmem>>, vector<1x88xbf16>,
    %c31 = arith.constant 31 : index
    %c0_323 = arith.constant 0 : index
    %307 = vector.load %arg7[%c31, %c0_323] : memref<64x88xbf16, #tpu.memory_space<vmem>>, vector<1x88xbf16>
    %308 = vector.shape_cast %307 : vector<1x88xbf16> to vector<88xbf16>
    %c0_324 = arith.constant 0 : index
    %c2728 = arith.constant 2728 : index
    %309 = vector.load %arg8[%c0_324, %c2728] : memref<1x5632xbf16, #tpu.memory_space<vmem>>, vector<1x88xbf16>
    %310 = vector.shape_cast %309 : vector<1x88xbf16> to vector<88xbf16>
    %311 = vector.shape_cast %308 : vector<88xbf16> to vector<1x88xbf16>
    tpu.vector_store %arg8[%c0_324, %c2728], %311 {strides = array<i32>} : memref<1x5632xbf16, #tpu.memory_space<vmem>>, vector<1x88xbf16>,
    %c32 = arith.constant 32 : index
    %c0_325 = arith.constant 0 : index
    %312 = vector.load %arg7[%c32, %c0_325] : memref<64x88xbf16, #tpu.memory_space<vmem>>, vector<1x88xbf16>
    %313 = vector.shape_cast %312 : vector<1x88xbf16> to vector<88xbf16>
    %c0_326 = arith.constant 0 : index
    %c2816 = arith.constant 2816 : index
    %314 = vector.load %arg8[%c0_326, %c2816] : memref<1x5632xbf16, #tpu.memory_space<vmem>>, vector<1x88xbf16>
    %315 = vector.shape_cast %314 : vector<1x88xbf16> to vector<88xbf16>
    %316 = vector.shape_cast %313 : vector<88xbf16> to vector<1x88xbf16>
    tpu.vector_store %arg8[%c0_326, %c2816], %316 {strides = array<i32>} : memref<1x5632xbf16, #tpu.memory_space<vmem>>, vector<1x88xbf16>,
    %c33_327 = arith.constant 33 : index
    %c0_328 = arith.constant 0 : index
    %317 = vector.load %arg7[%c33_327, %c0_328] : memref<64x88xbf16, #tpu.memory_space<vmem>>, vector<1x88xbf16>
    %318 = vector.shape_cast %317 : vector<1x88xbf16> to vector<88xbf16>
    %c0_329 = arith.constant 0 : index
    %c2904 = arith.constant 2904 : index
    %319 = vector.load %arg8[%c0_329, %c2904] : memref<1x5632xbf16, #tpu.memory_space<vmem>>, vector<1x88xbf16>
    %320 = vector.shape_cast %319 : vector<1x88xbf16> to vector<88xbf16>
    %321 = vector.shape_cast %318 : vector<88xbf16> to vector<1x88xbf16>
    tpu.vector_store %arg8[%c0_329, %c2904], %321 {strides = array<i32>} : memref<1x5632xbf16, #tpu.memory_space<vmem>>, vector<1x88xbf16>,
    %c34_330 = arith.constant 34 : index
    %c0_331 = arith.constant 0 : index
    %322 = vector.load %arg7[%c34_330, %c0_331] : memref<64x88xbf16, #tpu.memory_space<vmem>>, vector<1x88xbf16>
    %323 = vector.shape_cast %322 : vector<1x88xbf16> to vector<88xbf16>
    %c0_332 = arith.constant 0 : index
    %c2992 = arith.constant 2992 : index
    %324 = vector.load %arg8[%c0_332, %c2992] : memref<1x5632xbf16, #tpu.memory_space<vmem>>, vector<1x88xbf16>
    %325 = vector.shape_cast %324 : vector<1x88xbf16> to vector<88xbf16>
    %326 = vector.shape_cast %323 : vector<88xbf16> to vector<1x88xbf16>
    tpu.vector_store %arg8[%c0_332, %c2992], %326 {strides = array<i32>} : memref<1x5632xbf16, #tpu.memory_space<vmem>>, vector<1x88xbf16>,
    %c35_333 = arith.constant 35 : index
    %c0_334 = arith.constant 0 : index
    %327 = vector.load %arg7[%c35_333, %c0_334] : memref<64x88xbf16, #tpu.memory_space<vmem>>, vector<1x88xbf16>
    %328 = vector.shape_cast %327 : vector<1x88xbf16> to vector<88xbf16>
    %c0_335 = arith.constant 0 : index
    %c3080 = arith.constant 3080 : index
    %329 = vector.load %arg8[%c0_335, %c3080] : memref<1x5632xbf16, #tpu.memory_space<vmem>>, vector<1x88xbf16>
    %330 = vector.shape_cast %329 : vector<1x88xbf16> to vector<88xbf16>
    %331 = vector.shape_cast %328 : vector<88xbf16> to vector<1x88xbf16>
    tpu.vector_store %arg8[%c0_335, %c3080], %331 {strides = array<i32>} : memref<1x5632xbf16, #tpu.memory_space<vmem>>, vector<1x88xbf16>,
    %c36_336 = arith.constant 36 : index
    %c0_337 = arith.constant 0 : index
    %332 = vector.load %arg7[%c36_336, %c0_337] : memref<64x88xbf16, #tpu.memory_space<vmem>>, vector<1x88xbf16>
    %333 = vector.shape_cast %332 : vector<1x88xbf16> to vector<88xbf16>
    %c0_338 = arith.constant 0 : index
    %c3168 = arith.constant 3168 : index
    %334 = vector.load %arg8[%c0_338, %c3168] : memref<1x5632xbf16, #tpu.memory_space<vmem>>, vector<1x88xbf16>
    %335 = vector.shape_cast %334 : vector<1x88xbf16> to vector<88xbf16>
    %336 = vector.shape_cast %333 : vector<88xbf16> to vector<1x88xbf16>
    tpu.vector_store %arg8[%c0_338, %c3168], %336 {strides = array<i32>} : memref<1x5632xbf16, #tpu.memory_space<vmem>>, vector<1x88xbf16>,
    %c37 = arith.constant 37 : index
    %c0_339 = arith.constant 0 : index
    %337 = vector.load %arg7[%c37, %c0_339] : memref<64x88xbf16, #tpu.memory_space<vmem>>, vector<1x88xbf16>
    %338 = vector.shape_cast %337 : vector<1x88xbf16> to vector<88xbf16>
    %c0_340 = arith.constant 0 : index
    %c3256 = arith.constant 3256 : index
    %339 = vector.load %arg8[%c0_340, %c3256] : memref<1x5632xbf16, #tpu.memory_space<vmem>>, vector<1x88xbf16>
    %340 = vector.shape_cast %339 : vector<1x88xbf16> to vector<88xbf16>
    %341 = vector.shape_cast %338 : vector<88xbf16> to vector<1x88xbf16>
    tpu.vector_store %arg8[%c0_340, %c3256], %341 {strides = array<i32>} : memref<1x5632xbf16, #tpu.memory_space<vmem>>, vector<1x88xbf16>,
    %c38 = arith.constant 38 : index
    %c0_341 = arith.constant 0 : index
    %342 = vector.load %arg7[%c38, %c0_341] : memref<64x88xbf16, #tpu.memory_space<vmem>>, vector<1x88xbf16>
    %343 = vector.shape_cast %342 : vector<1x88xbf16> to vector<88xbf16>
    %c0_342 = arith.constant 0 : index
    %c3344 = arith.constant 3344 : index
    %344 = vector.load %arg8[%c0_342, %c3344] : memref<1x5632xbf16, #tpu.memory_space<vmem>>, vector<1x88xbf16>
    %345 = vector.shape_cast %344 : vector<1x88xbf16> to vector<88xbf16>
    %346 = vector.shape_cast %343 : vector<88xbf16> to vector<1x88xbf16>
    tpu.vector_store %arg8[%c0_342, %c3344], %346 {strides = array<i32>} : memref<1x5632xbf16, #tpu.memory_space<vmem>>, vector<1x88xbf16>,
    %c39_343 = arith.constant 39 : index
    %c0_344 = arith.constant 0 : index
    %347 = vector.load %arg7[%c39_343, %c0_344] : memref<64x88xbf16, #tpu.memory_space<vmem>>, vector<1x88xbf16>
    %348 = vector.shape_cast %347 : vector<1x88xbf16> to vector<88xbf16>
    %c0_345 = arith.constant 0 : index
    %c3432 = arith.constant 3432 : index
    %349 = vector.load %arg8[%c0_345, %c3432] : memref<1x5632xbf16, #tpu.memory_space<vmem>>, vector<1x88xbf16>
    %350 = vector.shape_cast %349 : vector<1x88xbf16> to vector<88xbf16>
    %351 = vector.shape_cast %348 : vector<88xbf16> to vector<1x88xbf16>
    tpu.vector_store %arg8[%c0_345, %c3432], %351 {strides = array<i32>} : memref<1x5632xbf16, #tpu.memory_space<vmem>>, vector<1x88xbf16>,
    %c40 = arith.constant 40 : index
    %c0_346 = arith.constant 0 : index
    %352 = vector.load %arg7[%c40, %c0_346] : memref<64x88xbf16, #tpu.memory_space<vmem>>, vector<1x88xbf16>
    %353 = vector.shape_cast %352 : vector<1x88xbf16> to vector<88xbf16>
    %c0_347 = arith.constant 0 : index
    %c3520 = arith.constant 3520 : index
    %354 = vector.load %arg8[%c0_347, %c3520] : memref<1x5632xbf16, #tpu.memory_space<vmem>>, vector<1x88xbf16>
    %355 = vector.shape_cast %354 : vector<1x88xbf16> to vector<88xbf16>
    %356 = vector.shape_cast %353 : vector<88xbf16> to vector<1x88xbf16>
    tpu.vector_store %arg8[%c0_347, %c3520], %356 {strides = array<i32>} : memref<1x5632xbf16, #tpu.memory_space<vmem>>, vector<1x88xbf16>,
    %c41 = arith.constant 41 : index
    %c0_348 = arith.constant 0 : index
    %357 = vector.load %arg7[%c41, %c0_348] : memref<64x88xbf16, #tpu.memory_space<vmem>>, vector<1x88xbf16>
    %358 = vector.shape_cast %357 : vector<1x88xbf16> to vector<88xbf16>
    %c0_349 = arith.constant 0 : index
    %c3608 = arith.constant 3608 : index
    %359 = vector.load %arg8[%c0_349, %c3608] : memref<1x5632xbf16, #tpu.memory_space<vmem>>, vector<1x88xbf16>
    %360 = vector.shape_cast %359 : vector<1x88xbf16> to vector<88xbf16>
    %361 = vector.shape_cast %358 : vector<88xbf16> to vector<1x88xbf16>
    tpu.vector_store %arg8[%c0_349, %c3608], %361 {strides = array<i32>} : memref<1x5632xbf16, #tpu.memory_space<vmem>>, vector<1x88xbf16>,
    %c42_350 = arith.constant 42 : index
    %c0_351 = arith.constant 0 : index
    %362 = vector.load %arg7[%c42_350, %c0_351] : memref<64x88xbf16, #tpu.memory_space<vmem>>, vector<1x88xbf16>
    %363 = vector.shape_cast %362 : vector<1x88xbf16> to vector<88xbf16>
    %c0_352 = arith.constant 0 : index
    %c3696 = arith.constant 3696 : index
    %364 = vector.load %arg8[%c0_352, %c3696] : memref<1x5632xbf16, #tpu.memory_space<vmem>>, vector<1x88xbf16>
    %365 = vector.shape_cast %364 : vector<1x88xbf16> to vector<88xbf16>
    %366 = vector.shape_cast %363 : vector<88xbf16> to vector<1x88xbf16>
    tpu.vector_store %arg8[%c0_352, %c3696], %366 {strides = array<i32>} : memref<1x5632xbf16, #tpu.memory_space<vmem>>, vector<1x88xbf16>,
    %c43 = arith.constant 43 : index
    %c0_353 = arith.constant 0 : index
    %367 = vector.load %arg7[%c43, %c0_353] : memref<64x88xbf16, #tpu.memory_space<vmem>>, vector<1x88xbf16>
    %368 = vector.shape_cast %367 : vector<1x88xbf16> to vector<88xbf16>
    %c0_354 = arith.constant 0 : index
    %c3784 = arith.constant 3784 : index
    %369 = vector.load %arg8[%c0_354, %c3784] : memref<1x5632xbf16, #tpu.memory_space<vmem>>, vector<1x88xbf16>
    %370 = vector.shape_cast %369 : vector<1x88xbf16> to vector<88xbf16>
    %371 = vector.shape_cast %368 : vector<88xbf16> to vector<1x88xbf16>
    tpu.vector_store %arg8[%c0_354, %c3784], %371 {strides = array<i32>} : memref<1x5632xbf16, #tpu.memory_space<vmem>>, vector<1x88xbf16>,
    %c44 = arith.constant 44 : index
    %c0_355 = arith.constant 0 : index
    %372 = vector.load %arg7[%c44, %c0_355] : memref<64x88xbf16, #tpu.memory_space<vmem>>, vector<1x88xbf16>
    %373 = vector.shape_cast %372 : vector<1x88xbf16> to vector<88xbf16>
    %c0_356 = arith.constant 0 : index
    %c3872 = arith.constant 3872 : index
    %374 = vector.load %arg8[%c0_356, %c3872] : memref<1x5632xbf16, #tpu.memory_space<vmem>>, vector<1x88xbf16>
    %375 = vector.shape_cast %374 : vector<1x88xbf16> to vector<88xbf16>
    %376 = vector.shape_cast %373 : vector<88xbf16> to vector<1x88xbf16>
    tpu.vector_store %arg8[%c0_356, %c3872], %376 {strides = array<i32>} : memref<1x5632xbf16, #tpu.memory_space<vmem>>, vector<1x88xbf16>,
    %c45_357 = arith.constant 45 : index
    %c0_358 = arith.constant 0 : index
    %377 = vector.load %arg7[%c45_357, %c0_358] : memref<64x88xbf16, #tpu.memory_space<vmem>>, vector<1x88xbf16>
    %378 = vector.shape_cast %377 : vector<1x88xbf16> to vector<88xbf16>
    %c0_359 = arith.constant 0 : index
    %c3960 = arith.constant 3960 : index
    %379 = vector.load %arg8[%c0_359, %c3960] : memref<1x5632xbf16, #tpu.memory_space<vmem>>, vector<1x88xbf16>
    %380 = vector.shape_cast %379 : vector<1x88xbf16> to vector<88xbf16>
    %381 = vector.shape_cast %378 : vector<88xbf16> to vector<1x88xbf16>
    tpu.vector_store %arg8[%c0_359, %c3960], %381 {strides = array<i32>} : memref<1x5632xbf16, #tpu.memory_space<vmem>>, vector<1x88xbf16>,
    %c46 = arith.constant 46 : index
    %c0_360 = arith.constant 0 : index
    %382 = vector.load %arg7[%c46, %c0_360] : memref<64x88xbf16, #tpu.memory_space<vmem>>, vector<1x88xbf16>
    %383 = vector.shape_cast %382 : vector<1x88xbf16> to vector<88xbf16>
    %c0_361 = arith.constant 0 : index
    %c4048 = arith.constant 4048 : index
    %384 = vector.load %arg8[%c0_361, %c4048] : memref<1x5632xbf16, #tpu.memory_space<vmem>>, vector<1x88xbf16>
    %385 = vector.shape_cast %384 : vector<1x88xbf16> to vector<88xbf16>
    %386 = vector.shape_cast %383 : vector<88xbf16> to vector<1x88xbf16>
    tpu.vector_store %arg8[%c0_361, %c4048], %386 {strides = array<i32>} : memref<1x5632xbf16, #tpu.memory_space<vmem>>, vector<1x88xbf16>,
    %c47 = arith.constant 47 : index
    %c0_362 = arith.constant 0 : index
    %387 = vector.load %arg7[%c47, %c0_362] : memref<64x88xbf16, #tpu.memory_space<vmem>>, vector<1x88xbf16>
    %388 = vector.shape_cast %387 : vector<1x88xbf16> to vector<88xbf16>
    %c0_363 = arith.constant 0 : index
    %c4136 = arith.constant 4136 : index
    %389 = vector.load %arg8[%c0_363, %c4136] : memref<1x5632xbf16, #tpu.memory_space<vmem>>, vector<1x88xbf16>
    %390 = vector.shape_cast %389 : vector<1x88xbf16> to vector<88xbf16>
    %391 = vector.shape_cast %388 : vector<88xbf16> to vector<1x88xbf16>
    tpu.vector_store %arg8[%c0_363, %c4136], %391 {strides = array<i32>} : memref<1x5632xbf16, #tpu.memory_space<vmem>>, vector<1x88xbf16>,
    %c48_364 = arith.constant 48 : index
    %c0_365 = arith.constant 0 : index
    %392 = vector.load %arg7[%c48_364, %c0_365] : memref<64x88xbf16, #tpu.memory_space<vmem>>, vector<1x88xbf16>
    %393 = vector.shape_cast %392 : vector<1x88xbf16> to vector<88xbf16>
    %c0_366 = arith.constant 0 : index
    %c4224 = arith.constant 4224 : index
    %394 = vector.load %arg8[%c0_366, %c4224] : memref<1x5632xbf16, #tpu.memory_space<vmem>>, vector<1x88xbf16>
    %395 = vector.shape_cast %394 : vector<1x88xbf16> to vector<88xbf16>
    %396 = vector.shape_cast %393 : vector<88xbf16> to vector<1x88xbf16>
    tpu.vector_store %arg8[%c0_366, %c4224], %396 {strides = array<i32>} : memref<1x5632xbf16, #tpu.memory_space<vmem>>, vector<1x88xbf16>,
    %c49 = arith.constant 49 : index
    %c0_367 = arith.constant 0 : index
    %397 = vector.load %arg7[%c49, %c0_367] : memref<64x88xbf16, #tpu.memory_space<vmem>>, vector<1x88xbf16>
    %398 = vector.shape_cast %397 : vector<1x88xbf16> to vector<88xbf16>
    %c0_368 = arith.constant 0 : index
    %c4312 = arith.constant 4312 : index
    %399 = vector.load %arg8[%c0_368, %c4312] : memref<1x5632xbf16, #tpu.memory_space<vmem>>, vector<1x88xbf16>
    %400 = vector.shape_cast %399 : vector<1x88xbf16> to vector<88xbf16>
    %401 = vector.shape_cast %398 : vector<88xbf16> to vector<1x88xbf16>
    tpu.vector_store %arg8[%c0_368, %c4312], %401 {strides = array<i32>} : memref<1x5632xbf16, #tpu.memory_space<vmem>>, vector<1x88xbf16>,
    %c50 = arith.constant 50 : index
    %c0_369 = arith.constant 0 : index
    %402 = vector.load %arg7[%c50, %c0_369] : memref<64x88xbf16, #tpu.memory_space<vmem>>, vector<1x88xbf16>
    %403 = vector.shape_cast %402 : vector<1x88xbf16> to vector<88xbf16>
    %c0_370 = arith.constant 0 : index
    %c4400 = arith.constant 4400 : index
    %404 = vector.load %arg8[%c0_370, %c4400] : memref<1x5632xbf16, #tpu.memory_space<vmem>>, vector<1x88xbf16>
    %405 = vector.shape_cast %404 : vector<1x88xbf16> to vector<88xbf16>
    %406 = vector.shape_cast %403 : vector<88xbf16> to vector<1x88xbf16>
    tpu.vector_store %arg8[%c0_370, %c4400], %406 {strides = array<i32>} : memref<1x5632xbf16, #tpu.memory_space<vmem>>, vector<1x88xbf16>,
    %c51_371 = arith.constant 51 : index
    %c0_372 = arith.constant 0 : index
    %407 = vector.load %arg7[%c51_371, %c0_372] : memref<64x88xbf16, #tpu.memory_space<vmem>>, vector<1x88xbf16>
    %408 = vector.shape_cast %407 : vector<1x88xbf16> to vector<88xbf16>
    %c0_373 = arith.constant 0 : index
    %c4488 = arith.constant 4488 : index
    %409 = vector.load %arg8[%c0_373, %c4488] : memref<1x5632xbf16, #tpu.memory_space<vmem>>, vector<1x88xbf16>
    %410 = vector.shape_cast %409 : vector<1x88xbf16> to vector<88xbf16>
    %411 = vector.shape_cast %408 : vector<88xbf16> to vector<1x88xbf16>
    tpu.vector_store %arg8[%c0_373, %c4488], %411 {strides = array<i32>} : memref<1x5632xbf16, #tpu.memory_space<vmem>>, vector<1x88xbf16>,
    %c52 = arith.constant 52 : index
    %c0_374 = arith.constant 0 : index
    %412 = vector.load %arg7[%c52, %c0_374] : memref<64x88xbf16, #tpu.memory_space<vmem>>, vector<1x88xbf16>
    %413 = vector.shape_cast %412 : vector<1x88xbf16> to vector<88xbf16>
    %c0_375 = arith.constant 0 : index
    %c4576 = arith.constant 4576 : index
    %414 = vector.load %arg8[%c0_375, %c4576] : memref<1x5632xbf16, #tpu.memory_space<vmem>>, vector<1x88xbf16>
    %415 = vector.shape_cast %414 : vector<1x88xbf16> to vector<88xbf16>
    %416 = vector.shape_cast %413 : vector<88xbf16> to vector<1x88xbf16>
    tpu.vector_store %arg8[%c0_375, %c4576], %416 {strides = array<i32>} : memref<1x5632xbf16, #tpu.memory_space<vmem>>, vector<1x88xbf16>,
    %c53 = arith.constant 53 : index
    %c0_376 = arith.constant 0 : index
    %417 = vector.load %arg7[%c53, %c0_376] : memref<64x88xbf16, #tpu.memory_space<vmem>>, vector<1x88xbf16>
    %418 = vector.shape_cast %417 : vector<1x88xbf16> to vector<88xbf16>
    %c0_377 = arith.constant 0 : index
    %c4664 = arith.constant 4664 : index
    %419 = vector.load %arg8[%c0_377, %c4664] : memref<1x5632xbf16, #tpu.memory_space<vmem>>, vector<1x88xbf16>
    %420 = vector.shape_cast %419 : vector<1x88xbf16> to vector<88xbf16>
    %421 = vector.shape_cast %418 : vector<88xbf16> to vector<1x88xbf16>
    tpu.vector_store %arg8[%c0_377, %c4664], %421 {strides = array<i32>} : memref<1x5632xbf16, #tpu.memory_space<vmem>>, vector<1x88xbf16>,
    %c54_378 = arith.constant 54 : index
    %c0_379 = arith.constant 0 : index
    %422 = vector.load %arg7[%c54_378, %c0_379] : memref<64x88xbf16, #tpu.memory_space<vmem>>, vector<1x88xbf16>
    %423 = vector.shape_cast %422 : vector<1x88xbf16> to vector<88xbf16>
    %c0_380 = arith.constant 0 : index
    %c4752 = arith.constant 4752 : index
    %424 = vector.load %arg8[%c0_380, %c4752] : memref<1x5632xbf16, #tpu.memory_space<vmem>>, vector<1x88xbf16>
    %425 = vector.shape_cast %424 : vector<1x88xbf16> to vector<88xbf16>
    %426 = vector.shape_cast %423 : vector<88xbf16> to vector<1x88xbf16>
    tpu.vector_store %arg8[%c0_380, %c4752], %426 {strides = array<i32>} : memref<1x5632xbf16, #tpu.memory_space<vmem>>, vector<1x88xbf16>,
    %c55 = arith.constant 55 : index
    %c0_381 = arith.constant 0 : index
    %427 = vector.load %arg7[%c55, %c0_381] : memref<64x88xbf16, #tpu.memory_space<vmem>>, vector<1x88xbf16>
    %428 = vector.shape_cast %427 : vector<1x88xbf16> to vector<88xbf16>
    %c0_382 = arith.constant 0 : index
    %c4840 = arith.constant 4840 : index
    %429 = vector.load %arg8[%c0_382, %c4840] : memref<1x5632xbf16, #tpu.memory_space<vmem>>, vector<1x88xbf16>
    %430 = vector.shape_cast %429 : vector<1x88xbf16> to vector<88xbf16>
    %431 = vector.shape_cast %428 : vector<88xbf16> to vector<1x88xbf16>
    tpu.vector_store %arg8[%c0_382, %c4840], %431 {strides = array<i32>} : memref<1x5632xbf16, #tpu.memory_space<vmem>>, vector<1x88xbf16>,
    %c56 = arith.constant 56 : index
    %c0_383 = arith.constant 0 : index
    %432 = vector.load %arg7[%c56, %c0_383] : memref<64x88xbf16, #tpu.memory_space<vmem>>, vector<1x88xbf16>
    %433 = vector.shape_cast %432 : vector<1x88xbf16> to vector<88xbf16>
    %c0_384 = arith.constant 0 : index
    %c4928 = arith.constant 4928 : index
    %434 = vector.load %arg8[%c0_384, %c4928] : memref<1x5632xbf16, #tpu.memory_space<vmem>>, vector<1x88xbf16>
    %435 = vector.shape_cast %434 : vector<1x88xbf16> to vector<88xbf16>
    %436 = vector.shape_cast %433 : vector<88xbf16> to vector<1x88xbf16>
    tpu.vector_store %arg8[%c0_384, %c4928], %436 {strides = array<i32>} : memref<1x5632xbf16, #tpu.memory_space<vmem>>, vector<1x88xbf16>,
    %c57_385 = arith.constant 57 : index
    %c0_386 = arith.constant 0 : index
    %437 = vector.load %arg7[%c57_385, %c0_386] : memref<64x88xbf16, #tpu.memory_space<vmem>>, vector<1x88xbf16>
    %438 = vector.shape_cast %437 : vector<1x88xbf16> to vector<88xbf16>
    %c0_387 = arith.constant 0 : index
    %c5016 = arith.constant 5016 : index
    %439 = vector.load %arg8[%c0_387, %c5016] : memref<1x5632xbf16, #tpu.memory_space<vmem>>, vector<1x88xbf16>
    %440 = vector.shape_cast %439 : vector<1x88xbf16> to vector<88xbf16>
    %441 = vector.shape_cast %438 : vector<88xbf16> to vector<1x88xbf16>
    tpu.vector_store %arg8[%c0_387, %c5016], %441 {strides = array<i32>} : memref<1x5632xbf16, #tpu.memory_space<vmem>>, vector<1x88xbf16>,
    %c58 = arith.constant 58 : index
    %c0_388 = arith.constant 0 : index
    %442 = vector.load %arg7[%c58, %c0_388] : memref<64x88xbf16, #tpu.memory_space<vmem>>, vector<1x88xbf16>
    %443 = vector.shape_cast %442 : vector<1x88xbf16> to vector<88xbf16>
    %c0_389 = arith.constant 0 : index
    %c5104 = arith.constant 5104 : index
    %444 = vector.load %arg8[%c0_389, %c5104] : memref<1x5632xbf16, #tpu.memory_space<vmem>>, vector<1x88xbf16>
    %445 = vector.shape_cast %444 : vector<1x88xbf16> to vector<88xbf16>
    %446 = vector.shape_cast %443 : vector<88xbf16> to vector<1x88xbf16>
    tpu.vector_store %arg8[%c0_389, %c5104], %446 {strides = array<i32>} : memref<1x5632xbf16, #tpu.memory_space<vmem>>, vector<1x88xbf16>,
    %c59 = arith.constant 59 : index
    %c0_390 = arith.constant 0 : index
    %447 = vector.load %arg7[%c59, %c0_390] : memref<64x88xbf16, #tpu.memory_space<vmem>>, vector<1x88xbf16>
    %448 = vector.shape_cast %447 : vector<1x88xbf16> to vector<88xbf16>
    %c0_391 = arith.constant 0 : index
    %c5192 = arith.constant 5192 : index
    %449 = vector.load %arg8[%c0_391, %c5192] : memref<1x5632xbf16, #tpu.memory_space<vmem>>, vector<1x88xbf16>
    %450 = vector.shape_cast %449 : vector<1x88xbf16> to vector<88xbf16>
    %451 = vector.shape_cast %448 : vector<88xbf16> to vector<1x88xbf16>
    tpu.vector_store %arg8[%c0_391, %c5192], %451 {strides = array<i32>} : memref<1x5632xbf16, #tpu.memory_space<vmem>>, vector<1x88xbf16>,
    %c60_392 = arith.constant 60 : index
    %c0_393 = arith.constant 0 : index
    %452 = vector.load %arg7[%c60_392, %c0_393] : memref<64x88xbf16, #tpu.memory_space<vmem>>, vector<1x88xbf16>
    %453 = vector.shape_cast %452 : vector<1x88xbf16> to vector<88xbf16>
    %c0_394 = arith.constant 0 : index
    %c5280 = arith.constant 5280 : index
    %454 = vector.load %arg8[%c0_394, %c5280] : memref<1x5632xbf16, #tpu.memory_space<vmem>>, vector<1x88xbf16>
    %455 = vector.shape_cast %454 : vector<1x88xbf16> to vector<88xbf16>
    %456 = vector.shape_cast %453 : vector<88xbf16> to vector<1x88xbf16>
    tpu.vector_store %arg8[%c0_394, %c5280], %456 {strides = array<i32>} : memref<1x5632xbf16, #tpu.memory_space<vmem>>, vector<1x88xbf16>,
    %c61 = arith.constant 61 : index
    %c0_395 = arith.constant 0 : index
    %457 = vector.load %arg7[%c61, %c0_395] : memref<64x88xbf16, #tpu.memory_space<vmem>>, vector<1x88xbf16>
    %458 = vector.shape_cast %457 : vector<1x88xbf16> to vector<88xbf16>
    %c0_396 = arith.constant 0 : index
    %c5368 = arith.constant 5368 : index
    %459 = vector.load %arg8[%c0_396, %c5368] : memref<1x5632xbf16, #tpu.memory_space<vmem>>, vector<1x88xbf16>
    %460 = vector.shape_cast %459 : vector<1x88xbf16> to vector<88xbf16>
    %461 = vector.shape_cast %458 : vector<88xbf16> to vector<1x88xbf16>
    tpu.vector_store %arg8[%c0_396, %c5368], %461 {strides = array<i32>} : memref<1x5632xbf16, #tpu.memory_space<vmem>>, vector<1x88xbf16>,
    %c62 = arith.constant 62 : index
    %c0_397 = arith.constant 0 : index
    %462 = vector.load %arg7[%c62, %c0_397] : memref<64x88xbf16, #tpu.memory_space<vmem>>, vector<1x88xbf16>
    %463 = vector.shape_cast %462 : vector<1x88xbf16> to vector<88xbf16>
    %c0_398 = arith.constant 0 : index
    %c5456 = arith.constant 5456 : index
    %464 = vector.load %arg8[%c0_398, %c5456] : memref<1x5632xbf16, #tpu.memory_space<vmem>>, vector<1x88xbf16>
    %465 = vector.shape_cast %464 : vector<1x88xbf16> to vector<88xbf16>
    %466 = vector.shape_cast %463 : vector<88xbf16> to vector<1x88xbf16>
    tpu.vector_store %arg8[%c0_398, %c5456], %466 {strides = array<i32>} : memref<1x5632xbf16, #tpu.memory_space<vmem>>, vector<1x88xbf16>,
    %c63_399 = arith.constant 63 : index
    %c0_400 = arith.constant 0 : index
    %467 = vector.load %arg7[%c63_399, %c0_400] : memref<64x88xbf16, #tpu.memory_space<vmem>>, vector<1x88xbf16>
    %468 = vector.shape_cast %467 : vector<1x88xbf16> to vector<88xbf16>
    %c0_401 = arith.constant 0 : index
    %c5544 = arith.constant 5544 : index
    %469 = vector.load %arg8[%c0_401, %c5544] : memref<1x5632xbf16, #tpu.memory_space<vmem>>, vector<1x88xbf16>
    %470 = vector.shape_cast %469 : vector<1x88xbf16> to vector<88xbf16>
    %471 = vector.shape_cast %468 : vector<88xbf16> to vector<1x88xbf16>
    tpu.vector_store %arg8[%c0_401, %c5544], %471 {strides = array<i32>} : memref<1x5632xbf16, #tpu.memory_space<vmem>>, vector<1x88xbf16>,
    %c0_402 = arith.constant 0 : index
    %c0_403 = arith.constant 0 : index
    %472 = vector.load %arg8[%c0_402, %c0_403] : memref<1x5632xbf16, #tpu.memory_space<vmem>>, vector<1x5632xbf16>
    %c0_404 = arith.constant 0 : index
    %c0_405 = arith.constant 0 : index
    %473 = vector.load %arg3[%c0_404, %c0_405] : memref<5632x128xbf16, #tpu.memory_space<vmem>>, vector<5632x128xbf16>
    %cst_406 = arith.constant dense<0.000000e+00> : vector<1x128xf32>
    %474 = tpu.matmul %472, %473, %cst_406 {dimension_numbers = #tpu.dot_dimension_numbers<[1], [0], [0], [1], [0, 0, 1, 1], [], []>} : vector<1x5632xbf16>, vector<5632x128xbf16>, vector<1x128xf32> -> vector<1x128xf32>
    %c0_407 = arith.constant 0 : index
    %c0_408 = arith.constant 0 : index
    %475 = vector.load %arg4[%c0_407, %c0_408] : memref<1x128xf32, #tpu.memory_space<vmem>>, vector<1x128xf32>
    %476 = arith.addf %474, %475 : vector<1x128xf32>
    %c0_409 = arith.constant 0 : index
    %c0_410 = arith.constant 0 : index
    %c0_411 = arith.constant 0 : index
    %477 = vector.load %arg5[%c0_409, %c0_410, %c0_411] : memref<1x1x128xf32, #tpu.memory_space<vmem>>, vector<1x1x128xf32>
    %478 = vector.shape_cast %477 : vector<1x1x128xf32> to vector<1x128xf32>
    %479 = vector.shape_cast %476 : vector<1x128xf32> to vector<1x1x128xf32>
    tpu.vector_store %arg5[%c0_409, %c0_410, %c0_411], %479 {strides = array<i32>} : memref<1x1x128xf32, #tpu.memory_space<vmem>>, vector<1x1x128xf32>,
    return
  }
  func.func @transform_0(%arg0: i32) -> (i32, i32, i32, i32) {
    %c0_i32 = arith.constant 0 : i32
    %c0_i32_0 = arith.constant 0 : i32
    %c0_i32_1 = arith.constant 0 : i32
    %c0_i32_2 = arith.constant 0 : i32
    return %arg0, %c0_i32, %c0_i32_0, %c0_i32_1 : i32, i32, i32, i32
  }
  func.func @transform_1(%arg0: i32) -> (i32, i32) {
    %c0_i32 = arith.constant 0 : i32
    %c0_i32_0 = arith.constant 0 : i32
    %c0_i32_1 = arith.constant 0 : i32
    return %c0_i32, %c0_i32_0 : i32, i32
  }
  func.func @transform_2(%arg0: i32) -> (i32, i32) {
    %c0_i32 = arith.constant 0 : i32
    %c0_i32_0 = arith.constant 0 : i32
    %c0_i32_1 = arith.constant 0 : i32
    return %c0_i32, %c0_i32_0 : i32, i32
  }
  func.func @transform_3(%arg0: i32) -> (i32, i32) {
    %c0_i32 = arith.constant 0 : i32
    %c0_i32_0 = arith.constant 0 : i32
    %c0_i32_1 = arith.constant 0 : i32
    return %c0_i32, %c0_i32_0 : i32, i32
  }
  func.func @transform_4(%arg0: i32) -> (i32, i32, i32) {
    %c0_i32 = arith.constant 0 : i32
    %c0_i32_0 = arith.constant 0 : i32
    %c0_i32_1 = arith.constant 0 : i32
    return %arg0, %c0_i32, %c0_i32_0 : i32, i32, i32
  }
}

</mosaic_0001>

<llo_original>
// kernel: resnet_forward.1
$region0: #{resnet_forward.1}
  #allocation0 [shape = 'u32[]', space=smem, size = 0x4, offset = 0x4, fixed_abs, tag = 'smem constant byte address 0x4 - core index']
  #allocation1 [shape = 'u32[144,128]{1,0:T(1,128)}', space=vmem, size = 0x12000, scoped, tag = 'internal scratch']
  #allocation2 [shape = 'bf16[147,88]{1,0:T(8,128)(2,1)}', space=vmem, size = 0x9800, scoped, tag = 'scratch operand']
  #allocation3 [shape = 'bf16[64,88]{1,0:T(16,128)(2,1)}', space=vmem, size = 0x4000, scoped, tag = 'scratch operand']
  #allocation4 [shape = 'bf16[1,5632]{1,0:T(2,128)(2,1)}', space=vmem, size = 0x5800, scoped, tag = 'scratch operand']
  %s0 = inlined_call_operand.vmem [shape: bf16[2,4,3,128], index: 0, kind: input, shape index: {}]
  %s1 = inlined_call_operand.hbm [shape: bf16[64,147], index: 1, kind: input, shape index: {}]
  %s2 = inlined_call_operand.hbm [shape: bf16[5632,128], index: 2, kind: input, shape index: {}]
  %s3 = inlined_call_operand.hbm [shape: f32[1,128], index: 3, kind: input, shape index: {}]
  %s4 = inlined_call_operand.vmem [shape: f32[2,1,128], index: 4, kind: output, shape index: {}]
  %s5 = sld [smem:[#allocation0]]
  $region61: #{resnet_forward.1} parent=0
    _
  %s7 = ssub.s32 1, %s5
  %s8 = scalar_select 0, %s7, %s5
  $region1: #{resnet_forward.1} parent=0
    #allocation5 [shape = 'u8[32768]{0}', space=vmem, size = 0x8000, scoped, tag = 'input window, operand 1, single buffered']
    #allocation6 [shape = 's32[2]{0}', space=sflag, size = 0x8, scoped, tag = 'scoped memory for resnet_forward.1']
    #allocation7 [shape = 'u8[1441792]{0}', space=vmem, size = 0x160000, scoped, tag = 'input window, operand 2, single buffered']
    #allocation8 [shape = 's32[1]{0}', space=sflag, size = 0x4, scoped, tag = 'scoped memory for resnet_forward.1']
    #allocation9 [shape = 'u8[512]{0}', space=vmem, size = 0x400, scoped, tag = 'input window, operand 3, single buffered']
    %9 = vsyncpa [#allocation6], 0
    %10 = vsyncpa [#allocation8], 0
    loop: start=0, step=1, limit=4
    $region2: #{resnet_forward.1} parent=1 // loop_pre_header
      _
    $region3: #{resnet_forward.1} parent=1 // loop_header
      %s12 = sphi 0, %s16
      %p13 = scmp.ge.s32.totalorder %s12, 4
      %s22 = sphi 0, %s24
      %s25 = sphi 0, %s22
      %s26 = sphi 0, %s25
      %s42 = sphi 0, %s26
      %s46 = sphi 0, %s46
      %s48 = sphi 0, %s46
      %s49 = sphi 0, %s48
      %s63 = sphi 0, %s49
      %s67 = sphi 0, %s67
      %s69 = sphi 0, %s67
      %s70 = sphi 0, %s69
      %s84 = sphi 0, %s70
      %s88 = sphi 0, %s88
      %s90 = sphi 0, %s88
      %s91 = sphi 0, %s90
      %s105 = sphi 0, %s91
      %s111 = sphi 0, %s113
      %s114 = sphi 0, %s111
      %s115 = sphi 0, %s114
      %s131 = sphi 0, %s115
    $region4: #{resnet_forward.1} parent=1 // loop_header_branch
      %15 = sbr.rel (%p13) target = $region8
    $region5: #{resnet_forward.1} parent=1 // loop_body
      %s17 = ssub.s32 %s12, 1
      %s18 = ssub.s32 %s12, 2
      %s19 = sadd.s32 %s12, 1
      %s20 = ssub.s32 %s12, %s19
      %p21 = scmp.eq.s32.totalorder %s20, 0
      %s23 = sadd.s32 %s22, 1
      %s24 = scalar_select %p21, %s22, %s23
      %p27 = pneg %p21
      %p28 = scmp.eq.s32.totalorder %s12, 1
      %p29 = por %p27, %p28
      %p30 = scmp.ne.s32.totalorder %s22, %s25
      %p31 = scmp.eq.s32.totalorder %s12, 0
      %p32 = por %p30, %p31
      %p33 = scmp.ne.s32.totalorder %s22, %s25
      %p34 = scmp.eq.s32.totalorder %s17, 1
      %p35 = por %p33, %p34
      %p36 = scmp.ne.s32.totalorder %s25, %s26
      %p37 = scmp.eq.s32.totalorder %s17, 0
      %p38 = por %p36, %p37
      %p39 = scmp.ne.s32.totalorder %s25, %s26
      %p40 = scmp.eq.s32.totalorder %s18, 1
      %p41 = por %p39, %p40
      %p43 = scmp.ne.s32.totalorder %s26, %s42
      %p44 = scmp.eq.s32.totalorder %s18, 0
      %p45 = por %p43, %p44
      %s47 = sadd.s32 %s46, 1
      %p50 = scmp.eq.s32.totalorder %s12, 1
      %p51 = scmp.ne.s32.totalorder %s46, %s48
      %p52 = scmp.eq.s32.totalorder %s12, 0
      %p53 = por %p51, %p52
      %p54 = scmp.ne.s32.totalorder %s46, %s48
      %p55 = scmp.eq.s32.totalorder %s17, 1
      %p56 = por %p54, %p55
      %p57 = scmp.ne.s32.totalorder %s48, %s49
      %p58 = scmp.eq.s32.totalorder %s17, 0
      %p59 = por %p57, %p58
      %p60 = scmp.ne.s32.totalorder %s48, %s49
      %p61 = scmp.eq.s32.totalorder %s18, 1
      %p62 = por %p60, %p61
      %p64 = scmp.ne.s32.totalorder %s49, %s63
      %p65 = scmp.eq.s32.totalorder %s18, 0
      %p66 = por %p64, %p65
      %s68 = sadd.s32 %s67, 1
      %p71 = scmp.eq.s32.totalorder %s12, 1
      %p72 = scmp.ne.s32.totalorder %s67, %s69
      %p73 = scmp.eq.s32.totalorder %s12, 0
      %p74 = por %p72, %p73
      %p75 = scmp.ne.s32.totalorder %s67, %s69
      %p76 = scmp.eq.s32.totalorder %s17, 1
      %p77 = por %p75, %p76
      %p78 = scmp.ne.s32.totalorder %s69, %s70
      %p79 = scmp.eq.s32.totalorder %s17, 0
      %p80 = por %p78, %p79
      %p81 = scmp.ne.s32.totalorder %s69, %s70
      %p82 = scmp.eq.s32.totalorder %s18, 1
      %p83 = por %p81, %p82
      %p85 = scmp.ne.s32.totalorder %s70, %s84
      %p86 = scmp.eq.s32.totalorder %s18, 0
      %p87 = por %p85, %p86
      %s89 = sadd.s32 %s88, 1
      %p92 = scmp.eq.s32.totalorder %s12, 1
      %p93 = scmp.ne.s32.totalorder %s88, %s90
      %p94 = scmp.eq.s32.totalorder %s12, 0
      %p95 = por %p93, %p94
      %p96 = scmp.ne.s32.totalorder %s88, %s90
      %p97 = scmp.eq.s32.totalorder %s17, 1
      %p98 = por %p96, %p97
      %p99 = scmp.ne.s32.totalorder %s90, %s91
      %p100 = scmp.eq.s32.totalorder %s17, 0
      %p101 = por %p99, %p100
      %p102 = scmp.ne.s32.totalorder %s90, %s91
      %p103 = scmp.eq.s32.totalorder %s18, 1
      %p104 = por %p102, %p103
      %p106 = scmp.ne.s32.totalorder %s91, %s105
      %p107 = scmp.eq.s32.totalorder %s18, 0
      %p108 = por %p106, %p107
      %s109 = ssub.s32 %s12, %s19
      %p110 = scmp.eq.s32.totalorder %s109, 0
      %s112 = sadd.s32 %s111, 1
      %s113 = scalar_select %p110, %s111, %s112
      %p116 = pneg %p110
      %p117 = scmp.eq.s32.totalorder %s12, 1
      %p118 = por %p116, %p117
      %p119 = scmp.ne.s32.totalorder %s111, %s114
      %p120 = scmp.eq.s32.totalorder %s12, 0
      %p121 = por %p119, %p120
      %p122 = scmp.ne.s32.totalorder %s111, %s114
      %p123 = scmp.eq.s32.totalorder %s17, 1
      %p124 = por %p122, %p123
      %p125 = scmp.ne.s32.totalorder %s114, %s115
      %p126 = scmp.eq.s32.totalorder %s17, 0
      %p127 = por %p125, %p126
      %p128 = scmp.ne.s32.totalorder %s114, %s115
      %p129 = scmp.eq.s32.totalorder %s18, 1
      %p130 = por %p128, %p129
      %p132 = scmp.ne.s32.totalorder %s115, %s131
      %p133 = scmp.eq.s32.totalorder %s18, 0
      %p134 = por %p132, %p133
      %p135 = scmp.le.s32.totalorder 1, %s12
      %p136 = scmp.lt.s32.totalorder %s12, 3
      %p137 = pnand %p135, %p136
      %p138 = pneg %p137
      // Predicated region
      $region9: #{resnet_forward.1} parent=5 // pred_check
        _
      $region10: #{resnet_forward.1} parent=5 // pred_check_branch
        %140 = sbr.rel (%p137) target = $region12
      $region11: #{resnet_forward.1} parent=5 // pred_region
        %s141 = ssub.s32 %s12, 1
        // Predicated region
        $region13: #{resnet_forward.1} parent=11 // pred_check
          %p142 = pneg %p59
        $region14: #{resnet_forward.1} parent=11 // pred_check_branch
          %144 = sbr.rel (%p142) target = $region16
        $region15: #{resnet_forward.1} parent=11 // pred_region
          %s146 = ssub.s32 1024, 1024
          %147 = vsyncadd [#allocation6], %s146
          %s148 = sshll.u32 [#allocation5], 4
          %s149 = int_to_ptr.vmem [resolvable:$true] %s148
          %154 = dma.hbm_to_vmem [thread:$0]  %s1, 1024, %s149, [#allocation6], 128, 128, 8
        $region16: #{resnet_forward.1} parent=11 // pred_fallthru
          _
        // Predicated region
        $region17: #{resnet_forward.1} parent=11 // pred_check
          %p155 = pneg %p80
        $region18: #{resnet_forward.1} parent=11 // pred_check_branch
          %157 = sbr.rel (%p155) target = $region20
        $region19: #{resnet_forward.1} parent=11 // pred_region
          %s159 = ssub.s32 45056, 45056
          %160 = vsyncadd [#allocation8], %s159
          %s161 = sshll.u32 [#allocation7], 4
          %s162 = int_to_ptr.vmem [resolvable:$true] %s161
          %167 = dma.hbm_to_vmem [thread:$0]  %s2, 45056, %s162, [#allocation8], 64, 64, 4
        $region20: #{resnet_forward.1} parent=11 // pred_fallthru
          _
        // Predicated region
        $region21: #{resnet_forward.1} parent=11 // pred_check
          %p168 = pneg %p101
        $region22: #{resnet_forward.1} parent=11 // pred_check_branch
          %170 = sbr.rel (%p168) target = $region24
        $region23: #{resnet_forward.1} parent=11 // pred_region
          %s172 = ssub.s32 16, 16
          %173 = vsyncadd [#allocation8], %s172
          %s175 = sshll.u32 [#allocation9], 4
          %s176 = int_to_ptr.vmem [resolvable:$true] %s175
          %178 = dma.hbm_to_vmem [thread:$0]  %s3, 16, %s176, [#allocation8]
        $region24: #{resnet_forward.1} parent=11 // pred_fallthru
          _
      $region12: #{resnet_forward.1} parent=5 // pred_fallthru
        _
      %p179 = scmp.lt.s32.totalorder %s12, 2
      // Predicated region
      $region25: #{resnet_forward.1} parent=5 // pred_check
        %p180 = pneg %p179
      $region26: #{resnet_forward.1} parent=5 // pred_check_branch
        %182 = sbr.rel (%p180) target = $region28
      $region27: #{resnet_forward.1} parent=5 // pred_region
        // Predicated region
        $region29: #{resnet_forward.1} parent=27 // pred_check
          %p183 = pneg %p32
        $region30: #{resnet_forward.1} parent=27 // pred_check_branch
          %185 = sbr.rel (%p183) target = $region32
        $region31: #{resnet_forward.1} parent=27 // pred_region
          %p186 = scmp.lt.s32.totalorder %s12, 1
          %s187 = scalar_select %p186, %s12, 1
          %s188 = smul.addr %s187, 4
          %s189 = smul.addr %s188, 2
          %s190 = scalar_lea.vmem %s0, %s189
        $region32: #{resnet_forward.1} parent=27 // pred_fallthru
          _
      $region28: #{resnet_forward.1} parent=5 // pred_fallthru
        _
      %p191 = scmp.le.s32.totalorder 1, %s12
      %p192 = scmp.lt.s32.totalorder %s12, 3
      %p193 = pnand %p191, %p192
      %p194 = pneg %p193
      // Predicated region
      $region33: #{resnet_forward.1} parent=5 // pred_check
        _
      $region34: #{resnet_forward.1} parent=5 // pred_check_branch
        %196 = sbr.rel (%p193) target = $region36
      $region35: #{resnet_forward.1} parent=5 // pred_region
        %s197 = ssub.s32 %s12, 1
        // Predicated region
        $region37: #{resnet_forward.1} parent=35 // pred_check
          %p198 = pneg %p59
        $region38: #{resnet_forward.1} parent=35 // pred_check_branch
          %200 = sbr.rel (%p198) target = $region40
        $region39: #{resnet_forward.1} parent=35 // pred_region
          %201 = dma.done [#allocation6], 1024
        $region40: #{resnet_forward.1} parent=35 // pred_fallthru
          _
        // Predicated region
        $region41: #{resnet_forward.1} parent=35 // pred_check
          %p202 = pneg %p80
        $region42: #{resnet_forward.1} parent=35 // pred_check_branch
          %204 = sbr.rel (%p202) target = $region44
        $region43: #{resnet_forward.1} parent=35 // pred_region
          %205 = dma.done [#allocation8], 45056
        $region44: #{resnet_forward.1} parent=35 // pred_fallthru
          _
        // Predicated region
        $region45: #{resnet_forward.1} parent=35 // pred_check
          %p206 = pneg %p101
        $region46: #{resnet_forward.1} parent=35 // pred_check_branch
          %208 = sbr.rel (%p206) target = $region48
        $region47: #{resnet_forward.1} parent=35 // pred_region
          %209 = dma.done [#allocation8], 16
        $region48: #{resnet_forward.1} parent=35 // pred_fallthru
          _
        %p210 = scmp.lt.s32.totalorder %s17, 1
        %s211 = scalar_select %p210, %s17, 1
        %s212 = smul.addr %s211, 4
        %s213 = smul.addr %s212, 2
        %s214 = scalar_lea.vmem %s0, %s213
        %p215 = pneg %p38
        %p216 = pneg %p35
        %p217 = pneg %p59
        %p218 = pneg %p56
        %p219 = pneg %p80
        %p220 = pneg %p77
        %p221 = pneg %p101
        %p222 = pneg %p98
        %p223 = pneg %p127
        %p224 = pneg %p124
        %p225 = scmp.lt.s32.totalorder %s17, 1
        %s226 = scalar_select %p225, %s17, 1
        %s227 = scalar_lea.vmem %s4, %s226
        %p228 = scmp.lt.s32.totalorder %s17, 1
        %s229 = scalar_select %p228, %s17, 1
        %s230 = smul.addr %s229, 4
        %s231 = smul.addr %s230, 2
        %s232 = scalar_lea.vmem %s0, %s231
        %p233 = scmp.lt.s32.totalorder %s17, 1
        %s234 = scalar_select %p233, %s17, 1
        %s235 = scalar_lea.vmem %s4, %s234
        %v237 = vld [vmem:[%s232] sm:$0x3]
        %vm238 = vcmask 713728
        %vm239 = vsmask.f32 1280
        %vm240 = vmand %vm238, %vm239
        %v241 = vld [vmem:[#allocation2] sm:$0x3]
        %v242 = vsel %vm240, %v237, %v241
        %243 = vst [vmem:[#allocation2] sm:$0x3] %v242
        %s244 = scalar_lea.vmem %s232, 2
        %v245 = vld [vmem:[%s244] sm:$0x3]
        %v248 = vunpack.c.l.s4 1983009808
        %v249 = vunpack.c.0.s8 %v248
        %v250 = vlaneseq
        %v251 = vshrl.u32 %v250, 7
        %v252 = vsub.s32 %v249, %v251
        %v253 = vrot.slane %v245, %v252
        %v255 = vshrl.u32 %v253, 16
        %v257 = vrot.slane %v255, 6
        %v258 = vshll.u32 %v253, 16
        %v260 = vrot.slane %v258, 7
        %v261 = vor.u32 %v257, %v260
        %vm263 = vcmask 714753
        %vm264 = vsmask.f32 7942
        %vm265 = vmand %vm263, %vm264
        %v266 = vld [vmem:[#allocation2] sm:$0x6]
        %v267 = vsel %vm265, %v261, %v266
        %268 = vst [vmem:[#allocation2] sm:$0x6] %v267
        %v269 = vld [vmem:[%s232] sm:$0x3]
        %v272 = vunpack.c.l.s4 1983009808
        %v273 = vunpack.c.0.s8 %v272
        %v274 = vlaneseq
        %v275 = vshrl.u32 %v274, 7
        %v276 = vsub.s32 %v273, %v275
        %v277 = vrot.slane %v269, %v276
        %v278 = vrot.slane %v277, 5
        %v279 = vrot.slane %v278, 4
        %280 = vrot.lane.b32.xlu0 %v278, 127
        %v281 = vpop.permute.xlu0 %280
        %282 = vrot.lane.b32.xlu0 %v279, 127
        %v283 = vpop.permute.xlu0 %282
        %vm286 = vcmask 715779
        %287 = vst.msk [vmem:[#allocation2] sm:$0x8] %vm286, %v281
        %vm288 = vcmask 712704
        %vm289 = vsmask.f32 256
        %vm290 = vmand %vm288, %vm289
        %v291 = vld [vmem:[#allocation2 + $0x4] sm:$0x1]
        %v292 = vsel %vm290, %v283, %v291
        %293 = vst [vmem:[#allocation2 + $0x4] sm:$0x1] %v292
        %v294 = vld [vmem:[%s244] sm:$0x3]
        %v297 = vunpack.c.l.s4 1983009808
        %v298 = vunpack.c.0.s8 %v297
        %v299 = vlaneseq
        %v300 = vshrl.u32 %v299, 7
        %v301 = vsub.s32 %v298, %v300
        %v302 = vrot.slane %v294, %v301
        %v304 = vshrl.u32 %v302, 16
        %v306 = vrot.slane %v304, 7
        %v307 = vshll.u32 %v302, 16
        %v309 = vor.u32 %v306, %v307
        %310 = vrot.lane.b32.xlu0 %v309, 127
        %v311 = vpop.permute.xlu0 %310
        %vm313 = vsmask.f32 7938
        %vm314 = vmand %vm238, %vm313
        %v315 = vld [vmem:[#allocation2 + $0x4] sm:$0x3]
        %v316 = vsel %vm314, %v311, %v315
        %317 = vst [vmem:[#allocation2 + $0x4] sm:$0x3] %v316
        %v318 = vld [vmem:[%s232] sm:$0x3]
        %v320 = vcombine.low %v318, %v318
        %v322 = vunpack.c.l.s4 1983009808
        %v323 = vunpack.c.0.s8 %v322
        %v324 = vlaneseq
        %v325 = vshrl.u32 %v324, 7
        %v326 = vsub.s32 %v323, %v325
        %v327 = vrot.slane %v320, %v326
        %328 = vrot.lane.b32.xlu0 %v327, 126
        %v329 = vpop.permute.xlu0 %328
        %vm331 = vcmask 715778
        %vm332 = vsmask.f32 3328
        %vm333 = vmand %vm331, %vm332
        %v334 = vld [vmem:[#allocation2 + $0x4] sm:$0xc]
        %v335 = vsel %vm333, %v329, %v334
        %336 = vst [vmem:[#allocation2 + $0x4] sm:$0xc] %v335
        %v337 = vld [vmem:[%s244] sm:$0x3]
        %v340 = vunpack.c.l.s4 1983009808
        %v341 = vunpack.c.0.s8 %v340
        %v342 = vlaneseq
        %v343 = vshrl.u32 %v342, 7
        %v344 = vsub.s32 %v341, %v343
        %v345 = vrot.slane %v337, %v344
        %v347 = vshll.u32 %v345, 16
        %v349 = vrot.slane %v347, 5
        %v350 = vshrl.u32 %v345, 16
        %v352 = vrot.slane %v350, 4
        %v353 = vor.u32 %v352, %v349
        %v354 = vrot.slane %v353, 4
        %355 = vrot.lane.b32.xlu0 %v349, 126
        %v356 = vpop.permute.xlu0 %355
        %357 = vrot.lane.b32.xlu0 %v354, 126
        %v358 = vpop.permute.xlu0 %357
        %vm361 = vcmask 715779
        %vm362 = vsmask.f32 7950
        %vm363 = vmand %vm361, %vm362
        %v364 = vld [vmem:[#allocation2 + $0x4] sm:$0x8]
        %v365 = vsel %vm363, %v356, %v364
        %366 = vst [vmem:[#allocation2 + $0x4] sm:$0x8] %v365
        %vm367 = vcmask 712704
        %368 = vst.msk [vmem:[#allocation2 + $0x8] sm:$0x1] %vm367, %v358
        %v369 = vld [vmem:[%s232] sm:$0x3]
        %v372 = vunpack.c.l.s4 1983009808
        %v373 = vunpack.c.0.s8 %v372
        %v374 = vlaneseq
        %v375 = vshrl.u32 %v374, 7
        %v376 = vsub.s32 %v373, %v375
        %v377 = vrot.slane %v369, %v376
        %v378 = vrot.slane %v377, 7
        %379 = vrot.lane.b32.xlu0 %v378, 125
        %v380 = vpop.permute.xlu0 %379
        %vm382 = vsmask.f32 2304
        %vm383 = vmand %vm263, %vm382
        %v384 = vld [vmem:[#allocation2 + $0x8] sm:$0x6]
        %v385 = vsel %vm383, %v380, %v384
        %386 = vst [vmem:[#allocation2 + $0x8] sm:$0x6] %v385
        %s387 = scalar_lea.vmem %s232, 4
        %v388 = vld [vmem:[%s387] sm:$0x3]
        %v391 = vunpack.c.l.s4 1983009808
        %v392 = vunpack.c.0.s8 %v391
        %v393 = vlaneseq
        %v394 = vshrl.u32 %v393, 7
        %v395 = vsub.s32 %v392, %v394
        %v396 = vrot.slane %v388, %v395
        %v398 = vshrl.u32 %v396, 16
        %v400 = vrot.slane %v398, 5
        %v401 = vshll.u32 %v396, 16
        %v403 = vrot.slane %v401, 6
        %v404 = vor.u32 %v400, %v403
        %vm406 = vsmask.f32 7946
        %vm407 = vmand %vm331, %vm406
        %v408 = vld [vmem:[#allocation2 + $0x8] sm:$0xc]
        %v409 = vsel %vm407, %v404, %v408
        %410 = vst [vmem:[#allocation2 + $0x8] sm:$0xc] %v409
        %s411 = scalar_lea.vmem %s232, 6
        %v412 = vld [vmem:[%s411] sm:$0x3]
        %v413 = vld [vmem:[#allocation2 + $0xc] sm:$0x3]
        %v414 = vsel %vm240, %v412, %v413
        %415 = vst [vmem:[#allocation2 + $0xc] sm:$0x3] %v414
        %v416 = vld [vmem:[%s387] sm:$0x3]
        %v419 = vunpack.c.l.s4 1983009808
        %v420 = vunpack.c.0.s8 %v419
        %v421 = vlaneseq
        %v422 = vshrl.u32 %v421, 7
        %v423 = vsub.s32 %v420, %v422
        %v424 = vrot.slane %v416, %v423
        %v426 = vshrl.u32 %v424, 16
        %v428 = vrot.slane %v426, 6
        %v429 = vshll.u32 %v424, 16
        %v431 = vrot.slane %v429, 7
        %v432 = vor.u32 %v428, %v431
        %433 = vrot.lane.b32.xlu0 %v432, 127
        %v434 = vpop.permute.xlu0 %433
        %v436 = vld [vmem:[#allocation2 + $0xc] sm:$0x6]
        %v437 = vsel %vm265, %v434, %v436
        %438 = vst [vmem:[#allocation2 + $0xc] sm:$0x6] %v437
        %v439 = vld [vmem:[%s411] sm:$0x3]
        %v442 = vunpack.c.l.s4 1983009808
        %v443 = vunpack.c.0.s8 %v442
        %v444 = vlaneseq
        %v445 = vshrl.u32 %v444, 7
        %v446 = vsub.s32 %v443, %v445
        %v447 = vrot.slane %v439, %v446
        %v448 = vrot.slane %v447, 5
        %v449 = vrot.slane %v448, 4
        %450 = vrot.lane.b32.xlu0 %v448, 127
        %v451 = vpop.permute.xlu0 %450
        %452 = vrot.lane.b32.xlu0 %v449, 127
        %v453 = vpop.permute.xlu0 %452
        %456 = vst.msk [vmem:[#allocation2 + $0xc] sm:$0x8] %vm286, %v451
        %v457 = vld [vmem:[#allocation2 + $0x10] sm:$0x1]
        %v458 = vsel %vm290, %v453, %v457
        %459 = vst [vmem:[#allocation2 + $0x10] sm:$0x1] %v458
        %v460 = vld [vmem:[%s387] sm:$0x3]
        %v463 = vunpack.c.l.s4 1983009808
        %v464 = vunpack.c.0.s8 %v463
        %v465 = vlaneseq
        %v466 = vshrl.u32 %v465, 7
        %v467 = vsub.s32 %v464, %v466
        %v468 = vrot.slane %v460, %v467
        %v470 = vshrl.u32 %v468, 16
        %v472 = vrot.slane %v470, 7
        %v473 = vshll.u32 %v468, 16
        %v475 = vor.u32 %v472, %v473
        %476 = vrot.lane.b32.xlu0 %v475, 126
        %v477 = vpop.permute.xlu0 %476
        %v479 = vld [vmem:[#allocation2 + $0x10] sm:$0x3]
        %v480 = vsel %vm314, %v477, %v479
        %481 = vst [vmem:[#allocation2 + $0x10] sm:$0x3] %v480
        %v482 = vld [vmem:[%s411] sm:$0x3]
        %v484 = vcombine.low %v482, %v482
        %v486 = vunpack.c.l.s4 1983009808
        %v487 = vunpack.c.0.s8 %v486
        %v488 = vlaneseq
        %v489 = vshrl.u32 %v488, 7
        %v490 = vsub.s32 %v487, %v489
        %v491 = vrot.slane %v484, %v490
        %492 = vrot.lane.b32.xlu0 %v491, 126
        %v493 = vpop.permute.xlu0 %492
        %v495 = vld [vmem:[#allocation2 + $0x10] sm:$0xc]
        %v496 = vsel %vm333, %v493, %v495
        %497 = vst [vmem:[#allocation2 + $0x10] sm:$0xc] %v496
        %v498 = vld [vmem:[%s387] sm:$0x3]
        %v501 = vunpack.c.l.s4 1983009808
        %v502 = vunpack.c.0.s8 %v501
        %v503 = vlaneseq
        %v504 = vshrl.u32 %v503, 7
        %v505 = vsub.s32 %v502, %v504
        %v506 = vrot.slane %v498, %v505
        %v508 = vshll.u32 %v506, 16
        %v510 = vrot.slane %v508, 5
        %v511 = vshrl.u32 %v506, 16
        %v513 = vrot.slane %v511, 4
        %v514 = vor.u32 %v513, %v510
        %v515 = vrot.slane %v514, 4
        %516 = vrot.lane.b32.xlu0 %v510, 125
        %v517 = vpop.permute.xlu0 %516
        %518 = vrot.lane.b32.xlu0 %v515, 125
        %v519 = vpop.permute.xlu0 %518
        %v522 = vld [vmem:[#allocation2 + $0x10] sm:$0x8]
        %v523 = vsel %vm363, %v517, %v522
        %524 = vst [vmem:[#allocation2 + $0x10] sm:$0x8] %v523
        %525 = vst.msk [vmem:[#allocation2 + $0x14] sm:$0x1] %vm367, %v519
        %v526 = vld [vmem:[%s232] sm:$0x3]
        %v529 = vunpack.c.l.s4 1983009808
        %v530 = vunpack.c.0.s8 %v529
        %v531 = vlaneseq
        %v532 = vshrl.u32 %v531, 7
        %v533 = vsub.s32 %v530, %v532
        %v534 = vrot.slane %v526, %v533
        %v535 = vrot.slane %v534, 7
        %536 = vrot.lane.b32.xlu0 %v535, 117
        %v537 = vpop.permute.xlu0 %536
        %v539 = vld [vmem:[#allocation2 + $0x14] sm:$0x6]
        %v540 = vsel %vm383, %v537, %v539
        %541 = vst [vmem:[#allocation2 + $0x14] sm:$0x6] %v540
        %v542 = vld [vmem:[%s244] sm:$0x3]
        %v545 = vunpack.c.l.s4 1983009808
        %v546 = vunpack.c.0.s8 %v545
        %v547 = vlaneseq
        %v548 = vshrl.u32 %v547, 7
        %v549 = vsub.s32 %v546, %v548
        %v550 = vrot.slane %v542, %v549
        %v552 = vshrl.u32 %v550, 16
        %v554 = vrot.slane %v552, 5
        %v555 = vshll.u32 %v550, 16
        %v557 = vrot.slane %v555, 6
        %v558 = vor.u32 %v554, %v557
        %559 = vrot.lane.b32.xlu0 %v558, 117
        %v560 = vpop.permute.xlu0 %559
        %v562 = vld [vmem:[#allocation2 + $0x14] sm:$0xc]
        %v563 = vsel %vm407, %v560, %v562
        %564 = vst [vmem:[#allocation2 + $0x14] sm:$0xc] %v563
        %v565 = vld [vmem:[%s232] sm:$0x3]
        %v568 = vunpack.c.l.s4 1983009808
        %v569 = vunpack.c.0.s8 %v568
        %v570 = vlaneseq
        %v571 = vshrl.u32 %v570, 7
        %v572 = vsub.s32 %v569, %v571
        %v573 = vrot.slane %v565, %v572
        %574 = vrot.lane.b32.xlu0 %v573, 116
        %v575 = vpop.permute.xlu0 %574
        %v577 = vld [vmem:[#allocation2 + $0x18] sm:$0x3]
        %v578 = vsel %vm240, %v575, %v577
        %579 = vst [vmem:[#allocation2 + $0x18] sm:$0x3] %v578
        %v580 = vld [vmem:[%s244] sm:$0x3]
        %v583 = vunpack.c.l.s4 1983009808
        %v584 = vunpack.c.0.s8 %v583
        %v585 = vlaneseq
        %v586 = vshrl.u32 %v585, 7
        %v587 = vsub.s32 %v584, %v586
        %v588 = vrot.slane %v580, %v587
        %v590 = vshrl.u32 %v588, 16
        %v592 = vrot.slane %v590, 6
        %v593 = vshll.u32 %v588, 16
        %v595 = vrot.slane %v593, 7
        %v596 = vor.u32 %v592, %v595
        %597 = vrot.lane.b32.xlu0 %v596, 116
        %v598 = vpop.permute.xlu0 %597
        %v600 = vld [vmem:[#allocation2 + $0x18] sm:$0x6]
        %v601 = vsel %vm265, %v598, %v600
        %602 = vst [vmem:[#allocation2 + $0x18] sm:$0x6] %v601
        %v603 = vld [vmem:[%s232] sm:$0x3]
        %v606 = vunpack.c.l.s4 1983009808
        %v607 = vunpack.c.0.s8 %v606
        %v608 = vlaneseq
        %v609 = vshrl.u32 %v608, 7
        %v610 = vsub.s32 %v607, %v609
        %v611 = vrot.slane %v603, %v610
        %v612 = vrot.slane %v611, 5
        %v613 = vrot.slane %v612, 4
        %614 = vrot.lane.b32.xlu0 %v612, 115
        %v615 = vpop.permute.xlu0 %614
        %616 = vrot.lane.b32.xlu0 %v613, 115
        %v617 = vpop.permute.xlu0 %616
        %620 = vst.msk [vmem:[#allocation2 + $0x18] sm:$0x8] %vm286, %v615
        %v621 = vld [vmem:[#allocation2 + $0x1c] sm:$0x1]
        %v622 = vsel %vm290, %v617, %v621
        %623 = vst [vmem:[#allocation2 + $0x1c] sm:$0x1] %v622
        %v624 = vld [vmem:[%s244] sm:$0x3]
        %v627 = vunpack.c.l.s4 1983009808
        %v628 = vunpack.c.0.s8 %v627
        %v629 = vlaneseq
        %v630 = vshrl.u32 %v629, 7
        %v631 = vsub.s32 %v628, %v630
        %v632 = vrot.slane %v624, %v631
        %v634 = vshrl.u32 %v632, 16
        %v636 = vrot.slane %v634, 7
        %v637 = vshll.u32 %v632, 16
        %v639 = vor.u32 %v636, %v637
        %640 = vrot.lane.b32.xlu0 %v639, 115
        %v641 = vpop.permute.xlu0 %640
        %v643 = vld [vmem:[#allocation2 + $0x1c] sm:$0x3]
        %v644 = vsel %vm314, %v641, %v643
        %645 = vst [vmem:[#allocation2 + $0x1c] sm:$0x3] %v644
        %v646 = vld [vmem:[%s232] sm:$0x3]
        %v648 = vcombine.low %v646, %v646
        %v650 = vunpack.c.l.s4 1983009808
        %v651 = vunpack.c.0.s8 %v650
        %v652 = vlaneseq
        %v653 = vshrl.u32 %v652, 7
        %v654 = vsub.s32 %v651, %v653
        %v655 = vrot.slane %v648, %v654
        %656 = vrot.lane.b32.xlu0 %v655, 114
        %v657 = vpop.permute.xlu0 %656
        %v659 = vld [vmem:[#allocation2 + $0x1c] sm:$0xc]
        %v660 = vsel %vm333, %v657, %v659
        %661 = vst [vmem:[#allocation2 + $0x1c] sm:$0xc] %v660
        %v662 = vld [vmem:[%s387] sm:$0x3]
        %v665 = vunpack.c.l.s4 1983009808
        %v666 = vunpack.c.0.s8 %v665
        %v667 = vlaneseq
        %v668 = vshrl.u32 %v667, 7
        %v669 = vsub.s32 %v666, %v668
        %v670 = vrot.slane %v662, %v669
        %v672 = vshll.u32 %v670, 16
        %v674 = vrot.slane %v672, 5
        %v675 = vshrl.u32 %v670, 16
        %v677 = vrot.slane %v675, 4
        %v678 = vor.u32 %v677, %v674
        %v679 = vrot.slane %v678, 4
        %680 = vrot.lane.b32.xlu0 %v674, 117
        %v681 = vpop.permute.xlu0 %680
        %682 = vrot.lane.b32.xlu0 %v679, 117
        %v683 = vpop.permute.xlu0 %682
        %v686 = vld [vmem:[#allocation2 + $0x1c] sm:$0x8]
        %v687 = vsel %vm363, %v681, %v686
        %688 = vst [vmem:[#allocation2 + $0x1c] sm:$0x8] %v687
        %689 = vst.msk [vmem:[#allocation2 + $0x20] sm:$0x1] %vm367, %v683
        %v690 = vld [vmem:[%s411] sm:$0x3]
        %v693 = vunpack.c.l.s4 1983009808
        %v694 = vunpack.c.0.s8 %v693
        %v695 = vlaneseq
        %v696 = vshrl.u32 %v695, 7
        %v697 = vsub.s32 %v694, %v696
        %v698 = vrot.slane %v690, %v697
        %v699 = vrot.slane %v698, 7
        %700 = vrot.lane.b32.xlu0 %v699, 117
        %v701 = vpop.permute.xlu0 %700
        %v703 = vld [vmem:[#allocation2 + $0x20] sm:$0x6]
        %v704 = vsel %vm383, %v701, %v703
        %705 = vst [vmem:[#allocation2 + $0x20] sm:$0x6] %v704
        %v706 = vld [vmem:[%s387] sm:$0x3]
        %v709 = vunpack.c.l.s4 1983009808
        %v710 = vunpack.c.0.s8 %v709
        %v711 = vlaneseq
        %v712 = vshrl.u32 %v711, 7
        %v713 = vsub.s32 %v710, %v712
        %v714 = vrot.slane %v706, %v713
        %v716 = vshrl.u32 %v714, 16
        %v718 = vrot.slane %v716, 5
        %v719 = vshll.u32 %v714, 16
        %v721 = vrot.slane %v719, 6
        %v722 = vor.u32 %v718, %v721
        %723 = vrot.lane.b32.xlu0 %v722, 116
        %v724 = vpop.permute.xlu0 %723
        %v726 = vld [vmem:[#allocation2 + $0x20] sm:$0xc]
        %v727 = vsel %vm407, %v724, %v726
        %728 = vst [vmem:[#allocation2 + $0x20] sm:$0xc] %v727
        %v729 = vld [vmem:[%s411] sm:$0x3]
        %v732 = vunpack.c.l.s4 1983009808
        %v733 = vunpack.c.0.s8 %v732
        %v734 = vlaneseq
        %v735 = vshrl.u32 %v734, 7
        %v736 = vsub.s32 %v733, %v735
        %v737 = vrot.slane %v729, %v736
        %738 = vrot.lane.b32.xlu0 %v737, 116
        %v739 = vpop.permute.xlu0 %738
        %v741 = vld [vmem:[#allocation2 + $0x24] sm:$0x3]
        %v742 = vsel %vm240, %v739, %v741
        %743 = vst [vmem:[#allocation2 + $0x24] sm:$0x3] %v742
        %v744 = vld [vmem:[%s387] sm:$0x3]
        %v747 = vunpack.c.l.s4 1983009808
        %v748 = vunpack.c.0.s8 %v747
        %v749 = vlaneseq
        %v750 = vshrl.u32 %v749, 7
        %v751 = vsub.s32 %v748, %v750
        %v752 = vrot.slane %v744, %v751
        %v754 = vshrl.u32 %v752, 16
        %v756 = vrot.slane %v754, 6
        %v757 = vshll.u32 %v752, 16
        %v759 = vrot.slane %v757, 7
        %v760 = vor.u32 %v756, %v759
        %761 = vrot.lane.b32.xlu0 %v760, 115
        %v762 = vpop.permute.xlu0 %761
        %v764 = vld [vmem:[#allocation2 + $0x24] sm:$0x6]
        %v765 = vsel %vm265, %v762, %v764
        %766 = vst [vmem:[#allocation2 + $0x24] sm:$0x6] %v765
        %v767 = vld [vmem:[%s411] sm:$0x3]
        %v770 = vunpack.c.l.s4 1983009808
        %v771 = vunpack.c.0.s8 %v770
        %v772 = vlaneseq
        %v773 = vshrl.u32 %v772, 7
        %v774 = vsub.s32 %v771, %v773
        %v775 = vrot.slane %v767, %v774
        %v776 = vrot.slane %v775, 5
        %v777 = vrot.slane %v776, 4
        %778 = vrot.lane.b32.xlu0 %v776, 115
        %v779 = vpop.permute.xlu0 %778
        %780 = vrot.lane.b32.xlu0 %v777, 115
        %v781 = vpop.permute.xlu0 %780
        %784 = vst.msk [vmem:[#allocation2 + $0x24] sm:$0x8] %vm286, %v779
        %v785 = vld [vmem:[#allocation2 + $0x28] sm:$0x1]
        %v786 = vsel %vm290, %v781, %v785
        %787 = vst [vmem:[#allocation2 + $0x28] sm:$0x1] %v786
        %v788 = vld [vmem:[%s387] sm:$0x3]
        %v791 = vunpack.c.l.s4 1983009808
        %v792 = vunpack.c.0.s8 %v791
        %v793 = vlaneseq
        %v794 = vshrl.u32 %v793, 7
        %v795 = vsub.s32 %v792, %v794
        %v796 = vrot.slane %v788, %v795
        %v798 = vshrl.u32 %v796, 16
        %v800 = vrot.slane %v798, 7
        %v801 = vshll.u32 %v796, 16
        %v803 = vor.u32 %v800, %v801
        %804 = vrot.lane.b32.xlu0 %v803, 114
        %v805 = vpop.permute.xlu0 %804
        %v807 = vld [vmem:[#allocation2 + $0x28] sm:$0x3]
        %v808 = vsel %vm314, %v805, %v807
        %809 = vst [vmem:[#allocation2 + $0x28] sm:$0x3] %v808
        %v810 = vld [vmem:[%s232] sm:$0x3]
        %v812 = vcombine.low %v810, %v810
        %v814 = vunpack.c.l.s4 1983009808
        %v815 = vunpack.c.0.s8 %v814
        %v816 = vlaneseq
        %v817 = vshrl.u32 %v816, 7
        %v818 = vsub.s32 %v815, %v817
        %v819 = vrot.slane %v812, %v818
        %820 = vrot.lane.b32.xlu0 %v819, 106
        %v821 = vpop.permute.xlu0 %820
        %v823 = vld [vmem:[#allocation2 + $0x28] sm:$0xc]
        %v824 = vsel %vm333, %v821, %v823
        %825 = vst [vmem:[#allocation2 + $0x28] sm:$0xc] %v824
        %v826 = vld [vmem:[%s244] sm:$0x3]
        %v829 = vunpack.c.l.s4 1983009808
        %v830 = vunpack.c.0.s8 %v829
        %v831 = vlaneseq
        %v832 = vshrl.u32 %v831, 7
        %v833 = vsub.s32 %v830, %v832
        %v834 = vrot.slane %v826, %v833
        %v836 = vshll.u32 %v834, 16
        %v838 = vrot.slane %v836, 5
        %v839 = vshrl.u32 %v834, 16
        %v841 = vrot.slane %v839, 4
        %v842 = vor.u32 %v841, %v838
        %v843 = vrot.slane %v842, 4
        %844 = vrot.lane.b32.xlu0 %v838, 106
        %v845 = vpop.permute.xlu0 %844
        %846 = vrot.lane.b32.xlu0 %v843, 106
        %v847 = vpop.permute.xlu0 %846
        %v850 = vld [vmem:[#allocation2 + $0x28] sm:$0x8]
        %v851 = vsel %vm363, %v845, %v850
        %852 = vst [vmem:[#allocation2 + $0x28] sm:$0x8] %v851
        %853 = vst.msk [vmem:[#allocation2 + $0x2c] sm:$0x1] %vm367, %v847
        %v854 = vld [vmem:[%s232] sm:$0x3]
        %v857 = vunpack.c.l.s4 1983009808
        %v858 = vunpack.c.0.s8 %v857
        %v859 = vlaneseq
        %v860 = vshrl.u32 %v859, 7
        %v861 = vsub.s32 %v858, %v860
        %v862 = vrot.slane %v854, %v861
        %v863 = vrot.slane %v862, 7
        %864 = vrot.lane.b32.xlu0 %v863, 105
        %v865 = vpop.permute.xlu0 %864
        %v867 = vld [vmem:[#allocation2 + $0x2c] sm:$0x6]
        %v868 = vsel %vm383, %v865, %v867
        %869 = vst [vmem:[#allocation2 + $0x2c] sm:$0x6] %v868
        %v870 = vld [vmem:[%s244] sm:$0x3]
        %v873 = vunpack.c.l.s4 1983009808
        %v874 = vunpack.c.0.s8 %v873
        %v875 = vlaneseq
        %v876 = vshrl.u32 %v875, 7
        %v877 = vsub.s32 %v874, %v876
        %v878 = vrot.slane %v870, %v877
        %v880 = vshrl.u32 %v878, 16
        %v882 = vrot.slane %v880, 5
        %v883 = vshll.u32 %v878, 16
        %v885 = vrot.slane %v883, 6
        %v886 = vor.u32 %v882, %v885
        %887 = vrot.lane.b32.xlu0 %v886, 105
        %v888 = vpop.permute.xlu0 %887
        %v890 = vld [vmem:[#allocation2 + $0x2c] sm:$0xc]
        %v891 = vsel %vm407, %v888, %v890
        %892 = vst [vmem:[#allocation2 + $0x2c] sm:$0xc] %v891
        %v893 = vld [vmem:[%s232] sm:$0x3]
        %v896 = vunpack.c.l.s4 1983009808
        %v897 = vunpack.c.0.s8 %v896
        %v898 = vlaneseq
        %v899 = vshrl.u32 %v898, 7
        %v900 = vsub.s32 %v897, %v899
        %v901 = vrot.slane %v893, %v900
        %902 = vrot.lane.b32.xlu0 %v901, 104
        %v903 = vpop.permute.xlu0 %902
        %v905 = vld [vmem:[#allocation2 + $0x30] sm:$0x3]
        %v906 = vsel %vm240, %v903, %v905
        %907 = vst [vmem:[#allocation2 + $0x30] sm:$0x3] %v906
        %v908 = vld [vmem:[%s244] sm:$0x3]
        %v911 = vunpack.c.l.s4 1983009808
        %v912 = vunpack.c.0.s8 %v911
        %v913 = vlaneseq
        %v914 = vshrl.u32 %v913, 7
        %v915 = vsub.s32 %v912, %v914
        %v916 = vrot.slane %v908, %v915
        %v918 = vshrl.u32 %v916, 16
        %v920 = vrot.slane %v918, 6
        %v921 = vshll.u32 %v916, 16
        %v923 = vrot.slane %v921, 7
        %v924 = vor.u32 %v920, %v923
        %925 = vrot.lane.b32.xlu0 %v924, 104
        %v926 = vpop.permute.xlu0 %925
        %v928 = vld [vmem:[#allocation2 + $0x30] sm:$0x6]
        %v929 = vsel %vm265, %v926, %v928
        %930 = vst [vmem:[#allocation2 + $0x30] sm:$0x6] %v929
        %v931 = vld [vmem:[%s232] sm:$0x3]
        %v934 = vunpack.c.l.s4 1983009808
        %v935 = vunpack.c.0.s8 %v934
        %v936 = vlaneseq
        %v937 = vshrl.u32 %v936, 7
        %v938 = vsub.s32 %v935, %v937
        %v939 = vrot.slane %v931, %v938
        %v940 = vrot.slane %v939, 5
        %v941 = vrot.slane %v940, 4
        %942 = vrot.lane.b32.xlu0 %v940, 103
        %v943 = vpop.permute.xlu0 %942
        %944 = vrot.lane.b32.xlu0 %v941, 103
        %v945 = vpop.permute.xlu0 %944
        %948 = vst.msk [vmem:[#allocation2 + $0x30] sm:$0x8] %vm286, %v943
        %v949 = vld [vmem:[#allocation2 + $0x34] sm:$0x1]
        %v950 = vsel %vm290, %v945, %v949
        %951 = vst [vmem:[#allocation2 + $0x34] sm:$0x1] %v950
        %v952 = vld [vmem:[%s387] sm:$0x3]
        %v955 = vunpack.c.l.s4 1983009808
        %v956 = vunpack.c.0.s8 %v955
        %v957 = vlaneseq
        %v958 = vshrl.u32 %v957, 7
        %v959 = vsub.s32 %v956, %v958
        %v960 = vrot.slane %v952, %v959
        %v962 = vshrl.u32 %v960, 16
        %v964 = vrot.slane %v962, 7
        %v965 = vshll.u32 %v960, 16
        %v967 = vor.u32 %v964, %v965
        %968 = vrot.lane.b32.xlu0 %v967, 106
        %v969 = vpop.permute.xlu0 %968
        %v971 = vld [vmem:[#allocation2 + $0x34] sm:$0x3]
        %v972 = vsel %vm314, %v969, %v971
        %973 = vst [vmem:[#allocation2 + $0x34] sm:$0x3] %v972
        %v974 = vld [vmem:[%s411] sm:$0x3]
        %v976 = vcombine.low %v974, %v974
        %v978 = vunpack.c.l.s4 1983009808
        %v979 = vunpack.c.0.s8 %v978
        %v980 = vlaneseq
        %v981 = vshrl.u32 %v980, 7
        %v982 = vsub.s32 %v979, %v981
        %v983 = vrot.slane %v976, %v982
        %984 = vrot.lane.b32.xlu0 %v983, 106
        %v985 = vpop.permute.xlu0 %984
        %v987 = vld [vmem:[#allocation2 + $0x34] sm:$0xc]
        %v988 = vsel %vm333, %v985, %v987
        %989 = vst [vmem:[#allocation2 + $0x34] sm:$0xc] %v988
        %v990 = vld [vmem:[%s387] sm:$0x3]
        %v993 = vunpack.c.l.s4 1983009808
        %v994 = vunpack.c.0.s8 %v993
        %v995 = vlaneseq
        %v996 = vshrl.u32 %v995, 7
        %v997 = vsub.s32 %v994, %v996
        %v998 = vrot.slane %v990, %v997
        %v1000 = vshll.u32 %v998, 16
        %v1002 = vrot.slane %v1000, 5
        %v1003 = vshrl.u32 %v998, 16
        %v1005 = vrot.slane %v1003, 4
        %v1006 = vor.u32 %v1005, %v1002
        %v1007 = vrot.slane %v1006, 4
        %1008 = vrot.lane.b32.xlu0 %v1002, 105
        %v1009 = vpop.permute.xlu0 %1008
        %1010 = vrot.lane.b32.xlu0 %v1007, 105
        %v1011 = vpop.permute.xlu0 %1010
        %v1014 = vld [vmem:[#allocation2 + $0x34] sm:$0x8]
        %v1015 = vsel %vm363, %v1009, %v1014
        %1016 = vst [vmem:[#allocation2 + $0x34] sm:$0x8] %v1015
        %1017 = vst.msk [vmem:[#allocation2 + $0x38] sm:$0x1] %vm367, %v1011
        %v1018 = vld [vmem:[%s411] sm:$0x3]
        %v1021 = vunpack.c.l.s4 1983009808
        %v1022 = vunpack.c.0.s8 %v1021
        %v1023 = vlaneseq
        %v1024 = vshrl.u32 %v1023, 7
        %v1025 = vsub.s32 %v1022, %v1024
        %v1026 = vrot.slane %v1018, %v1025
        %v1027 = vrot.slane %v1026, 7
        %1028 = vrot.lane.b32.xlu0 %v1027, 105
        %v1029 = vpop.permute.xlu0 %1028
        %v1031 = vld [vmem:[#allocation2 + $0x38] sm:$0x6]
        %v1032 = vsel %vm383, %v1029, %v1031
        %1033 = vst [vmem:[#allocation2 + $0x38] sm:$0x6] %v1032
        %v1034 = vld [vmem:[%s387] sm:$0x3]
        %v1037 = vunpack.c.l.s4 1983009808
        %v1038 = vunpack.c.0.s8 %v1037
        %v1039 = vlaneseq
        %v1040 = vshrl.u32 %v1039, 7
        %v1041 = vsub.s32 %v1038, %v1040
        %v1042 = vrot.slane %v1034, %v1041
        %v1044 = vshrl.u32 %v1042, 16
        %v1046 = vrot.slane %v1044, 5
        %v1047 = vshll.u32 %v1042, 16
        %v1049 = vrot.slane %v1047, 6
        %v1050 = vor.u32 %v1046, %v1049
        %1051 = vrot.lane.b32.xlu0 %v1050, 104
        %v1052 = vpop.permute.xlu0 %1051
        %v1054 = vld [vmem:[#allocation2 + $0x38] sm:$0xc]
        %v1055 = vsel %vm407, %v1052, %v1054
        %1056 = vst [vmem:[#allocation2 + $0x38] sm:$0xc] %v1055
        %v1057 = vld [vmem:[%s411] sm:$0x3]
        %v1060 = vunpack.c.l.s4 1983009808
        %v1061 = vunpack.c.0.s8 %v1060
        %v1062 = vlaneseq
        %v1063 = vshrl.u32 %v1062, 7
        %v1064 = vsub.s32 %v1061, %v1063
        %v1065 = vrot.slane %v1057, %v1064
        %1066 = vrot.lane.b32.xlu0 %v1065, 104
        %v1067 = vpop.permute.xlu0 %1066
        %v1069 = vld [vmem:[#allocation2 + $0x3c] sm:$0x3]
        %v1070 = vsel %vm240, %v1067, %v1069
        %1071 = vst [vmem:[#allocation2 + $0x3c] sm:$0x3] %v1070
        %v1072 = vld [vmem:[%s387] sm:$0x3]
        %v1075 = vunpack.c.l.s4 1983009808
        %v1076 = vunpack.c.0.s8 %v1075
        %v1077 = vlaneseq
        %v1078 = vshrl.u32 %v1077, 7
        %v1079 = vsub.s32 %v1076, %v1078
        %v1080 = vrot.slane %v1072, %v1079
        %v1082 = vshrl.u32 %v1080, 16
        %v1084 = vrot.slane %v1082, 6
        %v1085 = vshll.u32 %v1080, 16
        %v1087 = vrot.slane %v1085, 7
        %v1088 = vor.u32 %v1084, %v1087
        %1089 = vrot.lane.b32.xlu0 %v1088, 103
        %v1090 = vpop.permute.xlu0 %1089
        %v1092 = vld [vmem:[#allocation2 + $0x3c] sm:$0x6]
        %v1093 = vsel %vm265, %v1090, %v1092
        %1094 = vst [vmem:[#allocation2 + $0x3c] sm:$0x6] %v1093
        %v1095 = vld [vmem:[%s232] sm:$0x3]
        %v1098 = vunpack.c.l.s4 1983009808
        %v1099 = vunpack.c.0.s8 %v1098
        %v1100 = vlaneseq
        %v1101 = vshrl.u32 %v1100, 7
        %v1102 = vsub.s32 %v1099, %v1101
        %v1103 = vrot.slane %v1095, %v1102
        %v1104 = vrot.slane %v1103, 5
        %v1105 = vrot.slane %v1104, 4
        %1106 = vrot.lane.b32.xlu0 %v1104, 95
        %v1107 = vpop.permute.xlu0 %1106
        %1108 = vrot.lane.b32.xlu0 %v1105, 95
        %v1109 = vpop.permute.xlu0 %1108
        %1112 = vst.msk [vmem:[#allocation2 + $0x3c] sm:$0x8] %vm286, %v1107
        %v1113 = vld [vmem:[#allocation2 + $0x40] sm:$0x1]
        %v1114 = vsel %vm290, %v1109, %v1113
        %1115 = vst [vmem:[#allocation2 + $0x40] sm:$0x1] %v1114
        %v1116 = vld [vmem:[%s244] sm:$0x3]
        %v1119 = vunpack.c.l.s4 1983009808
        %v1120 = vunpack.c.0.s8 %v1119
        %v1121 = vlaneseq
        %v1122 = vshrl.u32 %v1121, 7
        %v1123 = vsub.s32 %v1120, %v1122
        %v1124 = vrot.slane %v1116, %v1123
        %v1126 = vshrl.u32 %v1124, 16
        %v1128 = vrot.slane %v1126, 7
        %v1129 = vshll.u32 %v1124, 16
        %v1131 = vor.u32 %v1128, %v1129
        %1132 = vrot.lane.b32.xlu0 %v1131, 95
        %v1133 = vpop.permute.xlu0 %1132
        %v1135 = vld [vmem:[#allocation2 + $0x40] sm:$0x3]
        %v1136 = vsel %vm314, %v1133, %v1135
        %1137 = vst [vmem:[#allocation2 + $0x40] sm:$0x3] %v1136
        %v1138 = vld [vmem:[%s232] sm:$0x3]
        %v1140 = vcombine.low %v1138, %v1138
        %v1142 = vunpack.c.l.s4 1983009808
        %v1143 = vunpack.c.0.s8 %v1142
        %v1144 = vlaneseq
        %v1145 = vshrl.u32 %v1144, 7
        %v1146 = vsub.s32 %v1143, %v1145
        %v1147 = vrot.slane %v1140, %v1146
        %1148 = vrot.lane.b32.xlu0 %v1147, 94
        %v1149 = vpop.permute.xlu0 %1148
        %v1151 = vld [vmem:[#allocation2 + $0x40] sm:$0xc]
        %v1152 = vsel %vm333, %v1149, %v1151
        %1153 = vst [vmem:[#allocation2 + $0x40] sm:$0xc] %v1152
        %v1154 = vld [vmem:[%s244] sm:$0x3]
        %v1157 = vunpack.c.l.s4 1983009808
        %v1158 = vunpack.c.0.s8 %v1157
        %v1159 = vlaneseq
        %v1160 = vshrl.u32 %v1159, 7
        %v1161 = vsub.s32 %v1158, %v1160
        %v1162 = vrot.slane %v1154, %v1161
        %v1164 = vshll.u32 %v1162, 16
        %v1166 = vrot.slane %v1164, 5
        %v1167 = vshrl.u32 %v1162, 16
        %v1169 = vrot.slane %v1167, 4
        %v1170 = vor.u32 %v1169, %v1166
        %v1171 = vrot.slane %v1170, 4
        %1172 = vrot.lane.b32.xlu0 %v1166, 94
        %v1173 = vpop.permute.xlu0 %1172
        %1174 = vrot.lane.b32.xlu0 %v1171, 94
        %v1175 = vpop.permute.xlu0 %1174
        %v1178 = vld [vmem:[#allocation2 + $0x40] sm:$0x8]
        %v1179 = vsel %vm363, %v1173, %v1178
        %1180 = vst [vmem:[#allocation2 + $0x40] sm:$0x8] %v1179
        %1181 = vst.msk [vmem:[#allocation2 + $0x44] sm:$0x1] %vm367, %v1175
        %v1182 = vld [vmem:[%s232] sm:$0x3]
        %v1185 = vunpack.c.l.s4 1983009808
        %v1186 = vunpack.c.0.s8 %v1185
        %v1187 = vlaneseq
        %v1188 = vshrl.u32 %v1187, 7
        %v1189 = vsub.s32 %v1186, %v1188
        %v1190 = vrot.slane %v1182, %v1189
        %v1191 = vrot.slane %v1190, 7
        %1192 = vrot.lane.b32.xlu0 %v1191, 93
        %v1193 = vpop.permute.xlu0 %1192
        %v1195 = vld [vmem:[#allocation2 + $0x44] sm:$0x6]
        %v1196 = vsel %vm383, %v1193, %v1195
        %1197 = vst [vmem:[#allocation2 + $0x44] sm:$0x6] %v1196
        %v1198 = vld [vmem:[%s244] sm:$0x3]
        %v1201 = vunpack.c.l.s4 1983009808
        %v1202 = vunpack.c.0.s8 %v1201
        %v1203 = vlaneseq
        %v1204 = vshrl.u32 %v1203, 7
        %v1205 = vsub.s32 %v1202, %v1204
        %v1206 = vrot.slane %v1198, %v1205
        %v1208 = vshrl.u32 %v1206, 16
        %v1210 = vrot.slane %v1208, 5
        %v1211 = vshll.u32 %v1206, 16
        %v1213 = vrot.slane %v1211, 6
        %v1214 = vor.u32 %v1210, %v1213
        %1215 = vrot.lane.b32.xlu0 %v1214, 93
        %v1216 = vpop.permute.xlu0 %1215
        %v1218 = vld [vmem:[#allocation2 + $0x44] sm:$0xc]
        %v1219 = vsel %vm407, %v1216, %v1218
        %1220 = vst [vmem:[#allocation2 + $0x44] sm:$0xc] %v1219
        %v1221 = vld [vmem:[%s232] sm:$0x3]
        %v1224 = vunpack.c.l.s4 1983009808
        %v1225 = vunpack.c.0.s8 %v1224
        %v1226 = vlaneseq
        %v1227 = vshrl.u32 %v1226, 7
        %v1228 = vsub.s32 %v1225, %v1227
        %v1229 = vrot.slane %v1221, %v1228
        %1230 = vrot.lane.b32.xlu0 %v1229, 92
        %v1231 = vpop.permute.xlu0 %1230
        %v1233 = vld [vmem:[#allocation2 + $0x48] sm:$0x3]
        %v1234 = vsel %vm240, %v1231, %v1233
        %1235 = vst [vmem:[#allocation2 + $0x48] sm:$0x3] %v1234
        %v1236 = vld [vmem:[#allocation5] sm:$0xff]
        %v1237 = vld [vmem:[#allocation5 + $0x8] sm:$0xff]
        %v1238 = vld [vmem:[#allocation5 + $0x10] sm:$0xff]
        %v1239 = vld [vmem:[#allocation5 + $0x18] sm:$0xff]
        %v1240 = vld [vmem:[#allocation5 + $0x20] sm:$0xff]
        %v1241 = vld [vmem:[#allocation5 + $0x28] sm:$0xff]
        %v1242 = vld [vmem:[#allocation5 + $0x30] sm:$0xff]
        %v1243 = vld [vmem:[#allocation5 + $0x38] sm:$0xff]
        %v1244 = vld [vmem:[#allocation2] sm:$0xf]
        %v1245 = vld [vmem:[#allocation2 + $0x4] sm:$0xf]
        %v1246 = vld [vmem:[#allocation2 + $0x8] sm:$0xf]
        %v1247 = vld [vmem:[#allocation2 + $0xc] sm:$0xf]
        %v1248 = vld [vmem:[#allocation2 + $0x10] sm:$0xf]
        %v1249 = vld [vmem:[#allocation2 + $0x14] sm:$0xf]
        %v1250 = vld [vmem:[#allocation2 + $0x18] sm:$0xf]
        %v1251 = vld [vmem:[#allocation2 + $0x1c] sm:$0xf]
        %v1252 = vld [vmem:[#allocation2 + $0x20] sm:$0xf]
        %v1253 = vld [vmem:[#allocation2 + $0x24] sm:$0xf]
        %v1254 = vld [vmem:[#allocation2 + $0x28] sm:$0xf]
        %v1255 = vld [vmem:[#allocation2 + $0x2c] sm:$0xf]
        %v1256 = vld [vmem:[#allocation2 + $0x30] sm:$0xf]
        %v1257 = vld [vmem:[#allocation2 + $0x34] sm:$0xf]
        %v1258 = vld [vmem:[#allocation2 + $0x38] sm:$0xf]
        %v1259 = vld [vmem:[#allocation2 + $0x3c] sm:$0xf]
        %v1260 = vld [vmem:[#allocation2 + $0x40] sm:$0xf]
        %v1261 = vld [vmem:[#allocation2 + $0x44] sm:$0xf]
        %v1262 = vld [vmem:[#allocation2 + $0x48] sm:$0x3]
        %v1271 = vunpack.c.l.b16 %v1236
        %v1272 = vunpack.c.h.b16 %v1236
        %v1273 = vunpack.c.l.b16 %v1237
        %v1274 = vunpack.c.h.b16 %v1237
        %v1275 = vunpack.c.l.b16 %v1238
        %v1276 = vunpack.c.h.b16 %v1238
        %v1277 = vunpack.c.l.b16 %v1239
        %v1278 = vunpack.c.h.b16 %v1239
        %v1279 = vunpack.c.l.b16 %v1240
        %v1280 = vunpack.c.h.b16 %v1240
        %v1281 = vunpack.c.l.b16 %v1241
        %v1282 = vunpack.c.h.b16 %v1241
        %v1283 = vunpack.c.l.b16 %v1242
        %v1284 = vunpack.c.h.b16 %v1242
        %v1285 = vunpack.c.l.b16 %v1243
        %v1286 = vunpack.c.h.b16 %v1243
        %v1287 = vpack.c.b16 %v1273, %v1271
        %v1288 = vpack.c.b16 %v1274, %v1272
        %v1289 = vpack.c.b16 %v1277, %v1275
        %v1290 = vpack.c.b16 %v1278, %v1276
        %v1291 = vpack.c.b16 %v1281, %v1279
        %v1292 = vpack.c.b16 %v1282, %v1280
        %v1293 = vpack.c.b16 %v1285, %v1283
        %v1294 = vpack.c.b16 %v1286, %v1284
        %v1318 = vunpack.c.l.b16 %v1244
        %v1319 = vunpack.c.l.b16 %v1245
        %v1320 = vunpack.c.l.b16 %v1246
        %v1321 = vunpack.c.l.b16 %v1247
        %v1322 = vunpack.c.l.b16 %v1248
        %v1323 = vunpack.c.l.b16 %v1249
        %v1324 = vunpack.c.l.b16 %v1250
        %v1325 = vunpack.c.l.b16 %v1251
        %v1326 = vunpack.c.l.b16 %v1252
        %v1327 = vunpack.c.l.b16 %v1253
        %v1328 = vunpack.c.l.b16 %v1254
        %v1329 = vunpack.c.l.b16 %v1255
        %v1330 = vunpack.c.l.b16 %v1256
        %v1331 = vunpack.c.l.b16 %v1257
        %v1332 = vunpack.c.l.b16 %v1258
        %v1333 = vunpack.c.l.b16 %v1259
        %v1334 = vunpack.c.l.b16 %v1260
        %v1335 = vunpack.c.l.b16 %v1261
        %v1336 = vunpack.c.l.b16 %v1262
        %v1337 = vpack.c.b16 %v1319, %v1318
        %v1338 = vpack.c.b16 %v1321, %v1320
        %v1339 = vpack.c.b16 %v1323, %v1322
        %v1340 = vpack.c.b16 %v1325, %v1324
        %v1341 = vpack.c.b16 %v1327, %v1326
        %v1342 = vpack.c.b16 %v1329, %v1328
        %v1343 = vpack.c.b16 %v1331, %v1330
        %v1344 = vpack.c.b16 %v1333, %v1332
        %v1345 = vpack.c.b16 %v1335, %v1334
        %v1346 = vpack.c.b16 %v1336, %v1336
        %vm1356 = vcmask 154624
        %v1358 = vsel %vm1356, %v1288, 0
        %v1361 = vsel %vm1356, %v1290, 0
        %v1364 = vsel %vm1356, %v1292, 0
        %v1367 = vsel %vm1356, %v1294, 0
        %vm1369 = vcmask 1040384
        %vm1370 = vcmask 1041408
        %v1371 = vsel %vm1369, 4294967295, 65535
        %v1372 = vsel %vm1370, %v1371, 0
        %v1374 = vand.u32 %v1346, %v1372
        %1376 = vmatprep.subr.bf16.mxu0 0
        %1377 = vmatpush1.bf16.msra.mxu0 %v1337
        %1378 = vmatprep.subr.bf16.mxu0 0
        %1379 = vmatpush1.bf16.msra.mxu0 %v1338
        %1380 = vmatprep.subr.bf16.mxu0 0
        %1381 = vmatpush1.bf16.msra.mxu0 %v1339
        %1382 = vmatprep.subr.bf16.mxu0 0
        %1383 = vmatpush1.bf16.msra.mxu0 %v1340
        %1384 = vmatprep.subr.bf16.mxu0 0
        %1385 = vmatpush1.bf16.msra.mxu0 %v1341
        %1386 = vmatprep.subr.bf16.mxu0 0
        %1387 = vmatpush1.bf16.msra.mxu0 %v1342
        %1388 = vmatprep.subr.bf16.mxu0 0
        %1389 = vmatpush1.bf16.msra.mxu0 %v1343
        %1390 = vmatprep.subr.bf16.mxu0 0
        %1391 = vmatpush1.bf16.msra.mxu0 %v1344
        %1392 = vmatprep.subr.bf16.mxu0 0
        %1393 = vmatpush1.bf16.msra.mxu0 %v1345
        %1394 = vmatprep.subr.bf16.mxu0 0
        %1395 = vmatpush1.bf16.msra.mxu0 %v1374
        %1396 = vmatprep.subr.bf16.mxu0 0
        %1397 = vmatpush1.bf16.msra.mxu0 0
        %1398 = vmatprep.subr.bf16.mxu0 0
        %1399 = vmatpush1.bf16.msra.mxu0 0
        %1400 = vmatprep.subr.bf16.mxu0 0
        %1401 = vmatpush1.bf16.msra.mxu0 0
        %1402 = vmatprep.subr.bf16.mxu0 0
        %1403 = vmatpush1.bf16.msra.mxu0 0
        %1404 = vmatprep.subr.bf16.mxu0 0
        %1405 = vmatpush1.bf16.msra.mxu0 0
        %1406 = vmatprep.subr.bf16.mxu0 0
        %1407 = vmatpush1.bf16.msra.mxu0 0
        %1408 = vmatprep.mubr.bf16.mxu0 %v1358
        %1409 = vmatmul.mubr.bf16.gmra.mrb[0].mxu0 %v1287
        %v1410 = vpop.f32.mrb[0].mxu0
        %v1411 = vadd.f32 0.0, %v1410
        %v1412 = vpop.f32.mrb[0].mxu0
        %v1413 = vpop.f32.mrb[0].mxu0
        %v1414 = vadd.f32 0.0, %v1413
        %v1415 = vpop.f32.mrb[0].mxu0
        %1416 = vmatprep.mubr.bf16.mxu0 %v1361
        %1417 = vmatmul.mubr.bf16.gmra.mrb[0].mxu0 %v1289
        %v1418 = vpop.f32.mrb[0].mxu0
        %v1419 = vadd.f32 0.0, %v1418
        %v1420 = vpop.f32.mrb[0].mxu0
        %v1421 = vpop.f32.mrb[0].mxu0
        %v1422 = vadd.f32 0.0, %v1421
        %v1423 = vpop.f32.mrb[0].mxu0
        %1424 = vmatprep.mubr.bf16.mxu0 %v1364
        %1425 = vmatmul.mubr.bf16.gmra.mrb[0].mxu0 %v1291
        %v1426 = vpop.f32.mrb[0].mxu0
        %v1427 = vadd.f32 0.0, %v1426
        %v1428 = vpop.f32.mrb[0].mxu0
        %v1429 = vpop.f32.mrb[0].mxu0
        %v1430 = vadd.f32 0.0, %v1429
        %v1431 = vpop.f32.mrb[0].mxu0
        %1432 = vmatprep.mubr.bf16.mxu0 %v1367
        %1433 = vmatmul.mubr.bf16.gmra.mrb[0].mxu0 %v1293
        %v1434 = vpop.f32.mrb[0].mxu0
        %v1435 = vadd.f32 0.0, %v1434
        %v1436 = vpop.f32.mrb[0].mxu0
        %v1437 = vpop.f32.mrb[0].mxu0
        %v1438 = vadd.f32 0.0, %v1437
        %v1439 = vpop.f32.mrb[0].mxu0
        %1440 = vdwg.mxu0
        %v1441 = vpack.c.bf16 %v1414, %v1411
        %v1442 = vpack.c.bf16 %v1422, %v1419
        %v1443 = vpack.c.bf16 %v1430, %v1427
        %v1444 = vpack.c.bf16 %v1438, %v1435
        %vm1445 = vcmask 719872
        %1446 = vst.msk [vmem:[#allocation3] sm:$0xff] %vm1445, %v1441
        %1447 = vst.msk [vmem:[#allocation3 + $0x8] sm:$0xff] %vm1445, %v1442
        %1448 = vst.msk [vmem:[#allocation3 + $0x10] sm:$0xff] %vm1445, %v1443
        %1449 = vst.msk [vmem:[#allocation3 + $0x18] sm:$0xff] %vm1445, %v1444
        %v1450 = vld [vmem:[#allocation3] sm:$0x1]
        %v1451 = vld [vmem:[#allocation4] sm:$0x1]
        %v1452 = vsel %vm290, %v1450, %v1451
        %1453 = vst [vmem:[#allocation4] sm:$0x1] %v1452
        %v1454 = vld [vmem:[#allocation3] sm:$0x1]
        %v1457 = vunpack.c.l.s4 1966171168
        %v1458 = vunpack.c.0.s8 %v1457
        %v1459 = vlaneseq
        %v1460 = vshrl.u32 %v1459, 7
        %v1461 = vsub.s32 %v1458, %v1460
        %v1462 = vrot.slane %v1454, %v1461
        %v1464 = vunpack.c.l.s4 1966171168
        %v1465 = vunpack.c.0.s8 %v1464
        %v1466 = vlaneseq
        %v1467 = vshrl.u32 %v1466, 7
        %v1468 = vsub.s32 %v1465, %v1467
        %v1469 = vrot.slane %v1462, %v1468
        %v1471 = vshrl.u32 %v1469, 16
        %v1473 = vrot.slane %v1471, 7
        %v1474 = vrot.slane %v1473, 1
        %1475 = vrot.lane.b32.xlu0 %v1474, 88
        %v1476 = vpop.permute.xlu0 %1475
        %v1477 = vrot.slane %v1476, 7
        %vm1478 = vcmask 719872
        %v1479 = vsel %vm1478, %v1477, %v1476
        %vm1481 = vcmask 1041088
        %vm1482 = vmand %vm1481, %vm289
        %vm1483 = vcmask 386049
        %vm1484 = vmand %vm1483, %vm239
        %vm1485 = vmor %vm1484, %vm1482
        %v1486 = vld [vmem:[#allocation4] sm:$0x3]
        %v1487 = vsel %vm1485, %v1479, %v1486
        %1488 = vst [vmem:[#allocation4] sm:$0x3] %v1487
        %v1489 = vld [vmem:[#allocation3] sm:$0x2]
        %v1492 = vunpack.c.l.s4 1966171168
        %v1493 = vunpack.c.0.s8 %v1492
        %v1494 = vlaneseq
        %v1495 = vshrl.u32 %v1494, 7
        %v1496 = vsub.s32 %v1493, %v1495
        %v1497 = vrot.slane %v1489, %v1496
        %v1498 = vcombine.high %v1497, %v1497
        %v1500 = vunpack.c.l.s4 1966171168
        %v1501 = vunpack.c.0.s8 %v1500
        %v1502 = vlaneseq
        %v1503 = vshrl.u32 %v1502, 7
        %v1504 = vsub.s32 %v1501, %v1503
        %v1505 = vrot.slane %v1498, %v1504
        %1506 = vrot.lane.b32.xlu0 %v1505, 48
        %v1507 = vpop.permute.xlu0 %1506
        %v1508 = vrot.slane %v1507, 7
        %vm1509 = vcmask 392192
        %v1510 = vsel %vm1509, %v1508, %v1507
        %vm1512 = vcmask 1040768
        %vm1513 = vmand %vm1512, %vm289
        %vm1514 = vcmask 58369
        %vm1515 = vmand %vm1514, %vm239
        %vm1516 = vmor %vm1515, %vm1513
        %v1517 = vld [vmem:[#allocation4 + $0x1] sm:$0x3]
        %v1518 = vsel %vm1516, %v1510, %v1517
        %1519 = vst [vmem:[#allocation4 + $0x1] sm:$0x3] %v1518
        %v1520 = vld [vmem:[#allocation3] sm:$0x2]
        %v1523 = vunpack.c.l.s4 1966171168
        %v1524 = vunpack.c.0.s8 %v1523
        %v1525 = vlaneseq
        %v1526 = vshrl.u32 %v1525, 7
        %v1527 = vsub.s32 %v1524, %v1526
        %v1528 = vrot.slane %v1520, %v1527
        %v1529 = vcombine.high %v1528, %v1528
        %v1531 = vunpack.c.l.s4 1966171168
        %v1532 = vunpack.c.0.s8 %v1531
        %v1533 = vlaneseq
        %v1534 = vshrl.u32 %v1533, 7
        %v1535 = vsub.s32 %v1532, %v1534
        %v1536 = vrot.slane %v1529, %v1535
        %v1538 = vshrl.u32 %v1536, 16
        %v1540 = vrot.slane %v1538, 7
        %v1541 = vrot.slane %v1540, 1
        %1542 = vrot.lane.b32.xlu0 %v1541, 8
        %v1543 = vpop.permute.xlu0 %1542
        %vm1545 = vcmask 778304
        %vm1546 = vmand %vm1545, %vm289
        %v1547 = vld [vmem:[#allocation4 + $0x2] sm:$0x1]
        %v1548 = vsel %vm1546, %v1543, %v1547
        %1549 = vst [vmem:[#allocation4 + $0x2] sm:$0x1] %v1548
        %v1550 = vld [vmem:[#allocation3] sm:$0x4]
        %v1553 = vunpack.c.l.s4 1966171168
        %v1554 = vunpack.c.0.s8 %v1553
        %v1555 = vlaneseq
        %v1556 = vshrl.u32 %v1555, 7
        %v1557 = vsub.s32 %v1554, %v1556
        %v1558 = vrot.slane %v1550, %v1557
        %v1560 = vunpack.c.l.s4 1966171168
        %v1561 = vunpack.c.0.s8 %v1560
        %v1562 = vlaneseq
        %v1563 = vshrl.u32 %v1562, 7
        %v1564 = vsub.s32 %v1561, %v1563
        %v1565 = vrot.slane %v1558, %v1564
        %v1566 = vcombine.high %v1565, %v1565
        %1567 = vrot.lane.b32.xlu0 %v1566, 96
        %v1568 = vpop.permute.xlu0 %1567
        %v1569 = vrot.slane %v1568, 7
        %vm1570 = vcmask 785408
        %v1571 = vsel %vm1570, %v1569, %v1568
        %vm1573 = vcmask 1041152
        %vm1574 = vmand %vm1573, %vm289
        %vm1575 = vcmask 451585
        %vm1576 = vmand %vm1575, %vm239
        %vm1577 = vmor %vm1576, %vm1574
        %v1578 = vld [vmem:[#allocation4 + $0x2] sm:$0x3]
        %v1579 = vsel %vm1577, %v1571, %v1578
        %1580 = vst [vmem:[#allocation4 + $0x2] sm:$0x3] %v1579
        %v1581 = vld [vmem:[#allocation3] sm:$0x4]
        %v1584 = vunpack.c.l.s4 1966171168
        %v1585 = vunpack.c.0.s8 %v1584
        %v1586 = vlaneseq
        %v1587 = vshrl.u32 %v1586, 7
        %v1588 = vsub.s32 %v1585, %v1587
        %v1589 = vrot.slane %v1581, %v1588
        %v1591 = vunpack.c.l.s4 1966171168
        %v1592 = vunpack.c.0.s8 %v1591
        %v1593 = vlaneseq
        %v1594 = vshrl.u32 %v1593, 7
        %v1595 = vsub.s32 %v1592, %v1594
        %v1596 = vrot.slane %v1589, %v1595
        %v1597 = vcombine.high %v1596, %v1596
        %v1599 = vshrl.u32 %v1597, 16
        %v1601 = vrot.slane %v1599, 7
        %v1602 = vrot.slane %v1601, 1
        %1603 = vrot.lane.b32.xlu0 %v1602, 56
        %v1604 = vpop.permute.xlu0 %1603
        %v1605 = vrot.slane %v1604, 7
        %vm1606 = vcmask 457728
        %v1607 = vsel %vm1606, %v1605, %v1604
        %vm1609 = vcmask 1040832
        %vm1610 = vmand %vm1609, %vm289
        %vm1611 = vcmask 123905
        %vm1612 = vmand %vm1611, %vm239
        %vm1613 = vmor %vm1612, %vm1610
        %v1614 = vld [vmem:[#allocation4 + $0x3] sm:$0x3]
        %v1615 = vsel %vm1613, %v1607, %v1614
        %1616 = vst [vmem:[#allocation4 + $0x3] sm:$0x3] %v1615
        %v1617 = vld [vmem:[#allocation3] sm:$0x8]
        %v1620 = vunpack.c.l.s4 1966171168
        %v1621 = vunpack.c.0.s8 %v1620
        %v1622 = vlaneseq
        %v1623 = vshrl.u32 %v1622, 7
        %v1624 = vsub.s32 %v1621, %v1623
        %v1625 = vrot.slane %v1617, %v1624
        %v1626 = vcombine.high %v1625, %v1625
        %v1628 = vunpack.c.l.s4 1966171168
        %v1629 = vunpack.c.0.s8 %v1628
        %v1630 = vlaneseq
        %v1631 = vshrl.u32 %v1630, 7
        %v1632 = vsub.s32 %v1629, %v1631
        %v1633 = vrot.slane %v1626, %v1632
        %v1634 = vcombine.high %v1633, %v1633
        %1635 = vrot.lane.b32.xlu0 %v1634, 16
        %v1636 = vpop.permute.xlu0 %1635
        %vm1638 = vcmask 843904
        %vm1639 = vmand %vm1638, %vm289
        %v1640 = vld [vmem:[#allocation4 + $0x4] sm:$0x1]
        %v1641 = vsel %vm1639, %v1636, %v1640
        %1642 = vst [vmem:[#allocation4 + $0x4] sm:$0x1] %v1641
        %v1643 = vld [vmem:[#allocation3] sm:$0x8]
        %v1646 = vunpack.c.l.s4 1966171168
        %v1647 = vunpack.c.0.s8 %v1646
        %v1648 = vlaneseq
        %v1649 = vshrl.u32 %v1648, 7
        %v1650 = vsub.s32 %v1647, %v1649
        %v1651 = vrot.slane %v1643, %v1650
        %v1652 = vcombine.high %v1651, %v1651
        %v1654 = vunpack.c.l.s4 1966171168
        %v1655 = vunpack.c.0.s8 %v1654
        %v1656 = vlaneseq
        %v1657 = vshrl.u32 %v1656, 7
        %v1658 = vsub.s32 %v1655, %v1657
        %v1659 = vrot.slane %v1652, %v1658
        %v1660 = vcombine.high %v1659, %v1659
        %v1662 = vshrl.u32 %v1660, 16
        %v1664 = vrot.slane %v1662, 7
        %v1665 = vrot.slane %v1664, 1
        %1666 = vrot.lane.b32.xlu0 %v1665, 104
        %v1667 = vpop.permute.xlu0 %1666
        %v1668 = vrot.slane %v1667, 7
        %vm1669 = vcmask 850944
        %v1670 = vsel %vm1669, %v1668, %v1667
        %vm1672 = vcmask 1041216
        %vm1673 = vmand %vm1672, %vm289
        %vm1674 = vcmask 517121
        %vm1675 = vmand %vm1674, %vm239
        %vm1676 = vmor %vm1675, %vm1673
        %v1677 = vld [vmem:[#allocation4 + $0x4] sm:$0x3]
        %v1678 = vsel %vm1676, %v1670, %v1677
        %1679 = vst [vmem:[#allocation4 + $0x4] sm:$0x3] %v1678
        %v1680 = vld [vmem:[#allocation3] sm:$0x10]
        %v1682 = vcombine.high %v1680, %v1680
        %v1684 = vunpack.c.l.s4 1966171168
        %v1685 = vunpack.c.0.s8 %v1684
        %v1686 = vlaneseq
        %v1687 = vshrl.u32 %v1686, 7
        %v1688 = vsub.s32 %v1685, %v1687
        %v1689 = vrot.slane %v1682, %v1688
        %v1691 = vunpack.c.l.s4 1966171168
        %v1692 = vunpack.c.0.s8 %v1691
        %v1693 = vlaneseq
        %v1694 = vshrl.u32 %v1693, 7
        %v1695 = vsub.s32 %v1692, %v1694
        %v1696 = vrot.slane %v1689, %v1695
        %1697 = vrot.lane.b32.xlu0 %v1696, 64
        %v1698 = vpop.permute.xlu0 %1697
        %v1699 = vrot.slane %v1698, 7
        %vm1700 = vcmask 523264
        %v1701 = vsel %vm1700, %v1699, %v1698
        %vm1703 = vcmask 1040896
        %vm1704 = vmand %vm1703, %vm289
        %vm1705 = vcmask 189441
        %vm1706 = vmand %vm1705, %vm239
        %vm1707 = vmor %vm1706, %vm1704
        %v1708 = vld [vmem:[#allocation4 + $0x5] sm:$0x3]
        %v1709 = vsel %vm1707, %v1701, %v1708
        %1710 = vst [vmem:[#allocation4 + $0x5] sm:$0x3] %v1709
        %v1711 = vld [vmem:[#allocation3] sm:$0x10]
        %v1713 = vcombine.high %v1711, %v1711
        %v1715 = vunpack.c.l.s4 1966171168
        %v1716 = vunpack.c.0.s8 %v1715
        %v1717 = vlaneseq
        %v1718 = vshrl.u32 %v1717, 7
        %v1719 = vsub.s32 %v1716, %v1718
        %v1720 = vrot.slane %v1713, %v1719
        %v1722 = vunpack.c.l.s4 1966171168
        %v1723 = vunpack.c.0.s8 %v1722
        %v1724 = vlaneseq
        %v1725 = vshrl.u32 %v1724, 7
        %v1726 = vsub.s32 %v1723, %v1725
        %v1727 = vrot.slane %v1720, %v1726
        %v1729 = vshrl.u32 %v1727, 16
        %v1731 = vrot.slane %v1729, 7
        %v1732 = vrot.slane %v1731, 1
        %1733 = vrot.lane.b32.xlu0 %v1732, 24
        %v1734 = vpop.permute.xlu0 %1733
        %vm1736 = vcmask 909504
        %vm1737 = vmand %vm1736, %vm289
        %v1738 = vld [vmem:[#allocation4 + $0x6] sm:$0x1]
        %v1739 = vsel %vm1737, %v1734, %v1738
        %1740 = vst [vmem:[#allocation4 + $0x6] sm:$0x1] %v1739
        %v1741 = vld [vmem:[#allocation3] sm:$0x20]
        %v1743 = vcombine.high %v1741, %v1741
        %v1745 = vunpack.c.l.s4 1966171168
        %v1746 = vunpack.c.0.s8 %v1745
        %v1747 = vlaneseq
        %v1748 = vshrl.u32 %v1747, 7
        %v1749 = vsub.s32 %v1746, %v1748
        %v1750 = vrot.slane %v1743, %v1749
        %v1751 = vcombine.high %v1750, %v1750
        %v1753 = vunpack.c.l.s4 1966171168
        %v1754 = vunpack.c.0.s8 %v1753
        %v1755 = vlaneseq
        %v1756 = vshrl.u32 %v1755, 7
        %v1757 = vsub.s32 %v1754, %v1756
        %v1758 = vrot.slane %v1751, %v1757
        %1759 = vrot.lane.b32.xlu0 %v1758, 112
        %v1760 = vpop.permute.xlu0 %1759
        %v1761 = vrot.slane %v1760, 7
        %vm1762 = vcmask 916480
        %v1763 = vsel %vm1762, %v1761, %v1760
        %vm1765 = vcmask 1041280
        %vm1766 = vmand %vm1765, %vm289
        %vm1767 = vcmask 582657
        %vm1768 = vmand %vm1767, %vm239
        %vm1769 = vmor %vm1768, %vm1766
        %v1770 = vld [vmem:[#allocation4 + $0x6] sm:$0x3]
        %v1771 = vsel %vm1769, %v1763, %v1770
        %1772 = vst [vmem:[#allocation4 + $0x6] sm:$0x3] %v1771
        %v1773 = vld [vmem:[#allocation3] sm:$0x20]
        %v1775 = vcombine.high %v1773, %v1773
        %v1777 = vunpack.c.l.s4 1966171168
        %v1778 = vunpack.c.0.s8 %v1777
        %v1779 = vlaneseq
        %v1780 = vshrl.u32 %v1779, 7
        %v1781 = vsub.s32 %v1778, %v1780
        %v1782 = vrot.slane %v1775, %v1781
        %v1783 = vcombine.high %v1782, %v1782
        %v1785 = vunpack.c.l.s4 1966171168
        %v1786 = vunpack.c.0.s8 %v1785
        %v1787 = vlaneseq
        %v1788 = vshrl.u32 %v1787, 7
        %v1789 = vsub.s32 %v1786, %v1788
        %v1790 = vrot.slane %v1783, %v1789
        %v1792 = vshrl.u32 %v1790, 16
        %v1794 = vrot.slane %v1792, 7
        %v1795 = vrot.slane %v1794, 1
        %1796 = vrot.lane.b32.xlu0 %v1795, 72
        %v1797 = vpop.permute.xlu0 %1796
        %v1798 = vrot.slane %v1797, 7
        %vm1799 = vcmask 588800
        %v1800 = vsel %vm1799, %v1798, %v1797
        %vm1802 = vcmask 1040960
        %vm1803 = vmand %vm1802, %vm289
        %vm1804 = vcmask 254977
        %vm1805 = vmand %vm1804, %vm239
        %vm1806 = vmor %vm1805, %vm1803
        %v1807 = vld [vmem:[#allocation4 + $0x7] sm:$0x3]
        %v1808 = vsel %vm1806, %v1800, %v1807
        %1809 = vst [vmem:[#allocation4 + $0x7] sm:$0x3] %v1808
        %v1810 = vld [vmem:[#allocation3] sm:$0x40]
        %v1812 = vcombine.high %v1810, %v1810
        %v1814 = vunpack.c.l.s4 1966171168
        %v1815 = vunpack.c.0.s8 %v1814
        %v1816 = vlaneseq
        %v1817 = vshrl.u32 %v1816, 7
        %v1818 = vsub.s32 %v1815, %v1817
        %v1819 = vrot.slane %v1812, %v1818
        %v1821 = vunpack.c.l.s4 1966171168
        %v1822 = vunpack.c.0.s8 %v1821
        %v1823 = vlaneseq
        %v1824 = vshrl.u32 %v1823, 7
        %v1825 = vsub.s32 %v1822, %v1824
        %v1826 = vrot.slane %v1819, %v1825
        %v1827 = vcombine.high %v1826, %v1826
        %1828 = vrot.lane.b32.xlu0 %v1827, 32
        %v1829 = vpop.permute.xlu0 %1828
        %vm1831 = vcmask 975104
        %vm1832 = vmand %vm1831, %vm289
        %v1833 = vld [vmem:[#allocation4 + $0x8] sm:$0x1]
        %v1834 = vsel %vm1832, %v1829, %v1833
        %1835 = vst [vmem:[#allocation4 + $0x8] sm:$0x1] %v1834
        %v1836 = vld [vmem:[#allocation3] sm:$0x40]
        %v1838 = vcombine.high %v1836, %v1836
        %v1840 = vunpack.c.l.s4 1966171168
        %v1841 = vunpack.c.0.s8 %v1840
        %v1842 = vlaneseq
        %v1843 = vshrl.u32 %v1842, 7
        %v1844 = vsub.s32 %v1841, %v1843
        %v1845 = vrot.slane %v1838, %v1844
        %v1847 = vunpack.c.l.s4 1966171168
        %v1848 = vunpack.c.0.s8 %v1847
        %v1849 = vlaneseq
        %v1850 = vshrl.u32 %v1849, 7
        %v1851 = vsub.s32 %v1848, %v1850
        %v1852 = vrot.slane %v1845, %v1851
        %v1853 = vcombine.high %v1852, %v1852
        %v1855 = vshrl.u32 %v1853, 16
        %v1857 = vrot.slane %v1855, 7
        %v1858 = vrot.slane %v1857, 1
        %1859 = vrot.lane.b32.xlu0 %v1858, 120
        %v1860 = vpop.permute.xlu0 %1859
        %v1861 = vrot.slane %v1860, 7
        %vm1862 = vcmask 982016
        %v1863 = vsel %vm1862, %v1861, %v1860
        %vm1865 = vcmask 1041344
        %vm1866 = vmand %vm1865, %vm289
        %vm1867 = vcmask 648193
        %vm1868 = vmand %vm1867, %vm239
        %vm1869 = vmor %vm1868, %vm1866
        %v1870 = vld [vmem:[#allocation4 + $0x8] sm:$0x3]
        %v1871 = vsel %vm1869, %v1863, %v1870
        %1872 = vst [vmem:[#allocation4 + $0x8] sm:$0x3] %v1871
        %v1873 = vld [vmem:[#allocation3] sm:$0x80]
        %v1875 = vcombine.high %v1873, %v1873
        %v1877 = vunpack.c.l.s4 1966171168
        %v1878 = vunpack.c.0.s8 %v1877
        %v1879 = vlaneseq
        %v1880 = vshrl.u32 %v1879, 7
        %v1881 = vsub.s32 %v1878, %v1880
        %v1882 = vrot.slane %v1875, %v1881
        %v1883 = vcombine.high %v1882, %v1882
        %v1885 = vunpack.c.l.s4 1966171168
        %v1886 = vunpack.c.0.s8 %v1885
        %v1887 = vlaneseq
        %v1888 = vshrl.u32 %v1887, 7
        %v1889 = vsub.s32 %v1886, %v1888
        %v1890 = vrot.slane %v1883, %v1889
        %v1891 = vcombine.high %v1890, %v1890
        %1892 = vrot.lane.b32.xlu0 %v1891, 80
        %v1893 = vpop.permute.xlu0 %1892
        %v1894 = vrot.slane %v1893, 7
        %vm1895 = vcmask 654336
        %v1896 = vsel %vm1895, %v1894, %v1893
        %vm1898 = vcmask 1041024
        %vm1899 = vmand %vm1898, %vm289
        %vm1900 = vcmask 320513
        %vm1901 = vmand %vm1900, %vm239
        %vm1902 = vmor %vm1901, %vm1899
        %v1903 = vld [vmem:[#allocation4 + $0x9] sm:$0x3]
        %v1904 = vsel %vm1902, %v1896, %v1903
        %1905 = vst [vmem:[#allocation4 + $0x9] sm:$0x3] %v1904
        %v1906 = vld [vmem:[#allocation3] sm:$0x80]
        %v1908 = vcombine.high %v1906, %v1906
        %v1910 = vunpack.c.l.s4 1966171168
        %v1911 = vunpack.c.0.s8 %v1910
        %v1912 = vlaneseq
        %v1913 = vshrl.u32 %v1912, 7
        %v1914 = vsub.s32 %v1911, %v1913
        %v1915 = vrot.slane %v1908, %v1914
        %v1916 = vcombine.high %v1915, %v1915
        %v1918 = vunpack.c.l.s4 1966171168
        %v1919 = vunpack.c.0.s8 %v1918
        %v1920 = vlaneseq
        %v1921 = vshrl.u32 %v1920, 7
        %v1922 = vsub.s32 %v1919, %v1921
        %v1923 = vrot.slane %v1916, %v1922
        %v1924 = vcombine.high %v1923, %v1923
        %v1926 = vshrl.u32 %v1924, 16
        %v1928 = vrot.slane %v1926, 7
        %v1929 = vrot.slane %v1928, 1
        %1930 = vrot.lane.b32.xlu0 %v1929, 40
        %v1931 = vpop.permute.xlu0 %1930
        %vm1933 = vcmask 1040704
        %vm1934 = vmand %vm1933, %vm289
        %v1935 = vld [vmem:[#allocation4 + $0xa] sm:$0x1]
        %v1936 = vsel %vm1934, %v1931, %v1935
        %1937 = vst [vmem:[#allocation4 + $0xa] sm:$0x1] %v1936
        %v1938 = vld [vmem:[#allocation3 + $0x8] sm:$0x1]
        %v1939 = vld [vmem:[#allocation4 + $0xb] sm:$0x1]
        %v1940 = vsel %vm290, %v1938, %v1939
        %1941 = vst [vmem:[#allocation4 + $0xb] sm:$0x1] %v1940
        %v1942 = vld [vmem:[#allocation3 + $0x8] sm:$0x1]
        %v1945 = vunpack.c.l.s4 1966171168
        %v1946 = vunpack.c.0.s8 %v1945
        %v1947 = vlaneseq
        %v1948 = vshrl.u32 %v1947, 7
        %v1949 = vsub.s32 %v1946, %v1948
        %v1950 = vrot.slane %v1942, %v1949
        %v1952 = vunpack.c.l.s4 1966171168
        %v1953 = vunpack.c.0.s8 %v1952
        %v1954 = vlaneseq
        %v1955 = vshrl.u32 %v1954, 7
        %v1956 = vsub.s32 %v1953, %v1955
        %v1957 = vrot.slane %v1950, %v1956
        %v1959 = vshrl.u32 %v1957, 16
        %v1961 = vrot.slane %v1959, 7
        %v1962 = vrot.slane %v1961, 1
        %1963 = vrot.lane.b32.xlu0 %v1962, 88
        %v1964 = vpop.permute.xlu0 %1963
        %v1965 = vrot.slane %v1964, 7
        %v1966 = vsel %vm1478, %v1965, %v1964
        %v1968 = vld [vmem:[#allocation4 + $0xb] sm:$0x3]
        %v1969 = vsel %vm1485, %v1966, %v1968
        %1970 = vst [vmem:[#allocation4 + $0xb] sm:$0x3] %v1969
        %v1971 = vld [vmem:[#allocation3 + $0x8] sm:$0x2]
        %v1974 = vunpack.c.l.s4 1966171168
        %v1975 = vunpack.c.0.s8 %v1974
        %v1976 = vlaneseq
        %v1977 = vshrl.u32 %v1976, 7
        %v1978 = vsub.s32 %v1975, %v1977
        %v1979 = vrot.slane %v1971, %v1978
        %v1980 = vcombine.high %v1979, %v1979
        %v1982 = vunpack.c.l.s4 1966171168
        %v1983 = vunpack.c.0.s8 %v1982
        %v1984 = vlaneseq
        %v1985 = vshrl.u32 %v1984, 7
        %v1986 = vsub.s32 %v1983, %v1985
        %v1987 = vrot.slane %v1980, %v1986
        %1988 = vrot.lane.b32.xlu0 %v1987, 48
        %v1989 = vpop.permute.xlu0 %1988
        %v1990 = vrot.slane %v1989, 7
        %v1991 = vsel %vm1509, %v1990, %v1989
        %v1993 = vld [vmem:[#allocation4 + $0xc] sm:$0x3]
        %v1994 = vsel %vm1516, %v1991, %v1993
        %1995 = vst [vmem:[#allocation4 + $0xc] sm:$0x3] %v1994
        %v1996 = vld [vmem:[#allocation3 + $0x8] sm:$0x2]
        %v1999 = vunpack.c.l.s4 1966171168
        %v2000 = vunpack.c.0.s8 %v1999
        %v2001 = vlaneseq
        %v2002 = vshrl.u32 %v2001, 7
        %v2003 = vsub.s32 %v2000, %v2002
        %v2004 = vrot.slane %v1996, %v2003
        %v2005 = vcombine.high %v2004, %v2004
        %v2007 = vunpack.c.l.s4 1966171168
        %v2008 = vunpack.c.0.s8 %v2007
        %v2009 = vlaneseq
        %v2010 = vshrl.u32 %v2009, 7
        %v2011 = vsub.s32 %v2008, %v2010
        %v2012 = vrot.slane %v2005, %v2011
        %v2014 = vshrl.u32 %v2012, 16
        %v2016 = vrot.slane %v2014, 7
        %v2017 = vrot.slane %v2016, 1
        %2018 = vrot.lane.b32.xlu0 %v2017, 8
        %v2019 = vpop.permute.xlu0 %2018
        %v2021 = vld [vmem:[#allocation4 + $0xd] sm:$0x1]
        %v2022 = vsel %vm1546, %v2019, %v2021
        %2023 = vst [vmem:[#allocation4 + $0xd] sm:$0x1] %v2022
        %v2024 = vld [vmem:[#allocation3 + $0x8] sm:$0x4]
        %v2027 = vunpack.c.l.s4 1966171168
        %v2028 = vunpack.c.0.s8 %v2027
        %v2029 = vlaneseq
        %v2030 = vshrl.u32 %v2029, 7
        %v2031 = vsub.s32 %v2028, %v2030
        %v2032 = vrot.slane %v2024, %v2031
        %v2034 = vunpack.c.l.s4 1966171168
        %v2035 = vunpack.c.0.s8 %v2034
        %v2036 = vlaneseq
        %v2037 = vshrl.u32 %v2036, 7
        %v2038 = vsub.s32 %v2035, %v2037
        %v2039 = vrot.slane %v2032, %v2038
        %v2040 = vcombine.high %v2039, %v2039
        %2041 = vrot.lane.b32.xlu0 %v2040, 96
        %v2042 = vpop.permute.xlu0 %2041
        %v2043 = vrot.slane %v2042, 7
        %v2044 = vsel %vm1570, %v2043, %v2042
        %v2046 = vld [vmem:[#allocation4 + $0xd] sm:$0x3]
        %v2047 = vsel %vm1577, %v2044, %v2046
        %2048 = vst [vmem:[#allocation4 + $0xd] sm:$0x3] %v2047
        %v2049 = vld [vmem:[#allocation3 + $0x8] sm:$0x4]
        %v2052 = vunpack.c.l.s4 1966171168
        %v2053 = vunpack.c.0.s8 %v2052
        %v2054 = vlaneseq
        %v2055 = vshrl.u32 %v2054, 7
        %v2056 = vsub.s32 %v2053, %v2055
        %v2057 = vrot.slane %v2049, %v2056
        %v2059 = vunpack.c.l.s4 1966171168
        %v2060 = vunpack.c.0.s8 %v2059
        %v2061 = vlaneseq
        %v2062 = vshrl.u32 %v2061, 7
        %v2063 = vsub.s32 %v2060, %v2062
        %v2064 = vrot.slane %v2057, %v2063
        %v2065 = vcombine.high %v2064, %v2064
        %v2067 = vshrl.u32 %v2065, 16
        %v2069 = vrot.slane %v2067, 7
        %v2070 = vrot.slane %v2069, 1
        %2071 = vrot.lane.b32.xlu0 %v2070, 56
        %v2072 = vpop.permute.xlu0 %2071
        %v2073 = vrot.slane %v2072, 7
        %v2074 = vsel %vm1606, %v2073, %v2072
        %v2076 = vld [vmem:[#allocation4 + $0xe] sm:$0x3]
        %v2077 = vsel %vm1613, %v2074, %v2076
        %2078 = vst [vmem:[#allocation4 + $0xe] sm:$0x3] %v2077
        %v2079 = vld [vmem:[#allocation3 + $0x8] sm:$0x8]
        %v2082 = vunpack.c.l.s4 1966171168
        %v2083 = vunpack.c.0.s8 %v2082
        %v2084 = vlaneseq
        %v2085 = vshrl.u32 %v2084, 7
        %v2086 = vsub.s32 %v2083, %v2085
        %v2087 = vrot.slane %v2079, %v2086
        %v2088 = vcombine.high %v2087, %v2087
        %v2090 = vunpack.c.l.s4 1966171168
        %v2091 = vunpack.c.0.s8 %v2090
        %v2092 = vlaneseq
        %v2093 = vshrl.u32 %v2092, 7
        %v2094 = vsub.s32 %v2091, %v2093
        %v2095 = vrot.slane %v2088, %v2094
        %v2096 = vcombine.high %v2095, %v2095
        %2097 = vrot.lane.b32.xlu0 %v2096, 16
        %v2098 = vpop.permute.xlu0 %2097
        %v2100 = vld [vmem:[#allocation4 + $0xf] sm:$0x1]
        %v2101 = vsel %vm1639, %v2098, %v2100
        %2102 = vst [vmem:[#allocation4 + $0xf] sm:$0x1] %v2101
        %v2103 = vld [vmem:[#allocation3 + $0x8] sm:$0x8]
        %v2106 = vunpack.c.l.s4 1966171168
        %v2107 = vunpack.c.0.s8 %v2106
        %v2108 = vlaneseq
        %v2109 = vshrl.u32 %v2108, 7
        %v2110 = vsub.s32 %v2107, %v2109
        %v2111 = vrot.slane %v2103, %v2110
        %v2112 = vcombine.high %v2111, %v2111
        %v2114 = vunpack.c.l.s4 1966171168
        %v2115 = vunpack.c.0.s8 %v2114
        %v2116 = vlaneseq
        %v2117 = vshrl.u32 %v2116, 7
        %v2118 = vsub.s32 %v2115, %v2117
        %v2119 = vrot.slane %v2112, %v2118
        %v2120 = vcombine.high %v2119, %v2119
        %v2122 = vshrl.u32 %v2120, 16
        %v2124 = vrot.slane %v2122, 7
        %v2125 = vrot.slane %v2124, 1
        %2126 = vrot.lane.b32.xlu0 %v2125, 104
        %v2127 = vpop.permute.xlu0 %2126
        %v2128 = vrot.slane %v2127, 7
        %v2129 = vsel %vm1669, %v2128, %v2127
        %v2131 = vld [vmem:[#allocation4 + $0xf] sm:$0x3]
        %v2132 = vsel %vm1676, %v2129, %v2131
        %2133 = vst [vmem:[#allocation4 + $0xf] sm:$0x3] %v2132
        %v2134 = vld [vmem:[#allocation3 + $0x8] sm:$0x10]
        %v2136 = vcombine.high %v2134, %v2134
        %v2138 = vunpack.c.l.s4 1966171168
        %v2139 = vunpack.c.0.s8 %v2138
        %v2140 = vlaneseq
        %v2141 = vshrl.u32 %v2140, 7
        %v2142 = vsub.s32 %v2139, %v2141
        %v2143 = vrot.slane %v2136, %v2142
        %v2145 = vunpack.c.l.s4 1966171168
        %v2146 = vunpack.c.0.s8 %v2145
        %v2147 = vlaneseq
        %v2148 = vshrl.u32 %v2147, 7
        %v2149 = vsub.s32 %v2146, %v2148
        %v2150 = vrot.slane %v2143, %v2149
        %2151 = vrot.lane.b32.xlu0 %v2150, 64
        %v2152 = vpop.permute.xlu0 %2151
        %v2153 = vrot.slane %v2152, 7
        %v2154 = vsel %vm1700, %v2153, %v2152
        %v2156 = vld [vmem:[#allocation4 + $0x10] sm:$0x3]
        %v2157 = vsel %vm1707, %v2154, %v2156
        %2158 = vst [vmem:[#allocation4 + $0x10] sm:$0x3] %v2157
        %v2159 = vld [vmem:[#allocation3 + $0x8] sm:$0x10]
        %v2161 = vcombine.high %v2159, %v2159
        %v2163 = vunpack.c.l.s4 1966171168
        %v2164 = vunpack.c.0.s8 %v2163
        %v2165 = vlaneseq
        %v2166 = vshrl.u32 %v2165, 7
        %v2167 = vsub.s32 %v2164, %v2166
        %v2168 = vrot.slane %v2161, %v2167
        %v2170 = vunpack.c.l.s4 1966171168
        %v2171 = vunpack.c.0.s8 %v2170
        %v2172 = vlaneseq
        %v2173 = vshrl.u32 %v2172, 7
        %v2174 = vsub.s32 %v2171, %v2173
        %v2175 = vrot.slane %v2168, %v2174
        %v2177 = vshrl.u32 %v2175, 16
        %v2179 = vrot.slane %v2177, 7
        %v2180 = vrot.slane %v2179, 1
        %2181 = vrot.lane.b32.xlu0 %v2180, 24
        %v2182 = vpop.permute.xlu0 %2181
        %v2184 = vld [vmem:[#allocation4 + $0x11] sm:$0x1]
        %v2185 = vsel %vm1737, %v2182, %v2184
        %2186 = vst [vmem:[#allocation4 + $0x11] sm:$0x1] %v2185
        %v2187 = vld [vmem:[#allocation3 + $0x8] sm:$0x20]
        %v2189 = vcombine.high %v2187, %v2187
        %v2191 = vunpack.c.l.s4 1966171168
        %v2192 = vunpack.c.0.s8 %v2191
        %v2193 = vlaneseq
        %v2194 = vshrl.u32 %v2193, 7
        %v2195 = vsub.s32 %v2192, %v2194
        %v2196 = vrot.slane %v2189, %v2195
        %v2197 = vcombine.high %v2196, %v2196
        %v2199 = vunpack.c.l.s4 1966171168
        %v2200 = vunpack.c.0.s8 %v2199
        %v2201 = vlaneseq
        %v2202 = vshrl.u32 %v2201, 7
        %v2203 = vsub.s32 %v2200, %v2202
        %v2204 = vrot.slane %v2197, %v2203
        %2205 = vrot.lane.b32.xlu0 %v2204, 112
        %v2206 = vpop.permute.xlu0 %2205
        %v2207 = vrot.slane %v2206, 7
        %v2208 = vsel %vm1762, %v2207, %v2206
        %v2210 = vld [vmem:[#allocation4 + $0x11] sm:$0x3]
        %v2211 = vsel %vm1769, %v2208, %v2210
        %2212 = vst [vmem:[#allocation4 + $0x11] sm:$0x3] %v2211
        %v2213 = vld [vmem:[#allocation3 + $0x8] sm:$0x20]
        %v2215 = vcombine.high %v2213, %v2213
        %v2217 = vunpack.c.l.s4 1966171168
        %v2218 = vunpack.c.0.s8 %v2217
        %v2219 = vlaneseq
        %v2220 = vshrl.u32 %v2219, 7
        %v2221 = vsub.s32 %v2218, %v2220
        %v2222 = vrot.slane %v2215, %v2221
        %v2223 = vcombine.high %v2222, %v2222
        %v2225 = vunpack.c.l.s4 1966171168
        %v2226 = vunpack.c.0.s8 %v2225
        %v2227 = vlaneseq
        %v2228 = vshrl.u32 %v2227, 7
        %v2229 = vsub.s32 %v2226, %v2228
        %v2230 = vrot.slane %v2223, %v2229
        %v2232 = vshrl.u32 %v2230, 16
        %v2234 = vrot.slane %v2232, 7
        %v2235 = vrot.slane %v2234, 1
        %2236 = vrot.lane.b32.xlu0 %v2235, 72
        %v2237 = vpop.permute.xlu0 %2236
        %v2238 = vrot.slane %v2237, 7
        %v2239 = vsel %vm1799, %v2238, %v2237
        %v2241 = vld [vmem:[#allocation4 + $0x12] sm:$0x3]
        %v2242 = vsel %vm1806, %v2239, %v2241
        %2243 = vst [vmem:[#allocation4 + $0x12] sm:$0x3] %v2242
        %v2244 = vld [vmem:[#allocation3 + $0x8] sm:$0x40]
        %v2246 = vcombine.high %v2244, %v2244
        %v2248 = vunpack.c.l.s4 1966171168
        %v2249 = vunpack.c.0.s8 %v2248
        %v2250 = vlaneseq
        %v2251 = vshrl.u32 %v2250, 7
        %v2252 = vsub.s32 %v2249, %v2251
        %v2253 = vrot.slane %v2246, %v2252
        %v2255 = vunpack.c.l.s4 1966171168
        %v2256 = vunpack.c.0.s8 %v2255
        %v2257 = vlaneseq
        %v2258 = vshrl.u32 %v2257, 7
        %v2259 = vsub.s32 %v2256, %v2258
        %v2260 = vrot.slane %v2253, %v2259
        %v2261 = vcombine.high %v2260, %v2260
        %2262 = vrot.lane.b32.xlu0 %v2261, 32
        %v2263 = vpop.permute.xlu0 %2262
        %v2265 = vld [vmem:[#allocation4 + $0x13] sm:$0x1]
        %v2266 = vsel %vm1832, %v2263, %v2265
        %2267 = vst [vmem:[#allocation4 + $0x13] sm:$0x1] %v2266
        %v2268 = vld [vmem:[#allocation3 + $0x8] sm:$0x40]
        %v2270 = vcombine.high %v2268, %v2268
        %v2272 = vunpack.c.l.s4 1966171168
        %v2273 = vunpack.c.0.s8 %v2272
        %v2274 = vlaneseq
        %v2275 = vshrl.u32 %v2274, 7
        %v2276 = vsub.s32 %v2273, %v2275
        %v2277 = vrot.slane %v2270, %v2276
        %v2279 = vunpack.c.l.s4 1966171168
        %v2280 = vunpack.c.0.s8 %v2279
        %v2281 = vlaneseq
        %v2282 = vshrl.u32 %v2281, 7
        %v2283 = vsub.s32 %v2280, %v2282
        %v2284 = vrot.slane %v2277, %v2283
        %v2285 = vcombine.high %v2284, %v2284
        %v2287 = vshrl.u32 %v2285, 16
        %v2289 = vrot.slane %v2287, 7
        %v2290 = vrot.slane %v2289, 1
        %2291 = vrot.lane.b32.xlu0 %v2290, 120
        %v2292 = vpop.permute.xlu0 %2291
        %v2293 = vrot.slane %v2292, 7
        %v2294 = vsel %vm1862, %v2293, %v2292
        %v2296 = vld [vmem:[#allocation4 + $0x13] sm:$0x3]
        %v2297 = vsel %vm1869, %v2294, %v2296
        %2298 = vst [vmem:[#allocation4 + $0x13] sm:$0x3] %v2297
        %v2299 = vld [vmem:[#allocation3 + $0x8] sm:$0x80]
        %v2301 = vcombine.high %v2299, %v2299
        %v2303 = vunpack.c.l.s4 1966171168
        %v2304 = vunpack.c.0.s8 %v2303
        %v2305 = vlaneseq
        %v2306 = vshrl.u32 %v2305, 7
        %v2307 = vsub.s32 %v2304, %v2306
        %v2308 = vrot.slane %v2301, %v2307
        %v2309 = vcombine.high %v2308, %v2308
        %v2311 = vunpack.c.l.s4 1966171168
        %v2312 = vunpack.c.0.s8 %v2311
        %v2313 = vlaneseq
        %v2314 = vshrl.u32 %v2313, 7
        %v2315 = vsub.s32 %v2312, %v2314
        %v2316 = vrot.slane %v2309, %v2315
        %v2317 = vcombine.high %v2316, %v2316
        %2318 = vrot.lane.b32.xlu0 %v2317, 80
        %v2319 = vpop.permute.xlu0 %2318
        %v2320 = vrot.slane %v2319, 7
        %v2321 = vsel %vm1895, %v2320, %v2319
        %v2323 = vld [vmem:[#allocation4 + $0x14] sm:$0x3]
        %v2324 = vsel %vm1902, %v2321, %v2323
        %2325 = vst [vmem:[#allocation4 + $0x14] sm:$0x3] %v2324
        %v2326 = vld [vmem:[#allocation3 + $0x8] sm:$0x80]
        %v2328 = vcombine.high %v2326, %v2326
        %v2330 = vunpack.c.l.s4 1966171168
        %v2331 = vunpack.c.0.s8 %v2330
        %v2332 = vlaneseq
        %v2333 = vshrl.u32 %v2332, 7
        %v2334 = vsub.s32 %v2331, %v2333
        %v2335 = vrot.slane %v2328, %v2334
        %v2336 = vcombine.high %v2335, %v2335
        %v2338 = vunpack.c.l.s4 1966171168
        %v2339 = vunpack.c.0.s8 %v2338
        %v2340 = vlaneseq
        %v2341 = vshrl.u32 %v2340, 7
        %v2342 = vsub.s32 %v2339, %v2341
        %v2343 = vrot.slane %v2336, %v2342
        %v2344 = vcombine.high %v2343, %v2343
        %v2346 = vshrl.u32 %v2344, 16
        %v2348 = vrot.slane %v2346, 7
        %v2349 = vrot.slane %v2348, 1
        %2350 = vrot.lane.b32.xlu0 %v2349, 40
        %v2351 = vpop.permute.xlu0 %2350
        %v2353 = vld [vmem:[#allocation4 + $0x15] sm:$0x1]
        %v2354 = vsel %vm1934, %v2351, %v2353
        %2355 = vst [vmem:[#allocation4 + $0x15] sm:$0x1] %v2354
        %v2356 = vld [vmem:[#allocation3 + $0x10] sm:$0x1]
        %v2357 = vld [vmem:[#allocation4 + $0x16] sm:$0x1]
        %v2358 = vsel %vm290, %v2356, %v2357
        %2359 = vst [vmem:[#allocation4 + $0x16] sm:$0x1] %v2358
        %v2360 = vld [vmem:[#allocation3 + $0x10] sm:$0x1]
        %v2363 = vunpack.c.l.s4 1966171168
        %v2364 = vunpack.c.0.s8 %v2363
        %v2365 = vlaneseq
        %v2366 = vshrl.u32 %v2365, 7
        %v2367 = vsub.s32 %v2364, %v2366
        %v2368 = vrot.slane %v2360, %v2367
        %v2370 = vunpack.c.l.s4 1966171168
        %v2371 = vunpack.c.0.s8 %v2370
        %v2372 = vlaneseq
        %v2373 = vshrl.u32 %v2372, 7
        %v2374 = vsub.s32 %v2371, %v2373
        %v2375 = vrot.slane %v2368, %v2374
        %v2377 = vshrl.u32 %v2375, 16
        %v2379 = vrot.slane %v2377, 7
        %v2380 = vrot.slane %v2379, 1
        %2381 = vrot.lane.b32.xlu0 %v2380, 88
        %v2382 = vpop.permute.xlu0 %2381
        %v2383 = vrot.slane %v2382, 7
        %v2384 = vsel %vm1478, %v2383, %v2382
        %v2386 = vld [vmem:[#allocation4 + $0x16] sm:$0x3]
        %v2387 = vsel %vm1485, %v2384, %v2386
        %2388 = vst [vmem:[#allocation4 + $0x16] sm:$0x3] %v2387
        %v2389 = vld [vmem:[#allocation3 + $0x10] sm:$0x2]
        %v2392 = vunpack.c.l.s4 1966171168
        %v2393 = vunpack.c.0.s8 %v2392
        %v2394 = vlaneseq
        %v2395 = vshrl.u32 %v2394, 7
        %v2396 = vsub.s32 %v2393, %v2395
        %v2397 = vrot.slane %v2389, %v2396
        %v2398 = vcombine.high %v2397, %v2397
        %v2400 = vunpack.c.l.s4 1966171168
        %v2401 = vunpack.c.0.s8 %v2400
        %v2402 = vlaneseq
        %v2403 = vshrl.u32 %v2402, 7
        %v2404 = vsub.s32 %v2401, %v2403
        %v2405 = vrot.slane %v2398, %v2404
        %2406 = vrot.lane.b32.xlu0 %v2405, 48
        %v2407 = vpop.permute.xlu0 %2406
        %v2408 = vrot.slane %v2407, 7
        %v2409 = vsel %vm1509, %v2408, %v2407
        %v2411 = vld [vmem:[#allocation4 + $0x17] sm:$0x3]
        %v2412 = vsel %vm1516, %v2409, %v2411
        %2413 = vst [vmem:[#allocation4 + $0x17] sm:$0x3] %v2412
        %v2414 = vld [vmem:[#allocation3 + $0x10] sm:$0x2]
        %v2417 = vunpack.c.l.s4 1966171168
        %v2418 = vunpack.c.0.s8 %v2417
        %v2419 = vlaneseq
        %v2420 = vshrl.u32 %v2419, 7
        %v2421 = vsub.s32 %v2418, %v2420
        %v2422 = vrot.slane %v2414, %v2421
        %v2423 = vcombine.high %v2422, %v2422
        %v2425 = vunpack.c.l.s4 1966171168
        %v2426 = vunpack.c.0.s8 %v2425
        %v2427 = vlaneseq
        %v2428 = vshrl.u32 %v2427, 7
        %v2429 = vsub.s32 %v2426, %v2428
        %v2430 = vrot.slane %v2423, %v2429
        %v2432 = vshrl.u32 %v2430, 16
        %v2434 = vrot.slane %v2432, 7
        %v2435 = vrot.slane %v2434, 1
        %2436 = vrot.lane.b32.xlu0 %v2435, 8
        %v2437 = vpop.permute.xlu0 %2436
        %v2439 = vld [vmem:[#allocation4 + $0x18] sm:$0x1]
        %v2440 = vsel %vm1546, %v2437, %v2439
        %2441 = vst [vmem:[#allocation4 + $0x18] sm:$0x1] %v2440
        %v2442 = vld [vmem:[#allocation3 + $0x10] sm:$0x4]
        %v2445 = vunpack.c.l.s4 1966171168
        %v2446 = vunpack.c.0.s8 %v2445
        %v2447 = vlaneseq
        %v2448 = vshrl.u32 %v2447, 7
        %v2449 = vsub.s32 %v2446, %v2448
        %v2450 = vrot.slane %v2442, %v2449
        %v2452 = vunpack.c.l.s4 1966171168
        %v2453 = vunpack.c.0.s8 %v2452
        %v2454 = vlaneseq
        %v2455 = vshrl.u32 %v2454, 7
        %v2456 = vsub.s32 %v2453, %v2455
        %v2457 = vrot.slane %v2450, %v2456
        %v2458 = vcombine.high %v2457, %v2457
        %2459 = vrot.lane.b32.xlu0 %v2458, 96
        %v2460 = vpop.permute.xlu0 %2459
        %v2461 = vrot.slane %v2460, 7
        %v2462 = vsel %vm1570, %v2461, %v2460
        %v2464 = vld [vmem:[#allocation4 + $0x18] sm:$0x3]
        %v2465 = vsel %vm1577, %v2462, %v2464
        %2466 = vst [vmem:[#allocation4 + $0x18] sm:$0x3] %v2465
        %v2467 = vld [vmem:[#allocation3 + $0x10] sm:$0x4]
        %v2470 = vunpack.c.l.s4 1966171168
        %v2471 = vunpack.c.0.s8 %v2470
        %v2472 = vlaneseq
        %v2473 = vshrl.u32 %v2472, 7
        %v2474 = vsub.s32 %v2471, %v2473
        %v2475 = vrot.slane %v2467, %v2474
        %v2477 = vunpack.c.l.s4 1966171168
        %v2478 = vunpack.c.0.s8 %v2477
        %v2479 = vlaneseq
        %v2480 = vshrl.u32 %v2479, 7
        %v2481 = vsub.s32 %v2478, %v2480
        %v2482 = vrot.slane %v2475, %v2481
        %v2483 = vcombine.high %v2482, %v2482
        %v2485 = vshrl.u32 %v2483, 16
        %v2487 = vrot.slane %v2485, 7
        %v2488 = vrot.slane %v2487, 1
        %2489 = vrot.lane.b32.xlu0 %v2488, 56
        %v2490 = vpop.permute.xlu0 %2489
        %v2491 = vrot.slane %v2490, 7
        %v2492 = vsel %vm1606, %v2491, %v2490
        %v2494 = vld [vmem:[#allocation4 + $0x19] sm:$0x3]
        %v2495 = vsel %vm1613, %v2492, %v2494
        %2496 = vst [vmem:[#allocation4 + $0x19] sm:$0x3] %v2495
        %v2497 = vld [vmem:[#allocation3 + $0x10] sm:$0x8]
        %v2500 = vunpack.c.l.s4 1966171168
        %v2501 = vunpack.c.0.s8 %v2500
        %v2502 = vlaneseq
        %v2503 = vshrl.u32 %v2502, 7
        %v2504 = vsub.s32 %v2501, %v2503
        %v2505 = vrot.slane %v2497, %v2504
        %v2506 = vcombine.high %v2505, %v2505
        %v2508 = vunpack.c.l.s4 1966171168
        %v2509 = vunpack.c.0.s8 %v2508
        %v2510 = vlaneseq
        %v2511 = vshrl.u32 %v2510, 7
        %v2512 = vsub.s32 %v2509, %v2511
        %v2513 = vrot.slane %v2506, %v2512
        %v2514 = vcombine.high %v2513, %v2513
        %2515 = vrot.lane.b32.xlu0 %v2514, 16
        %v2516 = vpop.permute.xlu0 %2515
        %v2518 = vld [vmem:[#allocation4 + $0x1a] sm:$0x1]
        %v2519 = vsel %vm1639, %v2516, %v2518
        %2520 = vst [vmem:[#allocation4 + $0x1a] sm:$0x1] %v2519
        %v2521 = vld [vmem:[#allocation3 + $0x10] sm:$0x8]
        %v2524 = vunpack.c.l.s4 1966171168
        %v2525 = vunpack.c.0.s8 %v2524
        %v2526 = vlaneseq
        %v2527 = vshrl.u32 %v2526, 7
        %v2528 = vsub.s32 %v2525, %v2527
        %v2529 = vrot.slane %v2521, %v2528
        %v2530 = vcombine.high %v2529, %v2529
        %v2532 = vunpack.c.l.s4 1966171168
        %v2533 = vunpack.c.0.s8 %v2532
        %v2534 = vlaneseq
        %v2535 = vshrl.u32 %v2534, 7
        %v2536 = vsub.s32 %v2533, %v2535
        %v2537 = vrot.slane %v2530, %v2536
        %v2538 = vcombine.high %v2537, %v2537
        %v2540 = vshrl.u32 %v2538, 16
        %v2542 = vrot.slane %v2540, 7
        %v2543 = vrot.slane %v2542, 1
        %2544 = vrot.lane.b32.xlu0 %v2543, 104
        %v2545 = vpop.permute.xlu0 %2544
        %v2546 = vrot.slane %v2545, 7
        %v2547 = vsel %vm1669, %v2546, %v2545
        %v2549 = vld [vmem:[#allocation4 + $0x1a] sm:$0x3]
        %v2550 = vsel %vm1676, %v2547, %v2549
        %2551 = vst [vmem:[#allocation4 + $0x1a] sm:$0x3] %v2550
        %v2552 = vld [vmem:[#allocation3 + $0x10] sm:$0x10]
        %v2554 = vcombine.high %v2552, %v2552
        %v2556 = vunpack.c.l.s4 1966171168
        %v2557 = vunpack.c.0.s8 %v2556
        %v2558 = vlaneseq
        %v2559 = vshrl.u32 %v2558, 7
        %v2560 = vsub.s32 %v2557, %v2559
        %v2561 = vrot.slane %v2554, %v2560
        %v2563 = vunpack.c.l.s4 1966171168
        %v2564 = vunpack.c.0.s8 %v2563
        %v2565 = vlaneseq
        %v2566 = vshrl.u32 %v2565, 7
        %v2567 = vsub.s32 %v2564, %v2566
        %v2568 = vrot.slane %v2561, %v2567
        %2569 = vrot.lane.b32.xlu0 %v2568, 64
        %v2570 = vpop.permute.xlu0 %2569
        %v2571 = vrot.slane %v2570, 7
        %v2572 = vsel %vm1700, %v2571, %v2570
        %v2574 = vld [vmem:[#allocation4 + $0x1b] sm:$0x3]
        %v2575 = vsel %vm1707, %v2572, %v2574
        %2576 = vst [vmem:[#allocation4 + $0x1b] sm:$0x3] %v2575
        %v2577 = vld [vmem:[#allocation3 + $0x10] sm:$0x10]
        %v2579 = vcombine.high %v2577, %v2577
        %v2581 = vunpack.c.l.s4 1966171168
        %v2582 = vunpack.c.0.s8 %v2581
        %v2583 = vlaneseq
        %v2584 = vshrl.u32 %v2583, 7
        %v2585 = vsub.s32 %v2582, %v2584
        %v2586 = vrot.slane %v2579, %v2585
        %v2588 = vunpack.c.l.s4 1966171168
        %v2589 = vunpack.c.0.s8 %v2588
        %v2590 = vlaneseq
        %v2591 = vshrl.u32 %v2590, 7
        %v2592 = vsub.s32 %v2589, %v2591
        %v2593 = vrot.slane %v2586, %v2592
        %v2595 = vshrl.u32 %v2593, 16
        %v2597 = vrot.slane %v2595, 7
        %v2598 = vrot.slane %v2597, 1
        %2599 = vrot.lane.b32.xlu0 %v2598, 24
        %v2600 = vpop.permute.xlu0 %2599
        %v2602 = vld [vmem:[#allocation4 + $0x1c] sm:$0x1]
        %v2603 = vsel %vm1737, %v2600, %v2602
        %2604 = vst [vmem:[#allocation4 + $0x1c] sm:$0x1] %v2603
        %v2605 = vld [vmem:[#allocation3 + $0x10] sm:$0x20]
        %v2607 = vcombine.high %v2605, %v2605
        %v2609 = vunpack.c.l.s4 1966171168
        %v2610 = vunpack.c.0.s8 %v2609
        %v2611 = vlaneseq
        %v2612 = vshrl.u32 %v2611, 7
        %v2613 = vsub.s32 %v2610, %v2612
        %v2614 = vrot.slane %v2607, %v2613
        %v2615 = vcombine.high %v2614, %v2614
        %v2617 = vunpack.c.l.s4 1966171168
        %v2618 = vunpack.c.0.s8 %v2617
        %v2619 = vlaneseq
        %v2620 = vshrl.u32 %v2619, 7
        %v2621 = vsub.s32 %v2618, %v2620
        %v2622 = vrot.slane %v2615, %v2621
        %2623 = vrot.lane.b32.xlu0 %v2622, 112
        %v2624 = vpop.permute.xlu0 %2623
        %v2625 = vrot.slane %v2624, 7
        %v2626 = vsel %vm1762, %v2625, %v2624
        %v2628 = vld [vmem:[#allocation4 + $0x1c] sm:$0x3]
        %v2629 = vsel %vm1769, %v2626, %v2628
        %2630 = vst [vmem:[#allocation4 + $0x1c] sm:$0x3] %v2629
        %v2631 = vld [vmem:[#allocation3 + $0x10] sm:$0x20]
        %v2633 = vcombine.high %v2631, %v2631
        %v2635 = vunpack.c.l.s4 1966171168
        %v2636 = vunpack.c.0.s8 %v2635
        %v2637 = vlaneseq
        %v2638 = vshrl.u32 %v2637, 7
        %v2639 = vsub.s32 %v2636, %v2638
        %v2640 = vrot.slane %v2633, %v2639
        %v2641 = vcombine.high %v2640, %v2640
        %v2643 = vunpack.c.l.s4 1966171168
        %v2644 = vunpack.c.0.s8 %v2643
        %v2645 = vlaneseq
        %v2646 = vshrl.u32 %v2645, 7
        %v2647 = vsub.s32 %v2644, %v2646
        %v2648 = vrot.slane %v2641, %v2647
        %v2650 = vshrl.u32 %v2648, 16
        %v2652 = vrot.slane %v2650, 7
        %v2653 = vrot.slane %v2652, 1
        %2654 = vrot.lane.b32.xlu0 %v2653, 72
        %v2655 = vpop.permute.xlu0 %2654
        %v2656 = vrot.slane %v2655, 7
        %v2657 = vsel %vm1799, %v2656, %v2655
        %v2659 = vld [vmem:[#allocation4 + $0x1d] sm:$0x3]
        %v2660 = vsel %vm1806, %v2657, %v2659
        %2661 = vst [vmem:[#allocation4 + $0x1d] sm:$0x3] %v2660
        %v2662 = vld [vmem:[#allocation3 + $0x10] sm:$0x40]
        %v2664 = vcombine.high %v2662, %v2662
        %v2666 = vunpack.c.l.s4 1966171168
        %v2667 = vunpack.c.0.s8 %v2666
        %v2668 = vlaneseq
        %v2669 = vshrl.u32 %v2668, 7
        %v2670 = vsub.s32 %v2667, %v2669
        %v2671 = vrot.slane %v2664, %v2670
        %v2673 = vunpack.c.l.s4 1966171168
        %v2674 = vunpack.c.0.s8 %v2673
        %v2675 = vlaneseq
        %v2676 = vshrl.u32 %v2675, 7
        %v2677 = vsub.s32 %v2674, %v2676
        %v2678 = vrot.slane %v2671, %v2677
        %v2679 = vcombine.high %v2678, %v2678
        %2680 = vrot.lane.b32.xlu0 %v2679, 32
        %v2681 = vpop.permute.xlu0 %2680
        %v2683 = vld [vmem:[#allocation4 + $0x1e] sm:$0x1]
        %v2684 = vsel %vm1832, %v2681, %v2683
        %2685 = vst [vmem:[#allocation4 + $0x1e] sm:$0x1] %v2684
        %v2686 = vld [vmem:[#allocation3 + $0x10] sm:$0x40]
        %v2688 = vcombine.high %v2686, %v2686
        %v2690 = vunpack.c.l.s4 1966171168
        %v2691 = vunpack.c.0.s8 %v2690
        %v2692 = vlaneseq
        %v2693 = vshrl.u32 %v2692, 7
        %v2694 = vsub.s32 %v2691, %v2693
        %v2695 = vrot.slane %v2688, %v2694
        %v2697 = vunpack.c.l.s4 1966171168
        %v2698 = vunpack.c.0.s8 %v2697
        %v2699 = vlaneseq
        %v2700 = vshrl.u32 %v2699, 7
        %v2701 = vsub.s32 %v2698, %v2700
        %v2702 = vrot.slane %v2695, %v2701
        %v2703 = vcombine.high %v2702, %v2702
        %v2705 = vshrl.u32 %v2703, 16
        %v2707 = vrot.slane %v2705, 7
        %v2708 = vrot.slane %v2707, 1
        %2709 = vrot.lane.b32.xlu0 %v2708, 120
        %v2710 = vpop.permute.xlu0 %2709
        %v2711 = vrot.slane %v2710, 7
        %v2712 = vsel %vm1862, %v2711, %v2710
        %v2714 = vld [vmem:[#allocation4 + $0x1e] sm:$0x3]
        %v2715 = vsel %vm1869, %v2712, %v2714
        %2716 = vst [vmem:[#allocation4 + $0x1e] sm:$0x3] %v2715
        %v2717 = vld [vmem:[#allocation3 + $0x10] sm:$0x80]
        %v2719 = vcombine.high %v2717, %v2717
        %v2721 = vunpack.c.l.s4 1966171168
        %v2722 = vunpack.c.0.s8 %v2721
        %v2723 = vlaneseq
        %v2724 = vshrl.u32 %v2723, 7
        %v2725 = vsub.s32 %v2722, %v2724
        %v2726 = vrot.slane %v2719, %v2725
        %v2727 = vcombine.high %v2726, %v2726
        %v2729 = vunpack.c.l.s4 1966171168
        %v2730 = vunpack.c.0.s8 %v2729
        %v2731 = vlaneseq
        %v2732 = vshrl.u32 %v2731, 7
        %v2733 = vsub.s32 %v2730, %v2732
        %v2734 = vrot.slane %v2727, %v2733
        %v2735 = vcombine.high %v2734, %v2734
        %2736 = vrot.lane.b32.xlu0 %v2735, 80
        %v2737 = vpop.permute.xlu0 %2736
        %v2738 = vrot.slane %v2737, 7
        %v2739 = vsel %vm1895, %v2738, %v2737
        %v2741 = vld [vmem:[#allocation4 + $0x1f] sm:$0x3]
        %v2742 = vsel %vm1902, %v2739, %v2741
        %2743 = vst [vmem:[#allocation4 + $0x1f] sm:$0x3] %v2742
        %v2744 = vld [vmem:[#allocation3 + $0x10] sm:$0x80]
        %v2746 = vcombine.high %v2744, %v2744
        %v2748 = vunpack.c.l.s4 1966171168
        %v2749 = vunpack.c.0.s8 %v2748
        %v2750 = vlaneseq
        %v2751 = vshrl.u32 %v2750, 7
        %v2752 = vsub.s32 %v2749, %v2751
        %v2753 = vrot.slane %v2746, %v2752
        %v2754 = vcombine.high %v2753, %v2753
        %v2756 = vunpack.c.l.s4 1966171168
        %v2757 = vunpack.c.0.s8 %v2756
        %v2758 = vlaneseq
        %v2759 = vshrl.u32 %v2758, 7
        %v2760 = vsub.s32 %v2757, %v2759
        %v2761 = vrot.slane %v2754, %v2760
        %v2762 = vcombine.high %v2761, %v2761
        %v2764 = vshrl.u32 %v2762, 16
        %v2766 = vrot.slane %v2764, 7
        %v2767 = vrot.slane %v2766, 1
        %2768 = vrot.lane.b32.xlu0 %v2767, 40
        %v2769 = vpop.permute.xlu0 %2768
        %v2771 = vld [vmem:[#allocation4 + $0x20] sm:$0x1]
        %v2772 = vsel %vm1934, %v2769, %v2771
        %2773 = vst [vmem:[#allocation4 + $0x20] sm:$0x1] %v2772
        %v2774 = vld [vmem:[#allocation3 + $0x18] sm:$0x1]
        %v2775 = vld [vmem:[#allocation4 + $0x21] sm:$0x1]
        %v2776 = vsel %vm290, %v2774, %v2775
        %2777 = vst [vmem:[#allocation4 + $0x21] sm:$0x1] %v2776
        %v2778 = vld [vmem:[#allocation3 + $0x18] sm:$0x1]
        %v2781 = vunpack.c.l.s4 1966171168
        %v2782 = vunpack.c.0.s8 %v2781
        %v2783 = vlaneseq
        %v2784 = vshrl.u32 %v2783, 7
        %v2785 = vsub.s32 %v2782, %v2784
        %v2786 = vrot.slane %v2778, %v2785
        %v2788 = vunpack.c.l.s4 1966171168
        %v2789 = vunpack.c.0.s8 %v2788
        %v2790 = vlaneseq
        %v2791 = vshrl.u32 %v2790, 7
        %v2792 = vsub.s32 %v2789, %v2791
        %v2793 = vrot.slane %v2786, %v2792
        %v2795 = vshrl.u32 %v2793, 16
        %v2797 = vrot.slane %v2795, 7
        %v2798 = vrot.slane %v2797, 1
        %2799 = vrot.lane.b32.xlu0 %v2798, 88
        %v2800 = vpop.permute.xlu0 %2799
        %v2801 = vrot.slane %v2800, 7
        %v2802 = vsel %vm1478, %v2801, %v2800
        %v2804 = vld [vmem:[#allocation4 + $0x21] sm:$0x3]
        %v2805 = vsel %vm1485, %v2802, %v2804
        %2806 = vst [vmem:[#allocation4 + $0x21] sm:$0x3] %v2805
        %v2807 = vld [vmem:[#allocation3 + $0x18] sm:$0x2]
        %v2810 = vunpack.c.l.s4 1966171168
        %v2811 = vunpack.c.0.s8 %v2810
        %v2812 = vlaneseq
        %v2813 = vshrl.u32 %v2812, 7
        %v2814 = vsub.s32 %v2811, %v2813
        %v2815 = vrot.slane %v2807, %v2814
        %v2816 = vcombine.high %v2815, %v2815
        %v2818 = vunpack.c.l.s4 1966171168
        %v2819 = vunpack.c.0.s8 %v2818
        %v2820 = vlaneseq
        %v2821 = vshrl.u32 %v2820, 7
        %v2822 = vsub.s32 %v2819, %v2821
        %v2823 = vrot.slane %v2816, %v2822
        %2824 = vrot.lane.b32.xlu0 %v2823, 48
        %v2825 = vpop.permute.xlu0 %2824
        %v2826 = vrot.slane %v2825, 7
        %v2827 = vsel %vm1509, %v2826, %v2825
        %v2829 = vld [vmem:[#allocation4 + $0x22] sm:$0x3]
        %v2830 = vsel %vm1516, %v2827, %v2829
        %2831 = vst [vmem:[#allocation4 + $0x22] sm:$0x3] %v2830
        %v2832 = vld [vmem:[#allocation3 + $0x18] sm:$0x2]
        %v2835 = vunpack.c.l.s4 1966171168
        %v2836 = vunpack.c.0.s8 %v2835
        %v2837 = vlaneseq
        %v2838 = vshrl.u32 %v2837, 7
        %v2839 = vsub.s32 %v2836, %v2838
        %v2840 = vrot.slane %v2832, %v2839
        %v2841 = vcombine.high %v2840, %v2840
        %v2843 = vunpack.c.l.s4 1966171168
        %v2844 = vunpack.c.0.s8 %v2843
        %v2845 = vlaneseq
        %v2846 = vshrl.u32 %v2845, 7
        %v2847 = vsub.s32 %v2844, %v2846
        %v2848 = vrot.slane %v2841, %v2847
        %v2850 = vshrl.u32 %v2848, 16
        %v2852 = vrot.slane %v2850, 7
        %v2853 = vrot.slane %v2852, 1
        %2854 = vrot.lane.b32.xlu0 %v2853, 8
        %v2855 = vpop.permute.xlu0 %2854
        %v2857 = vld [vmem:[#allocation4 + $0x23] sm:$0x1]
        %v2858 = vsel %vm1546, %v2855, %v2857
        %2859 = vst [vmem:[#allocation4 + $0x23] sm:$0x1] %v2858
        %v2860 = vld [vmem:[#allocation3 + $0x18] sm:$0x4]
        %v2863 = vunpack.c.l.s4 1966171168
        %v2864 = vunpack.c.0.s8 %v2863
        %v2865 = vlaneseq
        %v2866 = vshrl.u32 %v2865, 7
        %v2867 = vsub.s32 %v2864, %v2866
        %v2868 = vrot.slane %v2860, %v2867
        %v2870 = vunpack.c.l.s4 1966171168
        %v2871 = vunpack.c.0.s8 %v2870
        %v2872 = vlaneseq
        %v2873 = vshrl.u32 %v2872, 7
        %v2874 = vsub.s32 %v2871, %v2873
        %v2875 = vrot.slane %v2868, %v2874
        %v2876 = vcombine.high %v2875, %v2875
        %2877 = vrot.lane.b32.xlu0 %v2876, 96
        %v2878 = vpop.permute.xlu0 %2877
        %v2879 = vrot.slane %v2878, 7
        %v2880 = vsel %vm1570, %v2879, %v2878
        %v2882 = vld [vmem:[#allocation4 + $0x23] sm:$0x3]
        %v2883 = vsel %vm1577, %v2880, %v2882
        %2884 = vst [vmem:[#allocation4 + $0x23] sm:$0x3] %v2883
        %v2885 = vld [vmem:[#allocation3 + $0x18] sm:$0x4]
        %v2888 = vunpack.c.l.s4 1966171168
        %v2889 = vunpack.c.0.s8 %v2888
        %v2890 = vlaneseq
        %v2891 = vshrl.u32 %v2890, 7
        %v2892 = vsub.s32 %v2889, %v2891
        %v2893 = vrot.slane %v2885, %v2892
        %v2895 = vunpack.c.l.s4 1966171168
        %v2896 = vunpack.c.0.s8 %v2895
        %v2897 = vlaneseq
        %v2898 = vshrl.u32 %v2897, 7
        %v2899 = vsub.s32 %v2896, %v2898
        %v2900 = vrot.slane %v2893, %v2899
        %v2901 = vcombine.high %v2900, %v2900
        %v2903 = vshrl.u32 %v2901, 16
        %v2905 = vrot.slane %v2903, 7
        %v2906 = vrot.slane %v2905, 1
        %2907 = vrot.lane.b32.xlu0 %v2906, 56
        %v2908 = vpop.permute.xlu0 %2907
        %v2909 = vrot.slane %v2908, 7
        %v2910 = vsel %vm1606, %v2909, %v2908
        %v2912 = vld [vmem:[#allocation4 + $0x24] sm:$0x3]
        %v2913 = vsel %vm1613, %v2910, %v2912
        %2914 = vst [vmem:[#allocation4 + $0x24] sm:$0x3] %v2913
        %v2915 = vld [vmem:[#allocation3 + $0x18] sm:$0x8]
        %v2918 = vunpack.c.l.s4 1966171168
        %v2919 = vunpack.c.0.s8 %v2918
        %v2920 = vlaneseq
        %v2921 = vshrl.u32 %v2920, 7
        %v2922 = vsub.s32 %v2919, %v2921
        %v2923 = vrot.slane %v2915, %v2922
        %v2924 = vcombine.high %v2923, %v2923
        %v2926 = vunpack.c.l.s4 1966171168
        %v2927 = vunpack.c.0.s8 %v2926
        %v2928 = vlaneseq
        %v2929 = vshrl.u32 %v2928, 7
        %v2930 = vsub.s32 %v2927, %v2929
        %v2931 = vrot.slane %v2924, %v2930
        %v2932 = vcombine.high %v2931, %v2931
        %2933 = vrot.lane.b32.xlu0 %v2932, 16
        %v2934 = vpop.permute.xlu0 %2933
        %v2936 = vld [vmem:[#allocation4 + $0x25] sm:$0x1]
        %v2937 = vsel %vm1639, %v2934, %v2936
        %2938 = vst [vmem:[#allocation4 + $0x25] sm:$0x1] %v2937
        %v2939 = vld [vmem:[#allocation3 + $0x18] sm:$0x8]
        %v2942 = vunpack.c.l.s4 1966171168
        %v2943 = vunpack.c.0.s8 %v2942
        %v2944 = vlaneseq
        %v2945 = vshrl.u32 %v2944, 7
        %v2946 = vsub.s32 %v2943, %v2945
        %v2947 = vrot.slane %v2939, %v2946
        %v2948 = vcombine.high %v2947, %v2947
        %v2950 = vunpack.c.l.s4 1966171168
        %v2951 = vunpack.c.0.s8 %v2950
        %v2952 = vlaneseq
        %v2953 = vshrl.u32 %v2952, 7
        %v2954 = vsub.s32 %v2951, %v2953
        %v2955 = vrot.slane %v2948, %v2954
        %v2956 = vcombine.high %v2955, %v2955
        %v2958 = vshrl.u32 %v2956, 16
        %v2960 = vrot.slane %v2958, 7
        %v2961 = vrot.slane %v2960, 1
        %2962 = vrot.lane.b32.xlu0 %v2961, 104
        %v2963 = vpop.permute.xlu0 %2962
        %v2964 = vrot.slane %v2963, 7
        %v2965 = vsel %vm1669, %v2964, %v2963
        %v2967 = vld [vmem:[#allocation4 + $0x25] sm:$0x3]
        %v2968 = vsel %vm1676, %v2965, %v2967
        %2969 = vst [vmem:[#allocation4 + $0x25] sm:$0x3] %v2968
        %v2970 = vld [vmem:[#allocation3 + $0x18] sm:$0x10]
        %v2972 = vcombine.high %v2970, %v2970
        %v2974 = vunpack.c.l.s4 1966171168
        %v2975 = vunpack.c.0.s8 %v2974
        %v2976 = vlaneseq
        %v2977 = vshrl.u32 %v2976, 7
        %v2978 = vsub.s32 %v2975, %v2977
        %v2979 = vrot.slane %v2972, %v2978
        %v2981 = vunpack.c.l.s4 1966171168
        %v2982 = vunpack.c.0.s8 %v2981
        %v2983 = vlaneseq
        %v2984 = vshrl.u32 %v2983, 7
        %v2985 = vsub.s32 %v2982, %v2984
        %v2986 = vrot.slane %v2979, %v2985
        %2987 = vrot.lane.b32.xlu0 %v2986, 64
        %v2988 = vpop.permute.xlu0 %2987
        %v2989 = vrot.slane %v2988, 7
        %v2990 = vsel %vm1700, %v2989, %v2988
        %v2992 = vld [vmem:[#allocation4 + $0x26] sm:$0x3]
        %v2993 = vsel %vm1707, %v2990, %v2992
        %2994 = vst [vmem:[#allocation4 + $0x26] sm:$0x3] %v2993
        %v2995 = vld [vmem:[#allocation3 + $0x18] sm:$0x10]
        %v2997 = vcombine.high %v2995, %v2995
        %v2999 = vunpack.c.l.s4 1966171168
        %v3000 = vunpack.c.0.s8 %v2999
        %v3001 = vlaneseq
        %v3002 = vshrl.u32 %v3001, 7
        %v3003 = vsub.s32 %v3000, %v3002
        %v3004 = vrot.slane %v2997, %v3003
        %v3006 = vunpack.c.l.s4 1966171168
        %v3007 = vunpack.c.0.s8 %v3006
        %v3008 = vlaneseq
        %v3009 = vshrl.u32 %v3008, 7
        %v3010 = vsub.s32 %v3007, %v3009
        %v3011 = vrot.slane %v3004, %v3010
        %v3013 = vshrl.u32 %v3011, 16
        %v3015 = vrot.slane %v3013, 7
        %v3016 = vrot.slane %v3015, 1
        %3017 = vrot.lane.b32.xlu0 %v3016, 24
        %v3018 = vpop.permute.xlu0 %3017
        %v3020 = vld [vmem:[#allocation4 + $0x27] sm:$0x1]
        %v3021 = vsel %vm1737, %v3018, %v3020
        %3022 = vst [vmem:[#allocation4 + $0x27] sm:$0x1] %v3021
        %v3023 = vld [vmem:[#allocation3 + $0x18] sm:$0x20]
        %v3025 = vcombine.high %v3023, %v3023
        %v3027 = vunpack.c.l.s4 1966171168
        %v3028 = vunpack.c.0.s8 %v3027
        %v3029 = vlaneseq
        %v3030 = vshrl.u32 %v3029, 7
        %v3031 = vsub.s32 %v3028, %v3030
        %v3032 = vrot.slane %v3025, %v3031
        %v3033 = vcombine.high %v3032, %v3032
        %v3035 = vunpack.c.l.s4 1966171168
        %v3036 = vunpack.c.0.s8 %v3035
        %v3037 = vlaneseq
        %v3038 = vshrl.u32 %v3037, 7
        %v3039 = vsub.s32 %v3036, %v3038
        %v3040 = vrot.slane %v3033, %v3039
        %3041 = vrot.lane.b32.xlu0 %v3040, 112
        %v3042 = vpop.permute.xlu0 %3041
        %v3043 = vrot.slane %v3042, 7
        %v3044 = vsel %vm1762, %v3043, %v3042
        %v3046 = vld [vmem:[#allocation4 + $0x27] sm:$0x3]
        %v3047 = vsel %vm1769, %v3044, %v3046
        %3048 = vst [vmem:[#allocation4 + $0x27] sm:$0x3] %v3047
        %v3049 = vld [vmem:[#allocation3 + $0x18] sm:$0x20]
        %v3051 = vcombine.high %v3049, %v3049
        %v3053 = vunpack.c.l.s4 1966171168
        %v3054 = vunpack.c.0.s8 %v3053
        %v3055 = vlaneseq
        %v3056 = vshrl.u32 %v3055, 7
        %v3057 = vsub.s32 %v3054, %v3056
        %v3058 = vrot.slane %v3051, %v3057
        %v3059 = vcombine.high %v3058, %v3058
        %v3061 = vunpack.c.l.s4 1966171168
        %v3062 = vunpack.c.0.s8 %v3061
        %v3063 = vlaneseq
        %v3064 = vshrl.u32 %v3063, 7
        %v3065 = vsub.s32 %v3062, %v3064
        %v3066 = vrot.slane %v3059, %v3065
        %v3068 = vshrl.u32 %v3066, 16
        %v3070 = vrot.slane %v3068, 7
        %v3071 = vrot.slane %v3070, 1
        %3072 = vrot.lane.b32.xlu0 %v3071, 72
        %v3073 = vpop.permute.xlu0 %3072
        %v3074 = vrot.slane %v3073, 7
        %v3075 = vsel %vm1799, %v3074, %v3073
        %v3077 = vld [vmem:[#allocation4 + $0x28] sm:$0x3]
        %v3078 = vsel %vm1806, %v3075, %v3077
        %3079 = vst [vmem:[#allocation4 + $0x28] sm:$0x3] %v3078
        %v3080 = vld [vmem:[#allocation3 + $0x18] sm:$0x40]
        %v3082 = vcombine.high %v3080, %v3080
        %v3084 = vunpack.c.l.s4 1966171168
        %v3085 = vunpack.c.0.s8 %v3084
        %v3086 = vlaneseq
        %v3087 = vshrl.u32 %v3086, 7
        %v3088 = vsub.s32 %v3085, %v3087
        %v3089 = vrot.slane %v3082, %v3088
        %v3091 = vunpack.c.l.s4 1966171168
        %v3092 = vunpack.c.0.s8 %v3091
        %v3093 = vlaneseq
        %v3094 = vshrl.u32 %v3093, 7
        %v3095 = vsub.s32 %v3092, %v3094
        %v3096 = vrot.slane %v3089, %v3095
        %v3097 = vcombine.high %v3096, %v3096
        %3098 = vrot.lane.b32.xlu0 %v3097, 32
        %v3099 = vpop.permute.xlu0 %3098
        %v3101 = vld [vmem:[#allocation4 + $0x29] sm:$0x1]
        %v3102 = vsel %vm1832, %v3099, %v3101
        %3103 = vst [vmem:[#allocation4 + $0x29] sm:$0x1] %v3102
        %v3104 = vld [vmem:[#allocation3 + $0x18] sm:$0x40]
        %v3106 = vcombine.high %v3104, %v3104
        %v3108 = vunpack.c.l.s4 1966171168
        %v3109 = vunpack.c.0.s8 %v3108
        %v3110 = vlaneseq
        %v3111 = vshrl.u32 %v3110, 7
        %v3112 = vsub.s32 %v3109, %v3111
        %v3113 = vrot.slane %v3106, %v3112
        %v3115 = vunpack.c.l.s4 1966171168
        %v3116 = vunpack.c.0.s8 %v3115
        %v3117 = vlaneseq
        %v3118 = vshrl.u32 %v3117, 7
        %v3119 = vsub.s32 %v3116, %v3118
        %v3120 = vrot.slane %v3113, %v3119
        %v3121 = vcombine.high %v3120, %v3120
        %v3123 = vshrl.u32 %v3121, 16
        %v3125 = vrot.slane %v3123, 7
        %v3126 = vrot.slane %v3125, 1
        %3127 = vrot.lane.b32.xlu0 %v3126, 120
        %v3128 = vpop.permute.xlu0 %3127
        %v3129 = vrot.slane %v3128, 7
        %v3130 = vsel %vm1862, %v3129, %v3128
        %v3132 = vld [vmem:[#allocation4 + $0x29] sm:$0x3]
        %v3133 = vsel %vm1869, %v3130, %v3132
        %3134 = vst [vmem:[#allocation4 + $0x29] sm:$0x3] %v3133
        %v3135 = vld [vmem:[#allocation3 + $0x18] sm:$0x80]
        %v3137 = vcombine.high %v3135, %v3135
        %v3139 = vunpack.c.l.s4 1966171168
        %v3140 = vunpack.c.0.s8 %v3139
        %v3141 = vlaneseq
        %v3142 = vshrl.u32 %v3141, 7
        %v3143 = vsub.s32 %v3140, %v3142
        %v3144 = vrot.slane %v3137, %v3143
        %v3145 = vcombine.high %v3144, %v3144
        %v3147 = vunpack.c.l.s4 1966171168
        %v3148 = vunpack.c.0.s8 %v3147
        %v3149 = vlaneseq
        %v3150 = vshrl.u32 %v3149, 7
        %v3151 = vsub.s32 %v3148, %v3150
        %v3152 = vrot.slane %v3145, %v3151
        %v3153 = vcombine.high %v3152, %v3152
        %3154 = vrot.lane.b32.xlu0 %v3153, 80
        %v3155 = vpop.permute.xlu0 %3154
        %v3156 = vrot.slane %v3155, 7
        %v3157 = vsel %vm1895, %v3156, %v3155
        %v3159 = vld [vmem:[#allocation4 + $0x2a] sm:$0x3]
        %v3160 = vsel %vm1902, %v3157, %v3159
        %3161 = vst [vmem:[#allocation4 + $0x2a] sm:$0x3] %v3160
        %v3162 = vld [vmem:[#allocation3 + $0x18] sm:$0x80]
        %v3164 = vcombine.high %v3162, %v3162
        %v3166 = vunpack.c.l.s4 1966171168
        %v3167 = vunpack.c.0.s8 %v3166
        %v3168 = vlaneseq
        %v3169 = vshrl.u32 %v3168, 7
        %v3170 = vsub.s32 %v3167, %v3169
        %v3171 = vrot.slane %v3164, %v3170
        %v3172 = vcombine.high %v3171, %v3171
        %v3174 = vunpack.c.l.s4 1966171168
        %v3175 = vunpack.c.0.s8 %v3174
        %v3176 = vlaneseq
        %v3177 = vshrl.u32 %v3176, 7
        %v3178 = vsub.s32 %v3175, %v3177
        %v3179 = vrot.slane %v3172, %v3178
        %v3180 = vcombine.high %v3179, %v3179
        %v3182 = vshrl.u32 %v3180, 16
        %v3184 = vrot.slane %v3182, 7
        %v3185 = vrot.slane %v3184, 1
        %3186 = vrot.lane.b32.xlu0 %v3185, 40
        %v3187 = vpop.permute.xlu0 %3186
        %v3189 = vld [vmem:[#allocation4 + $0x2b] sm:$0x1]
        %v3190 = vsel %vm1934, %v3187, %v3189
        %3191 = vst [vmem:[#allocation4 + $0x2b] sm:$0x1] %v3190
        %v3192 = vld [vmem:[#allocation4] sm:$0xff]
        %v3193 = vld [vmem:[#allocation4 + $0x8] sm:$0xff]
        %v3194 = vld [vmem:[#allocation4 + $0x10] sm:$0xff]
        %v3195 = vld [vmem:[#allocation4 + $0x18] sm:$0xff]
        %v3196 = vld [vmem:[#allocation4 + $0x20] sm:$0xff]
        %v3197 = vld [vmem:[#allocation4 + $0x28] sm:$0xf]
        %v3198 = vld [vmem:[#allocation7] sm:$0xf]
        %v3199 = vld [vmem:[#allocation7 + $0x4] sm:$0xf]
        %v3200 = vld [vmem:[#allocation7 + $0x8] sm:$0xf]
        %v3201 = vld [vmem:[#allocation7 + $0xc] sm:$0xf]
        %v3202 = vld [vmem:[#allocation7 + $0x10] sm:$0xf]
        %v3203 = vld [vmem:[#allocation7 + $0x14] sm:$0xf]
        %v3204 = vld [vmem:[#allocation7 + $0x18] sm:$0xf]
        %v3205 = vld [vmem:[#allocation7 + $0x1c] sm:$0xf]
        %v3206 = vld [vmem:[#allocation7 + $0x20] sm:$0xf]
        %v3207 = vld [vmem:[#allocation7 + $0x24] sm:$0xf]
        %v3208 = vld [vmem:[#allocation7 + $0x28] sm:$0xf]
        %v3209 = vld [vmem:[#allocation7 + $0x2c] sm:$0xf]
        %v3210 = vld [vmem:[#allocation7 + $0x30] sm:$0xf]
        %v3211 = vld [vmem:[#allocation7 + $0x34] sm:$0xf]
        %v3212 = vld [vmem:[#allocation7 + $0x38] sm:$0xf]
        %v3213 = vld [vmem:[#allocation7 + $0x3c] sm:$0xf]
        %v3214 = vld [vmem:[#allocation7 + $0x40] sm:$0xf]
        %v3215 = vld [vmem:[#allocation7 + $0x44] sm:$0xf]
        %v3216 = vld [vmem:[#allocation7 + $0x48] sm:$0xf]
        %v3217 = vld [vmem:[#allocation7 + $0x4c] sm:$0xf]
        %v3218 = vld [vmem:[#allocation7 + $0x50] sm:$0xf]
        %v3219 = vld [vmem:[#allocation7 + $0x54] sm:$0xf]
        %v3220 = vld [vmem:[#allocation7 + $0x58] sm:$0xf]
        %v3221 = vld [vmem:[#allocation7 + $0x5c] sm:$0xf]
        %v3222 = vld [vmem:[#allocation7 + $0x60] sm:$0xf]
        %v3223 = vld [vmem:[#allocation7 + $0x64] sm:$0xf]
        %v3224 = vld [vmem:[#allocation7 + $0x68] sm:$0xf]
        %v3225 = vld [vmem:[#allocation7 + $0x6c] sm:$0xf]
        %v3226 = vld [vmem:[#allocation7 + $0x70] sm:$0xf]
        %v3227 = vld [vmem:[#allocation7 + $0x74] sm:$0xf]
        %v3228 = vld [vmem:[#allocation7 + $0x78] sm:$0xf]
        %v3229 = vld [vmem:[#allocation7 + $0x7c] sm:$0xf]
        %v3230 = vld [vmem:[#allocation7 + $0x80] sm:$0xf]
        %v3231 = vld [vmem:[#allocation7 + $0x84] sm:$0xf]
        %v3232 = vld [vmem:[#allocation7 + $0x88] sm:$0xf]
        %v3233 = vld [vmem:[#allocation7 + $0x8c] sm:$0xf]
        %v3234 = vld [vmem:[#allocation7 + $0x90] sm:$0xf]
        %v3235 = vld [vmem:[#allocation7 + $0x94] sm:$0xf]
        %v3236 = vld [vmem:[#allocation7 + $0x98] sm:$0xf]
        %v3237 = vld [vmem:[#allocation7 + $0x9c] sm:$0xf]
        %v3238 = vld [vmem:[#allocation7 + $0xa0] sm:$0xf]
        %v3239 = vld [vmem:[#allocation7 + $0xa4] sm:$0xf]
        %v3240 = vld [vmem:[#allocation7 + $0xa8] sm:$0xf]
        %v3241 = vld [vmem:[#allocation7 + $0xac] sm:$0xf]
        %v3242 = vld [vmem:[#allocation7 + $0xb0] sm:$0xf]
        %v3243 = vld [vmem:[#allocation7 + $0xb4] sm:$0xf]
        %v3244 = vld [vmem:[#allocation7 + $0xb8] sm:$0xf]
        %v3245 = vld [vmem:[#allocation7 + $0xbc] sm:$0xf]
        %v3246 = vld [vmem:[#allocation7 + $0xc0] sm:$0xf]
        %v3247 = vld [vmem:[#allocation7 + $0xc4] sm:$0xf]
        %v3248 = vld [vmem:[#allocation7 + $0xc8] sm:$0xf]
        %v3249 = vld [vmem:[#allocation7 + $0xcc] sm:$0xf]
        %v3250 = vld [vmem:[#allocation7 + $0xd0] sm:$0xf]
        %v3251 = vld [vmem:[#allocation7 + $0xd4] sm:$0xf]
        %v3252 = vld [vmem:[#allocation7 + $0xd8] sm:$0xf]
        %v3253 = vld [vmem:[#allocation7 + $0xdc] sm:$0xf]
        %v3254 = vld [vmem:[#allocation7 + $0xe0] sm:$0xf]
        %v3255 = vld [vmem:[#allocation7 + $0xe4] sm:$0xf]
        %v3256 = vld [vmem:[#allocation7 + $0xe8] sm:$0xf]
        %v3257 = vld [vmem:[#allocation7 + $0xec] sm:$0xf]
        %v3258 = vld [vmem:[#allocation7 + $0xf0] sm:$0xf]
        %v3259 = vld [vmem:[#allocation7 + $0xf4] sm:$0xf]
        %v3260 = vld [vmem:[#allocation7 + $0xf8] sm:$0xf]
        %v3261 = vld [vmem:[#allocation7 + $0xfc] sm:$0xf]
        %v3262 = vld [vmem:[#allocation7 + $0x100] sm:$0xf]
        %v3263 = vld [vmem:[#allocation7 + $0x104] sm:$0xf]
        %v3264 = vld [vmem:[#allocation7 + $0x108] sm:$0xf]
        %v3265 = vld [vmem:[#allocation7 + $0x10c] sm:$0xf]
        %v3266 = vld [vmem:[#allocation7 + $0x110] sm:$0xf]
        %v3267 = vld [vmem:[#allocation7 + $0x114] sm:$0xf]
        %v3268 = vld [vmem:[#allocation7 + $0x118] sm:$0xf]
        %v3269 = vld [vmem:[#allocation7 + $0x11c] sm:$0xf]
        %v3270 = vld [vmem:[#allocation7 + $0x120] sm:$0xf]
        %v3271 = vld [vmem:[#allocation7 + $0x124] sm:$0xf]
        %v3272 = vld [vmem:[#allocation7 + $0x128] sm:$0xf]
        %v3273 = vld [vmem:[#allocation7 + $0x12c] sm:$0xf]
        %v3274 = vld [vmem:[#allocation7 + $0x130] sm:$0xf]
        %v3275 = vld [vmem:[#allocation7 + $0x134] sm:$0xf]
        %v3276 = vld [vmem:[#allocation7 + $0x138] sm:$0xf]
        %v3277 = vld [vmem:[#allocation7 + $0x13c] sm:$0xf]
        %v3278 = vld [vmem:[#allocation7 + $0x140] sm:$0xf]
        %v3279 = vld [vmem:[#allocation7 + $0x144] sm:$0xf]
        %v3280 = vld [vmem:[#allocation7 + $0x148] sm:$0xf]
        %v3281 = vld [vmem:[#allocation7 + $0x14c] sm:$0xf]
        %v3282 = vld [vmem:[#allocation7 + $0x150] sm:$0xf]
        %v3283 = vld [vmem:[#allocation7 + $0x154] sm:$0xf]
        %v3284 = vld [vmem:[#allocation7 + $0x158] sm:$0xf]
        %v3285 = vld [vmem:[#allocation7 + $0x15c] sm:$0xf]
        %v3286 = vld [vmem:[#allocation7 + $0x160] sm:$0xf]
        %v3287 = vld [vmem:[#allocation7 + $0x164] sm:$0xf]
        %v3288 = vld [vmem:[#allocation7 + $0x168] sm:$0xf]
        %v3289 = vld [vmem:[#allocation7 + $0x16c] sm:$0xf]
        %v3290 = vld [vmem:[#allocation7 + $0x170] sm:$0xf]
        %v3291 = vld [vmem:[#allocation7 + $0x174] sm:$0xf]
        %v3292 = vld [vmem:[#allocation7 + $0x178] sm:$0xf]
        %v3293 = vld [vmem:[#allocation7 + $0x17c] sm:$0xf]
        %v3294 = vld [vmem:[#allocation7 + $0x180] sm:$0xf]
        %v3295 = vld [vmem:[#allocation7 + $0x184] sm:$0xf]
        %v3296 = vld [vmem:[#allocation7 + $0x188] sm:$0xf]
        %v3297 = vld [vmem:[#allocation7 + $0x18c] sm:$0xf]
        %v3298 = vld [vmem:[#allocation7 + $0x190] sm:$0xf]
        %v3299 = vld [vmem:[#allocation7 + $0x194] sm:$0xf]
        %v3300 = vld [vmem:[#allocation7 + $0x198] sm:$0xf]
        %v3301 = vld [vmem:[#allocation7 + $0x19c] sm:$0xf]
        %v3302 = vld [vmem:[#allocation7 + $0x1a0] sm:$0xf]
        %v3303 = vld [vmem:[#allocation7 + $0x1a4] sm:$0xf]
        %v3304 = vld [vmem:[#allocation7 + $0x1a8] sm:$0xf]
        %v3305 = vld [vmem:[#allocation7 + $0x1ac] sm:$0xf]
        %v3306 = vld [vmem:[#allocation7 + $0x1b0] sm:$0xf]
        %v3307 = vld [vmem:[#allocation7 + $0x1b4] sm:$0xf]
        %v3308 = vld [vmem:[#allocation7 + $0x1b8] sm:$0xf]
        %v3309 = vld [vmem:[#allocation7 + $0x1bc] sm:$0xf]
        %v3310 = vld [vmem:[#allocation7 + $0x1c0] sm:$0xf]
        %v3311 = vld [vmem:[#allocation7 + $0x1c4] sm:$0xf]
        %v3312 = vld [vmem:[#allocation7 + $0x1c8] sm:$0xf]
        %v3313 = vld [vmem:[#allocation7 + $0x1cc] sm:$0xf]
        %v3314 = vld [vmem:[#allocation7 + $0x1d0] sm:$0xf]
        %v3315 = vld [vmem:[#allocation7 + $0x1d4] sm:$0xf]
        %v3316 = vld [vmem:[#allocation7 + $0x1d8] sm:$0xf]
        %v3317 = vld [vmem:[#allocation7 + $0x1dc] sm:$0xf]
        %v3318 = vld [vmem:[#allocation7 + $0x1e0] sm:$0xf]
        %v3319 = vld [vmem:[#allocation7 + $0x1e4] sm:$0xf]
        %v3320 = vld [vmem:[#allocation7 + $0x1e8] sm:$0xf]
        %v3321 = vld [vmem:[#allocation7 + $0x1ec] sm:$0xf]
        %v3322 = vld [vmem:[#allocation7 + $0x1f0] sm:$0xf]
        %v3323 = vld [vmem:[#allocation7 + $0x1f4] sm:$0xf]
        %v3324 = vld [vmem:[#allocation7 + $0x1f8] sm:$0xf]
        %v3325 = vld [vmem:[#allocation7 + $0x1fc] sm:$0xf]
        %v3326 = vld [vmem:[#allocation7 + $0x200] sm:$0xf]
        %v3327 = vld [vmem:[#allocation7 + $0x204] sm:$0xf]
        %v3328 = vld [vmem:[#allocation7 + $0x208] sm:$0xf]
        %v3329 = vld [vmem:[#allocation7 + $0x20c] sm:$0xf]
        %v3330 = vld [vmem:[#allocation7 + $0x210] sm:$0xf]
        %v3331 = vld [vmem:[#allocation7 + $0x214] sm:$0xf]
        %v3332 = vld [vmem:[#allocation7 + $0x218] sm:$0xf]
        %v3333 = vld [vmem:[#allocation7 + $0x21c] sm:$0xf]
        %v3334 = vld [vmem:[#allocation7 + $0x220] sm:$0xf]
        %v3335 = vld [vmem:[#allocation7 + $0x224] sm:$0xf]
        %v3336 = vld [vmem:[#allocation7 + $0x228] sm:$0xf]
        %v3337 = vld [vmem:[#allocation7 + $0x22c] sm:$0xf]
        %v3338 = vld [vmem:[#allocation7 + $0x230] sm:$0xf]
        %v3339 = vld [vmem:[#allocation7 + $0x234] sm:$0xf]
        %v3340 = vld [vmem:[#allocation7 + $0x238] sm:$0xf]
        %v3341 = vld [vmem:[#allocation7 + $0x23c] sm:$0xf]
        %v3342 = vld [vmem:[#allocation7 + $0x240] sm:$0xf]
        %v3343 = vld [vmem:[#allocation7 + $0x244] sm:$0xf]
        %v3344 = vld [vmem:[#allocation7 + $0x248] sm:$0xf]
        %v3345 = vld [vmem:[#allocation7 + $0x24c] sm:$0xf]
        %v3346 = vld [vmem:[#allocation7 + $0x250] sm:$0xf]
        %v3347 = vld [vmem:[#allocation7 + $0x254] sm:$0xf]
        %v3348 = vld [vmem:[#allocation7 + $0x258] sm:$0xf]
        %v3349 = vld [vmem:[#allocation7 + $0x25c] sm:$0xf]
        %v3350 = vld [vmem:[#allocation7 + $0x260] sm:$0xf]
        %v3351 = vld [vmem:[#allocation7 + $0x264] sm:$0xf]
        %v3352 = vld [vmem:[#allocation7 + $0x268] sm:$0xf]
        %v3353 = vld [vmem:[#allocation7 + $0x26c] sm:$0xf]
        %v3354 = vld [vmem:[#allocation7 + $0x270] sm:$0xf]
        %v3355 = vld [vmem:[#allocation7 + $0x274] sm:$0xf]
        %v3356 = vld [vmem:[#allocation7 + $0x278] sm:$0xf]
        %v3357 = vld [vmem:[#allocation7 + $0x27c] sm:$0xf]
        %v3358 = vld [vmem:[#allocation7 + $0x280] sm:$0xf]
        %v3359 = vld [vmem:[#allocation7 + $0x284] sm:$0xf]
        %v3360 = vld [vmem:[#allocation7 + $0x288] sm:$0xf]
        %v3361 = vld [vmem:[#allocation7 + $0x28c] sm:$0xf]
        %v3362 = vld [vmem:[#allocation7 + $0x290] sm:$0xf]
        %v3363 = vld [vmem:[#allocation7 + $0x294] sm:$0xf]
        %v3364 = vld [vmem:[#allocation7 + $0x298] sm:$0xf]
        %v3365 = vld [vmem:[#allocation7 + $0x29c] sm:$0xf]
        %v3366 = vld [vmem:[#allocation7 + $0x2a0] sm:$0xf]
        %v3367 = vld [vmem:[#allocation7 + $0x2a4] sm:$0xf]
        %v3368 = vld [vmem:[#allocation7 + $0x2a8] sm:$0xf]
        %v3369 = vld [vmem:[#allocation7 + $0x2ac] sm:$0xf]
        %v3370 = vld [vmem:[#allocation7 + $0x2b0] sm:$0xf]
        %v3371 = vld [vmem:[#allocation7 + $0x2b4] sm:$0xf]
        %v3372 = vld [vmem:[#allocation7 + $0x2b8] sm:$0xf]
        %v3373 = vld [vmem:[#allocation7 + $0x2bc] sm:$0xf]
        %v3374 = vld [vmem:[#allocation7 + $0x2c0] sm:$0xf]
        %v3375 = vld [vmem:[#allocation7 + $0x2c4] sm:$0xf]
        %v3376 = vld [vmem:[#allocation7 + $0x2c8] sm:$0xf]
        %v3377 = vld [vmem:[#allocation7 + $0x2cc] sm:$0xf]
        %v3378 = vld [vmem:[#allocation7 + $0x2d0] sm:$0xf]
        %v3379 = vld [vmem:[#allocation7 + $0x2d4] sm:$0xf]
        %v3380 = vld [vmem:[#allocation7 + $0x2d8] sm:$0xf]
        %v3381 = vld [vmem:[#allocation7 + $0x2dc] sm:$0xf]
        %v3382 = vld [vmem:[#allocation7 + $0x2e0] sm:$0xf]
        %v3383 = vld [vmem:[#allocation7 + $0x2e4] sm:$0xf]
        %v3384 = vld [vmem:[#allocation7 + $0x2e8] sm:$0xf]
        %v3385 = vld [vmem:[#allocation7 + $0x2ec] sm:$0xf]
        %v3386 = vld [vmem:[#allocation7 + $0x2f0] sm:$0xf]
        %v3387 = vld [vmem:[#allocation7 + $0x2f4] sm:$0xf]
        %v3388 = vld [vmem:[#allocation7 + $0x2f8] sm:$0xf]
        %v3389 = vld [vmem:[#allocation7 + $0x2fc] sm:$0xf]
        %v3390 = vld [vmem:[#allocation7 + $0x300] sm:$0xf]
        %v3391 = vld [vmem:[#allocation7 + $0x304] sm:$0xf]
        %v3392 = vld [vmem:[#allocation7 + $0x308] sm:$0xf]
        %v3393 = vld [vmem:[#allocation7 + $0x30c] sm:$0xf]
        %v3394 = vld [vmem:[#allocation7 + $0x310] sm:$0xf]
        %v3395 = vld [vmem:[#allocation7 + $0x314] sm:$0xf]
        %v3396 = vld [vmem:[#allocation7 + $0x318] sm:$0xf]
        %v3397 = vld [vmem:[#allocation7 + $0x31c] sm:$0xf]
        %v3398 = vld [vmem:[#allocation7 + $0x320] sm:$0xf]
        %v3399 = vld [vmem:[#allocation7 + $0x324] sm:$0xf]
        %v3400 = vld [vmem:[#allocation7 + $0x328] sm:$0xf]
        %v3401 = vld [vmem:[#allocation7 + $0x32c] sm:$0xf]
        %v3402 = vld [vmem:[#allocation7 + $0x330] sm:$0xf]
        %v3403 = vld [vmem:[#allocation7 + $0x334] sm:$0xf]
        %v3404 = vld [vmem:[#allocation7 + $0x338] sm:$0xf]
        %v3405 = vld [vmem:[#allocation7 + $0x33c] sm:$0xf]
        %v3406 = vld [vmem:[#allocation7 + $0x340] sm:$0xf]
        %v3407 = vld [vmem:[#allocation7 + $0x344] sm:$0xf]
        %v3408 = vld [vmem:[#allocation7 + $0x348] sm:$0xf]
        %v3409 = vld [vmem:[#allocation7 + $0x34c] sm:$0xf]
        %v3410 = vld [vmem:[#allocation7 + $0x350] sm:$0xf]
        %v3411 = vld [vmem:[#allocation7 + $0x354] sm:$0xf]
        %v3412 = vld [vmem:[#allocation7 + $0x358] sm:$0xf]
        %v3413 = vld [vmem:[#allocation7 + $0x35c] sm:$0xf]
        %v3414 = vld [vmem:[#allocation7 + $0x360] sm:$0xf]
        %v3415 = vld [vmem:[#allocation7 + $0x364] sm:$0xf]
        %v3416 = vld [vmem:[#allocation7 + $0x368] sm:$0xf]
        %v3417 = vld [vmem:[#allocation7 + $0x36c] sm:$0xf]
        %v3418 = vld [vmem:[#allocation7 + $0x370] sm:$0xf]
        %v3419 = vld [vmem:[#allocation7 + $0x374] sm:$0xf]
        %v3420 = vld [vmem:[#allocation7 + $0x378] sm:$0xf]
        %v3421 = vld [vmem:[#allocation7 + $0x37c] sm:$0xf]
        %v3422 = vld [vmem:[#allocation7 + $0x380] sm:$0xf]
        %v3423 = vld [vmem:[#allocation7 + $0x384] sm:$0xf]
        %v3424 = vld [vmem:[#allocation7 + $0x388] sm:$0xf]
        %v3425 = vld [vmem:[#allocation7 + $0x38c] sm:$0xf]
        %v3426 = vld [vmem:[#allocation7 + $0x390] sm:$0xf]
        %v3427 = vld [vmem:[#allocation7 + $0x394] sm:$0xf]
        %v3428 = vld [vmem:[#allocation7 + $0x398] sm:$0xf]
        %v3429 = vld [vmem:[#allocation7 + $0x39c] sm:$0xf]
        %v3430 = vld [vmem:[#allocation7 + $0x3a0] sm:$0xf]
        %v3431 = vld [vmem:[#allocation7 + $0x3a4] sm:$0xf]
        %v3432 = vld [vmem:[#allocation7 + $0x3a8] sm:$0xf]
        %v3433 = vld [vmem:[#allocation7 + $0x3ac] sm:$0xf]
        %v3434 = vld [vmem:[#allocation7 + $0x3b0] sm:$0xf]
        %v3435 = vld [vmem:[#allocation7 + $0x3b4] sm:$0xf]
        %v3436 = vld [vmem:[#allocation7 + $0x3b8] sm:$0xf]
        %v3437 = vld [vmem:[#allocation7 + $0x3bc] sm:$0xf]
        %v3438 = vld [vmem:[#allocation7 + $0x3c0] sm:$0xf]
        %v3439 = vld [vmem:[#allocation7 + $0x3c4] sm:$0xf]
        %v3440 = vld [vmem:[#allocation7 + $0x3c8] sm:$0xf]
        %v3441 = vld [vmem:[#allocation7 + $0x3cc] sm:$0xf]
        %v3442 = vld [vmem:[#allocation7 + $0x3d0] sm:$0xf]
        %v3443 = vld [vmem:[#allocation7 + $0x3d4] sm:$0xf]
        %v3444 = vld [vmem:[#allocation7 + $0x3d8] sm:$0xf]
        %v3445 = vld [vmem:[#allocation7 + $0x3dc] sm:$0xf]
        %v3446 = vld [vmem:[#allocation7 + $0x3e0] sm:$0xf]
        %v3447 = vld [vmem:[#allocation7 + $0x3e4] sm:$0xf]
        %v3448 = vld [vmem:[#allocation7 + $0x3e8] sm:$0xf]
        %v3449 = vld [vmem:[#allocation7 + $0x3ec] sm:$0xf]
        %v3450 = vld [vmem:[#allocation7 + $0x3f0] sm:$0xf]
        %v3451 = vld [vmem:[#allocation7 + $0x3f4] sm:$0xf]
        %v3452 = vld [vmem:[#allocation7 + $0x3f8] sm:$0xf]
        %v3453 = vld [vmem:[#allocation7 + $0x3fc] sm:$0xf]
        %v3454 = vld [vmem:[#allocation7 + $0x400] sm:$0xf]
        %v3455 = vld [vmem:[#allocation7 + $0x404] sm:$0xf]
        %v3456 = vld [vmem:[#allocation7 + $0x408] sm:$0xf]
        %v3457 = vld [vmem:[#allocation7 + $0x40c] sm:$0xf]
        %v3458 = vld [vmem:[#allocation7 + $0x410] sm:$0xf]
        %v3459 = vld [vmem:[#allocation7 + $0x414] sm:$0xf]
        %v3460 = vld [vmem:[#allocation7 + $0x418] sm:$0xf]
        %v3461 = vld [vmem:[#allocation7 + $0x41c] sm:$0xf]
        %v3462 = vld [vmem:[#allocation7 + $0x420] sm:$0xf]
        %v3463 = vld [vmem:[#allocation7 + $0x424] sm:$0xf]
        %v3464 = vld [vmem:[#allocation7 + $0x428] sm:$0xf]
        %v3465 = vld [vmem:[#allocation7 + $0x42c] sm:$0xf]
        %v3466 = vld [vmem:[#allocation7 + $0x430] sm:$0xf]
        %v3467 = vld [vmem:[#allocation7 + $0x434] sm:$0xf]
        %v3468 = vld [vmem:[#allocation7 + $0x438] sm:$0xf]
        %v3469 = vld [vmem:[#allocation7 + $0x43c] sm:$0xf]
        %v3470 = vld [vmem:[#allocation7 + $0x440] sm:$0xf]
        %v3471 = vld [vmem:[#allocation7 + $0x444] sm:$0xf]
        %v3472 = vld [vmem:[#allocation7 + $0x448] sm:$0xf]
        %v3473 = vld [vmem:[#allocation7 + $0x44c] sm:$0xf]
        %v3474 = vld [vmem:[#allocation7 + $0x450] sm:$0xf]
        %v3475 = vld [vmem:[#allocation7 + $0x454] sm:$0xf]
        %v3476 = vld [vmem:[#allocation7 + $0x458] sm:$0xf]
        %v3477 = vld [vmem:[#allocation7 + $0x45c] sm:$0xf]
        %v3478 = vld [vmem:[#allocation7 + $0x460] sm:$0xf]
        %v3479 = vld [vmem:[#allocation7 + $0x464] sm:$0xf]
        %v3480 = vld [vmem:[#allocation7 + $0x468] sm:$0xf]
        %v3481 = vld [vmem:[#allocation7 + $0x46c] sm:$0xf]
        %v3482 = vld [vmem:[#allocation7 + $0x470] sm:$0xf]
        %v3483 = vld [vmem:[#allocation7 + $0x474] sm:$0xf]
        %v3484 = vld [vmem:[#allocation7 + $0x478] sm:$0xf]
        %v3485 = vld [vmem:[#allocation7 + $0x47c] sm:$0xf]
        %v3486 = vld [vmem:[#allocation7 + $0x480] sm:$0xf]
        %v3487 = vld [vmem:[#allocation7 + $0x484] sm:$0xf]
        %v3488 = vld [vmem:[#allocation7 + $0x488] sm:$0xf]
        %v3489 = vld [vmem:[#allocation7 + $0x48c] sm:$0xf]
        %v3490 = vld [vmem:[#allocation7 + $0x490] sm:$0xf]
        %v3491 = vld [vmem:[#allocation7 + $0x494] sm:$0xf]
        %v3492 = vld [vmem:[#allocation7 + $0x498] sm:$0xf]
        %v3493 = vld [vmem:[#allocation7 + $0x49c] sm:$0xf]
        %v3494 = vld [vmem:[#allocation7 + $0x4a0] sm:$0xf]
        %v3495 = vld [vmem:[#allocation7 + $0x4a4] sm:$0xf]
        %v3496 = vld [vmem:[#allocation7 + $0x4a8] sm:$0xf]
        %v3497 = vld [vmem:[#allocation7 + $0x4ac] sm:$0xf]
        %v3498 = vld [vmem:[#allocation7 + $0x4b0] sm:$0xf]
        %v3499 = vld [vmem:[#allocation7 + $0x4b4] sm:$0xf]
        %v3500 = vld [vmem:[#allocation7 + $0x4b8] sm:$0xf]
        %v3501 = vld [vmem:[#allocation7 + $0x4bc] sm:$0xf]
        %v3502 = vld [vmem:[#allocation7 + $0x4c0] sm:$0xf]
        %v3503 = vld [vmem:[#allocation7 + $0x4c4] sm:$0xf]
        %v3504 = vld [vmem:[#allocation7 + $0x4c8] sm:$0xf]
        %v3505 = vld [vmem:[#allocation7 + $0x4cc] sm:$0xf]
        %v3506 = vld [vmem:[#allocation7 + $0x4d0] sm:$0xf]
        %v3507 = vld [vmem:[#allocation7 + $0x4d4] sm:$0xf]
        %v3508 = vld [vmem:[#allocation7 + $0x4d8] sm:$0xf]
        %v3509 = vld [vmem:[#allocation7 + $0x4dc] sm:$0xf]
        %v3510 = vld [vmem:[#allocation7 + $0x4e0] sm:$0xf]
        %v3511 = vld [vmem:[#allocation7 + $0x4e4] sm:$0xf]
        %v3512 = vld [vmem:[#allocation7 + $0x4e8] sm:$0xf]
        %v3513 = vld [vmem:[#allocation7 + $0x4ec] sm:$0xf]
        %v3514 = vld [vmem:[#allocation7 + $0x4f0] sm:$0xf]
        %v3515 = vld [vmem:[#allocation7 + $0x4f4] sm:$0xf]
        %v3516 = vld [vmem:[#allocation7 + $0x4f8] sm:$0xf]
        %v3517 = vld [vmem:[#allocation7 + $0x4fc] sm:$0xf]
        %v3518 = vld [vmem:[#allocation7 + $0x500] sm:$0xf]
        %v3519 = vld [vmem:[#allocation7 + $0x504] sm:$0xf]
        %v3520 = vld [vmem:[#allocation7 + $0x508] sm:$0xf]
        %v3521 = vld [vmem:[#allocation7 + $0x50c] sm:$0xf]
        %v3522 = vld [vmem:[#allocation7 + $0x510] sm:$0xf]
        %v3523 = vld [vmem:[#allocation7 + $0x514] sm:$0xf]
        %v3524 = vld [vmem:[#allocation7 + $0x518] sm:$0xf]
        %v3525 = vld [vmem:[#allocation7 + $0x51c] sm:$0xf]
        %v3526 = vld [vmem:[#allocation7 + $0x520] sm:$0xf]
        %v3527 = vld [vmem:[#allocation7 + $0x524] sm:$0xf]
        %v3528 = vld [vmem:[#allocation7 + $0x528] sm:$0xf]
        %v3529 = vld [vmem:[#allocation7 + $0x52c] sm:$0xf]
        %v3530 = vld [vmem:[#allocation7 + $0x530] sm:$0xf]
        %v3531 = vld [vmem:[#allocation7 + $0x534] sm:$0xf]
        %v3532 = vld [vmem:[#allocation7 + $0x538] sm:$0xf]
        %v3533 = vld [vmem:[#allocation7 + $0x53c] sm:$0xf]
        %v3534 = vld [vmem:[#allocation7 + $0x540] sm:$0xf]
        %v3535 = vld [vmem:[#allocation7 + $0x544] sm:$0xf]
        %v3536 = vld [vmem:[#allocation7 + $0x548] sm:$0xf]
        %v3537 = vld [vmem:[#allocation7 + $0x54c] sm:$0xf]
        %v3538 = vld [vmem:[#allocation7 + $0x550] sm:$0xf]
        %v3539 = vld [vmem:[#allocation7 + $0x554] sm:$0xf]
        %v3540 = vld [vmem:[#allocation7 + $0x558] sm:$0xf]
        %v3541 = vld [vmem:[#allocation7 + $0x55c] sm:$0xf]
        %v3542 = vld [vmem:[#allocation7 + $0x560] sm:$0xf]
        %v3543 = vld [vmem:[#allocation7 + $0x564] sm:$0xf]
        %v3544 = vld [vmem:[#allocation7 + $0x568] sm:$0xf]
        %v3545 = vld [vmem:[#allocation7 + $0x56c] sm:$0xf]
        %v3546 = vld [vmem:[#allocation7 + $0x570] sm:$0xf]
        %v3547 = vld [vmem:[#allocation7 + $0x574] sm:$0xf]
        %v3548 = vld [vmem:[#allocation7 + $0x578] sm:$0xf]
        %v3549 = vld [vmem:[#allocation7 + $0x57c] sm:$0xf]
        %v3550 = vld [vmem:[#allocation7 + $0x580] sm:$0xf]
        %v3551 = vld [vmem:[#allocation7 + $0x584] sm:$0xf]
        %v3552 = vld [vmem:[#allocation7 + $0x588] sm:$0xf]
        %v3553 = vld [vmem:[#allocation7 + $0x58c] sm:$0xf]
        %v3554 = vld [vmem:[#allocation7 + $0x590] sm:$0xf]
        %v3555 = vld [vmem:[#allocation7 + $0x594] sm:$0xf]
        %v3556 = vld [vmem:[#allocation7 + $0x598] sm:$0xf]
        %v3557 = vld [vmem:[#allocation7 + $0x59c] sm:$0xf]
        %v3558 = vld [vmem:[#allocation7 + $0x5a0] sm:$0xf]
        %v3559 = vld [vmem:[#allocation7 + $0x5a4] sm:$0xf]
        %v3560 = vld [vmem:[#allocation7 + $0x5a8] sm:$0xf]
        %v3561 = vld [vmem:[#allocation7 + $0x5ac] sm:$0xf]
        %v3562 = vld [vmem:[#allocation7 + $0x5b0] sm:$0xf]
        %v3563 = vld [vmem:[#allocation7 + $0x5b4] sm:$0xf]
        %v3564 = vld [vmem:[#allocation7 + $0x5b8] sm:$0xf]
        %v3565 = vld [vmem:[#allocation7 + $0x5bc] sm:$0xf]
        %v3566 = vld [vmem:[#allocation7 + $0x5c0] sm:$0xf]
        %v3567 = vld [vmem:[#allocation7 + $0x5c4] sm:$0xf]
        %v3568 = vld [vmem:[#allocation7 + $0x5c8] sm:$0xf]
        %v3569 = vld [vmem:[#allocation7 + $0x5cc] sm:$0xf]
        %v3570 = vld [vmem:[#allocation7 + $0x5d0] sm:$0xf]
        %v3571 = vld [vmem:[#allocation7 + $0x5d4] sm:$0xf]
        %v3572 = vld [vmem:[#allocation7 + $0x5d8] sm:$0xf]
        %v3573 = vld [vmem:[#allocation7 + $0x5dc] sm:$0xf]
        %v3574 = vld [vmem:[#allocation7 + $0x5e0] sm:$0xf]
        %v3575 = vld [vmem:[#allocation7 + $0x5e4] sm:$0xf]
        %v3576 = vld [vmem:[#allocation7 + $0x5e8] sm:$0xf]
        %v3577 = vld [vmem:[#allocation7 + $0x5ec] sm:$0xf]
        %v3578 = vld [vmem:[#allocation7 + $0x5f0] sm:$0xf]
        %v3579 = vld [vmem:[#allocation7 + $0x5f4] sm:$0xf]
        %v3580 = vld [vmem:[#allocation7 + $0x5f8] sm:$0xf]
        %v3581 = vld [vmem:[#allocation7 + $0x5fc] sm:$0xf]
        %v3582 = vld [vmem:[#allocation7 + $0x600] sm:$0xf]
        %v3583 = vld [vmem:[#allocation7 + $0x604] sm:$0xf]
        %v3584 = vld [vmem:[#allocation7 + $0x608] sm:$0xf]
        %v3585 = vld [vmem:[#allocation7 + $0x60c] sm:$0xf]
        %v3586 = vld [vmem:[#allocation7 + $0x610] sm:$0xf]
        %v3587 = vld [vmem:[#allocation7 + $0x614] sm:$0xf]
        %v3588 = vld [vmem:[#allocation7 + $0x618] sm:$0xf]
        %v3589 = vld [vmem:[#allocation7 + $0x61c] sm:$0xf]
        %v3590 = vld [vmem:[#allocation7 + $0x620] sm:$0xf]
        %v3591 = vld [vmem:[#allocation7 + $0x624] sm:$0xf]
        %v3592 = vld [vmem:[#allocation7 + $0x628] sm:$0xf]
        %v3593 = vld [vmem:[#allocation7 + $0x62c] sm:$0xf]
        %v3594 = vld [vmem:[#allocation7 + $0x630] sm:$0xf]
        %v3595 = vld [vmem:[#allocation7 + $0x634] sm:$0xf]
        %v3596 = vld [vmem:[#allocation7 + $0x638] sm:$0xf]
        %v3597 = vld [vmem:[#allocation7 + $0x63c] sm:$0xf]
        %v3598 = vld [vmem:[#allocation7 + $0x640] sm:$0xf]
        %v3599 = vld [vmem:[#allocation7 + $0x644] sm:$0xf]
        %v3600 = vld [vmem:[#allocation7 + $0x648] sm:$0xf]
        %v3601 = vld [vmem:[#allocation7 + $0x64c] sm:$0xf]
        %v3602 = vld [vmem:[#allocation7 + $0x650] sm:$0xf]
        %v3603 = vld [vmem:[#allocation7 + $0x654] sm:$0xf]
        %v3604 = vld [vmem:[#allocation7 + $0x658] sm:$0xf]
        %v3605 = vld [vmem:[#allocation7 + $0x65c] sm:$0xf]
        %v3606 = vld [vmem:[#allocation7 + $0x660] sm:$0xf]
        %v3607 = vld [vmem:[#allocation7 + $0x664] sm:$0xf]
        %v3608 = vld [vmem:[#allocation7 + $0x668] sm:$0xf]
        %v3609 = vld [vmem:[#allocation7 + $0x66c] sm:$0xf]
        %v3610 = vld [vmem:[#allocation7 + $0x670] sm:$0xf]
        %v3611 = vld [vmem:[#allocation7 + $0x674] sm:$0xf]
        %v3612 = vld [vmem:[#allocation7 + $0x678] sm:$0xf]
        %v3613 = vld [vmem:[#allocation7 + $0x67c] sm:$0xf]
        %v3614 = vld [vmem:[#allocation7 + $0x680] sm:$0xf]
        %v3615 = vld [vmem:[#allocation7 + $0x684] sm:$0xf]
        %v3616 = vld [vmem:[#allocation7 + $0x688] sm:$0xf]
        %v3617 = vld [vmem:[#allocation7 + $0x68c] sm:$0xf]
        %v3618 = vld [vmem:[#allocation7 + $0x690] sm:$0xf]
        %v3619 = vld [vmem:[#allocation7 + $0x694] sm:$0xf]
        %v3620 = vld [vmem:[#allocation7 + $0x698] sm:$0xf]
        %v3621 = vld [vmem:[#allocation7 + $0x69c] sm:$0xf]
        %v3622 = vld [vmem:[#allocation7 + $0x6a0] sm:$0xf]
        %v3623 = vld [vmem:[#allocation7 + $0x6a4] sm:$0xf]
        %v3624 = vld [vmem:[#allocation7 + $0x6a8] sm:$0xf]
        %v3625 = vld [vmem:[#allocation7 + $0x6ac] sm:$0xf]
        %v3626 = vld [vmem:[#allocation7 + $0x6b0] sm:$0xf]
        %v3627 = vld [vmem:[#allocation7 + $0x6b4] sm:$0xf]
        %v3628 = vld [vmem:[#allocation7 + $0x6b8] sm:$0xf]
        %v3629 = vld [vmem:[#allocation7 + $0x6bc] sm:$0xf]
        %v3630 = vld [vmem:[#allocation7 + $0x6c0] sm:$0xf]
        %v3631 = vld [vmem:[#allocation7 + $0x6c4] sm:$0xf]
        %v3632 = vld [vmem:[#allocation7 + $0x6c8] sm:$0xf]
        %v3633 = vld [vmem:[#allocation7 + $0x6cc] sm:$0xf]
        %v3634 = vld [vmem:[#allocation7 + $0x6d0] sm:$0xf]
        %v3635 = vld [vmem:[#allocation7 + $0x6d4] sm:$0xf]
        %v3636 = vld [vmem:[#allocation7 + $0x6d8] sm:$0xf]
        %v3637 = vld [vmem:[#allocation7 + $0x6dc] sm:$0xf]
        %v3638 = vld [vmem:[#allocation7 + $0x6e0] sm:$0xf]
        %v3639 = vld [vmem:[#allocation7 + $0x6e4] sm:$0xf]
        %v3640 = vld [vmem:[#allocation7 + $0x6e8] sm:$0xf]
        %v3641 = vld [vmem:[#allocation7 + $0x6ec] sm:$0xf]
        %v3642 = vld [vmem:[#allocation7 + $0x6f0] sm:$0xf]
        %v3643 = vld [vmem:[#allocation7 + $0x6f4] sm:$0xf]
        %v3644 = vld [vmem:[#allocation7 + $0x6f8] sm:$0xf]
        %v3645 = vld [vmem:[#allocation7 + $0x6fc] sm:$0xf]
        %v3646 = vld [vmem:[#allocation7 + $0x700] sm:$0xf]
        %v3647 = vld [vmem:[#allocation7 + $0x704] sm:$0xf]
        %v3648 = vld [vmem:[#allocation7 + $0x708] sm:$0xf]
        %v3649 = vld [vmem:[#allocation7 + $0x70c] sm:$0xf]
        %v3650 = vld [vmem:[#allocation7 + $0x710] sm:$0xf]
        %v3651 = vld [vmem:[#allocation7 + $0x714] sm:$0xf]
        %v3652 = vld [vmem:[#allocation7 + $0x718] sm:$0xf]
        %v3653 = vld [vmem:[#allocation7 + $0x71c] sm:$0xf]
        %v3654 = vld [vmem:[#allocation7 + $0x720] sm:$0xf]
        %v3655 = vld [vmem:[#allocation7 + $0x724] sm:$0xf]
        %v3656 = vld [vmem:[#allocation7 + $0x728] sm:$0xf]
        %v3657 = vld [vmem:[#allocation7 + $0x72c] sm:$0xf]
        %v3658 = vld [vmem:[#allocation7 + $0x730] sm:$0xf]
        %v3659 = vld [vmem:[#allocation7 + $0x734] sm:$0xf]
        %v3660 = vld [vmem:[#allocation7 + $0x738] sm:$0xf]
        %v3661 = vld [vmem:[#allocation7 + $0x73c] sm:$0xf]
        %v3662 = vld [vmem:[#allocation7 + $0x740] sm:$0xf]
        %v3663 = vld [vmem:[#allocation7 + $0x744] sm:$0xf]
        %v3664 = vld [vmem:[#allocation7 + $0x748] sm:$0xf]
        %v3665 = vld [vmem:[#allocation7 + $0x74c] sm:$0xf]
        %v3666 = vld [vmem:[#allocation7 + $0x750] sm:$0xf]
        %v3667 = vld [vmem:[#allocation7 + $0x754] sm:$0xf]
        %v3668 = vld [vmem:[#allocation7 + $0x758] sm:$0xf]
        %v3669 = vld [vmem:[#allocation7 + $0x75c] sm:$0xf]
        %v3670 = vld [vmem:[#allocation7 + $0x760] sm:$0xf]
        %v3671 = vld [vmem:[#allocation7 + $0x764] sm:$0xf]
        %v3672 = vld [vmem:[#allocation7 + $0x768] sm:$0xf]
        %v3673 = vld [vmem:[#allocation7 + $0x76c] sm:$0xf]
        %v3674 = vld [vmem:[#allocation7 + $0x770] sm:$0xf]
        %v3675 = vld [vmem:[#allocation7 + $0x774] sm:$0xf]
        %v3676 = vld [vmem:[#allocation7 + $0x778] sm:$0xf]
        %v3677 = vld [vmem:[#allocation7 + $0x77c] sm:$0xf]
        %v3678 = vld [vmem:[#allocation7 + $0x780] sm:$0xf]
        %v3679 = vld [vmem:[#allocation7 + $0x784] sm:$0xf]
        %v3680 = vld [vmem:[#allocation7 + $0x788] sm:$0xf]
        %v3681 = vld [vmem:[#allocation7 + $0x78c] sm:$0xf]
        %v3682 = vld [vmem:[#allocation7 + $0x790] sm:$0xf]
        %v3683 = vld [vmem:[#allocation7 + $0x794] sm:$0xf]
        %v3684 = vld [vmem:[#allocation7 + $0x798] sm:$0xf]
        %v3685 = vld [vmem:[#allocation7 + $0x79c] sm:$0xf]
        %v3686 = vld [vmem:[#allocation7 + $0x7a0] sm:$0xf]
        %v3687 = vld [vmem:[#allocation7 + $0x7a4] sm:$0xf]
        %v3688 = vld [vmem:[#allocation7 + $0x7a8] sm:$0xf]
        %v3689 = vld [vmem:[#allocation7 + $0x7ac] sm:$0xf]
        %v3690 = vld [vmem:[#allocation7 + $0x7b0] sm:$0xf]
        %v3691 = vld [vmem:[#allocation7 + $0x7b4] sm:$0xf]
        %v3692 = vld [vmem:[#allocation7 + $0x7b8] sm:$0xf]
        %v3693 = vld [vmem:[#allocation7 + $0x7bc] sm:$0xf]
        %v3694 = vld [vmem:[#allocation7 + $0x7c0] sm:$0xf]
        %v3695 = vld [vmem:[#allocation7 + $0x7c4] sm:$0xf]
        %v3696 = vld [vmem:[#allocation7 + $0x7c8] sm:$0xf]
        %v3697 = vld [vmem:[#allocation7 + $0x7cc] sm:$0xf]
        %v3698 = vld [vmem:[#allocation7 + $0x7d0] sm:$0xf]
        %v3699 = vld [vmem:[#allocation7 + $0x7d4] sm:$0xf]
        %v3700 = vld [vmem:[#allocation7 + $0x7d8] sm:$0xf]
        %v3701 = vld [vmem:[#allocation7 + $0x7dc] sm:$0xf]
        %v3702 = vld [vmem:[#allocation7 + $0x7e0] sm:$0xf]
        %v3703 = vld [vmem:[#allocation7 + $0x7e4] sm:$0xf]
        %v3704 = vld [vmem:[#allocation7 + $0x7e8] sm:$0xf]
        %v3705 = vld [vmem:[#allocation7 + $0x7ec] sm:$0xf]
        %v3706 = vld [vmem:[#allocation7 + $0x7f0] sm:$0xf]
        %v3707 = vld [vmem:[#allocation7 + $0x7f4] sm:$0xf]
        %v3708 = vld [vmem:[#allocation7 + $0x7f8] sm:$0xf]
        %v3709 = vld [vmem:[#allocation7 + $0x7fc] sm:$0xf]
        %v3710 = vld [vmem:[#allocation7 + $0x800] sm:$0xf]
        %v3711 = vld [vmem:[#allocation7 + $0x804] sm:$0xf]
        %v3712 = vld [vmem:[#allocation7 + $0x808] sm:$0xf]
        %v3713 = vld [vmem:[#allocation7 + $0x80c] sm:$0xf]
        %v3714 = vld [vmem:[#allocation7 + $0x810] sm:$0xf]
        %v3715 = vld [vmem:[#allocation7 + $0x814] sm:$0xf]
        %v3716 = vld [vmem:[#allocation7 + $0x818] sm:$0xf]
        %v3717 = vld [vmem:[#allocation7 + $0x81c] sm:$0xf]
        %v3718 = vld [vmem:[#allocation7 + $0x820] sm:$0xf]
        %v3719 = vld [vmem:[#allocation7 + $0x824] sm:$0xf]
        %v3720 = vld [vmem:[#allocation7 + $0x828] sm:$0xf]
        %v3721 = vld [vmem:[#allocation7 + $0x82c] sm:$0xf]
        %v3722 = vld [vmem:[#allocation7 + $0x830] sm:$0xf]
        %v3723 = vld [vmem:[#allocation7 + $0x834] sm:$0xf]
        %v3724 = vld [vmem:[#allocation7 + $0x838] sm:$0xf]
        %v3725 = vld [vmem:[#allocation7 + $0x83c] sm:$0xf]
        %v3726 = vld [vmem:[#allocation7 + $0x840] sm:$0xf]
        %v3727 = vld [vmem:[#allocation7 + $0x844] sm:$0xf]
        %v3728 = vld [vmem:[#allocation7 + $0x848] sm:$0xf]
        %v3729 = vld [vmem:[#allocation7 + $0x84c] sm:$0xf]
        %v3730 = vld [vmem:[#allocation7 + $0x850] sm:$0xf]
        %v3731 = vld [vmem:[#allocation7 + $0x854] sm:$0xf]
        %v3732 = vld [vmem:[#allocation7 + $0x858] sm:$0xf]
        %v3733 = vld [vmem:[#allocation7 + $0x85c] sm:$0xf]
        %v3734 = vld [vmem:[#allocation7 + $0x860] sm:$0xf]
        %v3735 = vld [vmem:[#allocation7 + $0x864] sm:$0xf]
        %v3736 = vld [vmem:[#allocation7 + $0x868] sm:$0xf]
        %v3737 = vld [vmem:[#allocation7 + $0x86c] sm:$0xf]
        %v3738 = vld [vmem:[#allocation7 + $0x870] sm:$0xf]
        %v3739 = vld [vmem:[#allocation7 + $0x874] sm:$0xf]
        %v3740 = vld [vmem:[#allocation7 + $0x878] sm:$0xf]
        %v3741 = vld [vmem:[#allocation7 + $0x87c] sm:$0xf]
        %v3742 = vld [vmem:[#allocation7 + $0x880] sm:$0xf]
        %v3743 = vld [vmem:[#allocation7 + $0x884] sm:$0xf]
        %v3744 = vld [vmem:[#allocation7 + $0x888] sm:$0xf]
        %v3745 = vld [vmem:[#allocation7 + $0x88c] sm:$0xf]
        %v3746 = vld [vmem:[#allocation7 + $0x890] sm:$0xf]
        %v3747 = vld [vmem:[#allocation7 + $0x894] sm:$0xf]
        %v3748 = vld [vmem:[#allocation7 + $0x898] sm:$0xf]
        %v3749 = vld [vmem:[#allocation7 + $0x89c] sm:$0xf]
        %v3750 = vld [vmem:[#allocation7 + $0x8a0] sm:$0xf]
        %v3751 = vld [vmem:[#allocation7 + $0x8a4] sm:$0xf]
        %v3752 = vld [vmem:[#allocation7 + $0x8a8] sm:$0xf]
        %v3753 = vld [vmem:[#allocation7 + $0x8ac] sm:$0xf]
        %v3754 = vld [vmem:[#allocation7 + $0x8b0] sm:$0xf]
        %v3755 = vld [vmem:[#allocation7 + $0x8b4] sm:$0xf]
        %v3756 = vld [vmem:[#allocation7 + $0x8b8] sm:$0xf]
        %v3757 = vld [vmem:[#allocation7 + $0x8bc] sm:$0xf]
        %v3758 = vld [vmem:[#allocation7 + $0x8c0] sm:$0xf]
        %v3759 = vld [vmem:[#allocation7 + $0x8c4] sm:$0xf]
        %v3760 = vld [vmem:[#allocation7 + $0x8c8] sm:$0xf]
        %v3761 = vld [vmem:[#allocation7 + $0x8cc] sm:$0xf]
        %v3762 = vld [vmem:[#allocation7 + $0x8d0] sm:$0xf]
        %v3763 = vld [vmem:[#allocation7 + $0x8d4] sm:$0xf]
        %v3764 = vld [vmem:[#allocation7 + $0x8d8] sm:$0xf]
        %v3765 = vld [vmem:[#allocation7 + $0x8dc] sm:$0xf]
        %v3766 = vld [vmem:[#allocation7 + $0x8e0] sm:$0xf]
        %v3767 = vld [vmem:[#allocation7 + $0x8e4] sm:$0xf]
        %v3768 = vld [vmem:[#allocation7 + $0x8e8] sm:$0xf]
        %v3769 = vld [vmem:[#allocation7 + $0x8ec] sm:$0xf]
        %v3770 = vld [vmem:[#allocation7 + $0x8f0] sm:$0xf]
        %v3771 = vld [vmem:[#allocation7 + $0x8f4] sm:$0xf]
        %v3772 = vld [vmem:[#allocation7 + $0x8f8] sm:$0xf]
        %v3773 = vld [vmem:[#allocation7 + $0x8fc] sm:$0xf]
        %v3774 = vld [vmem:[#allocation7 + $0x900] sm:$0xf]
        %v3775 = vld [vmem:[#allocation7 + $0x904] sm:$0xf]
        %v3776 = vld [vmem:[#allocation7 + $0x908] sm:$0xf]
        %v3777 = vld [vmem:[#allocation7 + $0x90c] sm:$0xf]
        %v3778 = vld [vmem:[#allocation7 + $0x910] sm:$0xf]
        %v3779 = vld [vmem:[#allocation7 + $0x914] sm:$0xf]
        %v3780 = vld [vmem:[#allocation7 + $0x918] sm:$0xf]
        %v3781 = vld [vmem:[#allocation7 + $0x91c] sm:$0xf]
        %v3782 = vld [vmem:[#allocation7 + $0x920] sm:$0xf]
        %v3783 = vld [vmem:[#allocation7 + $0x924] sm:$0xf]
        %v3784 = vld [vmem:[#allocation7 + $0x928] sm:$0xf]
        %v3785 = vld [vmem:[#allocation7 + $0x92c] sm:$0xf]
        %v3786 = vld [vmem:[#allocation7 + $0x930] sm:$0xf]
        %v3787 = vld [vmem:[#allocation7 + $0x934] sm:$0xf]
        %v3788 = vld [vmem:[#allocation7 + $0x938] sm:$0xf]
        %v3789 = vld [vmem:[#allocation7 + $0x93c] sm:$0xf]
        %v3790 = vld [vmem:[#allocation7 + $0x940] sm:$0xf]
        %v3791 = vld [vmem:[#allocation7 + $0x944] sm:$0xf]
        %v3792 = vld [vmem:[#allocation7 + $0x948] sm:$0xf]
        %v3793 = vld [vmem:[#allocation7 + $0x94c] sm:$0xf]
        %v3794 = vld [vmem:[#allocation7 + $0x950] sm:$0xf]
        %v3795 = vld [vmem:[#allocation7 + $0x954] sm:$0xf]
        %v3796 = vld [vmem:[#allocation7 + $0x958] sm:$0xf]
        %v3797 = vld [vmem:[#allocation7 + $0x95c] sm:$0xf]
        %v3798 = vld [vmem:[#allocation7 + $0x960] sm:$0xf]
        %v3799 = vld [vmem:[#allocation7 + $0x964] sm:$0xf]
        %v3800 = vld [vmem:[#allocation7 + $0x968] sm:$0xf]
        %v3801 = vld [vmem:[#allocation7 + $0x96c] sm:$0xf]
        %v3802 = vld [vmem:[#allocation7 + $0x970] sm:$0xf]
        %v3803 = vld [vmem:[#allocation7 + $0x974] sm:$0xf]
        %v3804 = vld [vmem:[#allocation7 + $0x978] sm:$0xf]
        %v3805 = vld [vmem:[#allocation7 + $0x97c] sm:$0xf]
        %v3806 = vld [vmem:[#allocation7 + $0x980] sm:$0xf]
        %v3807 = vld [vmem:[#allocation7 + $0x984] sm:$0xf]
        %v3808 = vld [vmem:[#allocation7 + $0x988] sm:$0xf]
        %v3809 = vld [vmem:[#allocation7 + $0x98c] sm:$0xf]
        %v3810 = vld [vmem:[#allocation7 + $0x990] sm:$0xf]
        %v3811 = vld [vmem:[#allocation7 + $0x994] sm:$0xf]
        %v3812 = vld [vmem:[#allocation7 + $0x998] sm:$0xf]
        %v3813 = vld [vmem:[#allocation7 + $0x99c] sm:$0xf]
        %v3814 = vld [vmem:[#allocation7 + $0x9a0] sm:$0xf]
        %v3815 = vld [vmem:[#allocation7 + $0x9a4] sm:$0xf]
        %v3816 = vld [vmem:[#allocation7 + $0x9a8] sm:$0xf]
        %v3817 = vld [vmem:[#allocation7 + $0x9ac] sm:$0xf]
        %v3818 = vld [vmem:[#allocation7 + $0x9b0] sm:$0xf]
        %v3819 = vld [vmem:[#allocation7 + $0x9b4] sm:$0xf]
        %v3820 = vld [vmem:[#allocation7 + $0x9b8] sm:$0xf]
        %v3821 = vld [vmem:[#allocation7 + $0x9bc] sm:$0xf]
        %v3822 = vld [vmem:[#allocation7 + $0x9c0] sm:$0xf]
        %v3823 = vld [vmem:[#allocation7 + $0x9c4] sm:$0xf]
        %v3824 = vld [vmem:[#allocation7 + $0x9c8] sm:$0xf]
        %v3825 = vld [vmem:[#allocation7 + $0x9cc] sm:$0xf]
        %v3826 = vld [vmem:[#allocation7 + $0x9d0] sm:$0xf]
        %v3827 = vld [vmem:[#allocation7 + $0x9d4] sm:$0xf]
        %v3828 = vld [vmem:[#allocation7 + $0x9d8] sm:$0xf]
        %v3829 = vld [vmem:[#allocation7 + $0x9dc] sm:$0xf]
        %v3830 = vld [vmem:[#allocation7 + $0x9e0] sm:$0xf]
        %v3831 = vld [vmem:[#allocation7 + $0x9e4] sm:$0xf]
        %v3832 = vld [vmem:[#allocation7 + $0x9e8] sm:$0xf]
        %v3833 = vld [vmem:[#allocation7 + $0x9ec] sm:$0xf]
        %v3834 = vld [vmem:[#allocation7 + $0x9f0] sm:$0xf]
        %v3835 = vld [vmem:[#allocation7 + $0x9f4] sm:$0xf]
        %v3836 = vld [vmem:[#allocation7 + $0x9f8] sm:$0xf]
        %v3837 = vld [vmem:[#allocation7 + $0x9fc] sm:$0xf]
        %v3838 = vld [vmem:[#allocation7 + $0xa00] sm:$0xf]
        %v3839 = vld [vmem:[#allocation7 + $0xa04] sm:$0xf]
        %v3840 = vld [vmem:[#allocation7 + $0xa08] sm:$0xf]
        %v3841 = vld [vmem:[#allocation7 + $0xa0c] sm:$0xf]
        %v3842 = vld [vmem:[#allocation7 + $0xa10] sm:$0xf]
        %v3843 = vld [vmem:[#allocation7 + $0xa14] sm:$0xf]
        %v3844 = vld [vmem:[#allocation7 + $0xa18] sm:$0xf]
        %v3845 = vld [vmem:[#allocation7 + $0xa1c] sm:$0xf]
        %v3846 = vld [vmem:[#allocation7 + $0xa20] sm:$0xf]
        %v3847 = vld [vmem:[#allocation7 + $0xa24] sm:$0xf]
        %v3848 = vld [vmem:[#allocation7 + $0xa28] sm:$0xf]
        %v3849 = vld [vmem:[#allocation7 + $0xa2c] sm:$0xf]
        %v3850 = vld [vmem:[#allocation7 + $0xa30] sm:$0xf]
        %v3851 = vld [vmem:[#allocation7 + $0xa34] sm:$0xf]
        %v3852 = vld [vmem:[#allocation7 + $0xa38] sm:$0xf]
        %v3853 = vld [vmem:[#allocation7 + $0xa3c] sm:$0xf]
        %v3854 = vld [vmem:[#allocation7 + $0xa40] sm:$0xf]
        %v3855 = vld [vmem:[#allocation7 + $0xa44] sm:$0xf]
        %v3856 = vld [vmem:[#allocation7 + $0xa48] sm:$0xf]
        %v3857 = vld [vmem:[#allocation7 + $0xa4c] sm:$0xf]
        %v3858 = vld [vmem:[#allocation7 + $0xa50] sm:$0xf]
        %v3859 = vld [vmem:[#allocation7 + $0xa54] sm:$0xf]
        %v3860 = vld [vmem:[#allocation7 + $0xa58] sm:$0xf]
        %v3861 = vld [vmem:[#allocation7 + $0xa5c] sm:$0xf]
        %v3862 = vld [vmem:[#allocation7 + $0xa60] sm:$0xf]
        %v3863 = vld [vmem:[#allocation7 + $0xa64] sm:$0xf]
        %v3864 = vld [vmem:[#allocation7 + $0xa68] sm:$0xf]
        %v3865 = vld [vmem:[#allocation7 + $0xa6c] sm:$0xf]
        %v3866 = vld [vmem:[#allocation7 + $0xa70] sm:$0xf]
        %v3867 = vld [vmem:[#allocation7 + $0xa74] sm:$0xf]
        %v3868 = vld [vmem:[#allocation7 + $0xa78] sm:$0xf]
        %v3869 = vld [vmem:[#allocation7 + $0xa7c] sm:$0xf]
        %v3870 = vld [vmem:[#allocation7 + $0xa80] sm:$0xf]
        %v3871 = vld [vmem:[#allocation7 + $0xa84] sm:$0xf]
        %v3872 = vld [vmem:[#allocation7 + $0xa88] sm:$0xf]
        %v3873 = vld [vmem:[#allocation7 + $0xa8c] sm:$0xf]
        %v3874 = vld [vmem:[#allocation7 + $0xa90] sm:$0xf]
        %v3875 = vld [vmem:[#allocation7 + $0xa94] sm:$0xf]
        %v3876 = vld [vmem:[#allocation7 + $0xa98] sm:$0xf]
        %v3877 = vld [vmem:[#allocation7 + $0xa9c] sm:$0xf]
        %v3878 = vld [vmem:[#allocation7 + $0xaa0] sm:$0xf]
        %v3879 = vld [vmem:[#allocation7 + $0xaa4] sm:$0xf]
        %v3880 = vld [vmem:[#allocation7 + $0xaa8] sm:$0xf]
        %v3881 = vld [vmem:[#allocation7 + $0xaac] sm:$0xf]
        %v3882 = vld [vmem:[#allocation7 + $0xab0] sm:$0xf]
        %v3883 = vld [vmem:[#allocation7 + $0xab4] sm:$0xf]
        %v3884 = vld [vmem:[#allocation7 + $0xab8] sm:$0xf]
        %v3885 = vld [vmem:[#allocation7 + $0xabc] sm:$0xf]
        %v3886 = vld [vmem:[#allocation7 + $0xac0] sm:$0xf]
        %v3887 = vld [vmem:[#allocation7 + $0xac4] sm:$0xf]
        %v3888 = vld [vmem:[#allocation7 + $0xac8] sm:$0xf]
        %v3889 = vld [vmem:[#allocation7 + $0xacc] sm:$0xf]
        %v3890 = vld [vmem:[#allocation7 + $0xad0] sm:$0xf]
        %v3891 = vld [vmem:[#allocation7 + $0xad4] sm:$0xf]
        %v3892 = vld [vmem:[#allocation7 + $0xad8] sm:$0xf]
        %v3893 = vld [vmem:[#allocation7 + $0xadc] sm:$0xf]
        %v3894 = vld [vmem:[#allocation7 + $0xae0] sm:$0xf]
        %v3895 = vld [vmem:[#allocation7 + $0xae4] sm:$0xf]
        %v3896 = vld [vmem:[#allocation7 + $0xae8] sm:$0xf]
        %v3897 = vld [vmem:[#allocation7 + $0xaec] sm:$0xf]
        %v3898 = vld [vmem:[#allocation7 + $0xaf0] sm:$0xf]
        %v3899 = vld [vmem:[#allocation7 + $0xaf4] sm:$0xf]
        %v3900 = vld [vmem:[#allocation7 + $0xaf8] sm:$0xf]
        %v3901 = vld [vmem:[#allocation7 + $0xafc] sm:$0xf]
        %v3902 = vld [vmem:[#allocation9] sm:$0x1]
        %v3909 = vcombine.high %v3192, %v3192
        %v3911 = vunpack.c.l.s4 1966171168
        %v3912 = vunpack.c.0.s8 %v3911
        %v3913 = vlaneseq
        %v3914 = vshrl.u32 %v3913, 7
        %v3915 = vsub.s32 %v3912, %v3914
        %v3916 = vrot.slane %v3192, %v3915
        %v3918 = vunpack.c.l.s4 1966171168
        %v3919 = vunpack.c.0.s8 %v3918
        %v3920 = vlaneseq
        %v3921 = vshrl.u32 %v3920, 7
        %v3922 = vsub.s32 %v3919, %v3921
        %v3923 = vrot.slane %v3909, %v3922
        %v3924 = vcombine.high %v3916, %v3916
        %v3925 = vcombine.high %v3923, %v3923
        %v3927 = vunpack.c.l.s4 1966171168
        %v3928 = vunpack.c.0.s8 %v3927
        %v3929 = vlaneseq
        %v3930 = vshrl.u32 %v3929, 7
        %v3931 = vsub.s32 %v3928, %v3930
        %v3932 = vrot.slane %v3916, %v3931
        %v3934 = vunpack.c.l.s4 1966171168
        %v3935 = vunpack.c.0.s8 %v3934
        %v3936 = vlaneseq
        %v3937 = vshrl.u32 %v3936, 7
        %v3938 = vsub.s32 %v3935, %v3937
        %v3939 = vrot.slane %v3923, %v3938
        %v3941 = vunpack.c.l.s4 1966171168
        %v3942 = vunpack.c.0.s8 %v3941
        %v3943 = vlaneseq
        %v3944 = vshrl.u32 %v3943, 7
        %v3945 = vsub.s32 %v3942, %v3944
        %v3946 = vrot.slane %v3924, %v3945
        %v3948 = vunpack.c.l.s4 1966171168
        %v3949 = vunpack.c.0.s8 %v3948
        %v3950 = vlaneseq
        %v3951 = vshrl.u32 %v3950, 7
        %v3952 = vsub.s32 %v3949, %v3951
        %v3953 = vrot.slane %v3925, %v3952
        %v3954 = vcombine.high %v3932, %v3932
        %v3955 = vcombine.high %v3939, %v3939
        %v3956 = vcombine.high %v3946, %v3946
        %v3957 = vcombine.high %v3953, %v3953
        %v3958 = vcombine.high %v3193, %v3193
        %v3960 = vunpack.c.l.s4 1966171168
        %v3961 = vunpack.c.0.s8 %v3960
        %v3962 = vlaneseq
        %v3963 = vshrl.u32 %v3962, 7
        %v3964 = vsub.s32 %v3961, %v3963
        %v3965 = vrot.slane %v3193, %v3964
        %v3967 = vunpack.c.l.s4 1966171168
        %v3968 = vunpack.c.0.s8 %v3967
        %v3969 = vlaneseq
        %v3970 = vshrl.u32 %v3969, 7
        %v3971 = vsub.s32 %v3968, %v3970
        %v3972 = vrot.slane %v3958, %v3971
        %v3973 = vcombine.high %v3965, %v3965
        %v3974 = vcombine.high %v3972, %v3972
        %v3976 = vunpack.c.l.s4 1966171168
        %v3977 = vunpack.c.0.s8 %v3976
        %v3978 = vlaneseq
        %v3979 = vshrl.u32 %v3978, 7
        %v3980 = vsub.s32 %v3977, %v3979
        %v3981 = vrot.slane %v3965, %v3980
        %v3983 = vunpack.c.l.s4 1966171168
        %v3984 = vunpack.c.0.s8 %v3983
        %v3985 = vlaneseq
        %v3986 = vshrl.u32 %v3985, 7
        %v3987 = vsub.s32 %v3984, %v3986
        %v3988 = vrot.slane %v3972, %v3987
        %v3990 = vunpack.c.l.s4 1966171168
        %v3991 = vunpack.c.0.s8 %v3990
        %v3992 = vlaneseq
        %v3993 = vshrl.u32 %v3992, 7
        %v3994 = vsub.s32 %v3991, %v3993
        %v3995 = vrot.slane %v3973, %v3994
        %v3997 = vunpack.c.l.s4 1966171168
        %v3998 = vunpack.c.0.s8 %v3997
        %v3999 = vlaneseq
        %v4000 = vshrl.u32 %v3999, 7
        %v4001 = vsub.s32 %v3998, %v4000
        %v4002 = vrot.slane %v3974, %v4001
        %v4003 = vcombine.high %v3981, %v3981
        %v4004 = vcombine.high %v3988, %v3988
        %v4005 = vcombine.high %v3995, %v3995
        %v4006 = vcombine.high %v4002, %v4002
        %v4007 = vcombine.high %v3194, %v3194
        %v4009 = vunpack.c.l.s4 1966171168
        %v4010 = vunpack.c.0.s8 %v4009
        %v4011 = vlaneseq
        %v4012 = vshrl.u32 %v4011, 7
        %v4013 = vsub.s32 %v4010, %v4012
        %v4014 = vrot.slane %v3194, %v4013
        %v4016 = vunpack.c.l.s4 1966171168
        %v4017 = vunpack.c.0.s8 %v4016
        %v4018 = vlaneseq
        %v4019 = vshrl.u32 %v4018, 7
        %v4020 = vsub.s32 %v4017, %v4019
        %v4021 = vrot.slane %v4007, %v4020
        %v4022 = vcombine.high %v4014, %v4014
        %v4023 = vcombine.high %v4021, %v4021
        %v4025 = vunpack.c.l.s4 1966171168
        %v4026 = vunpack.c.0.s8 %v4025
        %v4027 = vlaneseq
        %v4028 = vshrl.u32 %v4027, 7
        %v4029 = vsub.s32 %v4026, %v4028
        %v4030 = vrot.slane %v4014, %v4029
        %v4032 = vunpack.c.l.s4 1966171168
        %v4033 = vunpack.c.0.s8 %v4032
        %v4034 = vlaneseq
        %v4035 = vshrl.u32 %v4034, 7
        %v4036 = vsub.s32 %v4033, %v4035
        %v4037 = vrot.slane %v4021, %v4036
        %v4039 = vunpack.c.l.s4 1966171168
        %v4040 = vunpack.c.0.s8 %v4039
        %v4041 = vlaneseq
        %v4042 = vshrl.u32 %v4041, 7
        %v4043 = vsub.s32 %v4040, %v4042
        %v4044 = vrot.slane %v4022, %v4043
        %v4046 = vunpack.c.l.s4 1966171168
        %v4047 = vunpack.c.0.s8 %v4046
        %v4048 = vlaneseq
        %v4049 = vshrl.u32 %v4048, 7
        %v4050 = vsub.s32 %v4047, %v4049
        %v4051 = vrot.slane %v4023, %v4050
        %v4052 = vcombine.high %v4030, %v4030
        %v4053 = vcombine.high %v4037, %v4037
        %v4054 = vcombine.high %v4044, %v4044
        %v4055 = vcombine.high %v4051, %v4051
        %v4056 = vcombine.high %v3195, %v3195
        %v4058 = vunpack.c.l.s4 1966171168
        %v4059 = vunpack.c.0.s8 %v4058
        %v4060 = vlaneseq
        %v4061 = vshrl.u32 %v4060, 7
        %v4062 = vsub.s32 %v4059, %v4061
        %v4063 = vrot.slane %v3195, %v4062
        %v4065 = vunpack.c.l.s4 1966171168
        %v4066 = vunpack.c.0.s8 %v4065
        %v4067 = vlaneseq
        %v4068 = vshrl.u32 %v4067, 7
        %v4069 = vsub.s32 %v4066, %v4068
        %v4070 = vrot.slane %v4056, %v4069
        %v4071 = vcombine.high %v4063, %v4063
        %v4072 = vcombine.high %v4070, %v4070
        %v4074 = vunpack.c.l.s4 1966171168
        %v4075 = vunpack.c.0.s8 %v4074
        %v4076 = vlaneseq
        %v4077 = vshrl.u32 %v4076, 7
        %v4078 = vsub.s32 %v4075, %v4077
        %v4079 = vrot.slane %v4063, %v4078
        %v4081 = vunpack.c.l.s4 1966171168
        %v4082 = vunpack.c.0.s8 %v4081
        %v4083 = vlaneseq
        %v4084 = vshrl.u32 %v4083, 7
        %v4085 = vsub.s32 %v4082, %v4084
        %v4086 = vrot.slane %v4070, %v4085
        %v4088 = vunpack.c.l.s4 1966171168
        %v4089 = vunpack.c.0.s8 %v4088
        %v4090 = vlaneseq
        %v4091 = vshrl.u32 %v4090, 7
        %v4092 = vsub.s32 %v4089, %v4091
        %v4093 = vrot.slane %v4071, %v4092
        %v4095 = vunpack.c.l.s4 1966171168
        %v4096 = vunpack.c.0.s8 %v4095
        %v4097 = vlaneseq
        %v4098 = vshrl.u32 %v4097, 7
        %v4099 = vsub.s32 %v4096, %v4098
        %v4100 = vrot.slane %v4072, %v4099
        %v4101 = vcombine.high %v4079, %v4079
        %v4102 = vcombine.high %v4086, %v4086
        %v4103 = vcombine.high %v4093, %v4093
        %v4104 = vcombine.high %v4100, %v4100
        %v4105 = vcombine.high %v3196, %v3196
        %v4107 = vunpack.c.l.s4 1966171168
        %v4108 = vunpack.c.0.s8 %v4107
        %v4109 = vlaneseq
        %v4110 = vshrl.u32 %v4109, 7
        %v4111 = vsub.s32 %v4108, %v4110
        %v4112 = vrot.slane %v3196, %v4111
        %v4114 = vunpack.c.l.s4 1966171168
        %v4115 = vunpack.c.0.s8 %v4114
        %v4116 = vlaneseq
        %v4117 = vshrl.u32 %v4116, 7
        %v4118 = vsub.s32 %v4115, %v4117
        %v4119 = vrot.slane %v4105, %v4118
        %v4120 = vcombine.high %v4112, %v4112
        %v4121 = vcombine.high %v4119, %v4119
        %v4123 = vunpack.c.l.s4 1966171168
        %v4124 = vunpack.c.0.s8 %v4123
        %v4125 = vlaneseq
        %v4126 = vshrl.u32 %v4125, 7
        %v4127 = vsub.s32 %v4124, %v4126
        %v4128 = vrot.slane %v4112, %v4127
        %v4130 = vunpack.c.l.s4 1966171168
        %v4131 = vunpack.c.0.s8 %v4130
        %v4132 = vlaneseq
        %v4133 = vshrl.u32 %v4132, 7
        %v4134 = vsub.s32 %v4131, %v4133
        %v4135 = vrot.slane %v4119, %v4134
        %v4137 = vunpack.c.l.s4 1966171168
        %v4138 = vunpack.c.0.s8 %v4137
        %v4139 = vlaneseq
        %v4140 = vshrl.u32 %v4139, 7
        %v4141 = vsub.s32 %v4138, %v4140
        %v4142 = vrot.slane %v4120, %v4141
        %v4144 = vunpack.c.l.s4 1966171168
        %v4145 = vunpack.c.0.s8 %v4144
        %v4146 = vlaneseq
        %v4147 = vshrl.u32 %v4146, 7
        %v4148 = vsub.s32 %v4145, %v4147
        %v4149 = vrot.slane %v4121, %v4148
        %v4150 = vcombine.high %v4128, %v4128
        %v4151 = vcombine.high %v4135, %v4135
        %v4152 = vcombine.high %v4142, %v4142
        %v4153 = vcombine.high %v4149, %v4149
        %v4155 = vunpack.c.l.s4 1966171168
        %v4156 = vunpack.c.0.s8 %v4155
        %v4157 = vlaneseq
        %v4158 = vshrl.u32 %v4157, 7
        %v4159 = vsub.s32 %v4156, %v4158
        %v4160 = vrot.slane %v3197, %v4159
        %v4161 = vcombine.high %v4160, %v4160
        %v4163 = vunpack.c.l.s4 1966171168
        %v4164 = vunpack.c.0.s8 %v4163
        %v4165 = vlaneseq
        %v4166 = vshrl.u32 %v4165, 7
        %v4167 = vsub.s32 %v4164, %v4166
        %v4168 = vrot.slane %v4160, %v4167
        %v4170 = vunpack.c.l.s4 1966171168
        %v4171 = vunpack.c.0.s8 %v4170
        %v4172 = vlaneseq
        %v4173 = vshrl.u32 %v4172, 7
        %v4174 = vsub.s32 %v4171, %v4173
        %v4175 = vrot.slane %v4161, %v4174
        %v4176 = vcombine.high %v4168, %v4168
        %v4177 = vcombine.high %v4175, %v4175
        %v4926 = vunpack.c.l.b16 %v3198
        %v4927 = vunpack.c.l.b16 %v3199
        %v4928 = vunpack.c.l.b16 %v3200
        %v4929 = vunpack.c.l.b16 %v3201
        %v4930 = vunpack.c.l.b16 %v3202
        %v4931 = vunpack.c.l.b16 %v3203
        %v4932 = vunpack.c.l.b16 %v3204
        %v4933 = vunpack.c.l.b16 %v3205
        %v4934 = vunpack.c.l.b16 %v3206
        %v4935 = vunpack.c.l.b16 %v3207
        %v4936 = vunpack.c.l.b16 %v3208
        %v4937 = vunpack.c.l.b16 %v3209
        %v4938 = vunpack.c.l.b16 %v3210
        %v4939 = vunpack.c.l.b16 %v3211
        %v4940 = vunpack.c.l.b16 %v3212
        %v4941 = vunpack.c.l.b16 %v3213
        %v4942 = vunpack.c.l.b16 %v3214
        %v4943 = vunpack.c.l.b16 %v3215
        %v4944 = vunpack.c.l.b16 %v3216
        %v4945 = vunpack.c.l.b16 %v3217
        %v4946 = vunpack.c.l.b16 %v3218
        %v4947 = vunpack.c.l.b16 %v3219
        %v4948 = vunpack.c.l.b16 %v3220
        %v4949 = vunpack.c.l.b16 %v3221
        %v4950 = vunpack.c.l.b16 %v3222
        %v4951 = vunpack.c.l.b16 %v3223
        %v4952 = vunpack.c.l.b16 %v3224
        %v4953 = vunpack.c.l.b16 %v3225
        %v4954 = vunpack.c.l.b16 %v3226
        %v4955 = vunpack.c.l.b16 %v3227
        %v4956 = vunpack.c.l.b16 %v3228
        %v4957 = vunpack.c.l.b16 %v3229
        %v4958 = vunpack.c.l.b16 %v3230
        %v4959 = vunpack.c.l.b16 %v3231
        %v4960 = vunpack.c.l.b16 %v3232
        %v4961 = vunpack.c.l.b16 %v3233
        %v4962 = vunpack.c.l.b16 %v3234
        %v4963 = vunpack.c.l.b16 %v3235
        %v4964 = vunpack.c.l.b16 %v3236
        %v4965 = vunpack.c.l.b16 %v3237
        %v4966 = vunpack.c.l.b16 %v3238
        %v4967 = vunpack.c.l.b16 %v3239
        %v4968 = vunpack.c.l.b16 %v3240
        %v4969 = vunpack.c.l.b16 %v3241
        %v4970 = vunpack.c.l.b16 %v3242
        %v4971 = vunpack.c.l.b16 %v3243
        %v4972 = vunpack.c.l.b16 %v3244
        %v4973 = vunpack.c.l.b16 %v3245
        %v4974 = vunpack.c.l.b16 %v3246
        %v4975 = vunpack.c.l.b16 %v3247
        %v4976 = vunpack.c.l.b16 %v3248
        %v4977 = vunpack.c.l.b16 %v3249
        %v4978 = vunpack.c.l.b16 %v3250
        %v4979 = vunpack.c.l.b16 %v3251
        %v4980 = vunpack.c.l.b16 %v3252
        %v4981 = vunpack.c.l.b16 %v3253
        %v4982 = vunpack.c.l.b16 %v3254
        %v4983 = vunpack.c.l.b16 %v3255
        %v4984 = vunpack.c.l.b16 %v3256
        %v4985 = vunpack.c.l.b16 %v3257
        %v4986 = vunpack.c.l.b16 %v3258
        %v4987 = vunpack.c.l.b16 %v3259
        %v4988 = vunpack.c.l.b16 %v3260
        %v4989 = vunpack.c.l.b16 %v3261
        %v4990 = vunpack.c.l.b16 %v3262
        %v4991 = vunpack.c.l.b16 %v3263
        %v4992 = vunpack.c.l.b16 %v3264
        %v4993 = vunpack.c.l.b16 %v3265
        %v4994 = vunpack.c.l.b16 %v3266
        %v4995 = vunpack.c.l.b16 %v3267
        %v4996 = vunpack.c.l.b16 %v3268
        %v4997 = vunpack.c.l.b16 %v3269
        %v4998 = vunpack.c.l.b16 %v3270
        %v4999 = vunpack.c.l.b16 %v3271
        %v5000 = vunpack.c.l.b16 %v3272
        %v5001 = vunpack.c.l.b16 %v3273
        %v5002 = vunpack.c.l.b16 %v3274
        %v5003 = vunpack.c.l.b16 %v3275
        %v5004 = vunpack.c.l.b16 %v3276
        %v5005 = vunpack.c.l.b16 %v3277
        %v5006 = vunpack.c.l.b16 %v3278
        %v5007 = vunpack.c.l.b16 %v3279
        %v5008 = vunpack.c.l.b16 %v3280
        %v5009 = vunpack.c.l.b16 %v3281
        %v5010 = vunpack.c.l.b16 %v3282
        %v5011 = vunpack.c.l.b16 %v3283
        %v5012 = vunpack.c.l.b16 %v3284
        %v5013 = vunpack.c.l.b16 %v3285
        %v5014 = vunpack.c.l.b16 %v3286
        %v5015 = vunpack.c.l.b16 %v3287
        %v5016 = vunpack.c.l.b16 %v3288
        %v5017 = vunpack.c.l.b16 %v3289
        %v5018 = vunpack.c.l.b16 %v3290
        %v5019 = vunpack.c.l.b16 %v3291
        %v5020 = vunpack.c.l.b16 %v3292
        %v5021 = vunpack.c.l.b16 %v3293
        %v5022 = vunpack.c.l.b16 %v3294
        %v5023 = vunpack.c.l.b16 %v3295
        %v5024 = vunpack.c.l.b16 %v3296
        %v5025 = vunpack.c.l.b16 %v3297
        %v5026 = vunpack.c.l.b16 %v3298
        %v5027 = vunpack.c.l.b16 %v3299
        %v5028 = vunpack.c.l.b16 %v3300
        %v5029 = vunpack.c.l.b16 %v3301
        %v5030 = vunpack.c.l.b16 %v3302
        %v5031 = vunpack.c.l.b16 %v3303
        %v5032 = vunpack.c.l.b16 %v3304
        %v5033 = vunpack.c.l.b16 %v3305
        %v5034 = vunpack.c.l.b16 %v3306
        %v5035 = vunpack.c.l.b16 %v3307
        %v5036 = vunpack.c.l.b16 %v3308
        %v5037 = vunpack.c.l.b16 %v3309
        %v5038 = vunpack.c.l.b16 %v3310
        %v5039 = vunpack.c.l.b16 %v3311
        %v5040 = vunpack.c.l.b16 %v3312
        %v5041 = vunpack.c.l.b16 %v3313
        %v5042 = vunpack.c.l.b16 %v3314
        %v5043 = vunpack.c.l.b16 %v3315
        %v5044 = vunpack.c.l.b16 %v3316
        %v5045 = vunpack.c.l.b16 %v3317
        %v5046 = vunpack.c.l.b16 %v3318
        %v5047 = vunpack.c.l.b16 %v3319
        %v5048 = vunpack.c.l.b16 %v3320
        %v5049 = vunpack.c.l.b16 %v3321
        %v5050 = vunpack.c.l.b16 %v3322
        %v5051 = vunpack.c.l.b16 %v3323
        %v5052 = vunpack.c.l.b16 %v3324
        %v5053 = vunpack.c.l.b16 %v3325
        %v5054 = vunpack.c.l.b16 %v3326
        %v5055 = vunpack.c.l.b16 %v3327
        %v5056 = vunpack.c.l.b16 %v3328
        %v5057 = vunpack.c.l.b16 %v3329
        %v5058 = vunpack.c.l.b16 %v3330
        %v5059 = vunpack.c.l.b16 %v3331
        %v5060 = vunpack.c.l.b16 %v3332
        %v5061 = vunpack.c.l.b16 %v3333
        %v5062 = vunpack.c.l.b16 %v3334
        %v5063 = vunpack.c.l.b16 %v3335
        %v5064 = vunpack.c.l.b16 %v3336
        %v5065 = vunpack.c.l.b16 %v3337
        %v5066 = vunpack.c.l.b16 %v3338
        %v5067 = vunpack.c.l.b16 %v3339
        %v5068 = vunpack.c.l.b16 %v3340
        %v5069 = vunpack.c.l.b16 %v3341
        %v5070 = vunpack.c.l.b16 %v3342
        %v5071 = vunpack.c.l.b16 %v3343
        %v5072 = vunpack.c.l.b16 %v3344
        %v5073 = vunpack.c.l.b16 %v3345
        %v5074 = vunpack.c.l.b16 %v3346
        %v5075 = vunpack.c.l.b16 %v3347
        %v5076 = vunpack.c.l.b16 %v3348
        %v5077 = vunpack.c.l.b16 %v3349
        %v5078 = vunpack.c.l.b16 %v3350
        %v5079 = vunpack.c.l.b16 %v3351
        %v5080 = vunpack.c.l.b16 %v3352
        %v5081 = vunpack.c.l.b16 %v3353
        %v5082 = vunpack.c.l.b16 %v3354
        %v5083 = vunpack.c.l.b16 %v3355
        %v5084 = vunpack.c.l.b16 %v3356
        %v5085 = vunpack.c.l.b16 %v3357
        %v5086 = vunpack.c.l.b16 %v3358
        %v5087 = vunpack.c.l.b16 %v3359
        %v5088 = vunpack.c.l.b16 %v3360
        %v5089 = vunpack.c.l.b16 %v3361
        %v5090 = vunpack.c.l.b16 %v3362
        %v5091 = vunpack.c.l.b16 %v3363
        %v5092 = vunpack.c.l.b16 %v3364
        %v5093 = vunpack.c.l.b16 %v3365
        %v5094 = vunpack.c.l.b16 %v3366
        %v5095 = vunpack.c.l.b16 %v3367
        %v5096 = vunpack.c.l.b16 %v3368
        %v5097 = vunpack.c.l.b16 %v3369
        %v5098 = vunpack.c.l.b16 %v3370
        %v5099 = vunpack.c.l.b16 %v3371
        %v5100 = vunpack.c.l.b16 %v3372
        %v5101 = vunpack.c.l.b16 %v3373
        %v5102 = vunpack.c.l.b16 %v3374
        %v5103 = vunpack.c.l.b16 %v3375
        %v5104 = vunpack.c.l.b16 %v3376
        %v5105 = vunpack.c.l.b16 %v3377
        %v5106 = vunpack.c.l.b16 %v3378
        %v5107 = vunpack.c.l.b16 %v3379
        %v5108 = vunpack.c.l.b16 %v3380
        %v5109 = vunpack.c.l.b16 %v3381
        %v5110 = vunpack.c.l.b16 %v3382
        %v5111 = vunpack.c.l.b16 %v3383
        %v5112 = vunpack.c.l.b16 %v3384
        %v5113 = vunpack.c.l.b16 %v3385
        %v5114 = vunpack.c.l.b16 %v3386
        %v5115 = vunpack.c.l.b16 %v3387
        %v5116 = vunpack.c.l.b16 %v3388
        %v5117 = vunpack.c.l.b16 %v3389
        %v5118 = vunpack.c.l.b16 %v3390
        %v5119 = vunpack.c.l.b16 %v3391
        %v5120 = vunpack.c.l.b16 %v3392
        %v5121 = vunpack.c.l.b16 %v3393
        %v5122 = vunpack.c.l.b16 %v3394
        %v5123 = vunpack.c.l.b16 %v3395
        %v5124 = vunpack.c.l.b16 %v3396
        %v5125 = vunpack.c.l.b16 %v3397
        %v5126 = vunpack.c.l.b16 %v3398
        %v5127 = vunpack.c.l.b16 %v3399
        %v5128 = vunpack.c.l.b16 %v3400
        %v5129 = vunpack.c.l.b16 %v3401
        %v5130 = vunpack.c.l.b16 %v3402
        %v5131 = vunpack.c.l.b16 %v3403
        %v5132 = vunpack.c.l.b16 %v3404
        %v5133 = vunpack.c.l.b16 %v3405
        %v5134 = vunpack.c.l.b16 %v3406
        %v5135 = vunpack.c.l.b16 %v3407
        %v5136 = vunpack.c.l.b16 %v3408
        %v5137 = vunpack.c.l.b16 %v3409
        %v5138 = vunpack.c.l.b16 %v3410
        %v5139 = vunpack.c.l.b16 %v3411
        %v5140 = vunpack.c.l.b16 %v3412
        %v5141 = vunpack.c.l.b16 %v3413
        %v5142 = vunpack.c.l.b16 %v3414
        %v5143 = vunpack.c.l.b16 %v3415
        %v5144 = vunpack.c.l.b16 %v3416
        %v5145 = vunpack.c.l.b16 %v3417
        %v5146 = vunpack.c.l.b16 %v3418
        %v5147 = vunpack.c.l.b16 %v3419
        %v5148 = vunpack.c.l.b16 %v3420
        %v5149 = vunpack.c.l.b16 %v3421
        %v5150 = vunpack.c.l.b16 %v3422
        %v5151 = vunpack.c.l.b16 %v3423
        %v5152 = vunpack.c.l.b16 %v3424
        %v5153 = vunpack.c.l.b16 %v3425
        %v5154 = vunpack.c.l.b16 %v3426
        %v5155 = vunpack.c.l.b16 %v3427
        %v5156 = vunpack.c.l.b16 %v3428
        %v5157 = vunpack.c.l.b16 %v3429
        %v5158 = vunpack.c.l.b16 %v3430
        %v5159 = vunpack.c.l.b16 %v3431
        %v5160 = vunpack.c.l.b16 %v3432
        %v5161 = vunpack.c.l.b16 %v3433
        %v5162 = vunpack.c.l.b16 %v3434
        %v5163 = vunpack.c.l.b16 %v3435
        %v5164 = vunpack.c.l.b16 %v3436
        %v5165 = vunpack.c.l.b16 %v3437
        %v5166 = vunpack.c.l.b16 %v3438
        %v5167 = vunpack.c.l.b16 %v3439
        %v5168 = vunpack.c.l.b16 %v3440
        %v5169 = vunpack.c.l.b16 %v3441
        %v5170 = vunpack.c.l.b16 %v3442
        %v5171 = vunpack.c.l.b16 %v3443
        %v5172 = vunpack.c.l.b16 %v3444
        %v5173 = vunpack.c.l.b16 %v3445
        %v5174 = vunpack.c.l.b16 %v3446
        %v5175 = vunpack.c.l.b16 %v3447
        %v5176 = vunpack.c.l.b16 %v3448
        %v5177 = vunpack.c.l.b16 %v3449
        %v5178 = vunpack.c.l.b16 %v3450
        %v5179 = vunpack.c.l.b16 %v3451
        %v5180 = vunpack.c.l.b16 %v3452
        %v5181 = vunpack.c.l.b16 %v3453
        %v5182 = vunpack.c.l.b16 %v3454
        %v5183 = vunpack.c.l.b16 %v3455
        %v5184 = vunpack.c.l.b16 %v3456
        %v5185 = vunpack.c.l.b16 %v3457
        %v5186 = vunpack.c.l.b16 %v3458
        %v5187 = vunpack.c.l.b16 %v3459
        %v5188 = vunpack.c.l.b16 %v3460
        %v5189 = vunpack.c.l.b16 %v3461
        %v5190 = vunpack.c.l.b16 %v3462
        %v5191 = vunpack.c.l.b16 %v3463
        %v5192 = vunpack.c.l.b16 %v3464
        %v5193 = vunpack.c.l.b16 %v3465
        %v5194 = vunpack.c.l.b16 %v3466
        %v5195 = vunpack.c.l.b16 %v3467
        %v5196 = vunpack.c.l.b16 %v3468
        %v5197 = vunpack.c.l.b16 %v3469
        %v5198 = vunpack.c.l.b16 %v3470
        %v5199 = vunpack.c.l.b16 %v3471
        %v5200 = vunpack.c.l.b16 %v3472
        %v5201 = vunpack.c.l.b16 %v3473
        %v5202 = vunpack.c.l.b16 %v3474
        %v5203 = vunpack.c.l.b16 %v3475
        %v5204 = vunpack.c.l.b16 %v3476
        %v5205 = vunpack.c.l.b16 %v3477
        %v5206 = vunpack.c.l.b16 %v3478
        %v5207 = vunpack.c.l.b16 %v3479
        %v5208 = vunpack.c.l.b16 %v3480
        %v5209 = vunpack.c.l.b16 %v3481
        %v5210 = vunpack.c.l.b16 %v3482
        %v5211 = vunpack.c.l.b16 %v3483
        %v5212 = vunpack.c.l.b16 %v3484
        %v5213 = vunpack.c.l.b16 %v3485
        %v5214 = vunpack.c.l.b16 %v3486
        %v5215 = vunpack.c.l.b16 %v3487
        %v5216 = vunpack.c.l.b16 %v3488
        %v5217 = vunpack.c.l.b16 %v3489
        %v5218 = vunpack.c.l.b16 %v3490
        %v5219 = vunpack.c.l.b16 %v3491
        %v5220 = vunpack.c.l.b16 %v3492
        %v5221 = vunpack.c.l.b16 %v3493
        %v5222 = vunpack.c.l.b16 %v3494
        %v5223 = vunpack.c.l.b16 %v3495
        %v5224 = vunpack.c.l.b16 %v3496
        %v5225 = vunpack.c.l.b16 %v3497
        %v5226 = vunpack.c.l.b16 %v3498
        %v5227 = vunpack.c.l.b16 %v3499
        %v5228 = vunpack.c.l.b16 %v3500
        %v5229 = vunpack.c.l.b16 %v3501
        %v5230 = vunpack.c.l.b16 %v3502
        %v5231 = vunpack.c.l.b16 %v3503
        %v5232 = vunpack.c.l.b16 %v3504
        %v5233 = vunpack.c.l.b16 %v3505
        %v5234 = vunpack.c.l.b16 %v3506
        %v5235 = vunpack.c.l.b16 %v3507
        %v5236 = vunpack.c.l.b16 %v3508
        %v5237 = vunpack.c.l.b16 %v3509
        %v5238 = vunpack.c.l.b16 %v3510
        %v5239 = vunpack.c.l.b16 %v3511
        %v5240 = vunpack.c.l.b16 %v3512
        %v5241 = vunpack.c.l.b16 %v3513
        %v5242 = vunpack.c.l.b16 %v3514
        %v5243 = vunpack.c.l.b16 %v3515
        %v5244 = vunpack.c.l.b16 %v3516
        %v5245 = vunpack.c.l.b16 %v3517
        %v5246 = vunpack.c.l.b16 %v3518
        %v5247 = vunpack.c.l.b16 %v3519
        %v5248 = vunpack.c.l.b16 %v3520
        %v5249 = vunpack.c.l.b16 %v3521
        %v5250 = vunpack.c.l.b16 %v3522
        %v5251 = vunpack.c.l.b16 %v3523
        %v5252 = vunpack.c.l.b16 %v3524
        %v5253 = vunpack.c.l.b16 %v3525
        %v5254 = vunpack.c.l.b16 %v3526
        %v5255 = vunpack.c.l.b16 %v3527
        %v5256 = vunpack.c.l.b16 %v3528
        %v5257 = vunpack.c.l.b16 %v3529
        %v5258 = vunpack.c.l.b16 %v3530
        %v5259 = vunpack.c.l.b16 %v3531
        %v5260 = vunpack.c.l.b16 %v3532
        %v5261 = vunpack.c.l.b16 %v3533
        %v5262 = vunpack.c.l.b16 %v3534
        %v5263 = vunpack.c.l.b16 %v3535
        %v5264 = vunpack.c.l.b16 %v3536
        %v5265 = vunpack.c.l.b16 %v3537
        %v5266 = vunpack.c.l.b16 %v3538
        %v5267 = vunpack.c.l.b16 %v3539
        %v5268 = vunpack.c.l.b16 %v3540
        %v5269 = vunpack.c.l.b16 %v3541
        %v5270 = vunpack.c.l.b16 %v3542
        %v5271 = vunpack.c.l.b16 %v3543
        %v5272 = vunpack.c.l.b16 %v3544
        %v5273 = vunpack.c.l.b16 %v3545
        %v5274 = vunpack.c.l.b16 %v3546
        %v5275 = vunpack.c.l.b16 %v3547
        %v5276 = vunpack.c.l.b16 %v3548
        %v5277 = vunpack.c.l.b16 %v3549
        %v5278 = vunpack.c.l.b16 %v3550
        %v5279 = vunpack.c.l.b16 %v3551
        %v5280 = vunpack.c.l.b16 %v3552
        %v5281 = vunpack.c.l.b16 %v3553
        %v5282 = vunpack.c.l.b16 %v3554
        %v5283 = vunpack.c.l.b16 %v3555
        %v5284 = vunpack.c.l.b16 %v3556
        %v5285 = vunpack.c.l.b16 %v3557
        %v5286 = vunpack.c.l.b16 %v3558
        %v5287 = vunpack.c.l.b16 %v3559
        %v5288 = vunpack.c.l.b16 %v3560
        %v5289 = vunpack.c.l.b16 %v3561
        %v5290 = vunpack.c.l.b16 %v3562
        %v5291 = vunpack.c.l.b16 %v3563
        %v5292 = vunpack.c.l.b16 %v3564
        %v5293 = vunpack.c.l.b16 %v3565
        %v5294 = vunpack.c.l.b16 %v3566
        %v5295 = vunpack.c.l.b16 %v3567
        %v5296 = vunpack.c.l.b16 %v3568
        %v5297 = vunpack.c.l.b16 %v3569
        %v5298 = vunpack.c.l.b16 %v3570
        %v5299 = vunpack.c.l.b16 %v3571
        %v5300 = vunpack.c.l.b16 %v3572
        %v5301 = vunpack.c.l.b16 %v3573
        %v5302 = vunpack.c.l.b16 %v3574
        %v5303 = vunpack.c.l.b16 %v3575
        %v5304 = vunpack.c.l.b16 %v3576
        %v5305 = vunpack.c.l.b16 %v3577
        %v5306 = vunpack.c.l.b16 %v3578
        %v5307 = vunpack.c.l.b16 %v3579
        %v5308 = vunpack.c.l.b16 %v3580
        %v5309 = vunpack.c.l.b16 %v3581
        %v5310 = vunpack.c.l.b16 %v3582
        %v5311 = vunpack.c.l.b16 %v3583
        %v5312 = vunpack.c.l.b16 %v3584
        %v5313 = vunpack.c.l.b16 %v3585
        %v5314 = vunpack.c.l.b16 %v3586
        %v5315 = vunpack.c.l.b16 %v3587
        %v5316 = vunpack.c.l.b16 %v3588
        %v5317 = vunpack.c.l.b16 %v3589
        %v5318 = vunpack.c.l.b16 %v3590
        %v5319 = vunpack.c.l.b16 %v3591
        %v5320 = vunpack.c.l.b16 %v3592
        %v5321 = vunpack.c.l.b16 %v3593
        %v5322 = vunpack.c.l.b16 %v3594
        %v5323 = vunpack.c.l.b16 %v3595
        %v5324 = vunpack.c.l.b16 %v3596
        %v5325 = vunpack.c.l.b16 %v3597
        %v5326 = vunpack.c.l.b16 %v3598
        %v5327 = vunpack.c.l.b16 %v3599
        %v5328 = vunpack.c.l.b16 %v3600
        %v5329 = vunpack.c.l.b16 %v3601
        %v5330 = vunpack.c.l.b16 %v3602
        %v5331 = vunpack.c.l.b16 %v3603
        %v5332 = vunpack.c.l.b16 %v3604
        %v5333 = vunpack.c.l.b16 %v3605
        %v5334 = vunpack.c.l.b16 %v3606
        %v5335 = vunpack.c.l.b16 %v3607
        %v5336 = vunpack.c.l.b16 %v3608
        %v5337 = vunpack.c.l.b16 %v3609
        %v5338 = vunpack.c.l.b16 %v3610
        %v5339 = vunpack.c.l.b16 %v3611
        %v5340 = vunpack.c.l.b16 %v3612
        %v5341 = vunpack.c.l.b16 %v3613
        %v5342 = vunpack.c.l.b16 %v3614
        %v5343 = vunpack.c.l.b16 %v3615
        %v5344 = vunpack.c.l.b16 %v3616
        %v5345 = vunpack.c.l.b16 %v3617
        %v5346 = vunpack.c.l.b16 %v3618
        %v5347 = vunpack.c.l.b16 %v3619
        %v5348 = vunpack.c.l.b16 %v3620
        %v5349 = vunpack.c.l.b16 %v3621
        %v5350 = vunpack.c.l.b16 %v3622
        %v5351 = vunpack.c.l.b16 %v3623
        %v5352 = vunpack.c.l.b16 %v3624
        %v5353 = vunpack.c.l.b16 %v3625
        %v5354 = vunpack.c.l.b16 %v3626
        %v5355 = vunpack.c.l.b16 %v3627
        %v5356 = vunpack.c.l.b16 %v3628
        %v5357 = vunpack.c.l.b16 %v3629
        %v5358 = vunpack.c.l.b16 %v3630
        %v5359 = vunpack.c.l.b16 %v3631
        %v5360 = vunpack.c.l.b16 %v3632
        %v5361 = vunpack.c.l.b16 %v3633
        %v5362 = vunpack.c.l.b16 %v3634
        %v5363 = vunpack.c.l.b16 %v3635
        %v5364 = vunpack.c.l.b16 %v3636
        %v5365 = vunpack.c.l.b16 %v3637
        %v5366 = vunpack.c.l.b16 %v3638
        %v5367 = vunpack.c.l.b16 %v3639
        %v5368 = vunpack.c.l.b16 %v3640
        %v5369 = vunpack.c.l.b16 %v3641
        %v5370 = vunpack.c.l.b16 %v3642
        %v5371 = vunpack.c.l.b16 %v3643
        %v5372 = vunpack.c.l.b16 %v3644
        %v5373 = vunpack.c.l.b16 %v3645
        %v5374 = vunpack.c.l.b16 %v3646
        %v5375 = vunpack.c.l.b16 %v3647
        %v5376 = vunpack.c.l.b16 %v3648
        %v5377 = vunpack.c.l.b16 %v3649
        %v5378 = vunpack.c.l.b16 %v3650
        %v5379 = vunpack.c.l.b16 %v3651
        %v5380 = vunpack.c.l.b16 %v3652
        %v5381 = vunpack.c.l.b16 %v3653
        %v5382 = vunpack.c.l.b16 %v3654
        %v5383 = vunpack.c.l.b16 %v3655
        %v5384 = vunpack.c.l.b16 %v3656
        %v5385 = vunpack.c.l.b16 %v3657
        %v5386 = vunpack.c.l.b16 %v3658
        %v5387 = vunpack.c.l.b16 %v3659
        %v5388 = vunpack.c.l.b16 %v3660
        %v5389 = vunpack.c.l.b16 %v3661
        %v5390 = vunpack.c.l.b16 %v3662
        %v5391 = vunpack.c.l.b16 %v3663
        %v5392 = vunpack.c.l.b16 %v3664
        %v5393 = vunpack.c.l.b16 %v3665
        %v5394 = vunpack.c.l.b16 %v3666
        %v5395 = vunpack.c.l.b16 %v3667
        %v5396 = vunpack.c.l.b16 %v3668
        %v5397 = vunpack.c.l.b16 %v3669
        %v5398 = vunpack.c.l.b16 %v3670
        %v5399 = vunpack.c.l.b16 %v3671
        %v5400 = vunpack.c.l.b16 %v3672
        %v5401 = vunpack.c.l.b16 %v3673
        %v5402 = vunpack.c.l.b16 %v3674
        %v5403 = vunpack.c.l.b16 %v3675
        %v5404 = vunpack.c.l.b16 %v3676
        %v5405 = vunpack.c.l.b16 %v3677
        %v5406 = vunpack.c.l.b16 %v3678
        %v5407 = vunpack.c.l.b16 %v3679
        %v5408 = vunpack.c.l.b16 %v3680
        %v5409 = vunpack.c.l.b16 %v3681
        %v5410 = vunpack.c.l.b16 %v3682
        %v5411 = vunpack.c.l.b16 %v3683
        %v5412 = vunpack.c.l.b16 %v3684
        %v5413 = vunpack.c.l.b16 %v3685
        %v5414 = vunpack.c.l.b16 %v3686
        %v5415 = vunpack.c.l.b16 %v3687
        %v5416 = vunpack.c.l.b16 %v3688
        %v5417 = vunpack.c.l.b16 %v3689
        %v5418 = vunpack.c.l.b16 %v3690
        %v5419 = vunpack.c.l.b16 %v3691
        %v5420 = vunpack.c.l.b16 %v3692
        %v5421 = vunpack.c.l.b16 %v3693
        %v5422 = vunpack.c.l.b16 %v3694
        %v5423 = vunpack.c.l.b16 %v3695
        %v5424 = vunpack.c.l.b16 %v3696
        %v5425 = vunpack.c.l.b16 %v3697
        %v5426 = vunpack.c.l.b16 %v3698
        %v5427 = vunpack.c.l.b16 %v3699
        %v5428 = vunpack.c.l.b16 %v3700
        %v5429 = vunpack.c.l.b16 %v3701
        %v5430 = vunpack.c.l.b16 %v3702
        %v5431 = vunpack.c.l.b16 %v3703
        %v5432 = vunpack.c.l.b16 %v3704
        %v5433 = vunpack.c.l.b16 %v3705
        %v5434 = vunpack.c.l.b16 %v3706
        %v5435 = vunpack.c.l.b16 %v3707
        %v5436 = vunpack.c.l.b16 %v3708
        %v5437 = vunpack.c.l.b16 %v3709
        %v5438 = vunpack.c.l.b16 %v3710
        %v5439 = vunpack.c.l.b16 %v3711
        %v5440 = vunpack.c.l.b16 %v3712
        %v5441 = vunpack.c.l.b16 %v3713
        %v5442 = vunpack.c.l.b16 %v3714
        %v5443 = vunpack.c.l.b16 %v3715
        %v5444 = vunpack.c.l.b16 %v3716
        %v5445 = vunpack.c.l.b16 %v3717
        %v5446 = vunpack.c.l.b16 %v3718
        %v5447 = vunpack.c.l.b16 %v3719
        %v5448 = vunpack.c.l.b16 %v3720
        %v5449 = vunpack.c.l.b16 %v3721
        %v5450 = vunpack.c.l.b16 %v3722
        %v5451 = vunpack.c.l.b16 %v3723
        %v5452 = vunpack.c.l.b16 %v3724
        %v5453 = vunpack.c.l.b16 %v3725
        %v5454 = vunpack.c.l.b16 %v3726
        %v5455 = vunpack.c.l.b16 %v3727
        %v5456 = vunpack.c.l.b16 %v3728
        %v5457 = vunpack.c.l.b16 %v3729
        %v5458 = vunpack.c.l.b16 %v3730
        %v5459 = vunpack.c.l.b16 %v3731
        %v5460 = vunpack.c.l.b16 %v3732
        %v5461 = vunpack.c.l.b16 %v3733
        %v5462 = vunpack.c.l.b16 %v3734
        %v5463 = vunpack.c.l.b16 %v3735
        %v5464 = vunpack.c.l.b16 %v3736
        %v5465 = vunpack.c.l.b16 %v3737
        %v5466 = vunpack.c.l.b16 %v3738
        %v5467 = vunpack.c.l.b16 %v3739
        %v5468 = vunpack.c.l.b16 %v3740
        %v5469 = vunpack.c.l.b16 %v3741
        %v5470 = vunpack.c.l.b16 %v3742
        %v5471 = vunpack.c.l.b16 %v3743
        %v5472 = vunpack.c.l.b16 %v3744
        %v5473 = vunpack.c.l.b16 %v3745
        %v5474 = vunpack.c.l.b16 %v3746
        %v5475 = vunpack.c.l.b16 %v3747
        %v5476 = vunpack.c.l.b16 %v3748
        %v5477 = vunpack.c.l.b16 %v3749
        %v5478 = vunpack.c.l.b16 %v3750
        %v5479 = vunpack.c.l.b16 %v3751
        %v5480 = vunpack.c.l.b16 %v3752
        %v5481 = vunpack.c.l.b16 %v3753
        %v5482 = vunpack.c.l.b16 %v3754
        %v5483 = vunpack.c.l.b16 %v3755
        %v5484 = vunpack.c.l.b16 %v3756
        %v5485 = vunpack.c.l.b16 %v3757
        %v5486 = vunpack.c.l.b16 %v3758
        %v5487 = vunpack.c.l.b16 %v3759
        %v5488 = vunpack.c.l.b16 %v3760
        %v5489 = vunpack.c.l.b16 %v3761
        %v5490 = vunpack.c.l.b16 %v3762
        %v5491 = vunpack.c.l.b16 %v3763
        %v5492 = vunpack.c.l.b16 %v3764
        %v5493 = vunpack.c.l.b16 %v3765
        %v5494 = vunpack.c.l.b16 %v3766
        %v5495 = vunpack.c.l.b16 %v3767
        %v5496 = vunpack.c.l.b16 %v3768
        %v5497 = vunpack.c.l.b16 %v3769
        %v5498 = vunpack.c.l.b16 %v3770
        %v5499 = vunpack.c.l.b16 %v3771
        %v5500 = vunpack.c.l.b16 %v3772
        %v5501 = vunpack.c.l.b16 %v3773
        %v5502 = vunpack.c.l.b16 %v3774
        %v5503 = vunpack.c.l.b16 %v3775
        %v5504 = vunpack.c.l.b16 %v3776
        %v5505 = vunpack.c.l.b16 %v3777
        %v5506 = vunpack.c.l.b16 %v3778
        %v5507 = vunpack.c.l.b16 %v3779
        %v5508 = vunpack.c.l.b16 %v3780
        %v5509 = vunpack.c.l.b16 %v3781
        %v5510 = vunpack.c.l.b16 %v3782
        %v5511 = vunpack.c.l.b16 %v3783
        %v5512 = vunpack.c.l.b16 %v3784
        %v5513 = vunpack.c.l.b16 %v3785
        %v5514 = vunpack.c.l.b16 %v3786
        %v5515 = vunpack.c.l.b16 %v3787
        %v5516 = vunpack.c.l.b16 %v3788
        %v5517 = vunpack.c.l.b16 %v3789
        %v5518 = vunpack.c.l.b16 %v3790
        %v5519 = vunpack.c.l.b16 %v3791
        %v5520 = vunpack.c.l.b16 %v3792
        %v5521 = vunpack.c.l.b16 %v3793
        %v5522 = vunpack.c.l.b16 %v3794
        %v5523 = vunpack.c.l.b16 %v3795
        %v5524 = vunpack.c.l.b16 %v3796
        %v5525 = vunpack.c.l.b16 %v3797
        %v5526 = vunpack.c.l.b16 %v3798
        %v5527 = vunpack.c.l.b16 %v3799
        %v5528 = vunpack.c.l.b16 %v3800
        %v5529 = vunpack.c.l.b16 %v3801
        %v5530 = vunpack.c.l.b16 %v3802
        %v5531 = vunpack.c.l.b16 %v3803
        %v5532 = vunpack.c.l.b16 %v3804
        %v5533 = vunpack.c.l.b16 %v3805
        %v5534 = vunpack.c.l.b16 %v3806
        %v5535 = vunpack.c.l.b16 %v3807
        %v5536 = vunpack.c.l.b16 %v3808
        %v5537 = vunpack.c.l.b16 %v3809
        %v5538 = vunpack.c.l.b16 %v3810
        %v5539 = vunpack.c.l.b16 %v3811
        %v5540 = vunpack.c.l.b16 %v3812
        %v5541 = vunpack.c.l.b16 %v3813
        %v5542 = vunpack.c.l.b16 %v3814
        %v5543 = vunpack.c.l.b16 %v3815
        %v5544 = vunpack.c.l.b16 %v3816
        %v5545 = vunpack.c.l.b16 %v3817
        %v5546 = vunpack.c.l.b16 %v3818
        %v5547 = vunpack.c.l.b16 %v3819
        %v5548 = vunpack.c.l.b16 %v3820
        %v5549 = vunpack.c.l.b16 %v3821
        %v5550 = vunpack.c.l.b16 %v3822
        %v5551 = vunpack.c.l.b16 %v3823
        %v5552 = vunpack.c.l.b16 %v3824
        %v5553 = vunpack.c.l.b16 %v3825
        %v5554 = vunpack.c.l.b16 %v3826
        %v5555 = vunpack.c.l.b16 %v3827
        %v5556 = vunpack.c.l.b16 %v3828
        %v5557 = vunpack.c.l.b16 %v3829
        %v5558 = vunpack.c.l.b16 %v3830
        %v5559 = vunpack.c.l.b16 %v3831
        %v5560 = vunpack.c.l.b16 %v3832
        %v5561 = vunpack.c.l.b16 %v3833
        %v5562 = vunpack.c.l.b16 %v3834
        %v5563 = vunpack.c.l.b16 %v3835
        %v5564 = vunpack.c.l.b16 %v3836
        %v5565 = vunpack.c.l.b16 %v3837
        %v5566 = vunpack.c.l.b16 %v3838
        %v5567 = vunpack.c.l.b16 %v3839
        %v5568 = vunpack.c.l.b16 %v3840
        %v5569 = vunpack.c.l.b16 %v3841
        %v5570 = vunpack.c.l.b16 %v3842
        %v5571 = vunpack.c.l.b16 %v3843
        %v5572 = vunpack.c.l.b16 %v3844
        %v5573 = vunpack.c.l.b16 %v3845
        %v5574 = vunpack.c.l.b16 %v3846
        %v5575 = vunpack.c.l.b16 %v3847
        %v5576 = vunpack.c.l.b16 %v3848
        %v5577 = vunpack.c.l.b16 %v3849
        %v5578 = vunpack.c.l.b16 %v3850
        %v5579 = vunpack.c.l.b16 %v3851
        %v5580 = vunpack.c.l.b16 %v3852
        %v5581 = vunpack.c.l.b16 %v3853
        %v5582 = vunpack.c.l.b16 %v3854
        %v5583 = vunpack.c.l.b16 %v3855
        %v5584 = vunpack.c.l.b16 %v3856
        %v5585 = vunpack.c.l.b16 %v3857
        %v5586 = vunpack.c.l.b16 %v3858
        %v5587 = vunpack.c.l.b16 %v3859
        %v5588 = vunpack.c.l.b16 %v3860
        %v5589 = vunpack.c.l.b16 %v3861
        %v5590 = vunpack.c.l.b16 %v3862
        %v5591 = vunpack.c.l.b16 %v3863
        %v5592 = vunpack.c.l.b16 %v3864
        %v5593 = vunpack.c.l.b16 %v3865
        %v5594 = vunpack.c.l.b16 %v3866
        %v5595 = vunpack.c.l.b16 %v3867
        %v5596 = vunpack.c.l.b16 %v3868
        %v5597 = vunpack.c.l.b16 %v3869
        %v5598 = vunpack.c.l.b16 %v3870
        %v5599 = vunpack.c.l.b16 %v3871
        %v5600 = vunpack.c.l.b16 %v3872
        %v5601 = vunpack.c.l.b16 %v3873
        %v5602 = vunpack.c.l.b16 %v3874
        %v5603 = vunpack.c.l.b16 %v3875
        %v5604 = vunpack.c.l.b16 %v3876
        %v5605 = vunpack.c.l.b16 %v3877
        %v5606 = vunpack.c.l.b16 %v3878
        %v5607 = vunpack.c.l.b16 %v3879
        %v5608 = vunpack.c.l.b16 %v3880
        %v5609 = vunpack.c.l.b16 %v3881
        %v5610 = vunpack.c.l.b16 %v3882
        %v5611 = vunpack.c.l.b16 %v3883
        %v5612 = vunpack.c.l.b16 %v3884
        %v5613 = vunpack.c.l.b16 %v3885
        %v5614 = vunpack.c.l.b16 %v3886
        %v5615 = vunpack.c.l.b16 %v3887
        %v5616 = vunpack.c.l.b16 %v3888
        %v5617 = vunpack.c.l.b16 %v3889
        %v5618 = vunpack.c.l.b16 %v3890
        %v5619 = vunpack.c.l.b16 %v3891
        %v5620 = vunpack.c.l.b16 %v3892
        %v5621 = vunpack.c.l.b16 %v3893
        %v5622 = vunpack.c.l.b16 %v3894
        %v5623 = vunpack.c.l.b16 %v3895
        %v5624 = vunpack.c.l.b16 %v3896
        %v5625 = vunpack.c.l.b16 %v3897
        %v5626 = vunpack.c.l.b16 %v3898
        %v5627 = vunpack.c.l.b16 %v3899
        %v5628 = vunpack.c.l.b16 %v3900
        %v5629 = vunpack.c.l.b16 %v3901
        %v5630 = vpack.c.b16 %v4927, %v4926
        %v5631 = vpack.c.b16 %v4929, %v4928
        %v5632 = vpack.c.b16 %v4931, %v4930
        %v5633 = vpack.c.b16 %v4933, %v4932
        %v5634 = vpack.c.b16 %v4935, %v4934
        %v5635 = vpack.c.b16 %v4937, %v4936
        %v5636 = vpack.c.b16 %v4939, %v4938
        %v5637 = vpack.c.b16 %v4941, %v4940
        %v5638 = vpack.c.b16 %v4943, %v4942
        %v5639 = vpack.c.b16 %v4945, %v4944
        %v5640 = vpack.c.b16 %v4947, %v4946
        %v5641 = vpack.c.b16 %v4949, %v4948
        %v5642 = vpack.c.b16 %v4951, %v4950
        %v5643 = vpack.c.b16 %v4953, %v4952
        %v5644 = vpack.c.b16 %v4955, %v4954
        %v5645 = vpack.c.b16 %v4957, %v4956
        %v5646 = vpack.c.b16 %v4959, %v4958
        %v5647 = vpack.c.b16 %v4961, %v4960
        %v5648 = vpack.c.b16 %v4963, %v4962
        %v5649 = vpack.c.b16 %v4965, %v4964
        %v5650 = vpack.c.b16 %v4967, %v4966
        %v5651 = vpack.c.b16 %v4969, %v4968
        %v5652 = vpack.c.b16 %v4971, %v4970
        %v5653 = vpack.c.b16 %v4973, %v4972
        %v5654 = vpack.c.b16 %v4975, %v4974
        %v5655 = vpack.c.b16 %v4977, %v4976
        %v5656 = vpack.c.b16 %v4979, %v4978
        %v5657 = vpack.c.b16 %v4981, %v4980
        %v5658 = vpack.c.b16 %v4983, %v4982
        %v5659 = vpack.c.b16 %v4985, %v4984
        %v5660 = vpack.c.b16 %v4987, %v4986
        %v5661 = vpack.c.b16 %v4989, %v4988
        %v5662 = vpack.c.b16 %v4991, %v4990
        %v5663 = vpack.c.b16 %v4993, %v4992
        %v5664 = vpack.c.b16 %v4995, %v4994
        %v5665 = vpack.c.b16 %v4997, %v4996
        %v5666 = vpack.c.b16 %v4999, %v4998
        %v5667 = vpack.c.b16 %v5001, %v5000
        %v5668 = vpack.c.b16 %v5003, %v5002
        %v5669 = vpack.c.b16 %v5005, %v5004
        %v5670 = vpack.c.b16 %v5007, %v5006
        %v5671 = vpack.c.b16 %v5009, %v5008
        %v5672 = vpack.c.b16 %v5011, %v5010
        %v5673 = vpack.c.b16 %v5013, %v5012
        %v5674 = vpack.c.b16 %v5015, %v5014
        %v5675 = vpack.c.b16 %v5017, %v5016
        %v5676 = vpack.c.b16 %v5019, %v5018
        %v5677 = vpack.c.b16 %v5021, %v5020
        %v5678 = vpack.c.b16 %v5023, %v5022
        %v5679 = vpack.c.b16 %v5025, %v5024
        %v5680 = vpack.c.b16 %v5027, %v5026
        %v5681 = vpack.c.b16 %v5029, %v5028
        %v5682 = vpack.c.b16 %v5031, %v5030
        %v5683 = vpack.c.b16 %v5033, %v5032
        %v5684 = vpack.c.b16 %v5035, %v5034
        %v5685 = vpack.c.b16 %v5037, %v5036
        %v5686 = vpack.c.b16 %v5039, %v5038
        %v5687 = vpack.c.b16 %v5041, %v5040
        %v5688 = vpack.c.b16 %v5043, %v5042
        %v5689 = vpack.c.b16 %v5045, %v5044
        %v5690 = vpack.c.b16 %v5047, %v5046
        %v5691 = vpack.c.b16 %v5049, %v5048
        %v5692 = vpack.c.b16 %v5051, %v5050
        %v5693 = vpack.c.b16 %v5053, %v5052
        %v5694 = vpack.c.b16 %v5055, %v5054
        %v5695 = vpack.c.b16 %v5057, %v5056
        %v5696 = vpack.c.b16 %v5059, %v5058
        %v5697 = vpack.c.b16 %v5061, %v5060
        %v5698 = vpack.c.b16 %v5063, %v5062
        %v5699 = vpack.c.b16 %v5065, %v5064
        %v5700 = vpack.c.b16 %v5067, %v5066
        %v5701 = vpack.c.b16 %v5069, %v5068
        %v5702 = vpack.c.b16 %v5071, %v5070
        %v5703 = vpack.c.b16 %v5073, %v5072
        %v5704 = vpack.c.b16 %v5075, %v5074
        %v5705 = vpack.c.b16 %v5077, %v5076
        %v5706 = vpack.c.b16 %v5079, %v5078
        %v5707 = vpack.c.b16 %v5081, %v5080
        %v5708 = vpack.c.b16 %v5083, %v5082
        %v5709 = vpack.c.b16 %v5085, %v5084
        %v5710 = vpack.c.b16 %v5087, %v5086
        %v5711 = vpack.c.b16 %v5089, %v5088
        %v5712 = vpack.c.b16 %v5091, %v5090
        %v5713 = vpack.c.b16 %v5093, %v5092
        %v5714 = vpack.c.b16 %v5095, %v5094
        %v5715 = vpack.c.b16 %v5097, %v5096
        %v5716 = vpack.c.b16 %v5099, %v5098
        %v5717 = vpack.c.b16 %v5101, %v5100
        %v5718 = vpack.c.b16 %v5103, %v5102
        %v5719 = vpack.c.b16 %v5105, %v5104
        %v5720 = vpack.c.b16 %v5107, %v5106
        %v5721 = vpack.c.b16 %v5109, %v5108
        %v5722 = vpack.c.b16 %v5111, %v5110
        %v5723 = vpack.c.b16 %v5113, %v5112
        %v5724 = vpack.c.b16 %v5115, %v5114
        %v5725 = vpack.c.b16 %v5117, %v5116
        %v5726 = vpack.c.b16 %v5119, %v5118
        %v5727 = vpack.c.b16 %v5121, %v5120
        %v5728 = vpack.c.b16 %v5123, %v5122
        %v5729 = vpack.c.b16 %v5125, %v5124
        %v5730 = vpack.c.b16 %v5127, %v5126
        %v5731 = vpack.c.b16 %v5129, %v5128
        %v5732 = vpack.c.b16 %v5131, %v5130
        %v5733 = vpack.c.b16 %v5133, %v5132
        %v5734 = vpack.c.b16 %v5135, %v5134
        %v5735 = vpack.c.b16 %v5137, %v5136
        %v5736 = vpack.c.b16 %v5139, %v5138
        %v5737 = vpack.c.b16 %v5141, %v5140
        %v5738 = vpack.c.b16 %v5143, %v5142
        %v5739 = vpack.c.b16 %v5145, %v5144
        %v5740 = vpack.c.b16 %v5147, %v5146
        %v5741 = vpack.c.b16 %v5149, %v5148
        %v5742 = vpack.c.b16 %v5151, %v5150
        %v5743 = vpack.c.b16 %v5153, %v5152
        %v5744 = vpack.c.b16 %v5155, %v5154
        %v5745 = vpack.c.b16 %v5157, %v5156
        %v5746 = vpack.c.b16 %v5159, %v5158
        %v5747 = vpack.c.b16 %v5161, %v5160
        %v5748 = vpack.c.b16 %v5163, %v5162
        %v5749 = vpack.c.b16 %v5165, %v5164
        %v5750 = vpack.c.b16 %v5167, %v5166
        %v5751 = vpack.c.b16 %v5169, %v5168
        %v5752 = vpack.c.b16 %v5171, %v5170
        %v5753 = vpack.c.b16 %v5173, %v5172
        %v5754 = vpack.c.b16 %v5175, %v5174
        %v5755 = vpack.c.b16 %v5177, %v5176
        %v5756 = vpack.c.b16 %v5179, %v5178
        %v5757 = vpack.c.b16 %v5181, %v5180
        %v5758 = vpack.c.b16 %v5183, %v5182
        %v5759 = vpack.c.b16 %v5185, %v5184
        %v5760 = vpack.c.b16 %v5187, %v5186
        %v5761 = vpack.c.b16 %v5189, %v5188
        %v5762 = vpack.c.b16 %v5191, %v5190
        %v5763 = vpack.c.b16 %v5193, %v5192
        %v5764 = vpack.c.b16 %v5195, %v5194
        %v5765 = vpack.c.b16 %v5197, %v5196
        %v5766 = vpack.c.b16 %v5199, %v5198
        %v5767 = vpack.c.b16 %v5201, %v5200
        %v5768 = vpack.c.b16 %v5203, %v5202
        %v5769 = vpack.c.b16 %v5205, %v5204
        %v5770 = vpack.c.b16 %v5207, %v5206
        %v5771 = vpack.c.b16 %v5209, %v5208
        %v5772 = vpack.c.b16 %v5211, %v5210
        %v5773 = vpack.c.b16 %v5213, %v5212
        %v5774 = vpack.c.b16 %v5215, %v5214
        %v5775 = vpack.c.b16 %v5217, %v5216
        %v5776 = vpack.c.b16 %v5219, %v5218
        %v5777 = vpack.c.b16 %v5221, %v5220
        %v5778 = vpack.c.b16 %v5223, %v5222
        %v5779 = vpack.c.b16 %v5225, %v5224
        %v5780 = vpack.c.b16 %v5227, %v5226
        %v5781 = vpack.c.b16 %v5229, %v5228
        %v5782 = vpack.c.b16 %v5231, %v5230
        %v5783 = vpack.c.b16 %v5233, %v5232
        %v5784 = vpack.c.b16 %v5235, %v5234
        %v5785 = vpack.c.b16 %v5237, %v5236
        %v5786 = vpack.c.b16 %v5239, %v5238
        %v5787 = vpack.c.b16 %v5241, %v5240
        %v5788 = vpack.c.b16 %v5243, %v5242
        %v5789 = vpack.c.b16 %v5245, %v5244
        %v5790 = vpack.c.b16 %v5247, %v5246
        %v5791 = vpack.c.b16 %v5249, %v5248
        %v5792 = vpack.c.b16 %v5251, %v5250
        %v5793 = vpack.c.b16 %v5253, %v5252
        %v5794 = vpack.c.b16 %v5255, %v5254
        %v5795 = vpack.c.b16 %v5257, %v5256
        %v5796 = vpack.c.b16 %v5259, %v5258
        %v5797 = vpack.c.b16 %v5261, %v5260
        %v5798 = vpack.c.b16 %v5263, %v5262
        %v5799 = vpack.c.b16 %v5265, %v5264
        %v5800 = vpack.c.b16 %v5267, %v5266
        %v5801 = vpack.c.b16 %v5269, %v5268
        %v5802 = vpack.c.b16 %v5271, %v5270
        %v5803 = vpack.c.b16 %v5273, %v5272
        %v5804 = vpack.c.b16 %v5275, %v5274
        %v5805 = vpack.c.b16 %v5277, %v5276
        %v5806 = vpack.c.b16 %v5279, %v5278
        %v5807 = vpack.c.b16 %v5281, %v5280
        %v5808 = vpack.c.b16 %v5283, %v5282
        %v5809 = vpack.c.b16 %v5285, %v5284
        %v5810 = vpack.c.b16 %v5287, %v5286
        %v5811 = vpack.c.b16 %v5289, %v5288
        %v5812 = vpack.c.b16 %v5291, %v5290
        %v5813 = vpack.c.b16 %v5293, %v5292
        %v5814 = vpack.c.b16 %v5295, %v5294
        %v5815 = vpack.c.b16 %v5297, %v5296
        %v5816 = vpack.c.b16 %v5299, %v5298
        %v5817 = vpack.c.b16 %v5301, %v5300
        %v5818 = vpack.c.b16 %v5303, %v5302
        %v5819 = vpack.c.b16 %v5305, %v5304
        %v5820 = vpack.c.b16 %v5307, %v5306
        %v5821 = vpack.c.b16 %v5309, %v5308
        %v5822 = vpack.c.b16 %v5311, %v5310
        %v5823 = vpack.c.b16 %v5313, %v5312
        %v5824 = vpack.c.b16 %v5315, %v5314
        %v5825 = vpack.c.b16 %v5317, %v5316
        %v5826 = vpack.c.b16 %v5319, %v5318
        %v5827 = vpack.c.b16 %v5321, %v5320
        %v5828 = vpack.c.b16 %v5323, %v5322
        %v5829 = vpack.c.b16 %v5325, %v5324
        %v5830 = vpack.c.b16 %v5327, %v5326
        %v5831 = vpack.c.b16 %v5329, %v5328
        %v5832 = vpack.c.b16 %v5331, %v5330
        %v5833 = vpack.c.b16 %v5333, %v5332
        %v5834 = vpack.c.b16 %v5335, %v5334
        %v5835 = vpack.c.b16 %v5337, %v5336
        %v5836 = vpack.c.b16 %v5339, %v5338
        %v5837 = vpack.c.b16 %v5341, %v5340
        %v5838 = vpack.c.b16 %v5343, %v5342
        %v5839 = vpack.c.b16 %v5345, %v5344
        %v5840 = vpack.c.b16 %v5347, %v5346
        %v5841 = vpack.c.b16 %v5349, %v5348
        %v5842 = vpack.c.b16 %v5351, %v5350
        %v5843 = vpack.c.b16 %v5353, %v5352
        %v5844 = vpack.c.b16 %v5355, %v5354
        %v5845 = vpack.c.b16 %v5357, %v5356
        %v5846 = vpack.c.b16 %v5359, %v5358
        %v5847 = vpack.c.b16 %v5361, %v5360
        %v5848 = vpack.c.b16 %v5363, %v5362
        %v5849 = vpack.c.b16 %v5365, %v5364
        %v5850 = vpack.c.b16 %v5367, %v5366
        %v5851 = vpack.c.b16 %v5369, %v5368
        %v5852 = vpack.c.b16 %v5371, %v5370
        %v5853 = vpack.c.b16 %v5373, %v5372
        %v5854 = vpack.c.b16 %v5375, %v5374
        %v5855 = vpack.c.b16 %v5377, %v5376
        %v5856 = vpack.c.b16 %v5379, %v5378
        %v5857 = vpack.c.b16 %v5381, %v5380
        %v5858 = vpack.c.b16 %v5383, %v5382
        %v5859 = vpack.c.b16 %v5385, %v5384
        %v5860 = vpack.c.b16 %v5387, %v5386
        %v5861 = vpack.c.b16 %v5389, %v5388
        %v5862 = vpack.c.b16 %v5391, %v5390
        %v5863 = vpack.c.b16 %v5393, %v5392
        %v5864 = vpack.c.b16 %v5395, %v5394
        %v5865 = vpack.c.b16 %v5397, %v5396
        %v5866 = vpack.c.b16 %v5399, %v5398
        %v5867 = vpack.c.b16 %v5401, %v5400
        %v5868 = vpack.c.b16 %v5403, %v5402
        %v5869 = vpack.c.b16 %v5405, %v5404
        %v5870 = vpack.c.b16 %v5407, %v5406
        %v5871 = vpack.c.b16 %v5409, %v5408
        %v5872 = vpack.c.b16 %v5411, %v5410
        %v5873 = vpack.c.b16 %v5413, %v5412
        %v5874 = vpack.c.b16 %v5415, %v5414
        %v5875 = vpack.c.b16 %v5417, %v5416
        %v5876 = vpack.c.b16 %v5419, %v5418
        %v5877 = vpack.c.b16 %v5421, %v5420
        %v5878 = vpack.c.b16 %v5423, %v5422
        %v5879 = vpack.c.b16 %v5425, %v5424
        %v5880 = vpack.c.b16 %v5427, %v5426
        %v5881 = vpack.c.b16 %v5429, %v5428
        %v5882 = vpack.c.b16 %v5431, %v5430
        %v5883 = vpack.c.b16 %v5433, %v5432
        %v5884 = vpack.c.b16 %v5435, %v5434
        %v5885 = vpack.c.b16 %v5437, %v5436
        %v5886 = vpack.c.b16 %v5439, %v5438
        %v5887 = vpack.c.b16 %v5441, %v5440
        %v5888 = vpack.c.b16 %v5443, %v5442
        %v5889 = vpack.c.b16 %v5445, %v5444
        %v5890 = vpack.c.b16 %v5447, %v5446
        %v5891 = vpack.c.b16 %v5449, %v5448
        %v5892 = vpack.c.b16 %v5451, %v5450
        %v5893 = vpack.c.b16 %v5453, %v5452
        %v5894 = vpack.c.b16 %v5455, %v5454
        %v5895 = vpack.c.b16 %v5457, %v5456
        %v5896 = vpack.c.b16 %v5459, %v5458
        %v5897 = vpack.c.b16 %v5461, %v5460
        %v5898 = vpack.c.b16 %v5463, %v5462
        %v5899 = vpack.c.b16 %v5465, %v5464
        %v5900 = vpack.c.b16 %v5467, %v5466
        %v5901 = vpack.c.b16 %v5469, %v5468
        %v5902 = vpack.c.b16 %v5471, %v5470
        %v5903 = vpack.c.b16 %v5473, %v5472
        %v5904 = vpack.c.b16 %v5475, %v5474
        %v5905 = vpack.c.b16 %v5477, %v5476
        %v5906 = vpack.c.b16 %v5479, %v5478
        %v5907 = vpack.c.b16 %v5481, %v5480
        %v5908 = vpack.c.b16 %v5483, %v5482
        %v5909 = vpack.c.b16 %v5485, %v5484
        %v5910 = vpack.c.b16 %v5487, %v5486
        %v5911 = vpack.c.b16 %v5489, %v5488
        %v5912 = vpack.c.b16 %v5491, %v5490
        %v5913 = vpack.c.b16 %v5493, %v5492
        %v5914 = vpack.c.b16 %v5495, %v5494
        %v5915 = vpack.c.b16 %v5497, %v5496
        %v5916 = vpack.c.b16 %v5499, %v5498
        %v5917 = vpack.c.b16 %v5501, %v5500
        %v5918 = vpack.c.b16 %v5503, %v5502
        %v5919 = vpack.c.b16 %v5505, %v5504
        %v5920 = vpack.c.b16 %v5507, %v5506
        %v5921 = vpack.c.b16 %v5509, %v5508
        %v5922 = vpack.c.b16 %v5511, %v5510
        %v5923 = vpack.c.b16 %v5513, %v5512
        %v5924 = vpack.c.b16 %v5515, %v5514
        %v5925 = vpack.c.b16 %v5517, %v5516
        %v5926 = vpack.c.b16 %v5519, %v5518
        %v5927 = vpack.c.b16 %v5521, %v5520
        %v5928 = vpack.c.b16 %v5523, %v5522
        %v5929 = vpack.c.b16 %v5525, %v5524
        %v5930 = vpack.c.b16 %v5527, %v5526
        %v5931 = vpack.c.b16 %v5529, %v5528
        %v5932 = vpack.c.b16 %v5531, %v5530
        %v5933 = vpack.c.b16 %v5533, %v5532
        %v5934 = vpack.c.b16 %v5535, %v5534
        %v5935 = vpack.c.b16 %v5537, %v5536
        %v5936 = vpack.c.b16 %v5539, %v5538
        %v5937 = vpack.c.b16 %v5541, %v5540
        %v5938 = vpack.c.b16 %v5543, %v5542
        %v5939 = vpack.c.b16 %v5545, %v5544
        %v5940 = vpack.c.b16 %v5547, %v5546
        %v5941 = vpack.c.b16 %v5549, %v5548
        %v5942 = vpack.c.b16 %v5551, %v5550
        %v5943 = vpack.c.b16 %v5553, %v5552
        %v5944 = vpack.c.b16 %v5555, %v5554
        %v5945 = vpack.c.b16 %v5557, %v5556
        %v5946 = vpack.c.b16 %v5559, %v5558
        %v5947 = vpack.c.b16 %v5561, %v5560
        %v5948 = vpack.c.b16 %v5563, %v5562
        %v5949 = vpack.c.b16 %v5565, %v5564
        %v5950 = vpack.c.b16 %v5567, %v5566
        %v5951 = vpack.c.b16 %v5569, %v5568
        %v5952 = vpack.c.b16 %v5571, %v5570
        %v5953 = vpack.c.b16 %v5573, %v5572
        %v5954 = vpack.c.b16 %v5575, %v5574
        %v5955 = vpack.c.b16 %v5577, %v5576
        %v5956 = vpack.c.b16 %v5579, %v5578
        %v5957 = vpack.c.b16 %v5581, %v5580
        %v5958 = vpack.c.b16 %v5583, %v5582
        %v5959 = vpack.c.b16 %v5585, %v5584
        %v5960 = vpack.c.b16 %v5587, %v5586
        %v5961 = vpack.c.b16 %v5589, %v5588
        %v5962 = vpack.c.b16 %v5591, %v5590
        %v5963 = vpack.c.b16 %v5593, %v5592
        %v5964 = vpack.c.b16 %v5595, %v5594
        %v5965 = vpack.c.b16 %v5597, %v5596
        %v5966 = vpack.c.b16 %v5599, %v5598
        %v5967 = vpack.c.b16 %v5601, %v5600
        %v5968 = vpack.c.b16 %v5603, %v5602
        %v5969 = vpack.c.b16 %v5605, %v5604
        %v5970 = vpack.c.b16 %v5607, %v5606
        %v5971 = vpack.c.b16 %v5609, %v5608
        %v5972 = vpack.c.b16 %v5611, %v5610
        %v5973 = vpack.c.b16 %v5613, %v5612
        %v5974 = vpack.c.b16 %v5615, %v5614
        %v5975 = vpack.c.b16 %v5617, %v5616
        %v5976 = vpack.c.b16 %v5619, %v5618
        %v5977 = vpack.c.b16 %v5621, %v5620
        %v5978 = vpack.c.b16 %v5623, %v5622
        %v5979 = vpack.c.b16 %v5625, %v5624
        %v5980 = vpack.c.b16 %v5627, %v5626
        %v5981 = vpack.c.b16 %v5629, %v5628
        %6334 = vmatprep.subr.bf16.mxu0 0
        %6335 = vmatpush1.bf16.msra.mxu0 %v5630
        %6336 = vmatprep.subr.bf16.mxu0 0
        %6337 = vmatpush1.bf16.msra.mxu0 %v5631
        %6338 = vmatprep.subr.bf16.mxu0 0
        %6339 = vmatpush1.bf16.msra.mxu0 %v5632
        %6340 = vmatprep.subr.bf16.mxu0 0
        %6341 = vmatpush1.bf16.msra.mxu0 %v5633
        %6342 = vmatprep.subr.bf16.mxu0 0
        %6343 = vmatpush1.bf16.msra.mxu0 %v5634
        %6344 = vmatprep.subr.bf16.mxu0 0
        %6345 = vmatpush1.bf16.msra.mxu0 %v5635
        %6346 = vmatprep.subr.bf16.mxu0 0
        %6347 = vmatpush1.bf16.msra.mxu0 %v5636
        %6348 = vmatprep.subr.bf16.mxu0 0
        %6349 = vmatpush1.bf16.msra.mxu0 %v5637
        %6350 = vmatprep.subr.bf16.mxu0 0
        %6351 = vmatpush1.bf16.msra.mxu0 %v5638
        %6352 = vmatprep.subr.bf16.mxu0 0
        %6353 = vmatpush1.bf16.msra.mxu0 %v5639
        %6354 = vmatprep.subr.bf16.mxu0 0
        %6355 = vmatpush1.bf16.msra.mxu0 %v5640
        %6356 = vmatprep.subr.bf16.mxu0 0
        %6357 = vmatpush1.bf16.msra.mxu0 %v5641
        %6358 = vmatprep.subr.bf16.mxu0 0
        %6359 = vmatpush1.bf16.msra.mxu0 %v5642
        %6360 = vmatprep.subr.bf16.mxu0 0
        %6361 = vmatpush1.bf16.msra.mxu0 %v5643
        %6362 = vmatprep.subr.bf16.mxu0 0
        %6363 = vmatpush1.bf16.msra.mxu0 %v5644
        %6364 = vmatprep.subr.bf16.mxu0 0
        %6365 = vmatpush1.bf16.msra.mxu0 %v5645
        %6366 = vmatprep.mubr.bf16.mxu0 %v3946
        %6367 = vmatmul.mubr.bf16.gmra.mrb[0].mxu0 %v3932
        %v6368 = vpop.f32.mrb[0].mxu0
        %v6369 = vadd.f32 %v3902, %v6368
        %v6370 = vpop.f32.mrb[0].mxu0
        %v6371 = vpop.f32.mrb[0].mxu0
        %v6372 = vpop.f32.mrb[0].mxu0
        %6373 = vdwg.mxu0
        %6374 = vmatprep.subr.bf16.mxu0 0
        %6375 = vmatpush1.bf16.msra.mxu0 %v5646
        %6376 = vmatprep.subr.bf16.mxu0 0
        %6377 = vmatpush1.bf16.msra.mxu0 %v5647
        %6378 = vmatprep.subr.bf16.mxu0 0
        %6379 = vmatpush1.bf16.msra.mxu0 %v5648
        %6380 = vmatprep.subr.bf16.mxu0 0
        %6381 = vmatpush1.bf16.msra.mxu0 %v5649
        %6382 = vmatprep.subr.bf16.mxu0 0
        %6383 = vmatpush1.bf16.msra.mxu0 %v5650
        %6384 = vmatprep.subr.bf16.mxu0 0
        %6385 = vmatpush1.bf16.msra.mxu0 %v5651
        %6386 = vmatprep.subr.bf16.mxu0 0
        %6387 = vmatpush1.bf16.msra.mxu0 %v5652
        %6388 = vmatprep.subr.bf16.mxu0 0
        %6389 = vmatpush1.bf16.msra.mxu0 %v5653
        %6390 = vmatprep.subr.bf16.mxu0 0
        %6391 = vmatpush1.bf16.msra.mxu0 %v5654
        %6392 = vmatprep.subr.bf16.mxu0 0
        %6393 = vmatpush1.bf16.msra.mxu0 %v5655
        %6394 = vmatprep.subr.bf16.mxu0 0
        %6395 = vmatpush1.bf16.msra.mxu0 %v5656
        %6396 = vmatprep.subr.bf16.mxu0 0
        %6397 = vmatpush1.bf16.msra.mxu0 %v5657
        %6398 = vmatprep.subr.bf16.mxu0 0
        %6399 = vmatpush1.bf16.msra.mxu0 %v5658
        %6400 = vmatprep.subr.bf16.mxu0 0
        %6401 = vmatpush1.bf16.msra.mxu0 %v5659
        %6402 = vmatprep.subr.bf16.mxu0 0
        %6403 = vmatpush1.bf16.msra.mxu0 %v5660
        %6404 = vmatprep.subr.bf16.mxu0 0
        %6405 = vmatpush1.bf16.msra.mxu0 %v5661
        %6406 = vmatprep.mubr.bf16.mxu0 %v3956
        %6407 = vmatmul.mubr.bf16.gmra.mrb[0].mxu0 %v3954
        %v6408 = vpop.f32.mrb[0].mxu0
        %v6409 = vadd.f32 %v6369, %v6408
        %v6410 = vpop.f32.mrb[0].mxu0
        %v6411 = vpop.f32.mrb[0].mxu0
        %v6412 = vpop.f32.mrb[0].mxu0
        %6413 = vdwg.mxu0
        %6414 = vmatprep.subr.bf16.mxu0 0
        %6415 = vmatpush1.bf16.msra.mxu0 %v5662
        %6416 = vmatprep.subr.bf16.mxu0 0
        %6417 = vmatpush1.bf16.msra.mxu0 %v5663
        %6418 = vmatprep.subr.bf16.mxu0 0
        %6419 = vmatpush1.bf16.msra.mxu0 %v5664
        %6420 = vmatprep.subr.bf16.mxu0 0
        %6421 = vmatpush1.bf16.msra.mxu0 %v5665
        %6422 = vmatprep.subr.bf16.mxu0 0
        %6423 = vmatpush1.bf16.msra.mxu0 %v5666
        %6424 = vmatprep.subr.bf16.mxu0 0
        %6425 = vmatpush1.bf16.msra.mxu0 %v5667
        %6426 = vmatprep.subr.bf16.mxu0 0
        %6427 = vmatpush1.bf16.msra.mxu0 %v5668
        %6428 = vmatprep.subr.bf16.mxu0 0
        %6429 = vmatpush1.bf16.msra.mxu0 %v5669
        %6430 = vmatprep.subr.bf16.mxu0 0
        %6431 = vmatpush1.bf16.msra.mxu0 %v5670
        %6432 = vmatprep.subr.bf16.mxu0 0
        %6433 = vmatpush1.bf16.msra.mxu0 %v5671
        %6434 = vmatprep.subr.bf16.mxu0 0
        %6435 = vmatpush1.bf16.msra.mxu0 %v5672
        %6436 = vmatprep.subr.bf16.mxu0 0
        %6437 = vmatpush1.bf16.msra.mxu0 %v5673
        %6438 = vmatprep.subr.bf16.mxu0 0
        %6439 = vmatpush1.bf16.msra.mxu0 %v5674
        %6440 = vmatprep.subr.bf16.mxu0 0
        %6441 = vmatpush1.bf16.msra.mxu0 %v5675
        %6442 = vmatprep.subr.bf16.mxu0 0
        %6443 = vmatpush1.bf16.msra.mxu0 %v5676
        %6444 = vmatprep.subr.bf16.mxu0 0
        %6445 = vmatpush1.bf16.msra.mxu0 %v5677
        %6446 = vmatprep.mubr.bf16.mxu0 %v3953
        %6447 = vmatmul.mubr.bf16.gmra.mrb[0].mxu0 %v3939
        %v6448 = vpop.f32.mrb[0].mxu0
        %v6449 = vadd.f32 %v6409, %v6448
        %v6450 = vpop.f32.mrb[0].mxu0
        %v6451 = vpop.f32.mrb[0].mxu0
        %v6452 = vpop.f32.mrb[0].mxu0
        %6453 = vdwg.mxu0
        %6454 = vmatprep.subr.bf16.mxu0 0
        %6455 = vmatpush1.bf16.msra.mxu0 %v5678
        %6456 = vmatprep.subr.bf16.mxu0 0
        %6457 = vmatpush1.bf16.msra.mxu0 %v5679
        %6458 = vmatprep.subr.bf16.mxu0 0
        %6459 = vmatpush1.bf16.msra.mxu0 %v5680
        %6460 = vmatprep.subr.bf16.mxu0 0
        %6461 = vmatpush1.bf16.msra.mxu0 %v5681
        %6462 = vmatprep.subr.bf16.mxu0 0
        %6463 = vmatpush1.bf16.msra.mxu0 %v5682
        %6464 = vmatprep.subr.bf16.mxu0 0
        %6465 = vmatpush1.bf16.msra.mxu0 %v5683
        %6466 = vmatprep.subr.bf16.mxu0 0
        %6467 = vmatpush1.bf16.msra.mxu0 %v5684
        %6468 = vmatprep.subr.bf16.mxu0 0
        %6469 = vmatpush1.bf16.msra.mxu0 %v5685
        %6470 = vmatprep.subr.bf16.mxu0 0
        %6471 = vmatpush1.bf16.msra.mxu0 %v5686
        %6472 = vmatprep.subr.bf16.mxu0 0
        %6473 = vmatpush1.bf16.msra.mxu0 %v5687
        %6474 = vmatprep.subr.bf16.mxu0 0
        %6475 = vmatpush1.bf16.msra.mxu0 %v5688
        %6476 = vmatprep.subr.bf16.mxu0 0
        %6477 = vmatpush1.bf16.msra.mxu0 %v5689
        %6478 = vmatprep.subr.bf16.mxu0 0
        %6479 = vmatpush1.bf16.msra.mxu0 %v5690
        %6480 = vmatprep.subr.bf16.mxu0 0
        %6481 = vmatpush1.bf16.msra.mxu0 %v5691
        %6482 = vmatprep.subr.bf16.mxu0 0
        %6483 = vmatpush1.bf16.msra.mxu0 %v5692
        %6484 = vmatprep.subr.bf16.mxu0 0
        %6485 = vmatpush1.bf16.msra.mxu0 %v5693
        %6486 = vmatprep.mubr.bf16.mxu0 %v3957
        %6487 = vmatmul.mubr.bf16.gmra.mrb[0].mxu0 %v3955
        %v6488 = vpop.f32.mrb[0].mxu0
        %v6489 = vadd.f32 %v6449, %v6488
        %v6490 = vpop.f32.mrb[0].mxu0
        %v6491 = vpop.f32.mrb[0].mxu0
        %v6492 = vpop.f32.mrb[0].mxu0
        %6493 = vdwg.mxu0
        %6494 = vmatprep.subr.bf16.mxu0 0
        %6495 = vmatpush1.bf16.msra.mxu0 %v5694
        %6496 = vmatprep.subr.bf16.mxu0 0
        %6497 = vmatpush1.bf16.msra.mxu0 %v5695
        %6498 = vmatprep.subr.bf16.mxu0 0
        %6499 = vmatpush1.bf16.msra.mxu0 %v5696
        %6500 = vmatprep.subr.bf16.mxu0 0
        %6501 = vmatpush1.bf16.msra.mxu0 %v5697
        %6502 = vmatprep.subr.bf16.mxu0 0
        %6503 = vmatpush1.bf16.msra.mxu0 %v5698
        %6504 = vmatprep.subr.bf16.mxu0 0
        %6505 = vmatpush1.bf16.msra.mxu0 %v5699
        %6506 = vmatprep.subr.bf16.mxu0 0
        %6507 = vmatpush1.bf16.msra.mxu0 %v5700
        %6508 = vmatprep.subr.bf16.mxu0 0
        %6509 = vmatpush1.bf16.msra.mxu0 %v5701
        %6510 = vmatprep.subr.bf16.mxu0 0
        %6511 = vmatpush1.bf16.msra.mxu0 %v5702
        %6512 = vmatprep.subr.bf16.mxu0 0
        %6513 = vmatpush1.bf16.msra.mxu0 %v5703
        %6514 = vmatprep.subr.bf16.mxu0 0
        %6515 = vmatpush1.bf16.msra.mxu0 %v5704
        %6516 = vmatprep.subr.bf16.mxu0 0
        %6517 = vmatpush1.bf16.msra.mxu0 %v5705
        %6518 = vmatprep.subr.bf16.mxu0 0
        %6519 = vmatpush1.bf16.msra.mxu0 %v5706
        %6520 = vmatprep.subr.bf16.mxu0 0
        %6521 = vmatpush1.bf16.msra.mxu0 %v5707
        %6522 = vmatprep.subr.bf16.mxu0 0
        %6523 = vmatpush1.bf16.msra.mxu0 %v5708
        %6524 = vmatprep.subr.bf16.mxu0 0
        %6525 = vmatpush1.bf16.msra.mxu0 %v5709
        %6526 = vmatprep.mubr.bf16.mxu0 %v3995
        %6527 = vmatmul.mubr.bf16.gmra.mrb[0].mxu0 %v3981
        %v6528 = vpop.f32.mrb[0].mxu0
        %v6529 = vadd.f32 %v6489, %v6528
        %v6530 = vpop.f32.mrb[0].mxu0
        %v6531 = vpop.f32.mrb[0].mxu0
        %v6532 = vpop.f32.mrb[0].mxu0
        %6533 = vdwg.mxu0
        %6534 = vmatprep.subr.bf16.mxu0 0
        %6535 = vmatpush1.bf16.msra.mxu0 %v5710
        %6536 = vmatprep.subr.bf16.mxu0 0
        %6537 = vmatpush1.bf16.msra.mxu0 %v5711
        %6538 = vmatprep.subr.bf16.mxu0 0
        %6539 = vmatpush1.bf16.msra.mxu0 %v5712
        %6540 = vmatprep.subr.bf16.mxu0 0
        %6541 = vmatpush1.bf16.msra.mxu0 %v5713
        %6542 = vmatprep.subr.bf16.mxu0 0
        %6543 = vmatpush1.bf16.msra.mxu0 %v5714
        %6544 = vmatprep.subr.bf16.mxu0 0
        %6545 = vmatpush1.bf16.msra.mxu0 %v5715
        %6546 = vmatprep.subr.bf16.mxu0 0
        %6547 = vmatpush1.bf16.msra.mxu0 %v5716
        %6548 = vmatprep.subr.bf16.mxu0 0
        %6549 = vmatpush1.bf16.msra.mxu0 %v5717
        %6550 = vmatprep.subr.bf16.mxu0 0
        %6551 = vmatpush1.bf16.msra.mxu0 %v5718
        %6552 = vmatprep.subr.bf16.mxu0 0
        %6553 = vmatpush1.bf16.msra.mxu0 %v5719
        %6554 = vmatprep.subr.bf16.mxu0 0
        %6555 = vmatpush1.bf16.msra.mxu0 %v5720
        %6556 = vmatprep.subr.bf16.mxu0 0
        %6557 = vmatpush1.bf16.msra.mxu0 %v5721
        %6558 = vmatprep.subr.bf16.mxu0 0
        %6559 = vmatpush1.bf16.msra.mxu0 %v5722
        %6560 = vmatprep.subr.bf16.mxu0 0
        %6561 = vmatpush1.bf16.msra.mxu0 %v5723
        %6562 = vmatprep.subr.bf16.mxu0 0
        %6563 = vmatpush1.bf16.msra.mxu0 %v5724
        %6564 = vmatprep.subr.bf16.mxu0 0
        %6565 = vmatpush1.bf16.msra.mxu0 %v5725
        %6566 = vmatprep.mubr.bf16.mxu0 %v4005
        %6567 = vmatmul.mubr.bf16.gmra.mrb[0].mxu0 %v4003
        %v6568 = vpop.f32.mrb[0].mxu0
        %v6569 = vadd.f32 %v6529, %v6568
        %v6570 = vpop.f32.mrb[0].mxu0
        %v6571 = vpop.f32.mrb[0].mxu0
        %v6572 = vpop.f32.mrb[0].mxu0
        %6573 = vdwg.mxu0
        %6574 = vmatprep.subr.bf16.mxu0 0
        %6575 = vmatpush1.bf16.msra.mxu0 %v5726
        %6576 = vmatprep.subr.bf16.mxu0 0
        %6577 = vmatpush1.bf16.msra.mxu0 %v5727
        %6578 = vmatprep.subr.bf16.mxu0 0
        %6579 = vmatpush1.bf16.msra.mxu0 %v5728
        %6580 = vmatprep.subr.bf16.mxu0 0
        %6581 = vmatpush1.bf16.msra.mxu0 %v5729
        %6582 = vmatprep.subr.bf16.mxu0 0
        %6583 = vmatpush1.bf16.msra.mxu0 %v5730
        %6584 = vmatprep.subr.bf16.mxu0 0
        %6585 = vmatpush1.bf16.msra.mxu0 %v5731
        %6586 = vmatprep.subr.bf16.mxu0 0
        %6587 = vmatpush1.bf16.msra.mxu0 %v5732
        %6588 = vmatprep.subr.bf16.mxu0 0
        %6589 = vmatpush1.bf16.msra.mxu0 %v5733
        %6590 = vmatprep.subr.bf16.mxu0 0
        %6591 = vmatpush1.bf16.msra.mxu0 %v5734
        %6592 = vmatprep.subr.bf16.mxu0 0
        %6593 = vmatpush1.bf16.msra.mxu0 %v5735
        %6594 = vmatprep.subr.bf16.mxu0 0
        %6595 = vmatpush1.bf16.msra.mxu0 %v5736
        %6596 = vmatprep.subr.bf16.mxu0 0
        %6597 = vmatpush1.bf16.msra.mxu0 %v5737
        %6598 = vmatprep.subr.bf16.mxu0 0
        %6599 = vmatpush1.bf16.msra.mxu0 %v5738
        %6600 = vmatprep.subr.bf16.mxu0 0
        %6601 = vmatpush1.bf16.msra.mxu0 %v5739
        %6602 = vmatprep.subr.bf16.mxu0 0
        %6603 = vmatpush1.bf16.msra.mxu0 %v5740
        %6604 = vmatprep.subr.bf16.mxu0 0
        %6605 = vmatpush1.bf16.msra.mxu0 %v5741
        %6606 = vmatprep.mubr.bf16.mxu0 %v4002
        %6607 = vmatmul.mubr.bf16.gmra.mrb[0].mxu0 %v3988
        %v6608 = vpop.f32.mrb[0].mxu0
        %v6609 = vadd.f32 %v6569, %v6608
        %v6610 = vpop.f32.mrb[0].mxu0
        %v6611 = vpop.f32.mrb[0].mxu0
        %v6612 = vpop.f32.mrb[0].mxu0
        %6613 = vdwg.mxu0
        %6614 = vmatprep.subr.bf16.mxu0 0
        %6615 = vmatpush1.bf16.msra.mxu0 %v5742
        %6616 = vmatprep.subr.bf16.mxu0 0
        %6617 = vmatpush1.bf16.msra.mxu0 %v5743
        %6618 = vmatprep.subr.bf16.mxu0 0
        %6619 = vmatpush1.bf16.msra.mxu0 %v5744
        %6620 = vmatprep.subr.bf16.mxu0 0
        %6621 = vmatpush1.bf16.msra.mxu0 %v5745
        %6622 = vmatprep.subr.bf16.mxu0 0
        %6623 = vmatpush1.bf16.msra.mxu0 %v5746
        %6624 = vmatprep.subr.bf16.mxu0 0
        %6625 = vmatpush1.bf16.msra.mxu0 %v5747
        %6626 = vmatprep.subr.bf16.mxu0 0
        %6627 = vmatpush1.bf16.msra.mxu0 %v5748
        %6628 = vmatprep.subr.bf16.mxu0 0
        %6629 = vmatpush1.bf16.msra.mxu0 %v5749
        %6630 = vmatprep.subr.bf16.mxu0 0
        %6631 = vmatpush1.bf16.msra.mxu0 %v5750
        %6632 = vmatprep.subr.bf16.mxu0 0
        %6633 = vmatpush1.bf16.msra.mxu0 %v5751
        %6634 = vmatprep.subr.bf16.mxu0 0
        %6635 = vmatpush1.bf16.msra.mxu0 %v5752
        %6636 = vmatprep.subr.bf16.mxu0 0
        %6637 = vmatpush1.bf16.msra.mxu0 %v5753
        %6638 = vmatprep.subr.bf16.mxu0 0
        %6639 = vmatpush1.bf16.msra.mxu0 %v5754
        %6640 = vmatprep.subr.bf16.mxu0 0
        %6641 = vmatpush1.bf16.msra.mxu0 %v5755
        %6642 = vmatprep.subr.bf16.mxu0 0
        %6643 = vmatpush1.bf16.msra.mxu0 %v5756
        %6644 = vmatprep.subr.bf16.mxu0 0
        %6645 = vmatpush1.bf16.msra.mxu0 %v5757
        %6646 = vmatprep.mubr.bf16.mxu0 %v4006
        %6647 = vmatmul.mubr.bf16.gmra.mrb[0].mxu0 %v4004
        %v6648 = vpop.f32.mrb[0].mxu0
        %v6649 = vadd.f32 %v6609, %v6648
        %v6650 = vpop.f32.mrb[0].mxu0
        %v6651 = vpop.f32.mrb[0].mxu0
        %v6652 = vpop.f32.mrb[0].mxu0
        %6653 = vdwg.mxu0
        %6654 = vmatprep.subr.bf16.mxu0 0
        %6655 = vmatpush1.bf16.msra.mxu0 %v5758
        %6656 = vmatprep.subr.bf16.mxu0 0
        %6657 = vmatpush1.bf16.msra.mxu0 %v5759
        %6658 = vmatprep.subr.bf16.mxu0 0
        %6659 = vmatpush1.bf16.msra.mxu0 %v5760
        %6660 = vmatprep.subr.bf16.mxu0 0
        %6661 = vmatpush1.bf16.msra.mxu0 %v5761
        %6662 = vmatprep.subr.bf16.mxu0 0
        %6663 = vmatpush1.bf16.msra.mxu0 %v5762
        %6664 = vmatprep.subr.bf16.mxu0 0
        %6665 = vmatpush1.bf16.msra.mxu0 %v5763
        %6666 = vmatprep.subr.bf16.mxu0 0
        %6667 = vmatpush1.bf16.msra.mxu0 %v5764
        %6668 = vmatprep.subr.bf16.mxu0 0
        %6669 = vmatpush1.bf16.msra.mxu0 %v5765
        %6670 = vmatprep.subr.bf16.mxu0 0
        %6671 = vmatpush1.bf16.msra.mxu0 %v5766
        %6672 = vmatprep.subr.bf16.mxu0 0
        %6673 = vmatpush1.bf16.msra.mxu0 %v5767
        %6674 = vmatprep.subr.bf16.mxu0 0
        %6675 = vmatpush1.bf16.msra.mxu0 %v5768
        %6676 = vmatprep.subr.bf16.mxu0 0
        %6677 = vmatpush1.bf16.msra.mxu0 %v5769
        %6678 = vmatprep.subr.bf16.mxu0 0
        %6679 = vmatpush1.bf16.msra.mxu0 %v5770
        %6680 = vmatprep.subr.bf16.mxu0 0
        %6681 = vmatpush1.bf16.msra.mxu0 %v5771
        %6682 = vmatprep.subr.bf16.mxu0 0
        %6683 = vmatpush1.bf16.msra.mxu0 %v5772
        %6684 = vmatprep.subr.bf16.mxu0 0
        %6685 = vmatpush1.bf16.msra.mxu0 %v5773
        %6686 = vmatprep.mubr.bf16.mxu0 %v4044
        %6687 = vmatmul.mubr.bf16.gmra.mrb[0].mxu0 %v4030
        %v6688 = vpop.f32.mrb[0].mxu0
        %v6689 = vadd.f32 %v6649, %v6688
        %v6690 = vpop.f32.mrb[0].mxu0
        %v6691 = vpop.f32.mrb[0].mxu0
        %v6692 = vpop.f32.mrb[0].mxu0
        %6693 = vdwg.mxu0
        %6694 = vmatprep.subr.bf16.mxu0 0
        %6695 = vmatpush1.bf16.msra.mxu0 %v5774
        %6696 = vmatprep.subr.bf16.mxu0 0
        %6697 = vmatpush1.bf16.msra.mxu0 %v5775
        %6698 = vmatprep.subr.bf16.mxu0 0
        %6699 = vmatpush1.bf16.msra.mxu0 %v5776
        %6700 = vmatprep.subr.bf16.mxu0 0
        %6701 = vmatpush1.bf16.msra.mxu0 %v5777
        %6702 = vmatprep.subr.bf16.mxu0 0
        %6703 = vmatpush1.bf16.msra.mxu0 %v5778
        %6704 = vmatprep.subr.bf16.mxu0 0
        %6705 = vmatpush1.bf16.msra.mxu0 %v5779
        %6706 = vmatprep.subr.bf16.mxu0 0
        %6707 = vmatpush1.bf16.msra.mxu0 %v5780
        %6708 = vmatprep.subr.bf16.mxu0 0
        %6709 = vmatpush1.bf16.msra.mxu0 %v5781
        %6710 = vmatprep.subr.bf16.mxu0 0
        %6711 = vmatpush1.bf16.msra.mxu0 %v5782
        %6712 = vmatprep.subr.bf16.mxu0 0
        %6713 = vmatpush1.bf16.msra.mxu0 %v5783
        %6714 = vmatprep.subr.bf16.mxu0 0
        %6715 = vmatpush1.bf16.msra.mxu0 %v5784
        %6716 = vmatprep.subr.bf16.mxu0 0
        %6717 = vmatpush1.bf16.msra.mxu0 %v5785
        %6718 = vmatprep.subr.bf16.mxu0 0
        %6719 = vmatpush1.bf16.msra.mxu0 %v5786
        %6720 = vmatprep.subr.bf16.mxu0 0
        %6721 = vmatpush1.bf16.msra.mxu0 %v5787
        %6722 = vmatprep.subr.bf16.mxu0 0
        %6723 = vmatpush1.bf16.msra.mxu0 %v5788
        %6724 = vmatprep.subr.bf16.mxu0 0
        %6725 = vmatpush1.bf16.msra.mxu0 %v5789
        %6726 = vmatprep.mubr.bf16.mxu0 %v4054
        %6727 = vmatmul.mubr.bf16.gmra.mrb[0].mxu0 %v4052
        %v6728 = vpop.f32.mrb[0].mxu0
        %v6729 = vadd.f32 %v6689, %v6728
        %v6730 = vpop.f32.mrb[0].mxu0
        %v6731 = vpop.f32.mrb[0].mxu0
        %v6732 = vpop.f32.mrb[0].mxu0
        %6733 = vdwg.mxu0
        %6734 = vmatprep.subr.bf16.mxu0 0
        %6735 = vmatpush1.bf16.msra.mxu0 %v5790
        %6736 = vmatprep.subr.bf16.mxu0 0
        %6737 = vmatpush1.bf16.msra.mxu0 %v5791
        %6738 = vmatprep.subr.bf16.mxu0 0
        %6739 = vmatpush1.bf16.msra.mxu0 %v5792
        %6740 = vmatprep.subr.bf16.mxu0 0
        %6741 = vmatpush1.bf16.msra.mxu0 %v5793
        %6742 = vmatprep.subr.bf16.mxu0 0
        %6743 = vmatpush1.bf16.msra.mxu0 %v5794
        %6744 = vmatprep.subr.bf16.mxu0 0
        %6745 = vmatpush1.bf16.msra.mxu0 %v5795
        %6746 = vmatprep.subr.bf16.mxu0 0
        %6747 = vmatpush1.bf16.msra.mxu0 %v5796
        %6748 = vmatprep.subr.bf16.mxu0 0
        %6749 = vmatpush1.bf16.msra.mxu0 %v5797
        %6750 = vmatprep.subr.bf16.mxu0 0
        %6751 = vmatpush1.bf16.msra.mxu0 %v5798
        %6752 = vmatprep.subr.bf16.mxu0 0
        %6753 = vmatpush1.bf16.msra.mxu0 %v5799
        %6754 = vmatprep.subr.bf16.mxu0 0
        %6755 = vmatpush1.bf16.msra.mxu0 %v5800
        %6756 = vmatprep.subr.bf16.mxu0 0
        %6757 = vmatpush1.bf16.msra.mxu0 %v5801
        %6758 = vmatprep.subr.bf16.mxu0 0
        %6759 = vmatpush1.bf16.msra.mxu0 %v5802
        %6760 = vmatprep.subr.bf16.mxu0 0
        %6761 = vmatpush1.bf16.msra.mxu0 %v5803
        %6762 = vmatprep.subr.bf16.mxu0 0
        %6763 = vmatpush1.bf16.msra.mxu0 %v5804
        %6764 = vmatprep.subr.bf16.mxu0 0
        %6765 = vmatpush1.bf16.msra.mxu0 %v5805
        %6766 = vmatprep.mubr.bf16.mxu0 %v4051
        %6767 = vmatmul.mubr.bf16.gmra.mrb[0].mxu0 %v4037
        %v6768 = vpop.f32.mrb[0].mxu0
        %v6769 = vadd.f32 %v6729, %v6768
        %v6770 = vpop.f32.mrb[0].mxu0
        %v6771 = vpop.f32.mrb[0].mxu0
        %v6772 = vpop.f32.mrb[0].mxu0
        %6773 = vdwg.mxu0
        %6774 = vmatprep.subr.bf16.mxu0 0
        %6775 = vmatpush1.bf16.msra.mxu0 %v5806
        %6776 = vmatprep.subr.bf16.mxu0 0
        %6777 = vmatpush1.bf16.msra.mxu0 %v5807
        %6778 = vmatprep.subr.bf16.mxu0 0
        %6779 = vmatpush1.bf16.msra.mxu0 %v5808
        %6780 = vmatprep.subr.bf16.mxu0 0
        %6781 = vmatpush1.bf16.msra.mxu0 %v5809
        %6782 = vmatprep.subr.bf16.mxu0 0
        %6783 = vmatpush1.bf16.msra.mxu0 %v5810
        %6784 = vmatprep.subr.bf16.mxu0 0
        %6785 = vmatpush1.bf16.msra.mxu0 %v5811
        %6786 = vmatprep.subr.bf16.mxu0 0
        %6787 = vmatpush1.bf16.msra.mxu0 %v5812
        %6788 = vmatprep.subr.bf16.mxu0 0
        %6789 = vmatpush1.bf16.msra.mxu0 %v5813
        %6790 = vmatprep.subr.bf16.mxu0 0
        %6791 = vmatpush1.bf16.msra.mxu0 %v5814
        %6792 = vmatprep.subr.bf16.mxu0 0
        %6793 = vmatpush1.bf16.msra.mxu0 %v5815
        %6794 = vmatprep.subr.bf16.mxu0 0
        %6795 = vmatpush1.bf16.msra.mxu0 %v5816
        %6796 = vmatprep.subr.bf16.mxu0 0
        %6797 = vmatpush1.bf16.msra.mxu0 %v5817
        %6798 = vmatprep.subr.bf16.mxu0 0
        %6799 = vmatpush1.bf16.msra.mxu0 %v5818
        %6800 = vmatprep.subr.bf16.mxu0 0
        %6801 = vmatpush1.bf16.msra.mxu0 %v5819
        %6802 = vmatprep.subr.bf16.mxu0 0
        %6803 = vmatpush1.bf16.msra.mxu0 %v5820
        %6804 = vmatprep.subr.bf16.mxu0 0
        %6805 = vmatpush1.bf16.msra.mxu0 %v5821
        %6806 = vmatprep.mubr.bf16.mxu0 %v4055
        %6807 = vmatmul.mubr.bf16.gmra.mrb[0].mxu0 %v4053
        %v6808 = vpop.f32.mrb[0].mxu0
        %v6809 = vadd.f32 %v6769, %v6808
        %v6810 = vpop.f32.mrb[0].mxu0
        %v6811 = vpop.f32.mrb[0].mxu0
        %v6812 = vpop.f32.mrb[0].mxu0
        %6813 = vdwg.mxu0
        %6814 = vmatprep.subr.bf16.mxu0 0
        %6815 = vmatpush1.bf16.msra.mxu0 %v5822
        %6816 = vmatprep.subr.bf16.mxu0 0
        %6817 = vmatpush1.bf16.msra.mxu0 %v5823
        %6818 = vmatprep.subr.bf16.mxu0 0
        %6819 = vmatpush1.bf16.msra.mxu0 %v5824
        %6820 = vmatprep.subr.bf16.mxu0 0
        %6821 = vmatpush1.bf16.msra.mxu0 %v5825
        %6822 = vmatprep.subr.bf16.mxu0 0
        %6823 = vmatpush1.bf16.msra.mxu0 %v5826
        %6824 = vmatprep.subr.bf16.mxu0 0
        %6825 = vmatpush1.bf16.msra.mxu0 %v5827
        %6826 = vmatprep.subr.bf16.mxu0 0
        %6827 = vmatpush1.bf16.msra.mxu0 %v5828
        %6828 = vmatprep.subr.bf16.mxu0 0
        %6829 = vmatpush1.bf16.msra.mxu0 %v5829
        %6830 = vmatprep.subr.bf16.mxu0 0
        %6831 = vmatpush1.bf16.msra.mxu0 %v5830
        %6832 = vmatprep.subr.bf16.mxu0 0
        %6833 = vmatpush1.bf16.msra.mxu0 %v5831
        %6834 = vmatprep.subr.bf16.mxu0 0
        %6835 = vmatpush1.bf16.msra.mxu0 %v5832
        %6836 = vmatprep.subr.bf16.mxu0 0
        %6837 = vmatpush1.bf16.msra.mxu0 %v5833
        %6838 = vmatprep.subr.bf16.mxu0 0
        %6839 = vmatpush1.bf16.msra.mxu0 %v5834
        %6840 = vmatprep.subr.bf16.mxu0 0
        %6841 = vmatpush1.bf16.msra.mxu0 %v5835
        %6842 = vmatprep.subr.bf16.mxu0 0
        %6843 = vmatpush1.bf16.msra.mxu0 %v5836
        %6844 = vmatprep.subr.bf16.mxu0 0
        %6845 = vmatpush1.bf16.msra.mxu0 %v5837
        %6846 = vmatprep.mubr.bf16.mxu0 %v4093
        %6847 = vmatmul.mubr.bf16.gmra.mrb[0].mxu0 %v4079
        %v6848 = vpop.f32.mrb[0].mxu0
        %v6849 = vadd.f32 %v6809, %v6848
        %v6850 = vpop.f32.mrb[0].mxu0
        %v6851 = vpop.f32.mrb[0].mxu0
        %v6852 = vpop.f32.mrb[0].mxu0
        %6853 = vdwg.mxu0
        %6854 = vmatprep.subr.bf16.mxu0 0
        %6855 = vmatpush1.bf16.msra.mxu0 %v5838
        %6856 = vmatprep.subr.bf16.mxu0 0
        %6857 = vmatpush1.bf16.msra.mxu0 %v5839
        %6858 = vmatprep.subr.bf16.mxu0 0
        %6859 = vmatpush1.bf16.msra.mxu0 %v5840
        %6860 = vmatprep.subr.bf16.mxu0 0
        %6861 = vmatpush1.bf16.msra.mxu0 %v5841
        %6862 = vmatprep.subr.bf16.mxu0 0
        %6863 = vmatpush1.bf16.msra.mxu0 %v5842
        %6864 = vmatprep.subr.bf16.mxu0 0
        %6865 = vmatpush1.bf16.msra.mxu0 %v5843
        %6866 = vmatprep.subr.bf16.mxu0 0
        %6867 = vmatpush1.bf16.msra.mxu0 %v5844
        %6868 = vmatprep.subr.bf16.mxu0 0
        %6869 = vmatpush1.bf16.msra.mxu0 %v5845
        %6870 = vmatprep.subr.bf16.mxu0 0
        %6871 = vmatpush1.bf16.msra.mxu0 %v5846
        %6872 = vmatprep.subr.bf16.mxu0 0
        %6873 = vmatpush1.bf16.msra.mxu0 %v5847
        %6874 = vmatprep.subr.bf16.mxu0 0
        %6875 = vmatpush1.bf16.msra.mxu0 %v5848
        %6876 = vmatprep.subr.bf16.mxu0 0
        %6877 = vmatpush1.bf16.msra.mxu0 %v5849
        %6878 = vmatprep.subr.bf16.mxu0 0
        %6879 = vmatpush1.bf16.msra.mxu0 %v5850
        %6880 = vmatprep.subr.bf16.mxu0 0
        %6881 = vmatpush1.bf16.msra.mxu0 %v5851
        %6882 = vmatprep.subr.bf16.mxu0 0
        %6883 = vmatpush1.bf16.msra.mxu0 %v5852
        %6884 = vmatprep.subr.bf16.mxu0 0
        %6885 = vmatpush1.bf16.msra.mxu0 %v5853
        %6886 = vmatprep.mubr.bf16.mxu0 %v4103
        %6887 = vmatmul.mubr.bf16.gmra.mrb[0].mxu0 %v4101
        %v6888 = vpop.f32.mrb[0].mxu0
        %v6889 = vadd.f32 %v6849, %v6888
        %v6890 = vpop.f32.mrb[0].mxu0
        %v6891 = vpop.f32.mrb[0].mxu0
        %v6892 = vpop.f32.mrb[0].mxu0
        %6893 = vdwg.mxu0
        %6894 = vmatprep.subr.bf16.mxu0 0
        %6895 = vmatpush1.bf16.msra.mxu0 %v5854
        %6896 = vmatprep.subr.bf16.mxu0 0
        %6897 = vmatpush1.bf16.msra.mxu0 %v5855
        %6898 = vmatprep.subr.bf16.mxu0 0
        %6899 = vmatpush1.bf16.msra.mxu0 %v5856
        %6900 = vmatprep.subr.bf16.mxu0 0
        %6901 = vmatpush1.bf16.msra.mxu0 %v5857
        %6902 = vmatprep.subr.bf16.mxu0 0
        %6903 = vmatpush1.bf16.msra.mxu0 %v5858
        %6904 = vmatprep.subr.bf16.mxu0 0
        %6905 = vmatpush1.bf16.msra.mxu0 %v5859
        %6906 = vmatprep.subr.bf16.mxu0 0
        %6907 = vmatpush1.bf16.msra.mxu0 %v5860
        %6908 = vmatprep.subr.bf16.mxu0 0
        %6909 = vmatpush1.bf16.msra.mxu0 %v5861
        %6910 = vmatprep.subr.bf16.mxu0 0
        %6911 = vmatpush1.bf16.msra.mxu0 %v5862
        %6912 = vmatprep.subr.bf16.mxu0 0
        %6913 = vmatpush1.bf16.msra.mxu0 %v5863
        %6914 = vmatprep.subr.bf16.mxu0 0
        %6915 = vmatpush1.bf16.msra.mxu0 %v5864
        %6916 = vmatprep.subr.bf16.mxu0 0
        %6917 = vmatpush1.bf16.msra.mxu0 %v5865
        %6918 = vmatprep.subr.bf16.mxu0 0
        %6919 = vmatpush1.bf16.msra.mxu0 %v5866
        %6920 = vmatprep.subr.bf16.mxu0 0
        %6921 = vmatpush1.bf16.msra.mxu0 %v5867
        %6922 = vmatprep.subr.bf16.mxu0 0
        %6923 = vmatpush1.bf16.msra.mxu0 %v5868
        %6924 = vmatprep.subr.bf16.mxu0 0
        %6925 = vmatpush1.bf16.msra.mxu0 %v5869
        %6926 = vmatprep.mubr.bf16.mxu0 %v4100
        %6927 = vmatmul.mubr.bf16.gmra.mrb[0].mxu0 %v4086
        %v6928 = vpop.f32.mrb[0].mxu0
        %v6929 = vadd.f32 %v6889, %v6928
        %v6930 = vpop.f32.mrb[0].mxu0
        %v6931 = vpop.f32.mrb[0].mxu0
        %v6932 = vpop.f32.mrb[0].mxu0
        %6933 = vdwg.mxu0
        %6934 = vmatprep.subr.bf16.mxu0 0
        %6935 = vmatpush1.bf16.msra.mxu0 %v5870
        %6936 = vmatprep.subr.bf16.mxu0 0
        %6937 = vmatpush1.bf16.msra.mxu0 %v5871
        %6938 = vmatprep.subr.bf16.mxu0 0
        %6939 = vmatpush1.bf16.msra.mxu0 %v5872
        %6940 = vmatprep.subr.bf16.mxu0 0
        %6941 = vmatpush1.bf16.msra.mxu0 %v5873
        %6942 = vmatprep.subr.bf16.mxu0 0
        %6943 = vmatpush1.bf16.msra.mxu0 %v5874
        %6944 = vmatprep.subr.bf16.mxu0 0
        %6945 = vmatpush1.bf16.msra.mxu0 %v5875
        %6946 = vmatprep.subr.bf16.mxu0 0
        %6947 = vmatpush1.bf16.msra.mxu0 %v5876
        %6948 = vmatprep.subr.bf16.mxu0 0
        %6949 = vmatpush1.bf16.msra.mxu0 %v5877
        %6950 = vmatprep.subr.bf16.mxu0 0
        %6951 = vmatpush1.bf16.msra.mxu0 %v5878
        %6952 = vmatprep.subr.bf16.mxu0 0
        %6953 = vmatpush1.bf16.msra.mxu0 %v5879
        %6954 = vmatprep.subr.bf16.mxu0 0
        %6955 = vmatpush1.bf16.msra.mxu0 %v5880
        %6956 = vmatprep.subr.bf16.mxu0 0
        %6957 = vmatpush1.bf16.msra.mxu0 %v5881
        %6958 = vmatprep.subr.bf16.mxu0 0
        %6959 = vmatpush1.bf16.msra.mxu0 %v5882
        %6960 = vmatprep.subr.bf16.mxu0 0
        %6961 = vmatpush1.bf16.msra.mxu0 %v5883
        %6962 = vmatprep.subr.bf16.mxu0 0
        %6963 = vmatpush1.bf16.msra.mxu0 %v5884
        %6964 = vmatprep.subr.bf16.mxu0 0
        %6965 = vmatpush1.bf16.msra.mxu0 %v5885
        %6966 = vmatprep.mubr.bf16.mxu0 %v4104
        %6967 = vmatmul.mubr.bf16.gmra.mrb[0].mxu0 %v4102
        %v6968 = vpop.f32.mrb[0].mxu0
        %v6969 = vadd.f32 %v6929, %v6968
        %v6970 = vpop.f32.mrb[0].mxu0
        %v6971 = vpop.f32.mrb[0].mxu0
        %v6972 = vpop.f32.mrb[0].mxu0
        %6973 = vdwg.mxu0
        %6974 = vmatprep.subr.bf16.mxu0 0
        %6975 = vmatpush1.bf16.msra.mxu0 %v5886
        %6976 = vmatprep.subr.bf16.mxu0 0
        %6977 = vmatpush1.bf16.msra.mxu0 %v5887
        %6978 = vmatprep.subr.bf16.mxu0 0
        %6979 = vmatpush1.bf16.msra.mxu0 %v5888
        %6980 = vmatprep.subr.bf16.mxu0 0
        %6981 = vmatpush1.bf16.msra.mxu0 %v5889
        %6982 = vmatprep.subr.bf16.mxu0 0
        %6983 = vmatpush1.bf16.msra.mxu0 %v5890
        %6984 = vmatprep.subr.bf16.mxu0 0
        %6985 = vmatpush1.bf16.msra.mxu0 %v5891
        %6986 = vmatprep.subr.bf16.mxu0 0
        %6987 = vmatpush1.bf16.msra.mxu0 %v5892
        %6988 = vmatprep.subr.bf16.mxu0 0
        %6989 = vmatpush1.bf16.msra.mxu0 %v5893
        %6990 = vmatprep.subr.bf16.mxu0 0
        %6991 = vmatpush1.bf16.msra.mxu0 %v5894
        %6992 = vmatprep.subr.bf16.mxu0 0
        %6993 = vmatpush1.bf16.msra.mxu0 %v5895
        %6994 = vmatprep.subr.bf16.mxu0 0
        %6995 = vmatpush1.bf16.msra.mxu0 %v5896
        %6996 = vmatprep.subr.bf16.mxu0 0
        %6997 = vmatpush1.bf16.msra.mxu0 %v5897
        %6998 = vmatprep.subr.bf16.mxu0 0
        %6999 = vmatpush1.bf16.msra.mxu0 %v5898
        %7000 = vmatprep.subr.bf16.mxu0 0
        %7001 = vmatpush1.bf16.msra.mxu0 %v5899
        %7002 = vmatprep.subr.bf16.mxu0 0
        %7003 = vmatpush1.bf16.msra.mxu0 %v5900
        %7004 = vmatprep.subr.bf16.mxu0 0
        %7005 = vmatpush1.bf16.msra.mxu0 %v5901
        %7006 = vmatprep.mubr.bf16.mxu0 %v4142
        %7007 = vmatmul.mubr.bf16.gmra.mrb[0].mxu0 %v4128
        %v7008 = vpop.f32.mrb[0].mxu0
        %v7009 = vadd.f32 %v6969, %v7008
        %v7010 = vpop.f32.mrb[0].mxu0
        %v7011 = vpop.f32.mrb[0].mxu0
        %v7012 = vpop.f32.mrb[0].mxu0
        %7013 = vdwg.mxu0
        %7014 = vmatprep.subr.bf16.mxu0 0
        %7015 = vmatpush1.bf16.msra.mxu0 %v5902
        %7016 = vmatprep.subr.bf16.mxu0 0
        %7017 = vmatpush1.bf16.msra.mxu0 %v5903
        %7018 = vmatprep.subr.bf16.mxu0 0
        %7019 = vmatpush1.bf16.msra.mxu0 %v5904
        %7020 = vmatprep.subr.bf16.mxu0 0
        %7021 = vmatpush1.bf16.msra.mxu0 %v5905
        %7022 = vmatprep.subr.bf16.mxu0 0
        %7023 = vmatpush1.bf16.msra.mxu0 %v5906
        %7024 = vmatprep.subr.bf16.mxu0 0
        %7025 = vmatpush1.bf16.msra.mxu0 %v5907
        %7026 = vmatprep.subr.bf16.mxu0 0
        %7027 = vmatpush1.bf16.msra.mxu0 %v5908
        %7028 = vmatprep.subr.bf16.mxu0 0
        %7029 = vmatpush1.bf16.msra.mxu0 %v5909
        %7030 = vmatprep.subr.bf16.mxu0 0
        %7031 = vmatpush1.bf16.msra.mxu0 %v5910
        %7032 = vmatprep.subr.bf16.mxu0 0
        %7033 = vmatpush1.bf16.msra.mxu0 %v5911
        %7034 = vmatprep.subr.bf16.mxu0 0
        %7035 = vmatpush1.bf16.msra.mxu0 %v5912
        %7036 = vmatprep.subr.bf16.mxu0 0
        %7037 = vmatpush1.bf16.msra.mxu0 %v5913
        %7038 = vmatprep.subr.bf16.mxu0 0
        %7039 = vmatpush1.bf16.msra.mxu0 %v5914
        %7040 = vmatprep.subr.bf16.mxu0 0
        %7041 = vmatpush1.bf16.msra.mxu0 %v5915
        %7042 = vmatprep.subr.bf16.mxu0 0
        %7043 = vmatpush1.bf16.msra.mxu0 %v5916
        %7044 = vmatprep.subr.bf16.mxu0 0
        %7045 = vmatpush1.bf16.msra.mxu0 %v5917
        %7046 = vmatprep.mubr.bf16.mxu0 %v4152
        %7047 = vmatmul.mubr.bf16.gmra.mrb[0].mxu0 %v4150
        %v7048 = vpop.f32.mrb[0].mxu0
        %v7049 = vadd.f32 %v7009, %v7048
        %v7050 = vpop.f32.mrb[0].mxu0
        %v7051 = vpop.f32.mrb[0].mxu0
        %v7052 = vpop.f32.mrb[0].mxu0
        %7053 = vdwg.mxu0
        %7054 = vmatprep.subr.bf16.mxu0 0
        %7055 = vmatpush1.bf16.msra.mxu0 %v5918
        %7056 = vmatprep.subr.bf16.mxu0 0
        %7057 = vmatpush1.bf16.msra.mxu0 %v5919
        %7058 = vmatprep.subr.bf16.mxu0 0
        %7059 = vmatpush1.bf16.msra.mxu0 %v5920
        %7060 = vmatprep.subr.bf16.mxu0 0
        %7061 = vmatpush1.bf16.msra.mxu0 %v5921
        %7062 = vmatprep.subr.bf16.mxu0 0
        %7063 = vmatpush1.bf16.msra.mxu0 %v5922
        %7064 = vmatprep.subr.bf16.mxu0 0
        %7065 = vmatpush1.bf16.msra.mxu0 %v5923
        %7066 = vmatprep.subr.bf16.mxu0 0
        %7067 = vmatpush1.bf16.msra.mxu0 %v5924
        %7068 = vmatprep.subr.bf16.mxu0 0
        %7069 = vmatpush1.bf16.msra.mxu0 %v5925
        %7070 = vmatprep.subr.bf16.mxu0 0
        %7071 = vmatpush1.bf16.msra.mxu0 %v5926
        %7072 = vmatprep.subr.bf16.mxu0 0
        %7073 = vmatpush1.bf16.msra.mxu0 %v5927
        %7074 = vmatprep.subr.bf16.mxu0 0
        %7075 = vmatpush1.bf16.msra.mxu0 %v5928
        %7076 = vmatprep.subr.bf16.mxu0 0
        %7077 = vmatpush1.bf16.msra.mxu0 %v5929
        %7078 = vmatprep.subr.bf16.mxu0 0
        %7079 = vmatpush1.bf16.msra.mxu0 %v5930
        %7080 = vmatprep.subr.bf16.mxu0 0
        %7081 = vmatpush1.bf16.msra.mxu0 %v5931
        %7082 = vmatprep.subr.bf16.mxu0 0
        %7083 = vmatpush1.bf16.msra.mxu0 %v5932
        %7084 = vmatprep.subr.bf16.mxu0 0
        %7085 = vmatpush1.bf16.msra.mxu0 %v5933
        %7086 = vmatprep.mubr.bf16.mxu0 %v4149
        %7087 = vmatmul.mubr.bf16.gmra.mrb[0].mxu0 %v4135
        %v7088 = vpop.f32.mrb[0].mxu0
        %v7089 = vadd.f32 %v7049, %v7088
        %v7090 = vpop.f32.mrb[0].mxu0
        %v7091 = vpop.f32.mrb[0].mxu0
        %v7092 = vpop.f32.mrb[0].mxu0
        %7093 = vdwg.mxu0
        %7094 = vmatprep.subr.bf16.mxu0 0
        %7095 = vmatpush1.bf16.msra.mxu0 %v5934
        %7096 = vmatprep.subr.bf16.mxu0 0
        %7097 = vmatpush1.bf16.msra.mxu0 %v5935
        %7098 = vmatprep.subr.bf16.mxu0 0
        %7099 = vmatpush1.bf16.msra.mxu0 %v5936
        %7100 = vmatprep.subr.bf16.mxu0 0
        %7101 = vmatpush1.bf16.msra.mxu0 %v5937
        %7102 = vmatprep.subr.bf16.mxu0 0
        %7103 = vmatpush1.bf16.msra.mxu0 %v5938
        %7104 = vmatprep.subr.bf16.mxu0 0
        %7105 = vmatpush1.bf16.msra.mxu0 %v5939
        %7106 = vmatprep.subr.bf16.mxu0 0
        %7107 = vmatpush1.bf16.msra.mxu0 %v5940
        %7108 = vmatprep.subr.bf16.mxu0 0
        %7109 = vmatpush1.bf16.msra.mxu0 %v5941
        %7110 = vmatprep.subr.bf16.mxu0 0
        %7111 = vmatpush1.bf16.msra.mxu0 %v5942
        %7112 = vmatprep.subr.bf16.mxu0 0
        %7113 = vmatpush1.bf16.msra.mxu0 %v5943
        %7114 = vmatprep.subr.bf16.mxu0 0
        %7115 = vmatpush1.bf16.msra.mxu0 %v5944
        %7116 = vmatprep.subr.bf16.mxu0 0
        %7117 = vmatpush1.bf16.msra.mxu0 %v5945
        %7118 = vmatprep.subr.bf16.mxu0 0
        %7119 = vmatpush1.bf16.msra.mxu0 %v5946
        %7120 = vmatprep.subr.bf16.mxu0 0
        %7121 = vmatpush1.bf16.msra.mxu0 %v5947
        %7122 = vmatprep.subr.bf16.mxu0 0
        %7123 = vmatpush1.bf16.msra.mxu0 %v5948
        %7124 = vmatprep.subr.bf16.mxu0 0
        %7125 = vmatpush1.bf16.msra.mxu0 %v5949
        %7126 = vmatprep.mubr.bf16.mxu0 %v4153
        %7127 = vmatmul.mubr.bf16.gmra.mrb[0].mxu0 %v4151
        %v7128 = vpop.f32.mrb[0].mxu0
        %v7129 = vadd.f32 %v7089, %v7128
        %v7130 = vpop.f32.mrb[0].mxu0
        %v7131 = vpop.f32.mrb[0].mxu0
        %v7132 = vpop.f32.mrb[0].mxu0
        %7133 = vdwg.mxu0
        %7134 = vmatprep.subr.bf16.mxu0 0
        %7135 = vmatpush1.bf16.msra.mxu0 %v5950
        %7136 = vmatprep.subr.bf16.mxu0 0
        %7137 = vmatpush1.bf16.msra.mxu0 %v5951
        %7138 = vmatprep.subr.bf16.mxu0 0
        %7139 = vmatpush1.bf16.msra.mxu0 %v5952
        %7140 = vmatprep.subr.bf16.mxu0 0
        %7141 = vmatpush1.bf16.msra.mxu0 %v5953
        %7142 = vmatprep.subr.bf16.mxu0 0
        %7143 = vmatpush1.bf16.msra.mxu0 %v5954
        %7144 = vmatprep.subr.bf16.mxu0 0
        %7145 = vmatpush1.bf16.msra.mxu0 %v5955
        %7146 = vmatprep.subr.bf16.mxu0 0
        %7147 = vmatpush1.bf16.msra.mxu0 %v5956
        %7148 = vmatprep.subr.bf16.mxu0 0
        %7149 = vmatpush1.bf16.msra.mxu0 %v5957
        %7150 = vmatprep.subr.bf16.mxu0 0
        %7151 = vmatpush1.bf16.msra.mxu0 %v5958
        %7152 = vmatprep.subr.bf16.mxu0 0
        %7153 = vmatpush1.bf16.msra.mxu0 %v5959
        %7154 = vmatprep.subr.bf16.mxu0 0
        %7155 = vmatpush1.bf16.msra.mxu0 %v5960
        %7156 = vmatprep.subr.bf16.mxu0 0
        %7157 = vmatpush1.bf16.msra.mxu0 %v5961
        %7158 = vmatprep.subr.bf16.mxu0 0
        %7159 = vmatpush1.bf16.msra.mxu0 %v5962
        %7160 = vmatprep.subr.bf16.mxu0 0
        %7161 = vmatpush1.bf16.msra.mxu0 %v5963
        %7162 = vmatprep.subr.bf16.mxu0 0
        %7163 = vmatpush1.bf16.msra.mxu0 %v5964
        %7164 = vmatprep.subr.bf16.mxu0 0
        %7165 = vmatpush1.bf16.msra.mxu0 %v5965
        %7166 = vmatprep.mubr.bf16.mxu0 %v4175
        %7167 = vmatmul.mubr.bf16.gmra.mrb[0].mxu0 %v4168
        %v7168 = vpop.f32.mrb[0].mxu0
        %v7169 = vadd.f32 %v7129, %v7168
        %v7170 = vpop.f32.mrb[0].mxu0
        %v7171 = vpop.f32.mrb[0].mxu0
        %v7172 = vpop.f32.mrb[0].mxu0
        %7173 = vdwg.mxu0
        %7174 = vmatprep.subr.bf16.mxu0 0
        %7175 = vmatpush1.bf16.msra.mxu0 %v5966
        %7176 = vmatprep.subr.bf16.mxu0 0
        %7177 = vmatpush1.bf16.msra.mxu0 %v5967
        %7178 = vmatprep.subr.bf16.mxu0 0
        %7179 = vmatpush1.bf16.msra.mxu0 %v5968
        %7180 = vmatprep.subr.bf16.mxu0 0
        %7181 = vmatpush1.bf16.msra.mxu0 %v5969
        %7182 = vmatprep.subr.bf16.mxu0 0
        %7183 = vmatpush1.bf16.msra.mxu0 %v5970
        %7184 = vmatprep.subr.bf16.mxu0 0
        %7185 = vmatpush1.bf16.msra.mxu0 %v5971
        %7186 = vmatprep.subr.bf16.mxu0 0
        %7187 = vmatpush1.bf16.msra.mxu0 %v5972
        %7188 = vmatprep.subr.bf16.mxu0 0
        %7189 = vmatpush1.bf16.msra.mxu0 %v5973
        %7190 = vmatprep.subr.bf16.mxu0 0
        %7191 = vmatpush1.bf16.msra.mxu0 %v5974
        %7192 = vmatprep.subr.bf16.mxu0 0
        %7193 = vmatpush1.bf16.msra.mxu0 %v5975
        %7194 = vmatprep.subr.bf16.mxu0 0
        %7195 = vmatpush1.bf16.msra.mxu0 %v5976
        %7196 = vmatprep.subr.bf16.mxu0 0
        %7197 = vmatpush1.bf16.msra.mxu0 %v5977
        %7198 = vmatprep.subr.bf16.mxu0 0
        %7199 = vmatpush1.bf16.msra.mxu0 %v5978
        %7200 = vmatprep.subr.bf16.mxu0 0
        %7201 = vmatpush1.bf16.msra.mxu0 %v5979
        %7202 = vmatprep.subr.bf16.mxu0 0
        %7203 = vmatpush1.bf16.msra.mxu0 %v5980
        %7204 = vmatprep.subr.bf16.mxu0 0
        %7205 = vmatpush1.bf16.msra.mxu0 %v5981
        %7206 = vmatprep.mubr.bf16.mxu0 %v4177
        %7207 = vmatmul.mubr.bf16.gmra.mrb[0].mxu0 %v4176
        %v7208 = vpop.f32.mrb[0].mxu0
        %v7209 = vadd.f32 %v7169, %v7208
        %v7210 = vpop.f32.mrb[0].mxu0
        %v7211 = vpop.f32.mrb[0].mxu0
        %v7212 = vpop.f32.mrb[0].mxu0
        %7213 = vdwg.mxu0
        %7214 = vst [vmem:[%s235] sm:$0x1] %v7209
        %p7215 = scmp.lt.s32.totalorder %s17, 1
        %s7216 = scalar_select %p7215, %s17, 1
        %s7217 = scalar_lea.vmem %s4, %s7216
        // Predicated region
        $region49: #{resnet_forward.1} parent=35 // pred_check
          %p7218 = pneg %p124
        $region50: #{resnet_forward.1} parent=35 // pred_check_branch
          %7220 = sbr.rel (%p7218) target = $region52
        $region51: #{resnet_forward.1} parent=35 // pred_region
          _
        $region52: #{resnet_forward.1} parent=35 // pred_fallthru
          _
      $region36: #{resnet_forward.1} parent=5 // pred_fallthru
        _
      %p7221 = scmp.le.s32.totalorder 2, %s12
      // Predicated region
      $region53: #{resnet_forward.1} parent=5 // pred_check
        %p7222 = pneg %p7221
      $region54: #{resnet_forward.1} parent=5 // pred_check_branch
        %7224 = sbr.rel (%p7222) target = $region56
      $region55: #{resnet_forward.1} parent=5 // pred_region
        %s7225 = ssub.s32 %s12, 2
        // Predicated region
        $region57: #{resnet_forward.1} parent=55 // pred_check
          %p7226 = pneg %p130
        $region58: #{resnet_forward.1} parent=55 // pred_check_branch
          %7228 = sbr.rel (%p7226) target = $region60
        $region59: #{resnet_forward.1} parent=55 // pred_region
          %p7229 = scmp.lt.s32.totalorder %s18, 1
          %s7230 = scalar_select %p7229, %s18, 1
          %s7231 = scalar_lea.vmem %s4, %s7230
        $region60: #{resnet_forward.1} parent=55 // pred_fallthru
          _
      $region56: #{resnet_forward.1} parent=5 // pred_fallthru
        _
    $region6: #{resnet_forward.1} parent=1 // loop_footer
      %s16 = sadd.s32 1, %s12
    $region7: #{resnet_forward.1} parent=1 // loop_footer_branch
      %11 = sbr.rel target = $region3
    $region8: #{resnet_forward.1} parent=1 // loop_exit
      _
    %7232 = vsyncpa [#allocation6], 1
    %s7233 = scalar_lea.sflag [#allocation6], 1
    %7234 = vsyncpa %s7233, 1
    %7235 = vsyncpa [#allocation8], 1

</llo_original>
